<compile_context>
chip_gen: v7x
topology: tpu7x:2x2x1
jax: 0.10.0
libtpu: 0.0.40
codegen_flags: <defaults>
</compile_context>

<pallas_src>
import functools

import numpy as np
import jax
import jax.numpy as jnp
from jax.experimental import pallas as pl
from jax.experimental.pallas import tpu as pltpu

BONE_PAIRS = [(1, 2), (2, 21), (3, 21), (4, 3), (5, 21), (6, 5), (7, 6), (8, 7),
              (9, 21), (10, 9), (11, 10), (12, 11), (13, 1), (14, 13), (15, 14),
              (16, 15), (17, 1), (18, 17), (19, 18), (20, 19), (21, 21), (22, 23),
              (23, 8), (24, 25), (25, 12)]


# ---------------------------------------------------------------------------
# Kernel A: motion + bone view construction for the stacked (query ++ key) batch.
#   x      : (R, V) rows ordered (qk, n, c, m, t) with T innermost, V on lanes
#   x_next : same array shifted by one frame (row r holds frame t+1)
#   bmat   : (V, V) with bmat[u, v] = [u == v] - [u == parent(v)]
#   mot[r] = x[r+1] - x[r] if (r % T) < T-1 else 0      (single full-tile store)
#   bone   = x @ bmat                                    (one 2-D MXU matmul)
# ---------------------------------------------------------------------------
def view_kernel(x_ref, xnext_ref, bmat_ref, mot_ref, bone_ref, *, T):
    x = x_ref[...]
    t_idx = jax.lax.broadcasted_iota(jnp.int32, x.shape, 0) % T
    mot_ref[...] = jnp.where(t_idx < T - 1, xnext_ref[...] - x, 0.0)
    bone_ref[...] = jnp.dot(x, bmat_ref[...], preferred_element_type=jnp.float32)


def build_views(x_rows, x_next, bmat, T):
    R, V = x_rows.shape
    return pl.pallas_call(
        functools.partial(view_kernel, T=T),
        out_shape=(
            jax.ShapeDtypeStruct((R, V), jnp.float32),   # motion rows
            jax.ShapeDtypeStruct((R, V), jnp.float32),   # bone rows
        ),
        grid=(1,),
        in_specs=[
            pl.BlockSpec((R, V), lambda i: (0, 0)),
            pl.BlockSpec((R, V), lambda i: (0, 0)),
            pl.BlockSpec((V, V), lambda i: (0, 0)),
        ],
        out_specs=(
            pl.BlockSpec((R, V), lambda i: (0, 0)),
            pl.BlockSpec((R, V), lambda i: (0, 0)),
        ),
        compiler_params=pltpu.CompilerParams(dimension_semantics=("arbitrary",)),
    )(x_rows, x_next, bmat)


# ---------------------------------------------------------------------------
# Kernel B: fused {EMA momentum update, q/k encoder heads, F.normalize, MoCo logits}
# per view.  grid=(3,) over {joint, motion, bone}; all per-view selection is done via
# BlockSpec index maps (no program_id needed).
# ---------------------------------------------------------------------------
def moco_fused_kernel(lhs_ref, wq1_ref, bq1_ref, wq2_ref, bq2_ref,
                      wk1_ref, bk1_ref, wk2_ref, bk2_ref, queue_ref,
                      lpos_ref, lneg_ref, kfeat_ref,
                      wk1_out, bk1_out, wk2_out, bk2_out,
                      *, momentum, inv_temp, batch):
    mm = momentum
    # Momentum (EMA) update of the key-encoder params, done in-kernel so each weight
    # tensor is read from HBM exactly once per step; updated state is persisted via
    # the outputs (the reference mutates persistent key-encoder buffers).
    wk1 = mm * wk1_ref[...] + (1.0 - mm) * wq1_ref[...]
    bk1 = mm * bk1_ref[...] + (1.0 - mm) * bq1_ref[...]
    wk2 = mm * wk2_ref[...] + (1.0 - mm) * wq2_ref[...]
    bk2 = mm * bk2_ref[...] + (1.0 - mm) * bq2_ref[...]
    wk1_out[...] = wk1
    bk1_out[...] = bk1
    wk2_out[...] = wk2
    bk2_out[...] = bk2

    x = lhs_ref[...]                 # (2N, Din): rows [0, N) = query, [N, 2N) = key
    xq = x[:batch, :]
    xk = x[batch:, :]

    def head(xx, w1, b1, w2, b2):
        # TODO(synk): stand-in for the ST-GCN base_encoder.  bf16 MXU matmuls with f32
        # accumulation; weights stay f32 in HBM so the EMA state is exact.
        h = jnp.dot(xx.astype(jnp.bfloat16), w1.astype(jnp.bfloat16),
                    preferred_element_type=jnp.float32) + b1
        h = jnp.maximum(h, 0.0)
        y = jnp.dot(h.astype(jnp.bfloat16), w2.astype(jnp.bfloat16),
                    preferred_element_type=jnp.float32) + b2
        # F.normalize(dim=1) with eps = 1e-12  (rsqrt of the clamped squared norm -> EUP)
        ssq = jnp.sum(y * y, axis=1, keepdims=True)
        return y * jax.lax.rsqrt(jnp.maximum(ssq, 1e-24))

    qf = head(xq, wq1_ref[...], bq1_ref[...], wq2_ref[...], bq2_ref[...])
    kf = head(xk, wk1, bk1, wk2, bk2)

    # MoCo logits, temperature folded in.  l_neg is lane-dense (K multiple of 128);
    # the 1+K concat happens in the wrapper so no masked 257-wide stores are issued.
    lpos_ref[...] = jnp.sum(qf * kf, axis=1, keepdims=True) * inv_temp
    lneg_ref[...] = jnp.dot(qf, queue_ref[...],
                            preferred_element_type=jnp.float32) * inv_temp
    kfeat_ref[...] = kf              # key features for the queue enqueue


def moco_fused(lhs, params, queues, *, momentum, temperature):
    # NOTE: at realistic MoCo queue sizes (K = 32768+) the queue's K axis should get its
    # own grid dimension (e.g. 2048-column tiles) to stay within v7x's 64 MiB VMEM;
    # at K = 256 a full-array block is fine.
    three, twoN, Din = lhs.shape
    assert three == 3
    N = twoN // 2
    H = params["q_w1"].shape[-1]
    Fdim = params["q_w2"].shape[-1]
    K = queues.shape[-1]

    def vblk(*shape):
        # leading view dim squeezed out of the kernel ref; index_map selects the view
        return pl.BlockSpec((None,) + shape, lambda v: (v,) + (0,) * len(shape))

    out_shapes = (
        jax.ShapeDtypeStruct((3, N, 1), jnp.float32),      # l_pos / T
        jax.ShapeDtypeStruct((3, N, K), jnp.float32),      # l_neg / T   (lane-dense)
        jax.ShapeDtypeStruct((3, N, Fdim), jnp.float32),   # key features
        jax.ShapeDtypeStruct((3, Din, H), jnp.float32),    # EMA'd key W1
        jax.ShapeDtypeStruct((3, 1, H), jnp.float32),      # EMA'd key b1
        jax.ShapeDtypeStruct((3, H, Fdim), jnp.float32),   # EMA'd key W2
        jax.ShapeDtypeStruct((3, 1, Fdim), jnp.float32),   # EMA'd key b2
    )

    return pl.pallas_call(
        functools.partial(moco_fused_kernel, momentum=momentum,
                          inv_temp=1.0 / temperature, batch=N),
        out_shape=out_shapes,
        grid=(3,),
        in_specs=[
            vblk(twoN, Din),                                          # stacked q/k views
            vblk(Din, H), vblk(1, H), vblk(H, Fdim), vblk(1, Fdim),   # query params
            vblk(Din, H), vblk(1, H), vblk(H, Fdim), vblk(1, Fdim),   # key params
            vblk(Fdim, K),                                            # queues
        ],
        out_specs=(
            vblk(N, 1), vblk(N, K), vblk(N, Fdim),
            vblk(Din, H), vblk(1, H), vblk(H, Fdim), vblk(1, Fdim),
        ),
        compiler_params=pltpu.CompilerParams(
            dimension_semantics=("parallel",),   # views are independent -> v7x 2-TC split
            vmem_limit_bytes=32 * 1024 * 1024,
        ),
    )(lhs,
      params["q_w1"], params["q_b1"], params["q_w2"], params["q_b2"],
      params["k_w1"], params["k_b1"], params["k_w2"], params["k_b2"],
      queues)


# ---------------------------------------------------------------------------
# Parameter / buffer init (deterministic, synthetic — no checkpoint load).
# Weights are stored already stacked per view so no wrapper-side restacking is needed.
# ---------------------------------------------------------------------------
def init_state(key, *, C, T, V, M, hidden_dim, feature_dim, queue_size):
    Din = C * M * T * V
    keys = jax.random.split(key, 8)

    def mk_encoder(k):
        k1, k2, k3, k4 = jax.random.split(k, 4)
        s1 = 1.0 / np.sqrt(Din)
        s2 = 1.0 / np.sqrt(hidden_dim)
        return (
            jax.random.uniform(k1, (Din, hidden_dim), jnp.float32, -s1, s1),
            jax.random.uniform(k2, (1, hidden_dim), jnp.float32, -s1, s1),
            jax.random.uniform(k3, (hidden_dim, feature_dim), jnp.float32, -s2, s2),
            jax.random.uniform(k4, (1, feature_dim), jnp.float32, -s2, s2),
        )

    encs = [mk_encoder(keys[i]) for i in range(3)]        # joint, motion, bone
    q_w1 = jnp.stack([e[0] for e in encs])                # (3, Din, H)
    q_b1 = jnp.stack([e[1] for e in encs])                # (3, 1, H)
    q_w2 = jnp.stack([e[2] for e in encs])                # (3, H, F)
    q_b2 = jnp.stack([e[3] for e in encs])                # (3, 1, F)
    params = {
        "q_w1": q_w1, "q_b1": q_b1, "q_w2": q_w2, "q_b2": q_b2,
        # key encoders initialized as copies of the query encoders (MoCo)
        "k_w1": q_w1, "k_b1": q_b1, "k_w2": q_w2, "k_b2": q_b2,
    }

    def mk_queue(k):
        qz = jax.random.normal(k, (feature_dim, queue_size), jnp.float32)
        return qz / jnp.maximum(jnp.sqrt(jnp.sum(qz * qz, axis=0, keepdims=True)), 1e-12)

    queues = jnp.stack([mk_queue(keys[4 + i]) for i in range(3)])   # (3, F, K)

    bmat = np.eye(V, dtype=np.float32)
    for v1, v2 in BONE_PAIRS:
        bmat[v2 - 1, v1 - 1] -= 1.0
    return params, queues, jnp.asarray(bmat)


# ---------------------------------------------------------------------------
# Forward (pretrain=True, cross=False path of CrosSCLR.forward).
# Returns (logits, logits_motion, logits_bone, labels) plus the updated persistent
# state (EMA'd key-encoder params and the queues after enqueue).
# ---------------------------------------------------------------------------
def crossclr_forward(im_q, im_k, params, queues, bone_mat, *, momentum=0.999,
                     temperature=0.07, queue_ptr=0):
    N, C, T, V, M = im_q.shape
    Din = C * M * T * V

    def to_rows(x):   # (N,C,T,V,M) -> (N*C*M*T, V): T innermost among row factors
        return jnp.transpose(x, (0, 1, 4, 2, 3)).reshape(N * C * M * T, V)

    # stacked (query ++ key) rows; rows past each sample's last frame get masked anyway
    x_rows = jnp.concatenate([to_rows(im_q), to_rows(im_k)], axis=0)   # (2R, V)
    x_next = jnp.roll(x_rows, -1, axis=0)                              # frame t+1 per row

    mot_rows, bone_rows = build_views(x_rows, x_next, bone_mat, T)     # Pallas kernel A

    # (3, 2R, V) -> (3, 2N, Din) is a pure row-major relabel (~115 KB of glue in XLA)
    lhs = jnp.stack([x_rows, mot_rows, bone_rows], axis=0).reshape(3, 2 * N, Din)

    (lpos, lneg, kfeat,
     k_w1, k_b1, k_w2, k_b2) = moco_fused(lhs, params, queues,
                                          momentum=momentum, temperature=temperature)

    logits_all = jnp.concatenate([lpos, lneg], axis=-1)   # (3, N, 1+K), already / T
    labels = jnp.zeros((N,), dtype=jnp.int32)             # torch.long -> int32 on TPU

    new_params = dict(params, k_w1=k_w1, k_b1=k_b1, k_w2=k_w2, k_b2=k_b2)
    # dequeue-and-enqueue: queue[:, ptr:ptr+N] = k.T (single-device, gpu_index = 0).
    # TODO(synk): queue_ptr advance (update_ptr) is a separate method in the reference;
    # the caller advances ptr = (ptr + N) % K between steps.
    new_queues = jax.lax.dynamic_update_slice(
        queues, jnp.transpose(kfeat, (0, 2, 1)), (0, 0, queue_ptr))

    return (logits_all[0], logits_all[1], logits_all[2], labels), new_params, new_queues


# ---------------------------------------------------------------------------
# Pure-JAX reference of the same forward (for a loose numerical sanity check).
# ---------------------------------------------------------------------------
def reference_forward(im_q, im_k, params, queues, bone_mat, momentum, temperature):
    N, C, T, V, M = im_q.shape
    Din = C * M * T * V
    hi = jax.lax.Precision.HIGHEST

    def motion(x):
        return jnp.zeros_like(x).at[:, :, :T - 1].set(x[:, :, 1:] - x[:, :, :T - 1])

    def bone(x):
        return jnp.einsum("nctum,uv->nctvm", x, bone_mat, precision=hi)

    def flat(x):
        return jnp.transpose(x, (0, 1, 4, 2, 3)).reshape(N, Din)

    def head(x, w1, b1, w2, b2):
        h = jnp.maximum(jnp.dot(x, w1, precision=hi) + b1, 0.0)
        y = jnp.dot(h, w2, precision=hi) + b2
        nrm = jnp.sqrt(jnp.sum(y * y, axis=1, keepdims=True))
        return y / jnp.maximum(nrm, 1e-12)

    q_views = (im_q, motion(im_q), bone(im_q))
    k_views = (im_k, motion(im_k), bone(im_k))
    logits_list, kfeats = [], []
    for v in range(3):
        wq1, bq1 = params["q_w1"][v], params["q_b1"][v]
        wq2, bq2 = params["q_w2"][v], params["q_b2"][v]
        wk1 = momentum * params["k_w1"][v] + (1.0 - momentum) * wq1
        bk1 = momentum * params["k_b1"][v] + (1.0 - momentum) * bq1
        wk2 = momentum * params["k_w2"][v] + (1.0 - momentum) * wq2
        bk2 = momentum * params["k_b2"][v] + (1.0 - momentum) * bq2
        qf = head(flat(q_views[v]), wq1, bq1, wq2, bq2)
        kf = head(flat(k_views[v]), wk1, bk1, wk2, bk2)
        l_pos = jnp.sum(qf * kf, axis=1, keepdims=True)
        l_neg = jnp.dot(qf, queues[v], precision=hi)
        logits_list.append(jnp.concatenate([l_pos, l_neg], axis=1) / temperature)
        kfeats.append(kf)
    return logits_list, jnp.stack(kfeats)


if __name__ == "__main__":
    N, C, T, V, M = 4, 3, 8, 25, 2          # small skeleton batch (NTU has V=25, M=2)
    feature_dim, hidden_dim, queue_size = 128, 256, 256
    key = jax.random.PRNGKey(0)
    k_imq, k_imk, k_par = jax.random.split(key, 3)

    im_q = jax.random.normal(k_imq, (N, C, T, V, M), jnp.float32)
    im_k = jax.random.normal(k_imk, (N, C, T, V, M), jnp.float32)

    params, queues, bone_mat = init_state(
        k_par, C=C, T=T, V=V, M=M,
        hidden_dim=hidden_dim, feature_dim=feature_dim, queue_size=queue_size,
    )

    fwd = jax.jit(crossclr_forward,
                  static_argnames=("momentum", "temperature", "queue_ptr"))
    (logits, logits_motion, logits_bone, labels), new_params, new_queues = fwd(
        im_q, im_k, params, queues, bone_mat,
        momentum=0.999, temperature=0.07, queue_ptr=0)
    jax.block_until_ready((logits, logits_motion, logits_bone, labels,
                           new_params, new_queues))

    # shape / sanity checks
    assert logits.shape == (N, 1 + queue_size)
    assert logits_motion.shape == (N, 1 + queue_size)
    assert logits_bone.shape == (N, 1 + queue_size)
    assert labels.shape == (N,)
    assert new_queues.shape == (3, feature_dim, queue_size)
    assert bool(jnp.all(jnp.isfinite(logits)))
    assert bool(jnp.all(jnp.isfinite(logits_motion)))
    assert bool(jnp.all(jnp.isfinite(logits_bone)))

    # loose numerical check vs. pure-JAX reference (kernel uses bf16 MXU matmuls)
    ref_logits, ref_kf = reference_forward(
        im_q, im_k, params, queues, bone_mat, 0.999, 0.07)
    for got, ref in zip((logits, logits_motion, logits_bone), ref_logits):
        assert float(jnp.max(jnp.abs(got - ref))) < 1.0
    for v in range(3):
        assert float(jnp.max(jnp.abs(new_queues[v, :, :N] - ref_kf[v].T))) < 0.1
        assert bool(jnp.all(new_queues[v, :, N:] == queues[v, :, N:]))

    print("KERNEL_OK")
</pallas_src>

<mosaic_0001>
module attributes {stable_mosaic.version = 11 : i64} {
  func.func @view_kernel(%arg0: i32, %arg1: memref<384x25xf32, #tpu.memory_space<vmem>>, %arg2: memref<384x25xf32, #tpu.memory_space<vmem>>, %arg3: memref<25x25xf32, #tpu.memory_space<vmem>>, %arg4: memref<384x25xf32, #tpu.memory_space<vmem>>, %arg5: memref<384x25xf32, #tpu.memory_space<vmem>>) attributes {dimension_semantics = [#tpu.dimension_semantics<arbitrary>], iteration_bounds = array<i64: 1>, scalar_prefetch = 0 : i64, scratch_operands = 0 : i64, tpu.core_type = #tpu.core_type<tc>, window_params = [{pipeline_mode = #tpu.pipeline_mode<synchronous>, transform_indices = @transform_0, window_bounds = array<i64: 384, 25>}, {pipeline_mode = #tpu.pipeline_mode<synchronous>, transform_indices = @transform_1, window_bounds = array<i64: 384, 25>}, {pipeline_mode = #tpu.pipeline_mode<synchronous>, transform_indices = @transform_2, window_bounds = array<i64: 25, 25>}, {pipeline_mode = #tpu.pipeline_mode<synchronous>, transform_indices = @transform_3, window_bounds = array<i64: 384, 25>}, {pipeline_mode = #tpu.pipeline_mode<synchronous>, transform_indices = @transform_4, window_bounds = array<i64: 384, 25>}]} {
    %c0 = arith.constant 0 : index
    %c0_0 = arith.constant 0 : index
    %0 = vector.load %arg1[%c0, %c0_0] : memref<384x25xf32, #tpu.memory_space<vmem>>, vector<384x25xf32>
    %1 = tpu.iota {dimensions = array<i32: 0>} : vector<384x25xi32>
    %c8_i32 = arith.constant 8 : i32
    %c0_i32 = arith.constant 0 : i32
    %2 = arith.cmpi eq, %c8_i32, %c0_i32 : i32
    %c1_i32 = arith.constant 1 : i32
    %3 = arith.select %2, %c1_i32, %c8_i32 : i32
    %4 = vector.broadcast %3 : i32 to vector<384x25xi32>
    %5 = arith.remsi %1, %4 : vector<384x25xi32>
    %c0_i32_1 = arith.constant 0 : i32
    %6 = vector.broadcast %c0_i32_1 : i32 to vector<384x25xi32>
    %7 = arith.cmpi ne, %5, %6 : vector<384x25xi32>
    %c0_i32_2 = arith.constant 0 : i32
    %8 = vector.broadcast %c0_i32_2 : i32 to vector<384x25xi32>
    %9 = arith.cmpi slt, %5, %8 : vector<384x25xi32>
    %c0_i32_3 = arith.constant 0 : i32
    %10 = arith.cmpi slt, %3, %c0_i32_3 : i32
    %11 = vector.broadcast %10 : i1 to vector<384x25xi1>
    %12 = vector.broadcast %11 : vector<384x25xi1> to vector<384x25xi1>
    %13 = arith.xori %9, %12 : vector<384x25xi1>
    %14 = arith.andi %13, %7 : vector<384x25xi1>
    %15 = vector.broadcast %3 : i32 to vector<384x25xi32>
    %16 = arith.addi %5, %15 : vector<384x25xi32>
    %17 = arith.select %14, %16, %5 : vector<384x25xi1>, vector<384x25xi32>
    %c7_i32 = arith.constant 7 : i32
    %18 = vector.broadcast %c7_i32 : i32 to vector<384x25xi32>
    %19 = arith.cmpi slt, %17, %18 : vector<384x25xi32>
    %c0_4 = arith.constant 0 : index
    %c0_5 = arith.constant 0 : index
    %20 = vector.load %arg2[%c0_4, %c0_5] : memref<384x25xf32, #tpu.memory_space<vmem>>, vector<384x25xf32>
    %21 = arith.subf %20, %0 : vector<384x25xf32>
    %cst = arith.constant 0.000000e+00 : f32
    %22 = vector.broadcast %cst : f32 to vector<384x25xf32>
    %23 = arith.select %19, %21, %22 : vector<384x25xi1>, vector<384x25xf32>
    %c0_6 = arith.constant 0 : index
    %c0_7 = arith.constant 0 : index
    %24 = vector.load %arg4[%c0_6, %c0_7] : memref<384x25xf32, #tpu.memory_space<vmem>>, vector<384x25xf32>
    tpu.vector_store %arg4[%c0_6, %c0_7], %23 {strides = array<i32>} : memref<384x25xf32, #tpu.memory_space<vmem>>, vector<384x25xf32>,
    %c0_8 = arith.constant 0 : index
    %c0_9 = arith.constant 0 : index
    %25 = vector.load %arg3[%c0_8, %c0_9] : memref<25x25xf32, #tpu.memory_space<vmem>>, vector<25x25xf32>
    %cst_10 = arith.constant dense<0.000000e+00> : vector<384x25xf32>
    %26 = tpu.matmul %0, %25, %cst_10 {dimension_numbers = #tpu.dot_dimension_numbers<[1], [0], [0], [1], [0, 0, 1, 1], [], []>} : vector<384x25xf32>, vector<25x25xf32>, vector<384x25xf32> -> vector<384x25xf32>
    %c0_11 = arith.constant 0 : index
    %c0_12 = arith.constant 0 : index
    %27 = vector.load %arg5[%c0_11, %c0_12] : memref<384x25xf32, #tpu.memory_space<vmem>>, vector<384x25xf32>
    tpu.vector_store %arg5[%c0_11, %c0_12], %26 {strides = array<i32>} : memref<384x25xf32, #tpu.memory_space<vmem>>, vector<384x25xf32>,
    return
  }
  func.func @transform_0(%arg0: i32) -> (i32, i32) {
    %c0_i32 = arith.constant 0 : i32
    %c0_i32_0 = arith.constant 0 : i32
    %c0_i32_1 = arith.constant 0 : i32
    return %c0_i32, %c0_i32_0 : i32, i32
  }
  func.func @transform_1(%arg0: i32) -> (i32, i32) {
    %c0_i32 = arith.constant 0 : i32
    %c0_i32_0 = arith.constant 0 : i32
    %c0_i32_1 = arith.constant 0 : i32
    return %c0_i32, %c0_i32_0 : i32, i32
  }
  func.func @transform_2(%arg0: i32) -> (i32, i32) {
    %c0_i32 = arith.constant 0 : i32
    %c0_i32_0 = arith.constant 0 : i32
    %c0_i32_1 = arith.constant 0 : i32
    return %c0_i32, %c0_i32_0 : i32, i32
  }
  func.func @transform_3(%arg0: i32) -> (i32, i32) {
    %c0_i32 = arith.constant 0 : i32
    %c0_i32_0 = arith.constant 0 : i32
    %c0_i32_1 = arith.constant 0 : i32
    return %c0_i32, %c0_i32_0 : i32, i32
  }
  func.func @transform_4(%arg0: i32) -> (i32, i32) {
    %c0_i32 = arith.constant 0 : i32
    %c0_i32_0 = arith.constant 0 : i32
    %c0_i32_1 = arith.constant 0 : i32
    return %c0_i32, %c0_i32_0 : i32, i32
  }
}

module attributes {stable_mosaic.version = 11 : i64} {
  func.func @moco_fused_kernel(%arg0: i32, %arg1: memref<1x8x1200xf32, #tpu.memory_space<vmem>>, %arg2: memref<1x1200x256xf32, #tpu.memory_space<vmem>>, %arg3: memref<1x1x256xf32, #tpu.memory_space<vmem>>, %arg4: memref<1x256x128xf32, #tpu.memory_space<vmem>>, %arg5: memref<1x1x128xf32, #tpu.memory_space<vmem>>, %arg6: memref<1x1200x256xf32, #tpu.memory_space<vmem>>, %arg7: memref<1x1x256xf32, #tpu.memory_space<vmem>>, %arg8: memref<1x256x128xf32, #tpu.memory_space<vmem>>, %arg9: memref<1x1x128xf32, #tpu.memory_space<vmem>>, %arg10: memref<1x128x256xf32, #tpu.memory_space<vmem>>, %arg11: memref<1x4x1xf32, #tpu.memory_space<vmem>>, %arg12: memref<1x4x256xf32, #tpu.memory_space<vmem>>, %arg13: memref<1x4x128xf32, #tpu.memory_space<vmem>>, %arg14: memref<1x1200x256xf32, #tpu.memory_space<vmem>>, %arg15: memref<1x1x256xf32, #tpu.memory_space<vmem>>, %arg16: memref<1x256x128xf32, #tpu.memory_space<vmem>>, %arg17: memref<1x1x128xf32, #tpu.memory_space<vmem>>) attributes {dimension_semantics = [#tpu.dimension_semantics<parallel>], iteration_bounds = array<i64: 3>, scalar_prefetch = 0 : i64, scratch_operands = 0 : i64, tpu.core_type = #tpu.core_type<tc>, window_params = [{transform_indices = @transform_0, window_bounds = array<i64: 1, 8, 1200>}, {transform_indices = @transform_1, window_bounds = array<i64: 1, 1200, 256>}, {transform_indices = @transform_2, window_bounds = array<i64: 1, 1, 256>}, {transform_indices = @transform_3, window_bounds = array<i64: 1, 256, 128>}, {transform_indices = @transform_4, window_bounds = array<i64: 1, 1, 128>}, {transform_indices = @transform_5, window_bounds = array<i64: 1, 1200, 256>}, {transform_indices = @transform_6, window_bounds = array<i64: 1, 1, 256>}, {transform_indices = @transform_7, window_bounds = array<i64: 1, 256, 128>}, {transform_indices = @transform_8, window_bounds = array<i64: 1, 1, 128>}, {transform_indices = @transform_9, window_bounds = array<i64: 1, 128, 256>}, {transform_indices = @transform_10, window_bounds = array<i64: 1, 4, 1>}, {transform_indices = @transform_11, window_bounds = array<i64: 1, 4, 256>}, {transform_indices = @transform_12, window_bounds = array<i64: 1, 4, 128>}, {transform_indices = @transform_13, window_bounds = array<i64: 1, 1200, 256>}, {transform_indices = @transform_14, window_bounds = array<i64: 1, 1, 256>}, {transform_indices = @transform_15, window_bounds = array<i64: 1, 256, 128>}, {transform_indices = @transform_16, window_bounds = array<i64: 1, 1, 128>}]} {
    %c0 = arith.constant 0 : index
    %c0_0 = arith.constant 0 : index
    %c0_1 = arith.constant 0 : index
    %0 = vector.load %arg6[%c0, %c0_0, %c0_1] : memref<1x1200x256xf32, #tpu.memory_space<vmem>>, vector<1x1200x256xf32>
    %1 = vector.shape_cast %0 : vector<1x1200x256xf32> to vector<1200x256xf32>
    %cst = arith.constant 9.990000e-01 : f32
    %2 = vector.broadcast %cst : f32 to vector<1200x256xf32>
    %3 = arith.mulf %2, %1 : vector<1200x256xf32>
    %c0_2 = arith.constant 0 : index
    %c0_3 = arith.constant 0 : index
    %c0_4 = arith.constant 0 : index
    %4 = vector.load %arg2[%c0_2, %c0_3, %c0_4] : memref<1x1200x256xf32, #tpu.memory_space<vmem>>, vector<1x1200x256xf32>
    %5 = vector.shape_cast %4 : vector<1x1200x256xf32> to vector<1200x256xf32>
    %cst_5 = arith.constant 1.000000e-03 : f32
    %6 = vector.broadcast %cst_5 : f32 to vector<1200x256xf32>
    %7 = arith.mulf %6, %5 : vector<1200x256xf32>
    %8 = arith.addf %3, %7 : vector<1200x256xf32>
    %c0_6 = arith.constant 0 : index
    %c0_7 = arith.constant 0 : index
    %c0_8 = arith.constant 0 : index
    %9 = vector.load %arg7[%c0_6, %c0_7, %c0_8] : memref<1x1x256xf32, #tpu.memory_space<vmem>>, vector<1x1x256xf32>
    %10 = vector.shape_cast %9 : vector<1x1x256xf32> to vector<1x256xf32>
    %cst_9 = arith.constant 9.990000e-01 : f32
    %11 = vector.broadcast %cst_9 : f32 to vector<1x256xf32>
    %12 = arith.mulf %11, %10 : vector<1x256xf32>
    %c0_10 = arith.constant 0 : index
    %c0_11 = arith.constant 0 : index
    %c0_12 = arith.constant 0 : index
    %13 = vector.load %arg3[%c0_10, %c0_11, %c0_12] : memref<1x1x256xf32, #tpu.memory_space<vmem>>, vector<1x1x256xf32>
    %14 = vector.shape_cast %13 : vector<1x1x256xf32> to vector<1x256xf32>
    %cst_13 = arith.constant 1.000000e-03 : f32
    %15 = vector.broadcast %cst_13 : f32 to vector<1x256xf32>
    %16 = arith.mulf %15, %14 : vector<1x256xf32>
    %17 = arith.addf %12, %16 : vector<1x256xf32>
    %c0_14 = arith.constant 0 : index
    %c0_15 = arith.constant 0 : index
    %c0_16 = arith.constant 0 : index
    %18 = vector.load %arg8[%c0_14, %c0_15, %c0_16] : memref<1x256x128xf32, #tpu.memory_space<vmem>>, vector<1x256x128xf32>
    %19 = vector.shape_cast %18 : vector<1x256x128xf32> to vector<256x128xf32>
    %cst_17 = arith.constant 9.990000e-01 : f32
    %20 = vector.broadcast %cst_17 : f32 to vector<256x128xf32>
    %21 = arith.mulf %20, %19 : vector<256x128xf32>
    %c0_18 = arith.constant 0 : index
    %c0_19 = arith.constant 0 : index
    %c0_20 = arith.constant 0 : index
    %22 = vector.load %arg4[%c0_18, %c0_19, %c0_20] : memref<1x256x128xf32, #tpu.memory_space<vmem>>, vector<1x256x128xf32>
    %23 = vector.shape_cast %22 : vector<1x256x128xf32> to vector<256x128xf32>
    %cst_21 = arith.constant 1.000000e-03 : f32
    %24 = vector.broadcast %cst_21 : f32 to vector<256x128xf32>
    %25 = arith.mulf %24, %23 : vector<256x128xf32>
    %26 = arith.addf %21, %25 : vector<256x128xf32>
    %c0_22 = arith.constant 0 : index
    %c0_23 = arith.constant 0 : index
    %c0_24 = arith.constant 0 : index
    %27 = vector.load %arg9[%c0_22, %c0_23, %c0_24] : memref<1x1x128xf32, #tpu.memory_space<vmem>>, vector<1x1x128xf32>
    %28 = vector.shape_cast %27 : vector<1x1x128xf32> to vector<1x128xf32>
    %cst_25 = arith.constant 9.990000e-01 : f32
    %29 = vector.broadcast %cst_25 : f32 to vector<1x128xf32>
    %30 = arith.mulf %29, %28 : vector<1x128xf32>
    %c0_26 = arith.constant 0 : index
    %c0_27 = arith.constant 0 : index
    %c0_28 = arith.constant 0 : index
    %31 = vector.load %arg5[%c0_26, %c0_27, %c0_28] : memref<1x1x128xf32, #tpu.memory_space<vmem>>, vector<1x1x128xf32>
    %32 = vector.shape_cast %31 : vector<1x1x128xf32> to vector<1x128xf32>
    %cst_29 = arith.constant 1.000000e-03 : f32
    %33 = vector.broadcast %cst_29 : f32 to vector<1x128xf32>
    %34 = arith.mulf %33, %32 : vector<1x128xf32>
    %35 = arith.addf %30, %34 : vector<1x128xf32>
    %c0_30 = arith.constant 0 : index
    %c0_31 = arith.constant 0 : index
    %c0_32 = arith.constant 0 : index
    %36 = vector.load %arg14[%c0_30, %c0_31, %c0_32] : memref<1x1200x256xf32, #tpu.memory_space<vmem>>, vector<1x1200x256xf32>
    %37 = vector.shape_cast %36 : vector<1x1200x256xf32> to vector<1200x256xf32>
    %38 = vector.shape_cast %8 : vector<1200x256xf32> to vector<1x1200x256xf32>
    tpu.vector_store %arg14[%c0_30, %c0_31, %c0_32], %38 {strides = array<i32>} : memref<1x1200x256xf32, #tpu.memory_space<vmem>>, vector<1x1200x256xf32>,
    %c0_33 = arith.constant 0 : index
    %c0_34 = arith.constant 0 : index
    %c0_35 = arith.constant 0 : index
    %39 = vector.load %arg15[%c0_33, %c0_34, %c0_35] : memref<1x1x256xf32, #tpu.memory_space<vmem>>, vector<1x1x256xf32>
    %40 = vector.shape_cast %39 : vector<1x1x256xf32> to vector<1x256xf32>
    %41 = vector.shape_cast %17 : vector<1x256xf32> to vector<1x1x256xf32>
    tpu.vector_store %arg15[%c0_33, %c0_34, %c0_35], %41 {strides = array<i32>} : memref<1x1x256xf32, #tpu.memory_space<vmem>>, vector<1x1x256xf32>,
    %c0_36 = arith.constant 0 : index
    %c0_37 = arith.constant 0 : index
    %c0_38 = arith.constant 0 : index
    %42 = vector.load %arg16[%c0_36, %c0_37, %c0_38] : memref<1x256x128xf32, #tpu.memory_space<vmem>>, vector<1x256x128xf32>
    %43 = vector.shape_cast %42 : vector<1x256x128xf32> to vector<256x128xf32>
    %44 = vector.shape_cast %26 : vector<256x128xf32> to vector<1x256x128xf32>
    tpu.vector_store %arg16[%c0_36, %c0_37, %c0_38], %44 {strides = array<i32>} : memref<1x256x128xf32, #tpu.memory_space<vmem>>, vector<1x256x128xf32>,
    %c0_39 = arith.constant 0 : index
    %c0_40 = arith.constant 0 : index
    %c0_41 = arith.constant 0 : index
    %45 = vector.load %arg17[%c0_39, %c0_40, %c0_41] : memref<1x1x128xf32, #tpu.memory_space<vmem>>, vector<1x1x128xf32>
    %46 = vector.shape_cast %45 : vector<1x1x128xf32> to vector<1x128xf32>
    %47 = vector.shape_cast %35 : vector<1x128xf32> to vector<1x1x128xf32>
    tpu.vector_store %arg17[%c0_39, %c0_40, %c0_41], %47 {strides = array<i32>} : memref<1x1x128xf32, #tpu.memory_space<vmem>>, vector<1x1x128xf32>,
    %c0_42 = arith.constant 0 : index
    %c0_43 = arith.constant 0 : index
    %c0_44 = arith.constant 0 : index
    %48 = vector.load %arg1[%c0_42, %c0_43, %c0_44] : memref<1x8x1200xf32, #tpu.memory_space<vmem>>, vector<1x8x1200xf32>
    %49 = vector.shape_cast %48 : vector<1x8x1200xf32> to vector<8x1200xf32>
    %50 = vector.extract_strided_slice %49 {offsets = [0, 0], sizes = [4, 1200], strides = [1, 1]} : vector<8x1200xf32> to vector<4x1200xf32>
    %51 = vector.extract_strided_slice %49 {offsets = [4, 0], sizes = [4, 1200], strides = [1, 1]} : vector<8x1200xf32> to vector<4x1200xf32>
    %c0_45 = arith.constant 0 : index
    %c0_46 = arith.constant 0 : index
    %c0_47 = arith.constant 0 : index
    %52 = vector.load %arg2[%c0_45, %c0_46, %c0_47] : memref<1x1200x256xf32, #tpu.memory_space<vmem>>, vector<1x1200x256xf32>
    %53 = vector.shape_cast %52 : vector<1x1200x256xf32> to vector<1200x256xf32>
    %c0_48 = arith.constant 0 : index
    %c0_49 = arith.constant 0 : index
    %c0_50 = arith.constant 0 : index
    %54 = vector.load %arg3[%c0_48, %c0_49, %c0_50] : memref<1x1x256xf32, #tpu.memory_space<vmem>>, vector<1x1x256xf32>
    %55 = vector.shape_cast %54 : vector<1x1x256xf32> to vector<1x256xf32>
    %c0_51 = arith.constant 0 : index
    %c0_52 = arith.constant 0 : index
    %c0_53 = arith.constant 0 : index
    %56 = vector.load %arg4[%c0_51, %c0_52, %c0_53] : memref<1x256x128xf32, #tpu.memory_space<vmem>>, vector<1x256x128xf32>
    %57 = vector.shape_cast %56 : vector<1x256x128xf32> to vector<256x128xf32>
    %c0_54 = arith.constant 0 : index
    %c0_55 = arith.constant 0 : index
    %c0_56 = arith.constant 0 : index
    %58 = vector.load %arg5[%c0_54, %c0_55, %c0_56] : memref<1x1x128xf32, #tpu.memory_space<vmem>>, vector<1x1x128xf32>
    %59 = vector.shape_cast %58 : vector<1x1x128xf32> to vector<1x128xf32>
    %60 = arith.truncf %50 : vector<4x1200xf32> to vector<4x1200xbf16>
    %61 = arith.truncf %53 : vector<1200x256xf32> to vector<1200x256xbf16>
    %cst_57 = arith.constant dense<0.000000e+00> : vector<4x256xf32>
    %62 = tpu.matmul %60, %61, %cst_57 {dimension_numbers = #tpu.dot_dimension_numbers<[1], [0], [0], [1], [0, 0, 1, 1], [], []>} : vector<4x1200xbf16>, vector<1200x256xbf16>, vector<4x256xf32> -> vector<4x256xf32>
    %63 = vector.broadcast %55 : vector<1x256xf32> to vector<4x256xf32>
    %64 = arith.addf %62, %63 : vector<4x256xf32>
    %cst_58 = arith.constant 0.000000e+00 : f32
    %65 = vector.broadcast %cst_58 : f32 to vector<4x256xf32>
    %66 = arith.maximumf %64, %65 : vector<4x256xf32>
    %67 = arith.truncf %66 : vector<4x256xf32> to vector<4x256xbf16>
    %68 = arith.truncf %57 : vector<256x128xf32> to vector<256x128xbf16>
    %cst_59 = arith.constant dense<0.000000e+00> : vector<4x128xf32>
    %69 = tpu.matmul %67, %68, %cst_59 {dimension_numbers = #tpu.dot_dimension_numbers<[1], [0], [0], [1], [0, 0, 1, 1], [], []>} : vector<4x256xbf16>, vector<256x128xbf16>, vector<4x128xf32> -> vector<4x128xf32>
    %70 = vector.broadcast %59 : vector<1x128xf32> to vector<4x128xf32>
    %71 = arith.addf %69, %70 : vector<4x128xf32>
    %72 = arith.mulf %71, %71 : vector<4x128xf32>
    %cst_60 = arith.constant dense<0.000000e+00> : vector<4xf32>
    %73 = vector.multi_reduction <add>, %72, %cst_60 [1] : vector<4x128xf32> to vector<4xf32>
    %74 = vector.shape_cast %73 : vector<4xf32> to vector<4x1xf32>
    %cst_61 = arith.constant 1.000000e-24 : f32
    %75 = vector.broadcast %cst_61 : f32 to vector<4x1xf32>
    %76 = arith.maximumf %74, %75 : vector<4x1xf32>
    %77 = math.rsqrt %76 : vector<4x1xf32>
    %78 = vector.broadcast %77 : vector<4x1xf32> to vector<4x128xf32>
    %79 = arith.mulf %71, %78 : vector<4x128xf32>
    %80 = arith.truncf %51 : vector<4x1200xf32> to vector<4x1200xbf16>
    %81 = arith.truncf %8 : vector<1200x256xf32> to vector<1200x256xbf16>
    %cst_62 = arith.constant dense<0.000000e+00> : vector<4x256xf32>
    %82 = tpu.matmul %80, %81, %cst_62 {dimension_numbers = #tpu.dot_dimension_numbers<[1], [0], [0], [1], [0, 0, 1, 1], [], []>} : vector<4x1200xbf16>, vector<1200x256xbf16>, vector<4x256xf32> -> vector<4x256xf32>
    %83 = vector.broadcast %17 : vector<1x256xf32> to vector<4x256xf32>
    %84 = arith.addf %82, %83 : vector<4x256xf32>
    %cst_63 = arith.constant 0.000000e+00 : f32
    %85 = vector.broadcast %cst_63 : f32 to vector<4x256xf32>
    %86 = arith.maximumf %84, %85 : vector<4x256xf32>
    %87 = arith.truncf %86 : vector<4x256xf32> to vector<4x256xbf16>
    %88 = arith.truncf %26 : vector<256x128xf32> to vector<256x128xbf16>
    %cst_64 = arith.constant dense<0.000000e+00> : vector<4x128xf32>
    %89 = tpu.matmul %87, %88, %cst_64 {dimension_numbers = #tpu.dot_dimension_numbers<[1], [0], [0], [1], [0, 0, 1, 1], [], []>} : vector<4x256xbf16>, vector<256x128xbf16>, vector<4x128xf32> -> vector<4x128xf32>
    %90 = vector.broadcast %35 : vector<1x128xf32> to vector<4x128xf32>
    %91 = arith.addf %89, %90 : vector<4x128xf32>
    %92 = arith.mulf %91, %91 : vector<4x128xf32>
    %cst_65 = arith.constant dense<0.000000e+00> : vector<4xf32>
    %93 = vector.multi_reduction <add>, %92, %cst_65 [1] : vector<4x128xf32> to vector<4xf32>
    %94 = vector.shape_cast %93 : vector<4xf32> to vector<4x1xf32>
    %cst_66 = arith.constant 1.000000e-24 : f32
    %95 = vector.broadcast %cst_66 : f32 to vector<4x1xf32>
    %96 = arith.maximumf %94, %95 : vector<4x1xf32>
    %97 = math.rsqrt %96 : vector<4x1xf32>
    %98 = vector.broadcast %97 : vector<4x1xf32> to vector<4x128xf32>
    %99 = arith.mulf %91, %98 : vector<4x128xf32>
    %100 = arith.mulf %79, %99 : vector<4x128xf32>
    %cst_67 = arith.constant dense<0.000000e+00> : vector<4xf32>
    %101 = vector.multi_reduction <add>, %100, %cst_67 [1] : vector<4x128xf32> to vector<4xf32>
    %102 = vector.shape_cast %101 : vector<4xf32> to vector<4x1xf32>
    %cst_68 = arith.constant 14.2857141 : f32
    %103 = vector.broadcast %cst_68 : f32 to vector<4x1xf32>
    %104 = arith.mulf %102, %103 : vector<4x1xf32>
    %c0_69 = arith.constant 0 : index
    %c0_70 = arith.constant 0 : index
    %c0_71 = arith.constant 0 : index
    %105 = vector.load %arg11[%c0_69, %c0_70, %c0_71] : memref<1x4x1xf32, #tpu.memory_space<vmem>>, vector<1x4x1xf32>
    %106 = vector.shape_cast %105 : vector<1x4x1xf32> to vector<4x1xf32>
    %107 = vector.shape_cast %104 : vector<4x1xf32> to vector<1x4x1xf32>
    tpu.vector_store %arg11[%c0_69, %c0_70, %c0_71], %107 {strides = array<i32>} : memref<1x4x1xf32, #tpu.memory_space<vmem>>, vector<1x4x1xf32>,
    %c0_72 = arith.constant 0 : index
    %c0_73 = arith.constant 0 : index
    %c0_74 = arith.constant 0 : index
    %108 = vector.load %arg10[%c0_72, %c0_73, %c0_74] : memref<1x128x256xf32, #tpu.memory_space<vmem>>, vector<1x128x256xf32>
    %109 = vector.shape_cast %108 : vector<1x128x256xf32> to vector<128x256xf32>
    %cst_75 = arith.constant dense<0.000000e+00> : vector<4x256xf32>
    %110 = tpu.matmul %79, %109, %cst_75 {dimension_numbers = #tpu.dot_dimension_numbers<[1], [0], [0], [1], [0, 0, 1, 1], [], []>} : vector<4x128xf32>, vector<128x256xf32>, vector<4x256xf32> -> vector<4x256xf32>
    %cst_76 = arith.constant 14.2857141 : f32
    %111 = vector.broadcast %cst_76 : f32 to vector<4x256xf32>
    %112 = arith.mulf %110, %111 : vector<4x256xf32>
    %c0_77 = arith.constant 0 : index
    %c0_78 = arith.constant 0 : index
    %c0_79 = arith.constant 0 : index
    %113 = vector.load %arg12[%c0_77, %c0_78, %c0_79] : memref<1x4x256xf32, #tpu.memory_space<vmem>>, vector<1x4x256xf32>
    %114 = vector.shape_cast %113 : vector<1x4x256xf32> to vector<4x256xf32>
    %115 = vector.shape_cast %112 : vector<4x256xf32> to vector<1x4x256xf32>
    tpu.vector_store %arg12[%c0_77, %c0_78, %c0_79], %115 {strides = array<i32>} : memref<1x4x256xf32, #tpu.memory_space<vmem>>, vector<1x4x256xf32>,
    %c0_80 = arith.constant 0 : index
    %c0_81 = arith.constant 0 : index
    %c0_82 = arith.constant 0 : index
    %116 = vector.load %arg13[%c0_80, %c0_81, %c0_82] : memref<1x4x128xf32, #tpu.memory_space<vmem>>, vector<1x4x128xf32>
    %117 = vector.shape_cast %116 : vector<1x4x128xf32> to vector<4x128xf32>
    %118 = vector.shape_cast %99 : vector<4x128xf32> to vector<1x4x128xf32>
    tpu.vector_store %arg13[%c0_80, %c0_81, %c0_82], %118 {strides = array<i32>} : memref<1x4x128xf32, #tpu.memory_space<vmem>>, vector<1x4x128xf32>,
    return
  }
  func.func @transform_0(%arg0: i32) -> (i32, i32, i32) {
    %c0_i32 = arith.constant 0 : i32
    %c0_i32_0 = arith.constant 0 : i32
    %c0_i32_1 = arith.constant 0 : i32
    return %arg0, %c0_i32, %c0_i32_0 : i32, i32, i32
  }
  func.func @transform_1(%arg0: i32) -> (i32, i32, i32) {
    %c0_i32 = arith.constant 0 : i32
    %c0_i32_0 = arith.constant 0 : i32
    %c0_i32_1 = arith.constant 0 : i32
    return %arg0, %c0_i32, %c0_i32_0 : i32, i32, i32
  }
  func.func @transform_2(%arg0: i32) -> (i32, i32, i32) {
    %c0_i32 = arith.constant 0 : i32
    %c0_i32_0 = arith.constant 0 : i32
    %c0_i32_1 = arith.constant 0 : i32
    return %arg0, %c0_i32, %c0_i32_0 : i32, i32, i32
  }
  func.func @transform_3(%arg0: i32) -> (i32, i32, i32) {
    %c0_i32 = arith.constant 0 : i32
    %c0_i32_0 = arith.constant 0 : i32
    %c0_i32_1 = arith.constant 0 : i32
    return %arg0, %c0_i32, %c0_i32_0 : i32, i32, i32
  }
  func.func @transform_4(%arg0: i32) -> (i32, i32, i32) {
    %c0_i32 = arith.constant 0 : i32
    %c0_i32_0 = arith.constant 0 : i32
    %c0_i32_1 = arith.constant 0 : i32
    return %arg0, %c0_i32, %c0_i32_0 : i32, i32, i32
  }
  func.func @transform_5(%arg0: i32) -> (i32, i32, i32) {
    %c0_i32 = arith.constant 0 : i32
    %c0_i32_0 = arith.constant 0 : i32
    %c0_i32_1 = arith.constant 0 : i32
    return %arg0, %c0_i32, %c0_i32_0 : i32, i32, i32
  }
  func.func @transform_6(%arg0: i32) -> (i32, i32, i32) {
    %c0_i32 = arith.constant 0 : i32
    %c0_i32_0 = arith.constant 0 : i32
    %c0_i32_1 = arith.constant 0 : i32
    return %arg0, %c0_i32, %c0_i32_0 : i32, i32, i32
  }
  func.func @transform_7(%arg0: i32) -> (i32, i32, i32) {
    %c0_i32 = arith.constant 0 : i32
    %c0_i32_0 = arith.constant 0 : i32
    %c0_i32_1 = arith.constant 0 : i32
    return %arg0, %c0_i32, %c0_i32_0 : i32, i32, i32
  }
  func.func @transform_8(%arg0: i32) -> (i32, i32, i32) {
    %c0_i32 = arith.constant 0 : i32
    %c0_i32_0 = arith.constant 0 : i32
    %c0_i32_1 = arith.constant 0 : i32
    return %arg0, %c0_i32, %c0_i32_0 : i32, i32, i32
  }
  func.func @transform_9(%arg0: i32) -> (i32, i32, i32) {
    %c0_i32 = arith.constant 0 : i32
    %c0_i32_0 = arith.constant 0 : i32
    %c0_i32_1 = arith.constant 0 : i32
    return %arg0, %c0_i32, %c0_i32_0 : i32, i32, i32
  }
  func.func @transform_10(%arg0: i32) -> (i32, i32, i32) {
    %c0_i32 = arith.constant 0 : i32
    %c0_i32_0 = arith.constant 0 : i32
    %c0_i32_1 = arith.constant 0 : i32
    return %arg0, %c0_i32, %c0_i32_0 : i32, i32, i32
  }
  func.func @transform_11(%arg0: i32) -> (i32, i32, i32) {
    %c0_i32 = arith.constant 0 : i32
    %c0_i32_0 = arith.constant 0 : i32
    %c0_i32_1 = arith.constant 0 : i32
    return %arg0, %c0_i32, %c0_i32_0 : i32, i32, i32
  }
  func.func @transform_12(%arg0: i32) -> (i32, i32, i32) {
    %c0_i32 = arith.constant 0 : i32
    %c0_i32_0 = arith.constant 0 : i32
    %c0_i32_1 = arith.constant 0 : i32
    return %arg0, %c0_i32, %c0_i32_0 : i32, i32, i32
  }
  func.func @transform_13(%arg0: i32) -> (i32, i32, i32) {
    %c0_i32 = arith.constant 0 : i32
    %c0_i32_0 = arith.constant 0 : i32
    %c0_i32_1 = arith.constant 0 : i32
    return %arg0, %c0_i32, %c0_i32_0 : i32, i32, i32
  }
  func.func @transform_14(%arg0: i32) -> (i32, i32, i32) {
    %c0_i32 = arith.constant 0 : i32
    %c0_i32_0 = arith.constant 0 : i32
    %c0_i32_1 = arith.constant 0 : i32
    return %arg0, %c0_i32, %c0_i32_0 : i32, i32, i32
  }
  func.func @transform_15(%arg0: i32) -> (i32, i32, i32) {
    %c0_i32 = arith.constant 0 : i32
    %c0_i32_0 = arith.constant 0 : i32
    %c0_i32_1 = arith.constant 0 : i32
    return %arg0, %c0_i32, %c0_i32_0 : i32, i32, i32
  }
  func.func @transform_16(%arg0: i32) -> (i32, i32, i32) {
    %c0_i32 = arith.constant 0 : i32
    %c0_i32_0 = arith.constant 0 : i32
    %c0_i32_1 = arith.constant 0 : i32
    return %arg0, %c0_i32, %c0_i32_0 : i32, i32, i32
  }
}

</mosaic_0001>

<llo_original>
// kernel: crossclr_forward.2
$region0: #{crossclr_forward.2}
  #allocation0 [shape = 'u32[]', space=smem, size = 0x4, offset = 0x4, fixed_abs, tag = 'smem constant byte address 0x4 - core index']
  #allocation1 [shape = 'u32[144,128]{1,0:T(1,128)}', space=vmem, size = 0x12000, scoped, tag = 'internal scratch']
  %s0 = inlined_call_operand.vmem [shape: f32[384,25], index: 0, kind: input, shape index: {}]
  %s1 = inlined_call_operand.vmem [shape: f32[384,25], index: 1, kind: input, shape index: {}]
  %s2 = inlined_call_operand.hbm [shape: f32[25,25], index: 2, kind: input, shape index: {}]
  %s3 = inlined_call_operand.vmem [shape: f32[384,25], index: 3, kind: output, shape index: {0}]
  %s4 = inlined_call_operand.vmem [shape: f32[384,25], index: 4, kind: output, shape index: {1}]
  %5 = xla_tuple %s3, %s4
  %s6 = sld [smem:[#allocation0]]
  $region34: #{crossclr_forward.2} parent=0
    _
  %s8 = ssub.s32 1, %s6
  %s9 = scalar_select 0, %s8, %s6
  $region1: #{crossclr_forward.2} parent=0
    #allocation2 [shape = 'u8[16384]{0}', space=vmem, size = 0x4000, scoped, tag = 'input window, operand 2, single buffered']
    #allocation3 [shape = 's32[1]{0}', space=sflag, size = 0x4, scoped, tag = 'scoped memory for crossclr_forward.2']
    %10 = vsyncpa [#allocation3], 0
    // Predicated region
    $region2: #{crossclr_forward.2} parent=1 // pred_check
      _
    $region3: #{crossclr_forward.2} parent=1 // pred_check_branch
      %12 = sbr.rel (0) target = $region5
    $region4: #{crossclr_forward.2} parent=1 // pred_region
      _
    $region5: #{crossclr_forward.2} parent=1 // pred_fallthru
      _
    // Predicated region
    $region6: #{crossclr_forward.2} parent=1 // pred_check
      _
    $region7: #{crossclr_forward.2} parent=1 // pred_check_branch
      %14 = sbr.rel (0) target = $region9
    $region8: #{crossclr_forward.2} parent=1 // pred_region
      _
    $region9: #{crossclr_forward.2} parent=1 // pred_fallthru
      _
    // Predicated region
    $region10: #{crossclr_forward.2} parent=1 // pred_check
      _
    $region11: #{crossclr_forward.2} parent=1 // pred_check_branch
      %16 = sbr.rel (0) target = $region13
    $region12: #{crossclr_forward.2} parent=1 // pred_region
      %s18 = ssub.s32 512, 512
      %19 = vsyncadd [#allocation3], %s18
      %s20 = sshll.u32 [#allocation2], 4
      %s21 = int_to_ptr.vmem [resolvable:$true] %s20
      %26 = dma.hbm_to_vmem [thread:$0]  %s2, 512, %s21, [#allocation3], 128, 128, 8
    $region13: #{crossclr_forward.2} parent=1 // pred_fallthru
      _
    // Predicated region
    $region14: #{crossclr_forward.2} parent=1 // pred_check
      _
    $region15: #{crossclr_forward.2} parent=1 // pred_check_branch
      %28 = sbr.rel (0) target = $region17
    $region16: #{crossclr_forward.2} parent=1 // pred_region
      %29 = dma.done [#allocation3], 512
    $region17: #{crossclr_forward.2} parent=1 // pred_fallthru
      _
    %v30 = vld [vmem:[%s0] sm:$0xff]
    %v31 = vld [vmem:[%s0 + $0x8] sm:$0xff]
    %v32 = vld [vmem:[%s0 + $0x10] sm:$0xff]
    %v33 = vld [vmem:[%s0 + $0x18] sm:$0xff]
    %v34 = vld [vmem:[%s0 + $0x20] sm:$0xff]
    %v35 = vld [vmem:[%s0 + $0x28] sm:$0xff]
    %v36 = vld [vmem:[%s0 + $0x30] sm:$0xff]
    %v37 = vld [vmem:[%s0 + $0x38] sm:$0xff]
    %v38 = vld [vmem:[%s0 + $0x40] sm:$0xff]
    %v39 = vld [vmem:[%s0 + $0x48] sm:$0xff]
    %v40 = vld [vmem:[%s0 + $0x50] sm:$0xff]
    %v41 = vld [vmem:[%s0 + $0x58] sm:$0xff]
    %v42 = vld [vmem:[%s0 + $0x60] sm:$0xff]
    %v43 = vld [vmem:[%s0 + $0x68] sm:$0xff]
    %v44 = vld [vmem:[%s0 + $0x70] sm:$0xff]
    %v45 = vld [vmem:[%s0 + $0x78] sm:$0xff]
    %v46 = vld [vmem:[%s0 + $0x80] sm:$0xff]
    %v47 = vld [vmem:[%s0 + $0x88] sm:$0xff]
    %v48 = vld [vmem:[%s0 + $0x90] sm:$0xff]
    %v49 = vld [vmem:[%s0 + $0x98] sm:$0xff]
    %v50 = vld [vmem:[%s0 + $0xa0] sm:$0xff]
    %v51 = vld [vmem:[%s0 + $0xa8] sm:$0xff]
    %v52 = vld [vmem:[%s0 + $0xb0] sm:$0xff]
    %v53 = vld [vmem:[%s0 + $0xb8] sm:$0xff]
    %v54 = vld [vmem:[%s0 + $0xc0] sm:$0xff]
    %v55 = vld [vmem:[%s0 + $0xc8] sm:$0xff]
    %v56 = vld [vmem:[%s0 + $0xd0] sm:$0xff]
    %v57 = vld [vmem:[%s0 + $0xd8] sm:$0xff]
    %v58 = vld [vmem:[%s0 + $0xe0] sm:$0xff]
    %v59 = vld [vmem:[%s0 + $0xe8] sm:$0xff]
    %v60 = vld [vmem:[%s0 + $0xf0] sm:$0xff]
    %v61 = vld [vmem:[%s0 + $0xf8] sm:$0xff]
    %v62 = vld [vmem:[%s0 + $0x100] sm:$0xff]
    %v63 = vld [vmem:[%s0 + $0x108] sm:$0xff]
    %v64 = vld [vmem:[%s0 + $0x110] sm:$0xff]
    %v65 = vld [vmem:[%s0 + $0x118] sm:$0xff]
    %v66 = vld [vmem:[%s0 + $0x120] sm:$0xff]
    %v67 = vld [vmem:[%s0 + $0x128] sm:$0xff]
    %v68 = vld [vmem:[%s0 + $0x130] sm:$0xff]
    %v69 = vld [vmem:[%s0 + $0x138] sm:$0xff]
    %v70 = vld [vmem:[%s0 + $0x140] sm:$0xff]
    %v71 = vld [vmem:[%s0 + $0x148] sm:$0xff]
    %v72 = vld [vmem:[%s0 + $0x150] sm:$0xff]
    %v73 = vld [vmem:[%s0 + $0x158] sm:$0xff]
    %v74 = vld [vmem:[%s0 + $0x160] sm:$0xff]
    %v75 = vld [vmem:[%s0 + $0x168] sm:$0xff]
    %v76 = vld [vmem:[%s0 + $0x170] sm:$0xff]
    %v77 = vld [vmem:[%s0 + $0x178] sm:$0xff]
    %v78 = vlaneseq
    %v79 = vshrl.u32 %v78, 7
    %v80 = vadd.s32 %v79, 8
    %v81 = vadd.s32 %v79, 16
    %v82 = vadd.s32 %v79, 24
    %v83 = vadd.s32 %v79, 32
    %v84 = vadd.s32 %v79, 40
    %v85 = vadd.s32 %v79, 48
    %v86 = vadd.s32 %v79, 56
    %v87 = vadd.s32 %v79, 64
    %v88 = vadd.s32 %v79, 72
    %v89 = vadd.s32 %v79, 80
    %v90 = vadd.s32 %v79, 88
    %v91 = vadd.s32 %v79, 96
    %v92 = vadd.s32 %v79, 104
    %v93 = vadd.s32 %v79, 112
    %v94 = vadd.s32 %v79, 120
    %v95 = vadd.s32 %v79, 128
    %v96 = vadd.s32 %v79, 136
    %v97 = vadd.s32 %v79, 144
    %v98 = vadd.s32 %v79, 152
    %v99 = vadd.s32 %v79, 160
    %v100 = vadd.s32 %v79, 168
    %v101 = vadd.s32 %v79, 176
    %v102 = vadd.s32 %v79, 184
    %v103 = vadd.s32 %v79, 192
    %v104 = vadd.s32 %v79, 200
    %v105 = vadd.s32 %v79, 208
    %v106 = vadd.s32 %v79, 216
    %v107 = vadd.s32 %v79, 224
    %v108 = vadd.s32 %v79, 232
    %v109 = vadd.s32 %v79, 240
    %v110 = vadd.s32 %v79, 248
    %v111 = vadd.s32 %v79, 256
    %v112 = vadd.s32 %v79, 264
    %v113 = vadd.s32 %v79, 272
    %v114 = vadd.s32 %v79, 280
    %v115 = vadd.s32 %v79, 288
    %v116 = vadd.s32 %v79, 296
    %v117 = vadd.s32 %v79, 304
    %v118 = vadd.s32 %v79, 312
    %v119 = vadd.s32 %v79, 320
    %v120 = vadd.s32 %v79, 328
    %v121 = vadd.s32 %v79, 336
    %v122 = vadd.s32 %v79, 344
    %v123 = vadd.s32 %v79, 352
    %v124 = vadd.s32 %v79, 360
    %v125 = vadd.s32 %v79, 368
    %v126 = vadd.s32 %v79, 376
    %vm127 = vcmp.lt.s32.totalorder %v79, 0
    %v128 = vsub.s32 0, %v79
    %v129 = vsel %vm127, %v128, %v79
    %v130 = vshrl.u32 %v129, 3
    %v131 = vand.u32 %v129, 7
    %v132 = vsub.s32 0, %v131
    %v133 = vsel %vm127, %v132, %v131
    %vm134 = vcmp.lt.s32.totalorder %v80, 0
    %v135 = vsub.s32 0, %v80
    %v136 = vsel %vm134, %v135, %v80
    %v137 = vshrl.u32 %v136, 3
    %v138 = vand.u32 %v136, 7
    %v139 = vsub.s32 0, %v138
    %v140 = vsel %vm134, %v139, %v138
    %vm141 = vcmp.lt.s32.totalorder %v81, 0
    %v142 = vsub.s32 0, %v81
    %v143 = vsel %vm141, %v142, %v81
    %v144 = vshrl.u32 %v143, 3
    %v145 = vand.u32 %v143, 7
    %v146 = vsub.s32 0, %v145
    %v147 = vsel %vm141, %v146, %v145
    %vm148 = vcmp.lt.s32.totalorder %v82, 0
    %v149 = vsub.s32 0, %v82
    %v150 = vsel %vm148, %v149, %v82
    %v151 = vshrl.u32 %v150, 3
    %v152 = vand.u32 %v150, 7
    %v153 = vsub.s32 0, %v152
    %v154 = vsel %vm148, %v153, %v152
    %vm155 = vcmp.lt.s32.totalorder %v83, 0
    %v156 = vsub.s32 0, %v83
    %v157 = vsel %vm155, %v156, %v83
    %v158 = vshrl.u32 %v157, 3
    %v159 = vand.u32 %v157, 7
    %v160 = vsub.s32 0, %v159
    %v161 = vsel %vm155, %v160, %v159
    %vm162 = vcmp.lt.s32.totalorder %v84, 0
    %v163 = vsub.s32 0, %v84
    %v164 = vsel %vm162, %v163, %v84
    %v165 = vshrl.u32 %v164, 3
    %v166 = vand.u32 %v164, 7
    %v167 = vsub.s32 0, %v166
    %v168 = vsel %vm162, %v167, %v166
    %vm169 = vcmp.lt.s32.totalorder %v85, 0
    %v170 = vsub.s32 0, %v85
    %v171 = vsel %vm169, %v170, %v85
    %v172 = vshrl.u32 %v171, 3
    %v173 = vand.u32 %v171, 7
    %v174 = vsub.s32 0, %v173
    %v175 = vsel %vm169, %v174, %v173
    %vm176 = vcmp.lt.s32.totalorder %v86, 0
    %v177 = vsub.s32 0, %v86
    %v178 = vsel %vm176, %v177, %v86
    %v179 = vshrl.u32 %v178, 3
    %v180 = vand.u32 %v178, 7
    %v181 = vsub.s32 0, %v180
    %v182 = vsel %vm176, %v181, %v180
    %vm183 = vcmp.lt.s32.totalorder %v87, 0
    %v184 = vsub.s32 0, %v87
    %v185 = vsel %vm183, %v184, %v87
    %v186 = vshrl.u32 %v185, 3
    %v187 = vand.u32 %v185, 7
    %v188 = vsub.s32 0, %v187
    %v189 = vsel %vm183, %v188, %v187
    %vm190 = vcmp.lt.s32.totalorder %v88, 0
    %v191 = vsub.s32 0, %v88
    %v192 = vsel %vm190, %v191, %v88
    %v193 = vshrl.u32 %v192, 3
    %v194 = vand.u32 %v192, 7
    %v195 = vsub.s32 0, %v194
    %v196 = vsel %vm190, %v195, %v194
    %vm197 = vcmp.lt.s32.totalorder %v89, 0
    %v198 = vsub.s32 0, %v89
    %v199 = vsel %vm197, %v198, %v89
    %v200 = vshrl.u32 %v199, 3
    %v201 = vand.u32 %v199, 7
    %v202 = vsub.s32 0, %v201
    %v203 = vsel %vm197, %v202, %v201
    %vm204 = vcmp.lt.s32.totalorder %v90, 0
    %v205 = vsub.s32 0, %v90
    %v206 = vsel %vm204, %v205, %v90
    %v207 = vshrl.u32 %v206, 3
    %v208 = vand.u32 %v206, 7
    %v209 = vsub.s32 0, %v208
    %v210 = vsel %vm204, %v209, %v208
    %vm211 = vcmp.lt.s32.totalorder %v91, 0
    %v212 = vsub.s32 0, %v91
    %v213 = vsel %vm211, %v212, %v91
    %v214 = vshrl.u32 %v213, 3
    %v215 = vand.u32 %v213, 7
    %v216 = vsub.s32 0, %v215
    %v217 = vsel %vm211, %v216, %v215
    %vm218 = vcmp.lt.s32.totalorder %v92, 0
    %v219 = vsub.s32 0, %v92
    %v220 = vsel %vm218, %v219, %v92
    %v221 = vshrl.u32 %v220, 3
    %v222 = vand.u32 %v220, 7
    %v223 = vsub.s32 0, %v222
    %v224 = vsel %vm218, %v223, %v222
    %vm225 = vcmp.lt.s32.totalorder %v93, 0
    %v226 = vsub.s32 0, %v93
    %v227 = vsel %vm225, %v226, %v93
    %v228 = vshrl.u32 %v227, 3
    %v229 = vand.u32 %v227, 7
    %v230 = vsub.s32 0, %v229
    %v231 = vsel %vm225, %v230, %v229
    %vm232 = vcmp.lt.s32.totalorder %v94, 0
    %v233 = vsub.s32 0, %v94
    %v234 = vsel %vm232, %v233, %v94
    %v235 = vshrl.u32 %v234, 3
    %v236 = vand.u32 %v234, 7
    %v237 = vsub.s32 0, %v236
    %v238 = vsel %vm232, %v237, %v236
    %vm239 = vcmp.lt.s32.totalorder %v95, 0
    %v240 = vsub.s32 0, %v95
    %v241 = vsel %vm239, %v240, %v95
    %v242 = vshrl.u32 %v241, 3
    %v243 = vand.u32 %v241, 7
    %v244 = vsub.s32 0, %v243
    %v245 = vsel %vm239, %v244, %v243
    %vm246 = vcmp.lt.s32.totalorder %v96, 0
    %v247 = vsub.s32 0, %v96
    %v248 = vsel %vm246, %v247, %v96
    %v249 = vshrl.u32 %v248, 3
    %v250 = vand.u32 %v248, 7
    %v251 = vsub.s32 0, %v250
    %v252 = vsel %vm246, %v251, %v250
    %vm253 = vcmp.lt.s32.totalorder %v97, 0
    %v254 = vsub.s32 0, %v97
    %v255 = vsel %vm253, %v254, %v97
    %v256 = vshrl.u32 %v255, 3
    %v257 = vand.u32 %v255, 7
    %v258 = vsub.s32 0, %v257
    %v259 = vsel %vm253, %v258, %v257
    %vm260 = vcmp.lt.s32.totalorder %v98, 0
    %v261 = vsub.s32 0, %v98
    %v262 = vsel %vm260, %v261, %v98
    %v263 = vshrl.u32 %v262, 3
    %v264 = vand.u32 %v262, 7
    %v265 = vsub.s32 0, %v264
    %v266 = vsel %vm260, %v265, %v264
    %vm267 = vcmp.lt.s32.totalorder %v99, 0
    %v268 = vsub.s32 0, %v99
    %v269 = vsel %vm267, %v268, %v99
    %v270 = vshrl.u32 %v269, 3
    %v271 = vand.u32 %v269, 7
    %v272 = vsub.s32 0, %v271
    %v273 = vsel %vm267, %v272, %v271
    %vm274 = vcmp.lt.s32.totalorder %v100, 0
    %v275 = vsub.s32 0, %v100
    %v276 = vsel %vm274, %v275, %v100
    %v277 = vshrl.u32 %v276, 3
    %v278 = vand.u32 %v276, 7
    %v279 = vsub.s32 0, %v278
    %v280 = vsel %vm274, %v279, %v278
    %vm281 = vcmp.lt.s32.totalorder %v101, 0
    %v282 = vsub.s32 0, %v101
    %v283 = vsel %vm281, %v282, %v101
    %v284 = vshrl.u32 %v283, 3
    %v285 = vand.u32 %v283, 7
    %v286 = vsub.s32 0, %v285
    %v287 = vsel %vm281, %v286, %v285
    %vm288 = vcmp.lt.s32.totalorder %v102, 0
    %v289 = vsub.s32 0, %v102
    %v290 = vsel %vm288, %v289, %v102
    %v291 = vshrl.u32 %v290, 3
    %v292 = vand.u32 %v290, 7
    %v293 = vsub.s32 0, %v292
    %v294 = vsel %vm288, %v293, %v292
    %vm295 = vcmp.lt.s32.totalorder %v103, 0
    %v296 = vsub.s32 0, %v103
    %v297 = vsel %vm295, %v296, %v103
    %v298 = vshrl.u32 %v297, 3
    %v299 = vand.u32 %v297, 7
    %v300 = vsub.s32 0, %v299
    %v301 = vsel %vm295, %v300, %v299
    %vm302 = vcmp.lt.s32.totalorder %v104, 0
    %v303 = vsub.s32 0, %v104
    %v304 = vsel %vm302, %v303, %v104
    %v305 = vshrl.u32 %v304, 3
    %v306 = vand.u32 %v304, 7
    %v307 = vsub.s32 0, %v306
    %v308 = vsel %vm302, %v307, %v306
    %vm309 = vcmp.lt.s32.totalorder %v105, 0
    %v310 = vsub.s32 0, %v105
    %v311 = vsel %vm309, %v310, %v105
    %v312 = vshrl.u32 %v311, 3
    %v313 = vand.u32 %v311, 7
    %v314 = vsub.s32 0, %v313
    %v315 = vsel %vm309, %v314, %v313
    %vm316 = vcmp.lt.s32.totalorder %v106, 0
    %v317 = vsub.s32 0, %v106
    %v318 = vsel %vm316, %v317, %v106
    %v319 = vshrl.u32 %v318, 3
    %v320 = vand.u32 %v318, 7
    %v321 = vsub.s32 0, %v320
    %v322 = vsel %vm316, %v321, %v320
    %vm323 = vcmp.lt.s32.totalorder %v107, 0
    %v324 = vsub.s32 0, %v107
    %v325 = vsel %vm323, %v324, %v107
    %v326 = vshrl.u32 %v325, 3
    %v327 = vand.u32 %v325, 7
    %v328 = vsub.s32 0, %v327
    %v329 = vsel %vm323, %v328, %v327
    %vm330 = vcmp.lt.s32.totalorder %v108, 0
    %v331 = vsub.s32 0, %v108
    %v332 = vsel %vm330, %v331, %v108
    %v333 = vshrl.u32 %v332, 3
    %v334 = vand.u32 %v332, 7
    %v335 = vsub.s32 0, %v334
    %v336 = vsel %vm330, %v335, %v334
    %vm337 = vcmp.lt.s32.totalorder %v109, 0
    %v338 = vsub.s32 0, %v109
    %v339 = vsel %vm337, %v338, %v109
    %v340 = vshrl.u32 %v339, 3
    %v341 = vand.u32 %v339, 7
    %v342 = vsub.s32 0, %v341
    %v343 = vsel %vm337, %v342, %v341
    %vm344 = vcmp.lt.s32.totalorder %v110, 0
    %v345 = vsub.s32 0, %v110
    %v346 = vsel %vm344, %v345, %v110
    %v347 = vshrl.u32 %v346, 3
    %v348 = vand.u32 %v346, 7
    %v349 = vsub.s32 0, %v348
    %v350 = vsel %vm344, %v349, %v348
    %vm351 = vcmp.lt.s32.totalorder %v111, 0
    %v352 = vsub.s32 0, %v111
    %v353 = vsel %vm351, %v352, %v111
    %v354 = vshrl.u32 %v353, 3
    %v355 = vand.u32 %v353, 7
    %v356 = vsub.s32 0, %v355
    %v357 = vsel %vm351, %v356, %v355
    %vm358 = vcmp.lt.s32.totalorder %v112, 0
    %v359 = vsub.s32 0, %v112
    %v360 = vsel %vm358, %v359, %v112
    %v361 = vshrl.u32 %v360, 3
    %v362 = vand.u32 %v360, 7
    %v363 = vsub.s32 0, %v362
    %v364 = vsel %vm358, %v363, %v362
    %vm365 = vcmp.lt.s32.totalorder %v113, 0
    %v366 = vsub.s32 0, %v113
    %v367 = vsel %vm365, %v366, %v113
    %v368 = vshrl.u32 %v367, 3
    %v369 = vand.u32 %v367, 7
    %v370 = vsub.s32 0, %v369
    %v371 = vsel %vm365, %v370, %v369
    %vm372 = vcmp.lt.s32.totalorder %v114, 0
    %v373 = vsub.s32 0, %v114
    %v374 = vsel %vm372, %v373, %v114
    %v375 = vshrl.u32 %v374, 3
    %v376 = vand.u32 %v374, 7
    %v377 = vsub.s32 0, %v376
    %v378 = vsel %vm372, %v377, %v376
    %vm379 = vcmp.lt.s32.totalorder %v115, 0
    %v380 = vsub.s32 0, %v115
    %v381 = vsel %vm379, %v380, %v115
    %v382 = vshrl.u32 %v381, 3
    %v383 = vand.u32 %v381, 7
    %v384 = vsub.s32 0, %v383
    %v385 = vsel %vm379, %v384, %v383
    %vm386 = vcmp.lt.s32.totalorder %v116, 0
    %v387 = vsub.s32 0, %v116
    %v388 = vsel %vm386, %v387, %v116
    %v389 = vshrl.u32 %v388, 3
    %v390 = vand.u32 %v388, 7
    %v391 = vsub.s32 0, %v390
    %v392 = vsel %vm386, %v391, %v390
    %vm393 = vcmp.lt.s32.totalorder %v117, 0
    %v394 = vsub.s32 0, %v117
    %v395 = vsel %vm393, %v394, %v117
    %v396 = vshrl.u32 %v395, 3
    %v397 = vand.u32 %v395, 7
    %v398 = vsub.s32 0, %v397
    %v399 = vsel %vm393, %v398, %v397
    %vm400 = vcmp.lt.s32.totalorder %v118, 0
    %v401 = vsub.s32 0, %v118
    %v402 = vsel %vm400, %v401, %v118
    %v403 = vshrl.u32 %v402, 3
    %v404 = vand.u32 %v402, 7
    %v405 = vsub.s32 0, %v404
    %v406 = vsel %vm400, %v405, %v404
    %vm407 = vcmp.lt.s32.totalorder %v119, 0
    %v408 = vsub.s32 0, %v119
    %v409 = vsel %vm407, %v408, %v119
    %v410 = vshrl.u32 %v409, 3
    %v411 = vand.u32 %v409, 7
    %v412 = vsub.s32 0, %v411
    %v413 = vsel %vm407, %v412, %v411
    %vm414 = vcmp.lt.s32.totalorder %v120, 0
    %v415 = vsub.s32 0, %v120
    %v416 = vsel %vm414, %v415, %v120
    %v417 = vshrl.u32 %v416, 3
    %v418 = vand.u32 %v416, 7
    %v419 = vsub.s32 0, %v418
    %v420 = vsel %vm414, %v419, %v418
    %vm421 = vcmp.lt.s32.totalorder %v121, 0
    %v422 = vsub.s32 0, %v121
    %v423 = vsel %vm421, %v422, %v121
    %v424 = vshrl.u32 %v423, 3
    %v425 = vand.u32 %v423, 7
    %v426 = vsub.s32 0, %v425
    %v427 = vsel %vm421, %v426, %v425
    %vm428 = vcmp.lt.s32.totalorder %v122, 0
    %v429 = vsub.s32 0, %v122
    %v430 = vsel %vm428, %v429, %v122
    %v431 = vshrl.u32 %v430, 3
    %v432 = vand.u32 %v430, 7
    %v433 = vsub.s32 0, %v432
    %v434 = vsel %vm428, %v433, %v432
    %vm435 = vcmp.lt.s32.totalorder %v123, 0
    %v436 = vsub.s32 0, %v123
    %v437 = vsel %vm435, %v436, %v123
    %v438 = vshrl.u32 %v437, 3
    %v439 = vand.u32 %v437, 7
    %v440 = vsub.s32 0, %v439
    %v441 = vsel %vm435, %v440, %v439
    %vm442 = vcmp.lt.s32.totalorder %v124, 0
    %v443 = vsub.s32 0, %v124
    %v444 = vsel %vm442, %v443, %v124
    %v445 = vshrl.u32 %v444, 3
    %v446 = vand.u32 %v444, 7
    %v447 = vsub.s32 0, %v446
    %v448 = vsel %vm442, %v447, %v446
    %vm449 = vcmp.lt.s32.totalorder %v125, 0
    %v450 = vsub.s32 0, %v125
    %v451 = vsel %vm449, %v450, %v125
    %v452 = vshrl.u32 %v451, 3
    %v453 = vand.u32 %v451, 7
    %v454 = vsub.s32 0, %v453
    %v455 = vsel %vm449, %v454, %v453
    %vm456 = vcmp.lt.s32.totalorder %v126, 0
    %v457 = vsub.s32 0, %v126
    %v458 = vsel %vm456, %v457, %v126
    %v459 = vshrl.u32 %v458, 3
    %v460 = vand.u32 %v458, 7
    %v461 = vsub.s32 0, %v460
    %v462 = vsel %vm456, %v461, %v460
    %vm463 = vcmp.ne.s32.totalorder %v133, 0
    %vm464 = vcmp.ne.s32.totalorder %v140, 0
    %vm465 = vcmp.ne.s32.totalorder %v147, 0
    %vm466 = vcmp.ne.s32.totalorder %v154, 0
    %vm467 = vcmp.ne.s32.totalorder %v161, 0
    %vm468 = vcmp.ne.s32.totalorder %v168, 0
    %vm469 = vcmp.ne.s32.totalorder %v175, 0
    %vm470 = vcmp.ne.s32.totalorder %v182, 0
    %vm471 = vcmp.ne.s32.totalorder %v189, 0
    %vm472 = vcmp.ne.s32.totalorder %v196, 0
    %vm473 = vcmp.ne.s32.totalorder %v203, 0
    %vm474 = vcmp.ne.s32.totalorder %v210, 0
    %vm475 = vcmp.ne.s32.totalorder %v217, 0
    %vm476 = vcmp.ne.s32.totalorder %v224, 0
    %vm477 = vcmp.ne.s32.totalorder %v231, 0
    %vm478 = vcmp.ne.s32.totalorder %v238, 0
    %vm479 = vcmp.ne.s32.totalorder %v245, 0
    %vm480 = vcmp.ne.s32.totalorder %v252, 0
    %vm481 = vcmp.ne.s32.totalorder %v259, 0
    %vm482 = vcmp.ne.s32.totalorder %v266, 0
    %vm483 = vcmp.ne.s32.totalorder %v273, 0
    %vm484 = vcmp.ne.s32.totalorder %v280, 0
    %vm485 = vcmp.ne.s32.totalorder %v287, 0
    %vm486 = vcmp.ne.s32.totalorder %v294, 0
    %vm487 = vcmp.ne.s32.totalorder %v301, 0
    %vm488 = vcmp.ne.s32.totalorder %v308, 0
    %vm489 = vcmp.ne.s32.totalorder %v315, 0
    %vm490 = vcmp.ne.s32.totalorder %v322, 0
    %vm491 = vcmp.ne.s32.totalorder %v329, 0
    %vm492 = vcmp.ne.s32.totalorder %v336, 0
    %vm493 = vcmp.ne.s32.totalorder %v343, 0
    %vm494 = vcmp.ne.s32.totalorder %v350, 0
    %vm495 = vcmp.ne.s32.totalorder %v357, 0
    %vm496 = vcmp.ne.s32.totalorder %v364, 0
    %vm497 = vcmp.ne.s32.totalorder %v371, 0
    %vm498 = vcmp.ne.s32.totalorder %v378, 0
    %vm499 = vcmp.ne.s32.totalorder %v385, 0
    %vm500 = vcmp.ne.s32.totalorder %v392, 0
    %vm501 = vcmp.ne.s32.totalorder %v399, 0
    %vm502 = vcmp.ne.s32.totalorder %v406, 0
    %vm503 = vcmp.ne.s32.totalorder %v413, 0
    %vm504 = vcmp.ne.s32.totalorder %v420, 0
    %vm505 = vcmp.ne.s32.totalorder %v427, 0
    %vm506 = vcmp.ne.s32.totalorder %v434, 0
    %vm507 = vcmp.ne.s32.totalorder %v441, 0
    %vm508 = vcmp.ne.s32.totalorder %v448, 0
    %vm509 = vcmp.ne.s32.totalorder %v455, 0
    %vm510 = vcmp.ne.s32.totalorder %v462, 0
    %vm511 = vcmp.lt.s32.totalorder %v133, 0
    %vm512 = vcmp.lt.s32.totalorder %v140, 0
    %vm513 = vcmp.lt.s32.totalorder %v147, 0
    %vm514 = vcmp.lt.s32.totalorder %v154, 0
    %vm515 = vcmp.lt.s32.totalorder %v161, 0
    %vm516 = vcmp.lt.s32.totalorder %v168, 0
    %vm517 = vcmp.lt.s32.totalorder %v175, 0
    %vm518 = vcmp.lt.s32.totalorder %v182, 0
    %vm519 = vcmp.lt.s32.totalorder %v189, 0
    %vm520 = vcmp.lt.s32.totalorder %v196, 0
    %vm521 = vcmp.lt.s32.totalorder %v203, 0
    %vm522 = vcmp.lt.s32.totalorder %v210, 0
    %vm523 = vcmp.lt.s32.totalorder %v217, 0
    %vm524 = vcmp.lt.s32.totalorder %v224, 0
    %vm525 = vcmp.lt.s32.totalorder %v231, 0
    %vm526 = vcmp.lt.s32.totalorder %v238, 0
    %vm527 = vcmp.lt.s32.totalorder %v245, 0
    %vm528 = vcmp.lt.s32.totalorder %v252, 0
    %vm529 = vcmp.lt.s32.totalorder %v259, 0
    %vm530 = vcmp.lt.s32.totalorder %v266, 0
    %vm531 = vcmp.lt.s32.totalorder %v273, 0
    %vm532 = vcmp.lt.s32.totalorder %v280, 0
    %vm533 = vcmp.lt.s32.totalorder %v287, 0
    %vm534 = vcmp.lt.s32.totalorder %v294, 0
    %vm535 = vcmp.lt.s32.totalorder %v301, 0
    %vm536 = vcmp.lt.s32.totalorder %v308, 0
    %vm537 = vcmp.lt.s32.totalorder %v315, 0
    %vm538 = vcmp.lt.s32.totalorder %v322, 0
    %vm539 = vcmp.lt.s32.totalorder %v329, 0
    %vm540 = vcmp.lt.s32.totalorder %v336, 0
    %vm541 = vcmp.lt.s32.totalorder %v343, 0
    %vm542 = vcmp.lt.s32.totalorder %v350, 0
    %vm543 = vcmp.lt.s32.totalorder %v357, 0
    %vm544 = vcmp.lt.s32.totalorder %v364, 0
    %vm545 = vcmp.lt.s32.totalorder %v371, 0
    %vm546 = vcmp.lt.s32.totalorder %v378, 0
    %vm547 = vcmp.lt.s32.totalorder %v385, 0
    %vm548 = vcmp.lt.s32.totalorder %v392, 0
    %vm549 = vcmp.lt.s32.totalorder %v399, 0
    %vm550 = vcmp.lt.s32.totalorder %v406, 0
    %vm551 = vcmp.lt.s32.totalorder %v413, 0
    %vm552 = vcmp.lt.s32.totalorder %v420, 0
    %vm553 = vcmp.lt.s32.totalorder %v427, 0
    %vm554 = vcmp.lt.s32.totalorder %v434, 0
    %vm555 = vcmp.lt.s32.totalorder %v441, 0
    %vm556 = vcmp.lt.s32.totalorder %v448, 0
    %vm557 = vcmp.lt.s32.totalorder %v455, 0
    %vm558 = vcmp.lt.s32.totalorder %v462, 0
    %vm559 = vmand %vm511, %vm463
    %vm560 = vmand %vm512, %vm464
    %vm561 = vmand %vm513, %vm465
    %vm562 = vmand %vm514, %vm466
    %vm563 = vmand %vm515, %vm467
    %vm564 = vmand %vm516, %vm468
    %vm565 = vmand %vm517, %vm469
    %vm566 = vmand %vm518, %vm470
    %vm567 = vmand %vm519, %vm471
    %vm568 = vmand %vm520, %vm472
    %vm569 = vmand %vm521, %vm473
    %vm570 = vmand %vm522, %vm474
    %vm571 = vmand %vm523, %vm475
    %vm572 = vmand %vm524, %vm476
    %vm573 = vmand %vm525, %vm477
    %vm574 = vmand %vm526, %vm478
    %vm575 = vmand %vm527, %vm479
    %vm576 = vmand %vm528, %vm480
    %vm577 = vmand %vm529, %vm481
    %vm578 = vmand %vm530, %vm482
    %vm579 = vmand %vm531, %vm483
    %vm580 = vmand %vm532, %vm484
    %vm581 = vmand %vm533, %vm485
    %vm582 = vmand %vm534, %vm486
    %vm583 = vmand %vm535, %vm487
    %vm584 = vmand %vm536, %vm488
    %vm585 = vmand %vm537, %vm489
    %vm586 = vmand %vm538, %vm490
    %vm587 = vmand %vm539, %vm491
    %vm588 = vmand %vm540, %vm492
    %vm589 = vmand %vm541, %vm493
    %vm590 = vmand %vm542, %vm494
    %vm591 = vmand %vm543, %vm495
    %vm592 = vmand %vm544, %vm496
    %vm593 = vmand %vm545, %vm497
    %vm594 = vmand %vm546, %vm498
    %vm595 = vmand %vm547, %vm499
    %vm596 = vmand %vm548, %vm500
    %vm597 = vmand %vm549, %vm501
    %vm598 = vmand %vm550, %vm502
    %vm599 = vmand %vm551, %vm503
    %vm600 = vmand %vm552, %vm504
    %vm601 = vmand %vm553, %vm505
    %vm602 = vmand %vm554, %vm506
    %vm603 = vmand %vm555, %vm507
    %vm604 = vmand %vm556, %vm508
    %vm605 = vmand %vm557, %vm509
    %vm606 = vmand %vm558, %vm510
    %v607 = vadd.s32 %v133, 8
    %v608 = vadd.s32 %v140, 8
    %v609 = vadd.s32 %v147, 8
    %v610 = vadd.s32 %v154, 8
    %v611 = vadd.s32 %v161, 8
    %v612 = vadd.s32 %v168, 8
    %v613 = vadd.s32 %v175, 8
    %v614 = vadd.s32 %v182, 8
    %v615 = vadd.s32 %v189, 8
    %v616 = vadd.s32 %v196, 8
    %v617 = vadd.s32 %v203, 8
    %v618 = vadd.s32 %v210, 8
    %v619 = vadd.s32 %v217, 8
    %v620 = vadd.s32 %v224, 8
    %v621 = vadd.s32 %v231, 8
    %v622 = vadd.s32 %v238, 8
    %v623 = vadd.s32 %v245, 8
    %v624 = vadd.s32 %v252, 8
    %v625 = vadd.s32 %v259, 8
    %v626 = vadd.s32 %v266, 8
    %v627 = vadd.s32 %v273, 8
    %v628 = vadd.s32 %v280, 8
    %v629 = vadd.s32 %v287, 8
    %v630 = vadd.s32 %v294, 8
    %v631 = vadd.s32 %v301, 8
    %v632 = vadd.s32 %v308, 8
    %v633 = vadd.s32 %v315, 8
    %v634 = vadd.s32 %v322, 8
    %v635 = vadd.s32 %v329, 8
    %v636 = vadd.s32 %v336, 8
    %v637 = vadd.s32 %v343, 8
    %v638 = vadd.s32 %v350, 8
    %v639 = vadd.s32 %v357, 8
    %v640 = vadd.s32 %v364, 8
    %v641 = vadd.s32 %v371, 8
    %v642 = vadd.s32 %v378, 8
    %v643 = vadd.s32 %v385, 8
    %v644 = vadd.s32 %v392, 8
    %v645 = vadd.s32 %v399, 8
    %v646 = vadd.s32 %v406, 8
    %v647 = vadd.s32 %v413, 8
    %v648 = vadd.s32 %v420, 8
    %v649 = vadd.s32 %v427, 8
    %v650 = vadd.s32 %v434, 8
    %v651 = vadd.s32 %v441, 8
    %v652 = vadd.s32 %v448, 8
    %v653 = vadd.s32 %v455, 8
    %v654 = vadd.s32 %v462, 8
    %v655 = vsel %vm559, %v607, %v133
    %v656 = vsel %vm560, %v608, %v140
    %v657 = vsel %vm561, %v609, %v147
    %v658 = vsel %vm562, %v610, %v154
    %v659 = vsel %vm563, %v611, %v161
    %v660 = vsel %vm564, %v612, %v168
    %v661 = vsel %vm565, %v613, %v175
    %v662 = vsel %vm566, %v614, %v182
    %v663 = vsel %vm567, %v615, %v189
    %v664 = vsel %vm568, %v616, %v196
    %v665 = vsel %vm569, %v617, %v203
    %v666 = vsel %vm570, %v618, %v210
    %v667 = vsel %vm571, %v619, %v217
    %v668 = vsel %vm572, %v620, %v224
    %v669 = vsel %vm573, %v621, %v231
    %v670 = vsel %vm574, %v622, %v238
    %v671 = vsel %vm575, %v623, %v245
    %v672 = vsel %vm576, %v624, %v252
    %v673 = vsel %vm577, %v625, %v259
    %v674 = vsel %vm578, %v626, %v266
    %v675 = vsel %vm579, %v627, %v273
    %v676 = vsel %vm580, %v628, %v280
    %v677 = vsel %vm581, %v629, %v287
    %v678 = vsel %vm582, %v630, %v294
    %v679 = vsel %vm583, %v631, %v301
    %v680 = vsel %vm584, %v632, %v308
    %v681 = vsel %vm585, %v633, %v315
    %v682 = vsel %vm586, %v634, %v322
    %v683 = vsel %vm587, %v635, %v329
    %v684 = vsel %vm588, %v636, %v336
    %v685 = vsel %vm589, %v637, %v343
    %v686 = vsel %vm590, %v638, %v350
    %v687 = vsel %vm591, %v639, %v357
    %v688 = vsel %vm592, %v640, %v364
    %v689 = vsel %vm593, %v641, %v371
    %v690 = vsel %vm594, %v642, %v378
    %v691 = vsel %vm595, %v643, %v385
    %v692 = vsel %vm596, %v644, %v392
    %v693 = vsel %vm597, %v645, %v399
    %v694 = vsel %vm598, %v646, %v406
    %v695 = vsel %vm599, %v647, %v413
    %v696 = vsel %vm600, %v648, %v420
    %v697 = vsel %vm601, %v649, %v427
    %v698 = vsel %vm602, %v650, %v434
    %v699 = vsel %vm603, %v651, %v441
    %v700 = vsel %vm604, %v652, %v448
    %v701 = vsel %vm605, %v653, %v455
    %v702 = vsel %vm606, %v654, %v462
    %vm703 = vcmp.lt.s32.totalorder %v655, 7
    %vm704 = vcmp.lt.s32.totalorder %v656, 7
    %vm705 = vcmp.lt.s32.totalorder %v657, 7
    %vm706 = vcmp.lt.s32.totalorder %v658, 7
    %vm707 = vcmp.lt.s32.totalorder %v659, 7
    %vm708 = vcmp.lt.s32.totalorder %v660, 7
    %vm709 = vcmp.lt.s32.totalorder %v661, 7
    %vm710 = vcmp.lt.s32.totalorder %v662, 7
    %vm711 = vcmp.lt.s32.totalorder %v663, 7
    %vm712 = vcmp.lt.s32.totalorder %v664, 7
    %vm713 = vcmp.lt.s32.totalorder %v665, 7
    %vm714 = vcmp.lt.s32.totalorder %v666, 7
    %vm715 = vcmp.lt.s32.totalorder %v667, 7
    %vm716 = vcmp.lt.s32.totalorder %v668, 7
    %vm717 = vcmp.lt.s32.totalorder %v669, 7
    %vm718 = vcmp.lt.s32.totalorder %v670, 7
    %vm719 = vcmp.lt.s32.totalorder %v671, 7
    %vm720 = vcmp.lt.s32.totalorder %v672, 7
    %vm721 = vcmp.lt.s32.totalorder %v673, 7
    %vm722 = vcmp.lt.s32.totalorder %v674, 7
    %vm723 = vcmp.lt.s32.totalorder %v675, 7
    %vm724 = vcmp.lt.s32.totalorder %v676, 7
    %vm725 = vcmp.lt.s32.totalorder %v677, 7
    %vm726 = vcmp.lt.s32.totalorder %v678, 7
    %vm727 = vcmp.lt.s32.totalorder %v679, 7
    %vm728 = vcmp.lt.s32.totalorder %v680, 7
    %vm729 = vcmp.lt.s32.totalorder %v681, 7
    %vm730 = vcmp.lt.s32.totalorder %v682, 7
    %vm731 = vcmp.lt.s32.totalorder %v683, 7
    %vm732 = vcmp.lt.s32.totalorder %v684, 7
    %vm733 = vcmp.lt.s32.totalorder %v685, 7
    %vm734 = vcmp.lt.s32.totalorder %v686, 7
    %vm735 = vcmp.lt.s32.totalorder %v687, 7
    %vm736 = vcmp.lt.s32.totalorder %v688, 7
    %vm737 = vcmp.lt.s32.totalorder %v689, 7
    %vm738 = vcmp.lt.s32.totalorder %v690, 7
    %vm739 = vcmp.lt.s32.totalorder %v691, 7
    %vm740 = vcmp.lt.s32.totalorder %v692, 7
    %vm741 = vcmp.lt.s32.totalorder %v693, 7
    %vm742 = vcmp.lt.s32.totalorder %v694, 7
    %vm743 = vcmp.lt.s32.totalorder %v695, 7
    %vm744 = vcmp.lt.s32.totalorder %v696, 7
    %vm745 = vcmp.lt.s32.totalorder %v697, 7
    %vm746 = vcmp.lt.s32.totalorder %v698, 7
    %vm747 = vcmp.lt.s32.totalorder %v699, 7
    %vm748 = vcmp.lt.s32.totalorder %v700, 7
    %vm749 = vcmp.lt.s32.totalorder %v701, 7
    %vm750 = vcmp.lt.s32.totalorder %v702, 7
    %v751 = vld [vmem:[%s1] sm:$0xff]
    %v752 = vld [vmem:[%s1 + $0x8] sm:$0xff]
    %v753 = vld [vmem:[%s1 + $0x10] sm:$0xff]
    %v754 = vld [vmem:[%s1 + $0x18] sm:$0xff]
    %v755 = vld [vmem:[%s1 + $0x20] sm:$0xff]
    %v756 = vld [vmem:[%s1 + $0x28] sm:$0xff]
    %v757 = vld [vmem:[%s1 + $0x30] sm:$0xff]
    %v758 = vld [vmem:[%s1 + $0x38] sm:$0xff]
    %v759 = vld [vmem:[%s1 + $0x40] sm:$0xff]
    %v760 = vld [vmem:[%s1 + $0x48] sm:$0xff]
    %v761 = vld [vmem:[%s1 + $0x50] sm:$0xff]
    %v762 = vld [vmem:[%s1 + $0x58] sm:$0xff]
    %v763 = vld [vmem:[%s1 + $0x60] sm:$0xff]
    %v764 = vld [vmem:[%s1 + $0x68] sm:$0xff]
    %v765 = vld [vmem:[%s1 + $0x70] sm:$0xff]
    %v766 = vld [vmem:[%s1 + $0x78] sm:$0xff]
    %v767 = vld [vmem:[%s1 + $0x80] sm:$0xff]
    %v768 = vld [vmem:[%s1 + $0x88] sm:$0xff]
    %v769 = vld [vmem:[%s1 + $0x90] sm:$0xff]
    %v770 = vld [vmem:[%s1 + $0x98] sm:$0xff]
    %v771 = vld [vmem:[%s1 + $0xa0] sm:$0xff]
    %v772 = vld [vmem:[%s1 + $0xa8] sm:$0xff]
    %v773 = vld [vmem:[%s1 + $0xb0] sm:$0xff]
    %v774 = vld [vmem:[%s1 + $0xb8] sm:$0xff]
    %v775 = vld [vmem:[%s1 + $0xc0] sm:$0xff]
    %v776 = vld [vmem:[%s1 + $0xc8] sm:$0xff]
    %v777 = vld [vmem:[%s1 + $0xd0] sm:$0xff]
    %v778 = vld [vmem:[%s1 + $0xd8] sm:$0xff]
    %v779 = vld [vmem:[%s1 + $0xe0] sm:$0xff]
    %v780 = vld [vmem:[%s1 + $0xe8] sm:$0xff]
    %v781 = vld [vmem:[%s1 + $0xf0] sm:$0xff]
    %v782 = vld [vmem:[%s1 + $0xf8] sm:$0xff]
    %v783 = vld [vmem:[%s1 + $0x100] sm:$0xff]
    %v784 = vld [vmem:[%s1 + $0x108] sm:$0xff]
    %v785 = vld [vmem:[%s1 + $0x110] sm:$0xff]
    %v786 = vld [vmem:[%s1 + $0x118] sm:$0xff]
    %v787 = vld [vmem:[%s1 + $0x120] sm:$0xff]
    %v788 = vld [vmem:[%s1 + $0x128] sm:$0xff]
    %v789 = vld [vmem:[%s1 + $0x130] sm:$0xff]
    %v790 = vld [vmem:[%s1 + $0x138] sm:$0xff]
    %v791 = vld [vmem:[%s1 + $0x140] sm:$0xff]
    %v792 = vld [vmem:[%s1 + $0x148] sm:$0xff]
    %v793 = vld [vmem:[%s1 + $0x150] sm:$0xff]
    %v794 = vld [vmem:[%s1 + $0x158] sm:$0xff]
    %v795 = vld [vmem:[%s1 + $0x160] sm:$0xff]
    %v796 = vld [vmem:[%s1 + $0x168] sm:$0xff]
    %v797 = vld [vmem:[%s1 + $0x170] sm:$0xff]
    %v798 = vld [vmem:[%s1 + $0x178] sm:$0xff]
    %v799 = vsub.f32 %v751, %v30
    %v800 = vsub.f32 %v752, %v31
    %v801 = vsub.f32 %v753, %v32
    %v802 = vsub.f32 %v754, %v33
    %v803 = vsub.f32 %v755, %v34
    %v804 = vsub.f32 %v756, %v35
    %v805 = vsub.f32 %v757, %v36
    %v806 = vsub.f32 %v758, %v37
    %v807 = vsub.f32 %v759, %v38
    %v808 = vsub.f32 %v760, %v39
    %v809 = vsub.f32 %v761, %v40
    %v810 = vsub.f32 %v762, %v41
    %v811 = vsub.f32 %v763, %v42
    %v812 = vsub.f32 %v764, %v43
    %v813 = vsub.f32 %v765, %v44
    %v814 = vsub.f32 %v766, %v45
    %v815 = vsub.f32 %v767, %v46
    %v816 = vsub.f32 %v768, %v47
    %v817 = vsub.f32 %v769, %v48
    %v818 = vsub.f32 %v770, %v49
    %v819 = vsub.f32 %v771, %v50
    %v820 = vsub.f32 %v772, %v51
    %v821 = vsub.f32 %v773, %v52
    %v822 = vsub.f32 %v774, %v53
    %v823 = vsub.f32 %v775, %v54
    %v824 = vsub.f32 %v776, %v55
    %v825 = vsub.f32 %v777, %v56
    %v826 = vsub.f32 %v778, %v57
    %v827 = vsub.f32 %v779, %v58
    %v828 = vsub.f32 %v780, %v59
    %v829 = vsub.f32 %v781, %v60
    %v830 = vsub.f32 %v782, %v61
    %v831 = vsub.f32 %v783, %v62
    %v832 = vsub.f32 %v784, %v63
    %v833 = vsub.f32 %v785, %v64
    %v834 = vsub.f32 %v786, %v65
    %v835 = vsub.f32 %v787, %v66
    %v836 = vsub.f32 %v788, %v67
    %v837 = vsub.f32 %v789, %v68
    %v838 = vsub.f32 %v790, %v69
    %v839 = vsub.f32 %v791, %v70
    %v840 = vsub.f32 %v792, %v71
    %v841 = vsub.f32 %v793, %v72
    %v842 = vsub.f32 %v794, %v73
    %v843 = vsub.f32 %v795, %v74
    %v844 = vsub.f32 %v796, %v75
    %v845 = vsub.f32 %v797, %v76
    %v846 = vsub.f32 %v798, %v77
    %v847 = vsel %vm703, %v799, 0.0
    %v848 = vsel %vm704, %v800, 0.0
    %v849 = vsel %vm705, %v801, 0.0
    %v850 = vsel %vm706, %v802, 0.0
    %v851 = vsel %vm707, %v803, 0.0
    %v852 = vsel %vm708, %v804, 0.0
    %v853 = vsel %vm709, %v805, 0.0
    %v854 = vsel %vm710, %v806, 0.0
    %v855 = vsel %vm711, %v807, 0.0
    %v856 = vsel %vm712, %v808, 0.0
    %v857 = vsel %vm713, %v809, 0.0
    %v858 = vsel %vm714, %v810, 0.0
    %v859 = vsel %vm715, %v811, 0.0
    %v860 = vsel %vm716, %v812, 0.0
    %v861 = vsel %vm717, %v813, 0.0
    %v862 = vsel %vm718, %v814, 0.0
    %v863 = vsel %vm719, %v815, 0.0
    %v864 = vsel %vm720, %v816, 0.0
    %v865 = vsel %vm721, %v817, 0.0
    %v866 = vsel %vm722, %v818, 0.0
    %v867 = vsel %vm723, %v819, 0.0
    %v868 = vsel %vm724, %v820, 0.0
    %v869 = vsel %vm725, %v821, 0.0
    %v870 = vsel %vm726, %v822, 0.0
    %v871 = vsel %vm727, %v823, 0.0
    %v872 = vsel %vm728, %v824, 0.0
    %v873 = vsel %vm729, %v825, 0.0
    %v874 = vsel %vm730, %v826, 0.0
    %v875 = vsel %vm731, %v827, 0.0
    %v876 = vsel %vm732, %v828, 0.0
    %v877 = vsel %vm733, %v829, 0.0
    %v878 = vsel %vm734, %v830, 0.0
    %v879 = vsel %vm735, %v831, 0.0
    %v880 = vsel %vm736, %v832, 0.0
    %v881 = vsel %vm737, %v833, 0.0
    %v882 = vsel %vm738, %v834, 0.0
    %v883 = vsel %vm739, %v835, 0.0
    %v884 = vsel %vm740, %v836, 0.0
    %v885 = vsel %vm741, %v837, 0.0
    %v886 = vsel %vm742, %v838, 0.0
    %v887 = vsel %vm743, %v839, 0.0
    %v888 = vsel %vm744, %v840, 0.0
    %v889 = vsel %vm745, %v841, 0.0
    %v890 = vsel %vm746, %v842, 0.0
    %v891 = vsel %vm747, %v843, 0.0
    %v892 = vsel %vm748, %v844, 0.0
    %v893 = vsel %vm749, %v845, 0.0
    %v894 = vsel %vm750, %v846, 0.0
    %vm895 = vcmask 203776
    %896 = vst.msk [vmem:[%s3] sm:$0xff] %vm895, %v847
    %897 = vst.msk [vmem:[%s3 + $0x8] sm:$0xff] %vm895, %v848
    %898 = vst.msk [vmem:[%s3 + $0x10] sm:$0xff] %vm895, %v849
    %899 = vst.msk [vmem:[%s3 + $0x18] sm:$0xff] %vm895, %v850
    %900 = vst.msk [vmem:[%s3 + $0x20] sm:$0xff] %vm895, %v851
    %901 = vst.msk [vmem:[%s3 + $0x28] sm:$0xff] %vm895, %v852
    %902 = vst.msk [vmem:[%s3 + $0x30] sm:$0xff] %vm895, %v853
    %903 = vst.msk [vmem:[%s3 + $0x38] sm:$0xff] %vm895, %v854
    %904 = vst.msk [vmem:[%s3 + $0x40] sm:$0xff] %vm895, %v855
    %905 = vst.msk [vmem:[%s3 + $0x48] sm:$0xff] %vm895, %v856
    %906 = vst.msk [vmem:[%s3 + $0x50] sm:$0xff] %vm895, %v857
    %907 = vst.msk [vmem:[%s3 + $0x58] sm:$0xff] %vm895, %v858
    %908 = vst.msk [vmem:[%s3 + $0x60] sm:$0xff] %vm895, %v859
    %909 = vst.msk [vmem:[%s3 + $0x68] sm:$0xff] %vm895, %v860
    %910 = vst.msk [vmem:[%s3 + $0x70] sm:$0xff] %vm895, %v861
    %911 = vst.msk [vmem:[%s3 + $0x78] sm:$0xff] %vm895, %v862
    %912 = vst.msk [vmem:[%s3 + $0x80] sm:$0xff] %vm895, %v863
    %913 = vst.msk [vmem:[%s3 + $0x88] sm:$0xff] %vm895, %v864
    %914 = vst.msk [vmem:[%s3 + $0x90] sm:$0xff] %vm895, %v865
    %915 = vst.msk [vmem:[%s3 + $0x98] sm:$0xff] %vm895, %v866
    %916 = vst.msk [vmem:[%s3 + $0xa0] sm:$0xff] %vm895, %v867
    %917 = vst.msk [vmem:[%s3 + $0xa8] sm:$0xff] %vm895, %v868
    %918 = vst.msk [vmem:[%s3 + $0xb0] sm:$0xff] %vm895, %v869
    %919 = vst.msk [vmem:[%s3 + $0xb8] sm:$0xff] %vm895, %v870
    %920 = vst.msk [vmem:[%s3 + $0xc0] sm:$0xff] %vm895, %v871
    %921 = vst.msk [vmem:[%s3 + $0xc8] sm:$0xff] %vm895, %v872
    %922 = vst.msk [vmem:[%s3 + $0xd0] sm:$0xff] %vm895, %v873
    %923 = vst.msk [vmem:[%s3 + $0xd8] sm:$0xff] %vm895, %v874
    %924 = vst.msk [vmem:[%s3 + $0xe0] sm:$0xff] %vm895, %v875
    %925 = vst.msk [vmem:[%s3 + $0xe8] sm:$0xff] %vm895, %v876
    %926 = vst.msk [vmem:[%s3 + $0xf0] sm:$0xff] %vm895, %v877
    %927 = vst.msk [vmem:[%s3 + $0xf8] sm:$0xff] %vm895, %v878
    %928 = vst.msk [vmem:[%s3 + $0x100] sm:$0xff] %vm895, %v879
    %929 = vst.msk [vmem:[%s3 + $0x108] sm:$0xff] %vm895, %v880
    %930 = vst.msk [vmem:[%s3 + $0x110] sm:$0xff] %vm895, %v881
    %931 = vst.msk [vmem:[%s3 + $0x118] sm:$0xff] %vm895, %v882
    %932 = vst.msk [vmem:[%s3 + $0x120] sm:$0xff] %vm895, %v883
    %933 = vst.msk [vmem:[%s3 + $0x128] sm:$0xff] %vm895, %v884
    %934 = vst.msk [vmem:[%s3 + $0x130] sm:$0xff] %vm895, %v885
    %935 = vst.msk [vmem:[%s3 + $0x138] sm:$0xff] %vm895, %v886
    %936 = vst.msk [vmem:[%s3 + $0x140] sm:$0xff] %vm895, %v887
    %937 = vst.msk [vmem:[%s3 + $0x148] sm:$0xff] %vm895, %v888
    %938 = vst.msk [vmem:[%s3 + $0x150] sm:$0xff] %vm895, %v889
    %939 = vst.msk [vmem:[%s3 + $0x158] sm:$0xff] %vm895, %v890
    %940 = vst.msk [vmem:[%s3 + $0x160] sm:$0xff] %vm895, %v891
    %941 = vst.msk [vmem:[%s3 + $0x168] sm:$0xff] %vm895, %v892
    %942 = vst.msk [vmem:[%s3 + $0x170] sm:$0xff] %vm895, %v893
    %943 = vst.msk [vmem:[%s3 + $0x178] sm:$0xff] %vm895, %v894
    %v944 = vld [vmem:[#allocation2] sm:$0xff]
    %v945 = vld [vmem:[#allocation2 + $0x8] sm:$0xff]
    %v946 = vld [vmem:[#allocation2 + $0x10] sm:$0xff]
    %v947 = vld [vmem:[#allocation2 + $0x18] sm:$0x1]
    %v949 = vsel %vm895, %v30, 0
    %v952 = vsel %vm895, %v31, 0
    %v955 = vsel %vm895, %v32, 0
    %v958 = vsel %vm895, %v33, 0
    %v961 = vsel %vm895, %v34, 0
    %v964 = vsel %vm895, %v35, 0
    %v967 = vsel %vm895, %v36, 0
    %v970 = vsel %vm895, %v37, 0
    %v973 = vsel %vm895, %v38, 0
    %v976 = vsel %vm895, %v39, 0
    %v979 = vsel %vm895, %v40, 0
    %v982 = vsel %vm895, %v41, 0
    %v985 = vsel %vm895, %v42, 0
    %v988 = vsel %vm895, %v43, 0
    %v991 = vsel %vm895, %v44, 0
    %v994 = vsel %vm895, %v45, 0
    %v997 = vsel %vm895, %v46, 0
    %v1000 = vsel %vm895, %v47, 0
    %v1003 = vsel %vm895, %v48, 0
    %v1006 = vsel %vm895, %v49, 0
    %v1009 = vsel %vm895, %v50, 0
    %v1012 = vsel %vm895, %v51, 0
    %v1015 = vsel %vm895, %v52, 0
    %v1018 = vsel %vm895, %v53, 0
    %v1021 = vsel %vm895, %v54, 0
    %v1024 = vsel %vm895, %v55, 0
    %v1027 = vsel %vm895, %v56, 0
    %v1030 = vsel %vm895, %v57, 0
    %v1033 = vsel %vm895, %v58, 0
    %v1036 = vsel %vm895, %v59, 0
    %v1039 = vsel %vm895, %v60, 0
    %v1042 = vsel %vm895, %v61, 0
    %v1045 = vsel %vm895, %v62, 0
    %v1048 = vsel %vm895, %v63, 0
    %v1051 = vsel %vm895, %v64, 0
    %v1054 = vsel %vm895, %v65, 0
    %v1057 = vsel %vm895, %v66, 0
    %v1060 = vsel %vm895, %v67, 0
    %v1063 = vsel %vm895, %v68, 0
    %v1066 = vsel %vm895, %v69, 0
    %v1069 = vsel %vm895, %v70, 0
    %v1072 = vsel %vm895, %v71, 0
    %v1075 = vsel %vm895, %v72, 0
    %v1078 = vsel %vm895, %v73, 0
    %v1081 = vsel %vm895, %v74, 0
    %v1084 = vsel %vm895, %v75, 0
    %v1087 = vsel %vm895, %v76, 0
    %v1090 = vsel %vm895, %v77, 0
    %vm1092 = vcmask 1040384
    %v1094 = vsel %vm1092, %v947, 0
    %1096 = vmatprep.subr.mxu0 0.0
    %1097 = vmatpush1.msra.mxu0 %v944
    %1098 = vmatprep.subr.mxu0 0.0
    %1099 = vmatpush1.msra.mxu0 %v945
    %1100 = vmatprep.subr.mxu0 0.0
    %1101 = vmatpush1.msra.mxu0 %v946
    %1102 = vmatprep.subr.mxu0 0.0
    %1103 = vmatpush1.msra.mxu0 %v1094
    %1104 = vmatprep.subr.mxu0 0.0
    %1105 = vmatpush1.msra.mxu0 0.0
    %1106 = vmatprep.subr.mxu0 0.0
    %1107 = vmatpush1.msra.mxu0 0.0
    %1108 = vmatprep.subr.mxu0 0.0
    %1109 = vmatpush1.msra.mxu0 0.0
    %1110 = vmatprep.subr.mxu0 0.0
    %1111 = vmatpush1.msra.mxu0 0.0
    %1112 = vmatprep.subr.mxu0 0.0
    %1113 = vmatpush1.msra.mxu0 0.0
    %1114 = vmatprep.subr.mxu0 0.0
    %1115 = vmatpush1.msra.mxu0 0.0
    %1116 = vmatprep.subr.mxu0 0.0
    %1117 = vmatpush1.msra.mxu0 0.0
    %1118 = vmatprep.subr.mxu0 0.0
    %1119 = vmatpush1.msra.mxu0 0.0
    %1120 = vmatprep.subr.mxu0 0.0
    %1121 = vmatpush1.msra.mxu0 0.0
    %1122 = vmatprep.subr.mxu0 0.0
    %1123 = vmatpush1.msra.mxu0 0.0
    %1124 = vmatprep.subr.mxu0 0.0
    %1125 = vmatpush1.msra.mxu0 0.0
    %1126 = vmatprep.subr.mxu0 0.0
    %1127 = vmatpush1.msra.mxu0 0.0
    %1128 = vmatprep.subr.mxu0 0.0
    %1129 = vmatpush1.msra.mxu0 0.0
    %1130 = vmatprep.subr.mxu0 0.0
    %1131 = vmatpush1.msra.mxu0 0.0
    %1132 = vmatprep.subr.mxu0 0.0
    %1133 = vmatpush1.msra.mxu0 0.0
    %1134 = vmatprep.subr.mxu0 0.0
    %1135 = vmatpush1.msra.mxu0 0.0
    %1136 = vmatprep.subr.mxu0 0.0
    %1137 = vmatpush1.msra.mxu0 0.0
    %1138 = vmatprep.subr.mxu0 0.0
    %1139 = vmatpush1.msra.mxu0 0.0
    %1140 = vmatprep.subr.mxu0 0.0
    %1141 = vmatpush1.msra.mxu0 0.0
    %1142 = vmatprep.subr.mxu0 0.0
    %1143 = vmatpush1.msra.mxu0 0.0
    %1144 = vmatprep.subr.mxu0 0.0
    %1145 = vmatpush1.msra.mxu0 0.0
    %1146 = vmatprep.subr.mxu0 0.0
    %1147 = vmatpush1.msra.mxu0 0.0
    %1148 = vmatprep.subr.mxu0 0.0
    %1149 = vmatpush1.msra.mxu0 0.0
    %1150 = vmatprep.subr.mxu0 0.0
    %1151 = vmatpush1.msra.mxu0 0.0
    %1152 = vmatprep.subr.mxu0 0.0
    %1153 = vmatpush1.msra.mxu0 0.0
    %1154 = vmatprep.subr.mxu0 0.0
    %1155 = vmatpush1.msra.mxu0 0.0
    %1156 = vmatprep.subr.mxu0 0.0
    %1157 = vmatpush1.msra.mxu0 0.0
    %1158 = vmatprep.subr.mxu0 0.0
    %1159 = vmatpush1.msra.mxu0 0.0
    %1160 = vmatprep.mubr.f32.mxu0 0.0
    %1161 = vmatmul.mubr.f32.gmra.mrb[0].mxu0 %v949
    %v1162 = vpop.f32.mrb[0].mxu0
    %v1163 = vadd.f32 0.0, %v1162
    %v1164 = vpop.f32.mrb[0].mxu0
    %1165 = vmatprep.mubr.f32.mxu0 0.0
    %1166 = vmatmul.mubr.f32.gmra.mrb[0].mxu0 %v952
    %v1167 = vpop.f32.mrb[0].mxu0
    %v1168 = vadd.f32 0.0, %v1167
    %v1169 = vpop.f32.mrb[0].mxu0
    %1170 = vmatprep.mubr.f32.mxu0 0.0
    %1171 = vmatmul.mubr.f32.gmra.mrb[0].mxu0 %v955
    %v1172 = vpop.f32.mrb[0].mxu0
    %v1173 = vadd.f32 0.0, %v1172
    %v1174 = vpop.f32.mrb[0].mxu0
    %1175 = vmatprep.mubr.f32.mxu0 0.0
    %1176 = vmatmul.mubr.f32.gmra.mrb[0].mxu0 %v958
    %v1177 = vpop.f32.mrb[0].mxu0
    %v1178 = vadd.f32 0.0, %v1177
    %v1179 = vpop.f32.mrb[0].mxu0
    %1180 = vmatprep.mubr.f32.mxu0 0.0
    %1181 = vmatmul.mubr.f32.gmra.mrb[0].mxu0 %v961
    %v1182 = vpop.f32.mrb[0].mxu0
    %v1183 = vadd.f32 0.0, %v1182
    %v1184 = vpop.f32.mrb[0].mxu0
    %1185 = vmatprep.mubr.f32.mxu0 0.0
    %1186 = vmatmul.mubr.f32.gmra.mrb[0].mxu0 %v964
    %v1187 = vpop.f32.mrb[0].mxu0
    %v1188 = vadd.f32 0.0, %v1187
    %v1189 = vpop.f32.mrb[0].mxu0
    %1190 = vmatprep.mubr.f32.mxu0 0.0
    %1191 = vmatmul.mubr.f32.gmra.mrb[0].mxu0 %v967
    %v1192 = vpop.f32.mrb[0].mxu0
    %v1193 = vadd.f32 0.0, %v1192
    %v1194 = vpop.f32.mrb[0].mxu0
    %1195 = vmatprep.mubr.f32.mxu0 0.0
    %1196 = vmatmul.mubr.f32.gmra.mrb[0].mxu0 %v970
    %v1197 = vpop.f32.mrb[0].mxu0
    %v1198 = vadd.f32 0.0, %v1197
    %v1199 = vpop.f32.mrb[0].mxu0
    %1200 = vmatprep.mubr.f32.mxu0 0.0
    %1201 = vmatmul.mubr.f32.gmra.mrb[0].mxu0 %v973
    %v1202 = vpop.f32.mrb[0].mxu0
    %v1203 = vadd.f32 0.0, %v1202
    %v1204 = vpop.f32.mrb[0].mxu0
    %1205 = vmatprep.mubr.f32.mxu0 0.0
    %1206 = vmatmul.mubr.f32.gmra.mrb[0].mxu0 %v976
    %v1207 = vpop.f32.mrb[0].mxu0
    %v1208 = vadd.f32 0.0, %v1207
    %v1209 = vpop.f32.mrb[0].mxu0
    %1210 = vmatprep.mubr.f32.mxu0 0.0
    %1211 = vmatmul.mubr.f32.gmra.mrb[0].mxu0 %v979
    %v1212 = vpop.f32.mrb[0].mxu0
    %v1213 = vadd.f32 0.0, %v1212
    %v1214 = vpop.f32.mrb[0].mxu0
    %1215 = vmatprep.mubr.f32.mxu0 0.0
    %1216 = vmatmul.mubr.f32.gmra.mrb[0].mxu0 %v982
    %v1217 = vpop.f32.mrb[0].mxu0
    %v1218 = vadd.f32 0.0, %v1217
    %v1219 = vpop.f32.mrb[0].mxu0
    %1220 = vmatprep.mubr.f32.mxu0 0.0
    %1221 = vmatmul.mubr.f32.gmra.mrb[0].mxu0 %v985
    %v1222 = vpop.f32.mrb[0].mxu0
    %v1223 = vadd.f32 0.0, %v1222
    %v1224 = vpop.f32.mrb[0].mxu0
    %1225 = vmatprep.mubr.f32.mxu0 0.0
    %1226 = vmatmul.mubr.f32.gmra.mrb[0].mxu0 %v988
    %v1227 = vpop.f32.mrb[0].mxu0
    %v1228 = vadd.f32 0.0, %v1227
    %v1229 = vpop.f32.mrb[0].mxu0
    %1230 = vmatprep.mubr.f32.mxu0 0.0
    %1231 = vmatmul.mubr.f32.gmra.mrb[0].mxu0 %v991
    %v1232 = vpop.f32.mrb[0].mxu0
    %v1233 = vadd.f32 0.0, %v1232
    %v1234 = vpop.f32.mrb[0].mxu0
    %1235 = vmatprep.mubr.f32.mxu0 0.0
    %1236 = vmatmul.mubr.f32.gmra.mrb[0].mxu0 %v994
    %v1237 = vpop.f32.mrb[0].mxu0
    %v1238 = vadd.f32 0.0, %v1237
    %v1239 = vpop.f32.mrb[0].mxu0
    %1240 = vmatprep.mubr.f32.mxu0 0.0
    %1241 = vmatmul.mubr.f32.gmra.mrb[0].mxu0 %v997
    %v1242 = vpop.f32.mrb[0].mxu0
    %v1243 = vadd.f32 0.0, %v1242
    %v1244 = vpop.f32.mrb[0].mxu0
    %1245 = vmatprep.mubr.f32.mxu0 0.0
    %1246 = vmatmul.mubr.f32.gmra.mrb[0].mxu0 %v1000
    %v1247 = vpop.f32.mrb[0].mxu0
    %v1248 = vadd.f32 0.0, %v1247
    %v1249 = vpop.f32.mrb[0].mxu0
    %1250 = vmatprep.mubr.f32.mxu0 0.0
    %1251 = vmatmul.mubr.f32.gmra.mrb[0].mxu0 %v1003
    %v1252 = vpop.f32.mrb[0].mxu0
    %v1253 = vadd.f32 0.0, %v1252
    %v1254 = vpop.f32.mrb[0].mxu0
    %1255 = vmatprep.mubr.f32.mxu0 0.0
    %1256 = vmatmul.mubr.f32.gmra.mrb[0].mxu0 %v1006
    %v1257 = vpop.f32.mrb[0].mxu0
    %v1258 = vadd.f32 0.0, %v1257
    %v1259 = vpop.f32.mrb[0].mxu0
    %1260 = vmatprep.mubr.f32.mxu0 0.0
    %1261 = vmatmul.mubr.f32.gmra.mrb[0].mxu0 %v1009
    %v1262 = vpop.f32.mrb[0].mxu0
    %v1263 = vadd.f32 0.0, %v1262
    %v1264 = vpop.f32.mrb[0].mxu0
    %1265 = vmatprep.mubr.f32.mxu0 0.0
    %1266 = vmatmul.mubr.f32.gmra.mrb[0].mxu0 %v1012
    %v1267 = vpop.f32.mrb[0].mxu0
    %v1268 = vadd.f32 0.0, %v1267
    %v1269 = vpop.f32.mrb[0].mxu0
    %1270 = vmatprep.mubr.f32.mxu0 0.0
    %1271 = vmatmul.mubr.f32.gmra.mrb[0].mxu0 %v1015
    %v1272 = vpop.f32.mrb[0].mxu0
    %v1273 = vadd.f32 0.0, %v1272
    %v1274 = vpop.f32.mrb[0].mxu0
    %1275 = vmatprep.mubr.f32.mxu0 0.0
    %1276 = vmatmul.mubr.f32.gmra.mrb[0].mxu0 %v1018
    %v1277 = vpop.f32.mrb[0].mxu0
    %v1278 = vadd.f32 0.0, %v1277
    %v1279 = vpop.f32.mrb[0].mxu0
    %1280 = vmatprep.mubr.f32.mxu0 0.0
    %1281 = vmatmul.mubr.f32.gmra.mrb[0].mxu0 %v1021
    %v1282 = vpop.f32.mrb[0].mxu0
    %v1283 = vadd.f32 0.0, %v1282
    %v1284 = vpop.f32.mrb[0].mxu0
    %1285 = vmatprep.mubr.f32.mxu0 0.0
    %1286 = vmatmul.mubr.f32.gmra.mrb[0].mxu0 %v1024
    %v1287 = vpop.f32.mrb[0].mxu0
    %v1288 = vadd.f32 0.0, %v1287
    %v1289 = vpop.f32.mrb[0].mxu0
    %1290 = vmatprep.mubr.f32.mxu0 0.0
    %1291 = vmatmul.mubr.f32.gmra.mrb[0].mxu0 %v1027
    %v1292 = vpop.f32.mrb[0].mxu0
    %v1293 = vadd.f32 0.0, %v1292
    %v1294 = vpop.f32.mrb[0].mxu0
    %1295 = vmatprep.mubr.f32.mxu0 0.0
    %1296 = vmatmul.mubr.f32.gmra.mrb[0].mxu0 %v1030
    %v1297 = vpop.f32.mrb[0].mxu0
    %v1298 = vadd.f32 0.0, %v1297
    %v1299 = vpop.f32.mrb[0].mxu0
    %1300 = vmatprep.mubr.f32.mxu0 0.0
    %1301 = vmatmul.mubr.f32.gmra.mrb[0].mxu0 %v1033
    %v1302 = vpop.f32.mrb[0].mxu0
    %v1303 = vadd.f32 0.0, %v1302
    %v1304 = vpop.f32.mrb[0].mxu0
    %1305 = vmatprep.mubr.f32.mxu0 0.0
    %1306 = vmatmul.mubr.f32.gmra.mrb[0].mxu0 %v1036
    %v1307 = vpop.f32.mrb[0].mxu0
    %v1308 = vadd.f32 0.0, %v1307
    %v1309 = vpop.f32.mrb[0].mxu0
    %1310 = vmatprep.mubr.f32.mxu0 0.0
    %1311 = vmatmul.mubr.f32.gmra.mrb[0].mxu0 %v1039
    %v1312 = vpop.f32.mrb[0].mxu0
    %v1313 = vadd.f32 0.0, %v1312
    %v1314 = vpop.f32.mrb[0].mxu0
    %1315 = vmatprep.mubr.f32.mxu0 0.0
    %1316 = vmatmul.mubr.f32.gmra.mrb[0].mxu0 %v1042
    %v1317 = vpop.f32.mrb[0].mxu0
    %v1318 = vadd.f32 0.0, %v1317
    %v1319 = vpop.f32.mrb[0].mxu0
    %1320 = vmatprep.mubr.f32.mxu0 0.0
    %1321 = vmatmul.mubr.f32.gmra.mrb[0].mxu0 %v1045
    %v1322 = vpop.f32.mrb[0].mxu0
    %v1323 = vadd.f32 0.0, %v1322
    %v1324 = vpop.f32.mrb[0].mxu0
    %1325 = vmatprep.mubr.f32.mxu0 0.0
    %1326 = vmatmul.mubr.f32.gmra.mrb[0].mxu0 %v1048
    %v1327 = vpop.f32.mrb[0].mxu0
    %v1328 = vadd.f32 0.0, %v1327
    %v1329 = vpop.f32.mrb[0].mxu0
    %1330 = vmatprep.mubr.f32.mxu0 0.0
    %1331 = vmatmul.mubr.f32.gmra.mrb[0].mxu0 %v1051
    %v1332 = vpop.f32.mrb[0].mxu0
    %v1333 = vadd.f32 0.0, %v1332
    %v1334 = vpop.f32.mrb[0].mxu0
    %1335 = vmatprep.mubr.f32.mxu0 0.0
    %1336 = vmatmul.mubr.f32.gmra.mrb[0].mxu0 %v1054
    %v1337 = vpop.f32.mrb[0].mxu0
    %v1338 = vadd.f32 0.0, %v1337
    %v1339 = vpop.f32.mrb[0].mxu0
    %1340 = vmatprep.mubr.f32.mxu0 0.0
    %1341 = vmatmul.mubr.f32.gmra.mrb[0].mxu0 %v1057
    %v1342 = vpop.f32.mrb[0].mxu0
    %v1343 = vadd.f32 0.0, %v1342
    %v1344 = vpop.f32.mrb[0].mxu0
    %1345 = vmatprep.mubr.f32.mxu0 0.0
    %1346 = vmatmul.mubr.f32.gmra.mrb[0].mxu0 %v1060
    %v1347 = vpop.f32.mrb[0].mxu0
    %v1348 = vadd.f32 0.0, %v1347
    %v1349 = vpop.f32.mrb[0].mxu0
    %1350 = vmatprep.mubr.f32.mxu0 0.0
    %1351 = vmatmul.mubr.f32.gmra.mrb[0].mxu0 %v1063
    %v1352 = vpop.f32.mrb[0].mxu0
    %v1353 = vadd.f32 0.0, %v1352
    %v1354 = vpop.f32.mrb[0].mxu0
    %1355 = vmatprep.mubr.f32.mxu0 0.0
    %1356 = vmatmul.mubr.f32.gmra.mrb[0].mxu0 %v1066
    %v1357 = vpop.f32.mrb[0].mxu0
    %v1358 = vadd.f32 0.0, %v1357
    %v1359 = vpop.f32.mrb[0].mxu0
    %1360 = vmatprep.mubr.f32.mxu0 0.0
    %1361 = vmatmul.mubr.f32.gmra.mrb[0].mxu0 %v1069
    %v1362 = vpop.f32.mrb[0].mxu0
    %v1363 = vadd.f32 0.0, %v1362
    %v1364 = vpop.f32.mrb[0].mxu0
    %1365 = vmatprep.mubr.f32.mxu0 0.0
    %1366 = vmatmul.mubr.f32.gmra.mrb[0].mxu0 %v1072
    %v1367 = vpop.f32.mrb[0].mxu0
    %v1368 = vadd.f32 0.0, %v1367
    %v1369 = vpop.f32.mrb[0].mxu0
    %1370 = vmatprep.mubr.f32.mxu0 0.0
    %1371 = vmatmul.mubr.f32.gmra.mrb[0].mxu0 %v1075
    %v1372 = vpop.f32.mrb[0].mxu0
    %v1373 = vadd.f32 0.0, %v1372
    %v1374 = vpop.f32.mrb[0].mxu0
    %1375 = vmatprep.mubr.f32.mxu0 0.0
    %1376 = vmatmul.mubr.f32.gmra.mrb[0].mxu0 %v1078
    %v1377 = vpop.f32.mrb[0].mxu0
    %v1378 = vadd.f32 0.0, %v1377
    %v1379 = vpop.f32.mrb[0].mxu0
    %1380 = vmatprep.mubr.f32.mxu0 0.0
    %1381 = vmatmul.mubr.f32.gmra.mrb[0].mxu0 %v1081
    %v1382 = vpop.f32.mrb[0].mxu0
    %v1383 = vadd.f32 0.0, %v1382
    %v1384 = vpop.f32.mrb[0].mxu0
    %1385 = vmatprep.mubr.f32.mxu0 0.0
    %1386 = vmatmul.mubr.f32.gmra.mrb[0].mxu0 %v1084
    %v1387 = vpop.f32.mrb[0].mxu0
    %v1388 = vadd.f32 0.0, %v1387
    %v1389 = vpop.f32.mrb[0].mxu0
    %1390 = vmatprep.mubr.f32.mxu0 0.0
    %1391 = vmatmul.mubr.f32.gmra.mrb[0].mxu0 %v1087
    %v1392 = vpop.f32.mrb[0].mxu0
    %v1393 = vadd.f32 0.0, %v1392
    %v1394 = vpop.f32.mrb[0].mxu0
    %1395 = vmatprep.mubr.f32.mxu0 0.0
    %1396 = vmatmul.mubr.f32.gmra.mrb[0].mxu0 %v1090
    %v1397 = vpop.f32.mrb[0].mxu0
    %v1398 = vadd.f32 0.0, %v1397
    %v1399 = vpop.f32.mrb[0].mxu0
    %1400 = vdwg.mxu0
    %1401 = vst.msk [vmem:[%s4] sm:$0xff] %vm895, %v1163
    %1402 = vst.msk [vmem:[%s4 + $0x8] sm:$0xff] %vm895, %v1168
    %1403 = vst.msk [vmem:[%s4 + $0x10] sm:$0xff] %vm895, %v1173
    %1404 = vst.msk [vmem:[%s4 + $0x18] sm:$0xff] %vm895, %v1178
    %1405 = vst.msk [vmem:[%s4 + $0x20] sm:$0xff] %vm895, %v1183
    %1406 = vst.msk [vmem:[%s4 + $0x28] sm:$0xff] %vm895, %v1188
    %1407 = vst.msk [vmem:[%s4 + $0x30] sm:$0xff] %vm895, %v1193
    %1408 = vst.msk [vmem:[%s4 + $0x38] sm:$0xff] %vm895, %v1198
    %1409 = vst.msk [vmem:[%s4 + $0x40] sm:$0xff] %vm895, %v1203
    %1410 = vst.msk [vmem:[%s4 + $0x48] sm:$0xff] %vm895, %v1208
    %1411 = vst.msk [vmem:[%s4 + $0x50] sm:$0xff] %vm895, %v1213
    %1412 = vst.msk [vmem:[%s4 + $0x58] sm:$0xff] %vm895, %v1218
    %1413 = vst.msk [vmem:[%s4 + $0x60] sm:$0xff] %vm895, %v1223
    %1414 = vst.msk [vmem:[%s4 + $0x68] sm:$0xff] %vm895, %v1228
    %1415 = vst.msk [vmem:[%s4 + $0x70] sm:$0xff] %vm895, %v1233
    %1416 = vst.msk [vmem:[%s4 + $0x78] sm:$0xff] %vm895, %v1238
    %1417 = vst.msk [vmem:[%s4 + $0x80] sm:$0xff] %vm895, %v1243
    %1418 = vst.msk [vmem:[%s4 + $0x88] sm:$0xff] %vm895, %v1248
    %1419 = vst.msk [vmem:[%s4 + $0x90] sm:$0xff] %vm895, %v1253
    %1420 = vst.msk [vmem:[%s4 + $0x98] sm:$0xff] %vm895, %v1258
    %1421 = vst.msk [vmem:[%s4 + $0xa0] sm:$0xff] %vm895, %v1263
    %1422 = vst.msk [vmem:[%s4 + $0xa8] sm:$0xff] %vm895, %v1268
    %1423 = vst.msk [vmem:[%s4 + $0xb0] sm:$0xff] %vm895, %v1273
    %1424 = vst.msk [vmem:[%s4 + $0xb8] sm:$0xff] %vm895, %v1278
    %1425 = vst.msk [vmem:[%s4 + $0xc0] sm:$0xff] %vm895, %v1283
    %1426 = vst.msk [vmem:[%s4 + $0xc8] sm:$0xff] %vm895, %v1288
    %1427 = vst.msk [vmem:[%s4 + $0xd0] sm:$0xff] %vm895, %v1293
    %1428 = vst.msk [vmem:[%s4 + $0xd8] sm:$0xff] %vm895, %v1298
    %1429 = vst.msk [vmem:[%s4 + $0xe0] sm:$0xff] %vm895, %v1303
    %1430 = vst.msk [vmem:[%s4 + $0xe8] sm:$0xff] %vm895, %v1308
    %1431 = vst.msk [vmem:[%s4 + $0xf0] sm:$0xff] %vm895, %v1313
    %1432 = vst.msk [vmem:[%s4 + $0xf8] sm:$0xff] %vm895, %v1318
    %1433 = vst.msk [vmem:[%s4 + $0x100] sm:$0xff] %vm895, %v1323
    %1434 = vst.msk [vmem:[%s4 + $0x108] sm:$0xff] %vm895, %v1328
    %1435 = vst.msk [vmem:[%s4 + $0x110] sm:$0xff] %vm895, %v1333
    %1436 = vst.msk [vmem:[%s4 + $0x118] sm:$0xff] %vm895, %v1338
    %1437 = vst.msk [vmem:[%s4 + $0x120] sm:$0xff] %vm895, %v1343
    %1438 = vst.msk [vmem:[%s4 + $0x128] sm:$0xff] %vm895, %v1348
    %1439 = vst.msk [vmem:[%s4 + $0x130] sm:$0xff] %vm895, %v1353
    %1440 = vst.msk [vmem:[%s4 + $0x138] sm:$0xff] %vm895, %v1358
    %1441 = vst.msk [vmem:[%s4 + $0x140] sm:$0xff] %vm895, %v1363
    %1442 = vst.msk [vmem:[%s4 + $0x148] sm:$0xff] %vm895, %v1368
    %1443 = vst.msk [vmem:[%s4 + $0x150] sm:$0xff] %vm895, %v1373
    %1444 = vst.msk [vmem:[%s4 + $0x158] sm:$0xff] %vm895, %v1378
    %1445 = vst.msk [vmem:[%s4 + $0x160] sm:$0xff] %vm895, %v1383
    %1446 = vst.msk [vmem:[%s4 + $0x168] sm:$0xff] %vm895, %v1388
    %1447 = vst.msk [vmem:[%s4 + $0x170] sm:$0xff] %vm895, %v1393
    %1448 = vst.msk [vmem:[%s4 + $0x178] sm:$0xff] %vm895, %v1398
    // Predicated region
    $region18: #{crossclr_forward.2} parent=1 // pred_check
      _
    $region19: #{crossclr_forward.2} parent=1 // pred_check_branch
      %1450 = sbr.rel (0) target = $region21
    $region20: #{crossclr_forward.2} parent=1 // pred_region
      _
    $region21: #{crossclr_forward.2} parent=1 // pred_fallthru
      _
    // Predicated region
    $region22: #{crossclr_forward.2} parent=1 // pred_check
      _
    $region23: #{crossclr_forward.2} parent=1 // pred_check_branch
      %1452 = sbr.rel (0) target = $region25
    $region24: #{crossclr_forward.2} parent=1 // pred_region
      _
    $region25: #{crossclr_forward.2} parent=1 // pred_fallthru
      _
    // Predicated region
    $region26: #{crossclr_forward.2} parent=1 // pred_check
      _
    $region27: #{crossclr_forward.2} parent=1 // pred_check_branch
      %1454 = sbr.rel (0) target = $region29
    $region28: #{crossclr_forward.2} parent=1 // pred_region
      _
    $region29: #{crossclr_forward.2} parent=1 // pred_fallthru
      _
    // Predicated region
    $region30: #{crossclr_forward.2} parent=1 // pred_check
      _
    $region31: #{crossclr_forward.2} parent=1 // pred_check_branch
      %1456 = sbr.rel (0) target = $region33
    $region32: #{crossclr_forward.2} parent=1 // pred_region
      _
    $region33: #{crossclr_forward.2} parent=1 // pred_fallthru
      _
    %1457 = vsyncpa [#allocation3], 1

// kernel: crossclr_forward.3
$region0: #{crossclr_forward.3}
  #allocation0 [shape = 'u32[]', space=smem, size = 0x4, offset = 0x4, fixed_abs, tag = 'smem constant byte address 0x4 - core index']
  #allocation1 [shape = 'u32[144,128]{1,0:T(1,128)}', space=vmem, size = 0x12000, scoped, tag = 'internal scratch']
  %s0 = inlined_call_operand.vmem [shape: f32[3,8,1200], index: 0, kind: input, shape index: {}]
  %s1 = inlined_call_operand.vmem [shape: f32[3,1200,256], index: 1, kind: input, shape index: {}]
  %s2 = inlined_call_operand.vmem [shape: f32[3,1,256], index: 2, kind: input, shape index: {}]
  %s3 = inlined_call_operand.hbm [shape: f32[3,256,128], index: 3, kind: input, shape index: {}]
  %s4 = inlined_call_operand.vmem [shape: f32[3,1,128], index: 4, kind: input, shape index: {}]
  %s5 = inlined_call_operand.hbm [shape: f32[3,1200,256], index: 5, kind: input, shape index: {}]
  %s6 = inlined_call_operand.vmem [shape: f32[3,1,256], index: 6, kind: input, shape index: {}]
  %s7 = inlined_call_operand.hbm [shape: f32[3,256,128], index: 7, kind: input, shape index: {}]
  %s8 = inlined_call_operand.vmem [shape: f32[3,1,128], index: 8, kind: input, shape index: {}]
  %s9 = inlined_call_operand.vmem [shape: f32[3,128,256], index: 9, kind: input, shape index: {}]
  %s10 = inlined_call_operand.vmem [shape: f32[3,4,1], index: 10, kind: output, shape index: {0}]
  %s11 = inlined_call_operand.vmem [shape: f32[3,4,256], index: 11, kind: output, shape index: {1}]
  %s12 = inlined_call_operand.vmem [shape: f32[3,4,128], index: 12, kind: output, shape index: {2}]
  %s13 = inlined_call_operand.hbm [shape: f32[3,1200,256], index: 13, kind: output, shape index: {3}]
  %s14 = inlined_call_operand.hbm [shape: f32[3,1,256], index: 14, kind: output, shape index: {4}]
  %s15 = inlined_call_operand.hbm [shape: f32[3,256,128], index: 15, kind: output, shape index: {5}]
  %s16 = inlined_call_operand.hbm [shape: f32[3,1,128], index: 16, kind: output, shape index: {6}]
  %17 = xla_tuple %s10, %s11, %s12, %s13, %s14, %s15, %s16
  %s18 = sld [smem:[#allocation0]]
  $region133: #{crossclr_forward.3} parent=0
    _
  %s20 = ssub.s32 1, %s18
  %s21 = scalar_select 0, %s20, %s18
  $region1: #{crossclr_forward.3} parent=0
    #allocation2 [shape = 'u8[262144]{0}', space=vmem, size = 0x40000, scoped, tag = 'input window, operand 3']
    #allocation3 [shape = 's32[2]{0}', space=sflag, size = 0x8, scoped, tag = 'scoped memory for crossclr_forward.3']
    #allocation4 [shape = 's32[2]{0}', space=sflag, size = 0x8, scoped, tag = 'scoped memory for crossclr_forward.3']
    #allocation5 [shape = 'u8[2457600]{0}', space=vmem, size = 0x258000, scoped, tag = 'input window, operand 5']
    #allocation6 [shape = 's32[2]{0}', space=sflag, size = 0x8, scoped, tag = 'scoped memory for crossclr_forward.3']
    #allocation7 [shape = 'u8[262144]{0}', space=vmem, size = 0x40000, scoped, tag = 'input window, operand 7']
    #allocation8 [shape = 'u8[2457600]{0}', space=vmem, size = 0x258000, scoped, tag = 'output window, operand 3']
    #allocation9 [shape = 'u8[2048]{0}', space=vmem, size = 0x800, scoped, tag = 'output window, operand 4']
    #allocation10 [shape = 's32[2]{0}', space=sflag, size = 0x8, scoped, tag = 'scoped memory for crossclr_forward.3']
    #allocation11 [shape = 'u8[262144]{0}', space=vmem, size = 0x40000, scoped, tag = 'output window, operand 5']
    #allocation12 [shape = 'u8[1024]{0}', space=vmem, size = 0x400, scoped, tag = 'output window, operand 6']
    #allocation13 [shape = 's32[2]{0}', space=sflag, size = 0x8, scoped, tag = 'scoped memory for crossclr_forward.3']
    %22 = vsyncpa [#allocation3], 0
    %s23 = scalar_lea.sflag [#allocation3], 1
    %24 = vsyncpa %s23, 0
    %25 = vsyncpa [#allocation6], 0
    %s26 = scalar_lea.sflag [#allocation6], 1
    %27 = vsyncpa %s26, 0
    %28 = vsyncpa [#allocation4], 0
    %s29 = scalar_lea.sflag [#allocation4], 1
    %30 = vsyncpa %s29, 0
    %31 = vsyncpa [#allocation10], 0
    %s32 = scalar_lea.sflag [#allocation10], 1
    %33 = vsyncpa %s32, 0
    %34 = vsyncpa [#allocation13], 0
    %s35 = scalar_lea.sflag [#allocation13], 1
    %36 = vsyncpa %s35, 0
    loop: start=0, step=1, limit=5
    $region2: #{crossclr_forward.3} parent=1 // loop_pre_header
      _
    $region3: #{crossclr_forward.3} parent=1 // loop_header
      %s38 = sphi 0, %s42
      %p39 = scmp.ge.s32.totalorder %s38, 5
      %s48 = sphi 0, %s50
      %s51 = sphi 0, %s48
      %s52 = sphi 0, %s51
      %s68 = sphi 0, %s52
      %s74 = sphi 0, %s76
      %s77 = sphi 0, %s74
      %s78 = sphi 0, %s77
      %s94 = sphi 0, %s78
      %s100 = sphi 0, %s102
      %s103 = sphi 0, %s100
      %s104 = sphi 0, %s103
      %s120 = sphi 0, %s104
      %s126 = sphi 0, %s128
      %s129 = sphi 0, %s126
      %s130 = sphi 0, %s129
      %s146 = sphi 0, %s130
      %s152 = sphi 0, %s154
      %s155 = sphi 0, %s152
      %s156 = sphi 0, %s155
      %s172 = sphi 0, %s156
      %s178 = sphi 0, %s180
      %s181 = sphi 0, %s178
      %s182 = sphi 0, %s181
      %s198 = sphi 0, %s182
      %s204 = sphi 0, %s206
      %s207 = sphi 0, %s204
      %s208 = sphi 0, %s207
      %s224 = sphi 0, %s208
      %s230 = sphi 0, %s232
      %s233 = sphi 0, %s230
      %s234 = sphi 0, %s233
      %s250 = sphi 0, %s234
      %s256 = sphi 0, %s258
      %s259 = sphi 0, %s256
      %s260 = sphi 0, %s259
      %s276 = sphi 0, %s260
      %s282 = sphi 0, %s284
      %s285 = sphi 0, %s282
      %s286 = sphi 0, %s285
      %s302 = sphi 0, %s286
      %s308 = sphi 0, %s310
      %s311 = sphi 0, %s308
      %s312 = sphi 0, %s311
      %s328 = sphi 0, %s312
      %s334 = sphi 0, %s336
      %s337 = sphi 0, %s334
      %s338 = sphi 0, %s337
      %s354 = sphi 0, %s338
      %s360 = sphi 0, %s362
      %s363 = sphi 0, %s360
      %s364 = sphi 0, %s363
      %s380 = sphi 0, %s364
      %s386 = sphi 0, %s388
      %s389 = sphi 0, %s386
      %s390 = sphi 0, %s389
      %s406 = sphi 0, %s390
      %s412 = sphi 0, %s414
      %s415 = sphi 0, %s412
      %s416 = sphi 0, %s415
      %s432 = sphi 0, %s416
      %s438 = sphi 0, %s440
      %s441 = sphi 0, %s438
      %s442 = sphi 0, %s441
      %s458 = sphi 0, %s442
      %s464 = sphi 0, %s466
      %s467 = sphi 0, %s464
      %s468 = sphi 0, %s467
      %s484 = sphi 0, %s468
    $region4: #{crossclr_forward.3} parent=1 // loop_header_branch
      %41 = sbr.rel (%p39) target = $region8
    $region5: #{crossclr_forward.3} parent=1 // loop_body
      %s43 = ssub.s32 %s38, 1
      %s44 = ssub.s32 %s38, 2
      %s45 = sadd.s32 %s38, 1
      %s46 = ssub.s32 %s38, %s45
      %p47 = scmp.eq.s32.totalorder %s46, 0
      %s49 = sadd.s32 %s48, 1
      %s50 = scalar_select %p47, %s48, %s49
      %p53 = pneg %p47
      %p54 = scmp.eq.s32.totalorder %s38, 2
      %p55 = por %p53, %p54
      %p56 = scmp.ne.s32.totalorder %s48, %s51
      %p57 = scmp.eq.s32.totalorder %s38, 0
      %p58 = por %p56, %p57
      %p59 = scmp.ne.s32.totalorder %s48, %s51
      %p60 = scmp.eq.s32.totalorder %s43, 2
      %p61 = por %p59, %p60
      %p62 = scmp.ne.s32.totalorder %s51, %s52
      %p63 = scmp.eq.s32.totalorder %s43, 0
      %p64 = por %p62, %p63
      %p65 = scmp.ne.s32.totalorder %s51, %s52
      %p66 = scmp.eq.s32.totalorder %s44, 2
      %p67 = por %p65, %p66
      %p69 = scmp.ne.s32.totalorder %s52, %s68
      %p70 = scmp.eq.s32.totalorder %s44, 0
      %p71 = por %p69, %p70
      %s72 = ssub.s32 %s38, %s45
      %p73 = scmp.eq.s32.totalorder %s72, 0
      %s75 = sadd.s32 %s74, 1
      %s76 = scalar_select %p73, %s74, %s75
      %p79 = pneg %p73
      %p80 = scmp.eq.s32.totalorder %s38, 2
      %p81 = por %p79, %p80
      %p82 = scmp.ne.s32.totalorder %s74, %s77
      %p83 = scmp.eq.s32.totalorder %s38, 0
      %p84 = por %p82, %p83
      %p85 = scmp.ne.s32.totalorder %s74, %s77
      %p86 = scmp.eq.s32.totalorder %s43, 2
      %p87 = por %p85, %p86
      %p88 = scmp.ne.s32.totalorder %s77, %s78
      %p89 = scmp.eq.s32.totalorder %s43, 0
      %p90 = por %p88, %p89
      %p91 = scmp.ne.s32.totalorder %s77, %s78
      %p92 = scmp.eq.s32.totalorder %s44, 2
      %p93 = por %p91, %p92
      %p95 = scmp.ne.s32.totalorder %s78, %s94
      %p96 = scmp.eq.s32.totalorder %s44, 0
      %p97 = por %p95, %p96
      %s98 = ssub.s32 %s38, %s45
      %p99 = scmp.eq.s32.totalorder %s98, 0
      %s101 = sadd.s32 %s100, 1
      %s102 = scalar_select %p99, %s100, %s101
      %p105 = pneg %p99
      %p106 = scmp.eq.s32.totalorder %s38, 2
      %p107 = por %p105, %p106
      %p108 = scmp.ne.s32.totalorder %s100, %s103
      %p109 = scmp.eq.s32.totalorder %s38, 0
      %p110 = por %p108, %p109
      %p111 = scmp.ne.s32.totalorder %s100, %s103
      %p112 = scmp.eq.s32.totalorder %s43, 2
      %p113 = por %p111, %p112
      %p114 = scmp.ne.s32.totalorder %s103, %s104
      %p115 = scmp.eq.s32.totalorder %s43, 0
      %p116 = por %p114, %p115
      %p117 = scmp.ne.s32.totalorder %s103, %s104
      %p118 = scmp.eq.s32.totalorder %s44, 2
      %p119 = por %p117, %p118
      %p121 = scmp.ne.s32.totalorder %s104, %s120
      %p122 = scmp.eq.s32.totalorder %s44, 0
      %p123 = por %p121, %p122
      %s124 = ssub.s32 %s38, %s45
      %p125 = scmp.eq.s32.totalorder %s124, 0
      %s127 = sadd.s32 %s126, 1
      %s128 = scalar_select %p125, %s126, %s127
      %p131 = pneg %p125
      %p132 = scmp.eq.s32.totalorder %s38, 2
      %p133 = por %p131, %p132
      %p134 = scmp.ne.s32.totalorder %s126, %s129
      %p135 = scmp.eq.s32.totalorder %s38, 0
      %p136 = por %p134, %p135
      %p137 = scmp.ne.s32.totalorder %s126, %s129
      %p138 = scmp.eq.s32.totalorder %s43, 2
      %p139 = por %p137, %p138
      %p140 = scmp.ne.s32.totalorder %s129, %s130
      %p141 = scmp.eq.s32.totalorder %s43, 0
      %p142 = por %p140, %p141
      %p143 = scmp.ne.s32.totalorder %s129, %s130
      %p144 = scmp.eq.s32.totalorder %s44, 2
      %p145 = por %p143, %p144
      %p147 = scmp.ne.s32.totalorder %s130, %s146
      %p148 = scmp.eq.s32.totalorder %s44, 0
      %p149 = por %p147, %p148
      %s150 = ssub.s32 %s38, %s45
      %p151 = scmp.eq.s32.totalorder %s150, 0
      %s153 = sadd.s32 %s152, 1
      %s154 = scalar_select %p151, %s152, %s153
      %p157 = pneg %p151
      %p158 = scmp.eq.s32.totalorder %s38, 2
      %p159 = por %p157, %p158
      %p160 = scmp.ne.s32.totalorder %s152, %s155
      %p161 = scmp.eq.s32.totalorder %s38, 0
      %p162 = por %p160, %p161
      %p163 = scmp.ne.s32.totalorder %s152, %s155
      %p164 = scmp.eq.s32.totalorder %s43, 2
      %p165 = por %p163, %p164
      %p166 = scmp.ne.s32.totalorder %s155, %s156
      %p167 = scmp.eq.s32.totalorder %s43, 0
      %p168 = por %p166, %p167
      %p169 = scmp.ne.s32.totalorder %s155, %s156
      %p170 = scmp.eq.s32.totalorder %s44, 2
      %p171 = por %p169, %p170
      %p173 = scmp.ne.s32.totalorder %s156, %s172
      %p174 = scmp.eq.s32.totalorder %s44, 0
      %p175 = por %p173, %p174
      %s176 = ssub.s32 %s38, %s45
      %p177 = scmp.eq.s32.totalorder %s176, 0
      %s179 = sadd.s32 %s178, 1
      %s180 = scalar_select %p177, %s178, %s179
      %p183 = pneg %p177
      %p184 = scmp.eq.s32.totalorder %s38, 2
      %p185 = por %p183, %p184
      %p186 = scmp.ne.s32.totalorder %s178, %s181
      %p187 = scmp.eq.s32.totalorder %s38, 0
      %p188 = por %p186, %p187
      %p189 = scmp.ne.s32.totalorder %s178, %s181
      %p190 = scmp.eq.s32.totalorder %s43, 2
      %p191 = por %p189, %p190
      %p192 = scmp.ne.s32.totalorder %s181, %s182
      %p193 = scmp.eq.s32.totalorder %s43, 0
      %p194 = por %p192, %p193
      %p195 = scmp.ne.s32.totalorder %s181, %s182
      %p196 = scmp.eq.s32.totalorder %s44, 2
      %p197 = por %p195, %p196
      %p199 = scmp.ne.s32.totalorder %s182, %s198
      %p200 = scmp.eq.s32.totalorder %s44, 0
      %p201 = por %p199, %p200
      %s202 = ssub.s32 %s38, %s45
      %p203 = scmp.eq.s32.totalorder %s202, 0
      %s205 = sadd.s32 %s204, 1
      %s206 = scalar_select %p203, %s204, %s205
      %p209 = pneg %p203
      %p210 = scmp.eq.s32.totalorder %s38, 2
      %p211 = por %p209, %p210
      %p212 = scmp.ne.s32.totalorder %s204, %s207
      %p213 = scmp.eq.s32.totalorder %s38, 0
      %p214 = por %p212, %p213
      %p215 = scmp.ne.s32.totalorder %s204, %s207
      %p216 = scmp.eq.s32.totalorder %s43, 2
      %p217 = por %p215, %p216
      %p218 = scmp.ne.s32.totalorder %s207, %s208
      %p219 = scmp.eq.s32.totalorder %s43, 0
      %p220 = por %p218, %p219
      %p221 = scmp.ne.s32.totalorder %s207, %s208
      %p222 = scmp.eq.s32.totalorder %s44, 2
      %p223 = por %p221, %p222
      %p225 = scmp.ne.s32.totalorder %s208, %s224
      %p226 = scmp.eq.s32.totalorder %s44, 0
      %p227 = por %p225, %p226
      %s228 = ssub.s32 %s38, %s45
      %p229 = scmp.eq.s32.totalorder %s228, 0
      %s231 = sadd.s32 %s230, 1
      %s232 = scalar_select %p229, %s230, %s231
      %p235 = pneg %p229
      %p236 = scmp.eq.s32.totalorder %s38, 2
      %p237 = por %p235, %p236
      %p238 = scmp.ne.s32.totalorder %s230, %s233
      %p239 = scmp.eq.s32.totalorder %s38, 0
      %p240 = por %p238, %p239
      %p241 = scmp.ne.s32.totalorder %s230, %s233
      %p242 = scmp.eq.s32.totalorder %s43, 2
      %p243 = por %p241, %p242
      %p244 = scmp.ne.s32.totalorder %s233, %s234
      %p245 = scmp.eq.s32.totalorder %s43, 0
      %p246 = por %p244, %p245
      %p247 = scmp.ne.s32.totalorder %s233, %s234
      %p248 = scmp.eq.s32.totalorder %s44, 2
      %p249 = por %p247, %p248
      %p251 = scmp.ne.s32.totalorder %s234, %s250
      %p252 = scmp.eq.s32.totalorder %s44, 0
      %p253 = por %p251, %p252
      %s254 = ssub.s32 %s38, %s45
      %p255 = scmp.eq.s32.totalorder %s254, 0
      %s257 = sadd.s32 %s256, 1
      %s258 = scalar_select %p255, %s256, %s257
      %p261 = pneg %p255
      %p262 = scmp.eq.s32.totalorder %s38, 2
      %p263 = por %p261, %p262
      %p264 = scmp.ne.s32.totalorder %s256, %s259
      %p265 = scmp.eq.s32.totalorder %s38, 0
      %p266 = por %p264, %p265
      %p267 = scmp.ne.s32.totalorder %s256, %s259
      %p268 = scmp.eq.s32.totalorder %s43, 2
      %p269 = por %p267, %p268
      %p270 = scmp.ne.s32.totalorder %s259, %s260
      %p271 = scmp.eq.s32.totalorder %s43, 0
      %p272 = por %p270, %p271
      %p273 = scmp.ne.s32.totalorder %s259, %s260
      %p274 = scmp.eq.s32.totalorder %s44, 2
      %p275 = por %p273, %p274
      %p277 = scmp.ne.s32.totalorder %s260, %s276
      %p278 = scmp.eq.s32.totalorder %s44, 0
      %p279 = por %p277, %p278
      %s280 = ssub.s32 %s38, %s45
      %p281 = scmp.eq.s32.totalorder %s280, 0
      %s283 = sadd.s32 %s282, 1
      %s284 = scalar_select %p281, %s282, %s283
      %p287 = pneg %p281
      %p288 = scmp.eq.s32.totalorder %s38, 2
      %p289 = por %p287, %p288
      %p290 = scmp.ne.s32.totalorder %s282, %s285
      %p291 = scmp.eq.s32.totalorder %s38, 0
      %p292 = por %p290, %p291
      %p293 = scmp.ne.s32.totalorder %s282, %s285
      %p294 = scmp.eq.s32.totalorder %s43, 2
      %p295 = por %p293, %p294
      %p296 = scmp.ne.s32.totalorder %s285, %s286
      %p297 = scmp.eq.s32.totalorder %s43, 0
      %p298 = por %p296, %p297
      %p299 = scmp.ne.s32.totalorder %s285, %s286
      %p300 = scmp.eq.s32.totalorder %s44, 2
      %p301 = por %p299, %p300
      %p303 = scmp.ne.s32.totalorder %s286, %s302
      %p304 = scmp.eq.s32.totalorder %s44, 0
      %p305 = por %p303, %p304
      %s306 = ssub.s32 %s38, %s45
      %p307 = scmp.eq.s32.totalorder %s306, 0
      %s309 = sadd.s32 %s308, 1
      %s310 = scalar_select %p307, %s308, %s309
      %p313 = pneg %p307
      %p314 = scmp.eq.s32.totalorder %s38, 2
      %p315 = por %p313, %p314
      %p316 = scmp.ne.s32.totalorder %s308, %s311
      %p317 = scmp.eq.s32.totalorder %s38, 0
      %p318 = por %p316, %p317
      %p319 = scmp.ne.s32.totalorder %s308, %s311
      %p320 = scmp.eq.s32.totalorder %s43, 2
      %p321 = por %p319, %p320
      %p322 = scmp.ne.s32.totalorder %s311, %s312
      %p323 = scmp.eq.s32.totalorder %s43, 0
      %p324 = por %p322, %p323
      %p325 = scmp.ne.s32.totalorder %s311, %s312
      %p326 = scmp.eq.s32.totalorder %s44, 2
      %p327 = por %p325, %p326
      %p329 = scmp.ne.s32.totalorder %s312, %s328
      %p330 = scmp.eq.s32.totalorder %s44, 0
      %p331 = por %p329, %p330
      %s332 = ssub.s32 %s38, %s45
      %p333 = scmp.eq.s32.totalorder %s332, 0
      %s335 = sadd.s32 %s334, 1
      %s336 = scalar_select %p333, %s334, %s335
      %p339 = pneg %p333
      %p340 = scmp.eq.s32.totalorder %s38, 2
      %p341 = por %p339, %p340
      %p342 = scmp.ne.s32.totalorder %s334, %s337
      %p343 = scmp.eq.s32.totalorder %s38, 0
      %p344 = por %p342, %p343
      %p345 = scmp.ne.s32.totalorder %s334, %s337
      %p346 = scmp.eq.s32.totalorder %s43, 2
      %p347 = por %p345, %p346
      %p348 = scmp.ne.s32.totalorder %s337, %s338
      %p349 = scmp.eq.s32.totalorder %s43, 0
      %p350 = por %p348, %p349
      %p351 = scmp.ne.s32.totalorder %s337, %s338
      %p352 = scmp.eq.s32.totalorder %s44, 2
      %p353 = por %p351, %p352
      %p355 = scmp.ne.s32.totalorder %s338, %s354
      %p356 = scmp.eq.s32.totalorder %s44, 0
      %p357 = por %p355, %p356
      %s358 = ssub.s32 %s38, %s45
      %p359 = scmp.eq.s32.totalorder %s358, 0
      %s361 = sadd.s32 %s360, 1
      %s362 = scalar_select %p359, %s360, %s361
      %p365 = pneg %p359
      %p366 = scmp.eq.s32.totalorder %s38, 2
      %p367 = por %p365, %p366
      %p368 = scmp.ne.s32.totalorder %s360, %s363
      %p369 = scmp.eq.s32.totalorder %s38, 0
      %p370 = por %p368, %p369
      %p371 = scmp.ne.s32.totalorder %s360, %s363
      %p372 = scmp.eq.s32.totalorder %s43, 2
      %p373 = por %p371, %p372
      %p374 = scmp.ne.s32.totalorder %s363, %s364
      %p375 = scmp.eq.s32.totalorder %s43, 0
      %p376 = por %p374, %p375
      %p377 = scmp.ne.s32.totalorder %s363, %s364
      %p378 = scmp.eq.s32.totalorder %s44, 2
      %p379 = por %p377, %p378
      %p381 = scmp.ne.s32.totalorder %s364, %s380
      %p382 = scmp.eq.s32.totalorder %s44, 0
      %p383 = por %p381, %p382
      %s384 = ssub.s32 %s38, %s45
      %p385 = scmp.eq.s32.totalorder %s384, 0
      %s387 = sadd.s32 %s386, 1
      %s388 = scalar_select %p385, %s386, %s387
      %p391 = pneg %p385
      %p392 = scmp.eq.s32.totalorder %s38, 2
      %p393 = por %p391, %p392
      %p394 = scmp.ne.s32.totalorder %s386, %s389
      %p395 = scmp.eq.s32.totalorder %s38, 0
      %p396 = por %p394, %p395
      %p397 = scmp.ne.s32.totalorder %s386, %s389
      %p398 = scmp.eq.s32.totalorder %s43, 2
      %p399 = por %p397, %p398
      %p400 = scmp.ne.s32.totalorder %s389, %s390
      %p401 = scmp.eq.s32.totalorder %s43, 0
      %p402 = por %p400, %p401
      %p403 = scmp.ne.s32.totalorder %s389, %s390
      %p404 = scmp.eq.s32.totalorder %s44, 2
      %p405 = por %p403, %p404
      %p407 = scmp.ne.s32.totalorder %s390, %s406
      %p408 = scmp.eq.s32.totalorder %s44, 0
      %p409 = por %p407, %p408
      %s410 = ssub.s32 %s38, %s45
      %p411 = scmp.eq.s32.totalorder %s410, 0
      %s413 = sadd.s32 %s412, 1
      %s414 = scalar_select %p411, %s412, %s413
      %p417 = pneg %p411
      %p418 = scmp.eq.s32.totalorder %s38, 2
      %p419 = por %p417, %p418
      %p420 = scmp.ne.s32.totalorder %s412, %s415
      %p421 = scmp.eq.s32.totalorder %s38, 0
      %p422 = por %p420, %p421
      %p423 = scmp.ne.s32.totalorder %s412, %s415
      %p424 = scmp.eq.s32.totalorder %s43, 2
      %p425 = por %p423, %p424
      %p426 = scmp.ne.s32.totalorder %s415, %s416
      %p427 = scmp.eq.s32.totalorder %s43, 0
      %p428 = por %p426, %p427
      %p429 = scmp.ne.s32.totalorder %s415, %s416
      %p430 = scmp.eq.s32.totalorder %s44, 2
      %p431 = por %p429, %p430
      %p433 = scmp.ne.s32.totalorder %s416, %s432
      %p434 = scmp.eq.s32.totalorder %s44, 0
      %p435 = por %p433, %p434
      %s436 = ssub.s32 %s38, %s45
      %p437 = scmp.eq.s32.totalorder %s436, 0
      %s439 = sadd.s32 %s438, 1
      %s440 = scalar_select %p437, %s438, %s439
      %p443 = pneg %p437
      %p444 = scmp.eq.s32.totalorder %s38, 2
      %p445 = por %p443, %p444
      %p446 = scmp.ne.s32.totalorder %s438, %s441
      %p447 = scmp.eq.s32.totalorder %s38, 0
      %p448 = por %p446, %p447
      %p449 = scmp.ne.s32.totalorder %s438, %s441
      %p450 = scmp.eq.s32.totalorder %s43, 2
      %p451 = por %p449, %p450
      %p452 = scmp.ne.s32.totalorder %s441, %s442
      %p453 = scmp.eq.s32.totalorder %s43, 0
      %p454 = por %p452, %p453
      %p455 = scmp.ne.s32.totalorder %s441, %s442
      %p456 = scmp.eq.s32.totalorder %s44, 2
      %p457 = por %p455, %p456
      %p459 = scmp.ne.s32.totalorder %s442, %s458
      %p460 = scmp.eq.s32.totalorder %s44, 0
      %p461 = por %p459, %p460
      %s462 = ssub.s32 %s38, %s45
      %p463 = scmp.eq.s32.totalorder %s462, 0
      %s465 = sadd.s32 %s464, 1
      %s466 = scalar_select %p463, %s464, %s465
      %p469 = pneg %p463
      %p470 = scmp.eq.s32.totalorder %s38, 2
      %p471 = por %p469, %p470
      %p472 = scmp.ne.s32.totalorder %s464, %s467
      %p473 = scmp.eq.s32.totalorder %s38, 0
      %p474 = por %p472, %p473
      %p475 = scmp.ne.s32.totalorder %s464, %s467
      %p476 = scmp.eq.s32.totalorder %s43, 2
      %p477 = por %p475, %p476
      %p478 = scmp.ne.s32.totalorder %s467, %s468
      %p479 = scmp.eq.s32.totalorder %s43, 0
      %p480 = por %p478, %p479
      %p481 = scmp.ne.s32.totalorder %s467, %s468
      %p482 = scmp.eq.s32.totalorder %s44, 2
      %p483 = por %p481, %p482
      %p485 = scmp.ne.s32.totalorder %s468, %s484
      %p486 = scmp.eq.s32.totalorder %s44, 0
      %p487 = por %p485, %p486
      %p488 = scmp.le.s32.totalorder 1, %s38
      %p489 = scmp.lt.s32.totalorder %s38, 4
      %p490 = pnand %p488, %p489
      %p491 = pneg %p490
      // Predicated region
      $region9: #{crossclr_forward.3} parent=5 // pred_check
        _
      $region10: #{crossclr_forward.3} parent=5 // pred_check_branch
        %493 = sbr.rel (%p490) target = $region12
      $region11: #{crossclr_forward.3} parent=5 // pred_region
        %s494 = ssub.s32 %s38, 1
      $region12: #{crossclr_forward.3} parent=5 // pred_fallthru
        _
      %p495 = scmp.lt.s32.totalorder %s38, 3
      // Predicated region
      $region13: #{crossclr_forward.3} parent=5 // pred_check
        %p496 = pneg %p495
      $region14: #{crossclr_forward.3} parent=5 // pred_check_branch
        %498 = sbr.rel (%p496) target = $region16
      $region15: #{crossclr_forward.3} parent=5 // pred_region
        // Predicated region
        $region17: #{crossclr_forward.3} parent=15 // pred_check
          %p499 = pneg %p58
        $region18: #{crossclr_forward.3} parent=15 // pred_check_branch
          %501 = sbr.rel (%p499) target = $region20
        $region19: #{crossclr_forward.3} parent=15 // pred_region
          %p502 = scmp.lt.s32.totalorder %s38, 2
          %s503 = scalar_select %p502, %s38, 2
          %s504 = smul.addr %s503, 10
          %s505 = smul.addr %s504, 8
          %s506 = scalar_lea.vmem %s0, %s505
        $region20: #{crossclr_forward.3} parent=15 // pred_fallthru
          _
        // Predicated region
        $region21: #{crossclr_forward.3} parent=15 // pred_check
          %p507 = pneg %p84
        $region22: #{crossclr_forward.3} parent=15 // pred_check_branch
          %509 = sbr.rel (%p507) target = $region24
        $region23: #{crossclr_forward.3} parent=15 // pred_region
          %p510 = scmp.lt.s32.totalorder %s38, 2
          %s511 = scalar_select %p510, %s38, 2
          %s512 = smul.addr %s511, 300
          %s513 = smul.addr %s512, 8
          %s514 = scalar_lea.vmem %s1, %s513
        $region24: #{crossclr_forward.3} parent=15 // pred_fallthru
          _
        // Predicated region
        $region25: #{crossclr_forward.3} parent=15 // pred_check
          %p515 = pneg %p110
        $region26: #{crossclr_forward.3} parent=15 // pred_check_branch
          %517 = sbr.rel (%p515) target = $region28
        $region27: #{crossclr_forward.3} parent=15 // pred_region
          %p518 = scmp.lt.s32.totalorder %s38, 2
          %s519 = scalar_select %p518, %s38, 2
          %s520 = smul.addr %s519, 2
          %s521 = scalar_lea.vmem %s2, %s520
        $region28: #{crossclr_forward.3} parent=15 // pred_fallthru
          _
        // Predicated region
        $region29: #{crossclr_forward.3} parent=15 // pred_check
          %p522 = pneg %p136
        $region30: #{crossclr_forward.3} parent=15 // pred_check_branch
          %524 = sbr.rel (%p522) target = $region32
        $region31: #{crossclr_forward.3} parent=15 // pred_region
          %s525 = sand.u32 %s126, 1
          %s526 = scalar_lea.sflag [#allocation3], %s525
          %s527 = sand.u32 %s126, 1
          %s528 = smul.addr %s527, 256
          %s529 = scalar_lea.vmem [#allocation2], %s528
          %s531 = ssub.s32 4096, 4096
          %532 = vsyncadd %s526, %s531
          %s533 = smul.addr %s38, 32
          %s534 = smul.addr %s533, 128
          %s535 = scalar_lea.hbm %s3, %s534
          %s536 = sshll.u32 %s529, 4
          %s537 = int_to_ptr.vmem [resolvable:$true] %s536
          %542 = dma.hbm_to_vmem [thread:$0]  %s535, 4096, %s537, %s526, 128, 128, 8
        $region32: #{crossclr_forward.3} parent=15 // pred_fallthru
          _
        // Predicated region
        $region33: #{crossclr_forward.3} parent=15 // pred_check
          %p543 = pneg %p162
        $region34: #{crossclr_forward.3} parent=15 // pred_check_branch
          %545 = sbr.rel (%p543) target = $region36
        $region35: #{crossclr_forward.3} parent=15 // pred_region
          %p546 = scmp.lt.s32.totalorder %s38, 2
          %s547 = scalar_select %p546, %s38, 2
          %s548 = scalar_lea.vmem %s4, %s547
        $region36: #{crossclr_forward.3} parent=15 // pred_fallthru
          _
        // Predicated region
        $region37: #{crossclr_forward.3} parent=15 // pred_check
          %p549 = pneg %p188
        $region38: #{crossclr_forward.3} parent=15 // pred_check_branch
          %551 = sbr.rel (%p549) target = $region40
        $region39: #{crossclr_forward.3} parent=15 // pred_region
          %s552 = sand.u32 %s38, 1
          %s553 = scalar_lea.sflag [#allocation6], %s552
          %s554 = sand.u32 %s178, 1
          %s555 = smul.addr %s554, 2400
          %s556 = scalar_lea.vmem [#allocation5], %s555
          %s558 = ssub.s32 38400, 38400
          %559 = vsyncadd %s553, %s558
          %s560 = smul.addr %s38, 300
          %s561 = smul.addr %s560, 128
          %s562 = scalar_lea.hbm %s5, %s561
          %s563 = sshll.u32 %s556, 4
          %s564 = int_to_ptr.vmem [resolvable:$true] %s563
          %569 = dma.hbm_to_vmem [thread:$0]  %s562, 38400, %s564, %s553, 256, 256, 16
        $region40: #{crossclr_forward.3} parent=15 // pred_fallthru
          _
        // Predicated region
        $region41: #{crossclr_forward.3} parent=15 // pred_check
          %p570 = pneg %p214
        $region42: #{crossclr_forward.3} parent=15 // pred_check_branch
          %572 = sbr.rel (%p570) target = $region44
        $region43: #{crossclr_forward.3} parent=15 // pred_region
          %p573 = scmp.lt.s32.totalorder %s38, 2
          %s574 = scalar_select %p573, %s38, 2
          %s575 = smul.addr %s574, 2
          %s576 = scalar_lea.vmem %s6, %s575
        $region44: #{crossclr_forward.3} parent=15 // pred_fallthru
          _
        // Predicated region
        $region45: #{crossclr_forward.3} parent=15 // pred_check
          %p577 = pneg %p240
        $region46: #{crossclr_forward.3} parent=15 // pred_check_branch
          %579 = sbr.rel (%p577) target = $region48
        $region47: #{crossclr_forward.3} parent=15 // pred_region
          %s580 = sand.u32 %s38, 1
          %s581 = scalar_lea.sflag [#allocation6], %s580
          %s582 = sand.u32 %s230, 1
          %s583 = smul.addr %s582, 256
          %s584 = scalar_lea.vmem [#allocation7], %s583
          %s586 = ssub.s32 4096, 4096
          %587 = vsyncadd %s581, %s586
          %s588 = smul.addr %s38, 32
          %s589 = smul.addr %s588, 128
          %s590 = scalar_lea.hbm %s7, %s589
          %s591 = sshll.u32 %s584, 4
          %s592 = int_to_ptr.vmem [resolvable:$true] %s591
          %597 = dma.hbm_to_vmem [thread:$0]  %s590, 4096, %s592, %s581, 128, 128, 8
        $region48: #{crossclr_forward.3} parent=15 // pred_fallthru
          _
        // Predicated region
        $region49: #{crossclr_forward.3} parent=15 // pred_check
          %p598 = pneg %p266
        $region50: #{crossclr_forward.3} parent=15 // pred_check_branch
          %600 = sbr.rel (%p598) target = $region52
        $region51: #{crossclr_forward.3} parent=15 // pred_region
          %p601 = scmp.lt.s32.totalorder %s38, 2
          %s602 = scalar_select %p601, %s38, 2
          %s603 = scalar_lea.vmem %s8, %s602
        $region52: #{crossclr_forward.3} parent=15 // pred_fallthru
          _
        // Predicated region
        $region53: #{crossclr_forward.3} parent=15 // pred_check
          %p604 = pneg %p292
        $region54: #{crossclr_forward.3} parent=15 // pred_check_branch
          %606 = sbr.rel (%p604) target = $region56
        $region55: #{crossclr_forward.3} parent=15 // pred_region
          %p607 = scmp.lt.s32.totalorder %s38, 2
          %s608 = scalar_select %p607, %s38, 2
          %s609 = smul.addr %s608, 32
          %s610 = smul.addr %s609, 8
          %s611 = scalar_lea.vmem %s9, %s610
        $region56: #{crossclr_forward.3} parent=15 // pred_fallthru
          _
      $region16: #{crossclr_forward.3} parent=5 // pred_fallthru
        _
      %p612 = scmp.le.s32.totalorder 1, %s38
      %p613 = scmp.lt.s32.totalorder %s38, 4
      %p614 = pnand %p612, %p613
      %p615 = pneg %p614
      // Predicated region
      $region57: #{crossclr_forward.3} parent=5 // pred_check
        _
      $region58: #{crossclr_forward.3} parent=5 // pred_check_branch
        %617 = sbr.rel (%p614) target = $region60
      $region59: #{crossclr_forward.3} parent=5 // pred_region
        %s618 = ssub.s32 %s38, 1
        %s619 = sand.u32 %s129, 1
        %s620 = scalar_lea.sflag [#allocation3], %s619
        %s621 = sand.u32 %s129, 1
        %s622 = smul.addr %s621, 256
        %s623 = scalar_lea.vmem [#allocation2], %s622
        // Predicated region
        $region61: #{crossclr_forward.3} parent=59 // pred_check
          %p624 = pneg %p142
        $region62: #{crossclr_forward.3} parent=59 // pred_check_branch
          %626 = sbr.rel (%p624) target = $region64
        $region63: #{crossclr_forward.3} parent=59 // pred_region
          %627 = dma.done %s620, 4096
        $region64: #{crossclr_forward.3} parent=59 // pred_fallthru
          _
        %s628 = sand.u32 %s43, 1
        %s629 = scalar_lea.sflag [#allocation6], %s628
        %s630 = sand.u32 %s181, 1
        %s631 = smul.addr %s630, 2400
        %s632 = scalar_lea.vmem [#allocation5], %s631
        // Predicated region
        $region65: #{crossclr_forward.3} parent=59 // pred_check
          %p633 = pneg %p194
        $region66: #{crossclr_forward.3} parent=59 // pred_check_branch
          %635 = sbr.rel (%p633) target = $region68
        $region67: #{crossclr_forward.3} parent=59 // pred_region
          %636 = dma.done %s629, 38400
        $region68: #{crossclr_forward.3} parent=59 // pred_fallthru
          _
        %s637 = sand.u32 %s43, 1
        %s638 = scalar_lea.sflag [#allocation6], %s637
        %s639 = sand.u32 %s233, 1
        %s640 = smul.addr %s639, 256
        %s641 = scalar_lea.vmem [#allocation7], %s640
        // Predicated region
        $region69: #{crossclr_forward.3} parent=59 // pred_check
          %p642 = pneg %p246
        $region70: #{crossclr_forward.3} parent=59 // pred_check_branch
          %644 = sbr.rel (%p642) target = $region72
        $region71: #{crossclr_forward.3} parent=59 // pred_region
          %645 = dma.done %s638, 4096
        $region72: #{crossclr_forward.3} parent=59 // pred_fallthru
          _
        %p646 = scmp.lt.s32.totalorder %s43, 2
        %s647 = scalar_select %p646, %s43, 2
        %s648 = smul.addr %s647, 10
        %s649 = smul.addr %s648, 8
        %s650 = scalar_lea.vmem %s0, %s649
        %p651 = pneg %p64
        %p652 = pneg %p61
        %p653 = scmp.lt.s32.totalorder %s43, 2
        %s654 = scalar_select %p653, %s43, 2
        %s655 = smul.addr %s654, 300
        %s656 = smul.addr %s655, 8
        %s657 = scalar_lea.vmem %s1, %s656
        %p658 = pneg %p90
        %p659 = pneg %p87
        %p660 = scmp.lt.s32.totalorder %s43, 2
        %s661 = scalar_select %p660, %s43, 2
        %s662 = smul.addr %s661, 2
        %s663 = scalar_lea.vmem %s2, %s662
        %p664 = pneg %p116
        %p665 = pneg %p113
        %s666 = sand.u32 %s129, 1
        %s667 = scalar_lea.sflag [#allocation3], %s666
        %s668 = sand.u32 %s129, 1
        %s669 = smul.addr %s668, 256
        %s670 = scalar_lea.vmem [#allocation2], %s669
        %p671 = pneg %p142
        %p672 = pneg %p139
        %p673 = scmp.lt.s32.totalorder %s43, 2
        %s674 = scalar_select %p673, %s43, 2
        %s675 = scalar_lea.vmem %s4, %s674
        %p676 = pneg %p168
        %p677 = pneg %p165
        %s678 = sand.u32 %s43, 1
        %s679 = scalar_lea.sflag [#allocation6], %s678
        %s680 = sand.u32 %s181, 1
        %s681 = smul.addr %s680, 2400
        %s682 = scalar_lea.vmem [#allocation5], %s681
        %p683 = pneg %p194
        %p684 = pneg %p191
        %p685 = scmp.lt.s32.totalorder %s43, 2
        %s686 = scalar_select %p685, %s43, 2
        %s687 = smul.addr %s686, 2
        %s688 = scalar_lea.vmem %s6, %s687
        %p689 = pneg %p220
        %p690 = pneg %p217
        %s691 = sand.u32 %s43, 1
        %s692 = scalar_lea.sflag [#allocation6], %s691
        %s693 = sand.u32 %s233, 1
        %s694 = smul.addr %s693, 256
        %s695 = scalar_lea.vmem [#allocation7], %s694
        %p696 = pneg %p246
        %p697 = pneg %p243
        %p698 = scmp.lt.s32.totalorder %s43, 2
        %s699 = scalar_select %p698, %s43, 2
        %s700 = scalar_lea.vmem %s8, %s699
        %p701 = pneg %p272
        %p702 = pneg %p269
        %p703 = scmp.lt.s32.totalorder %s43, 2
        %s704 = scalar_select %p703, %s43, 2
        %s705 = smul.addr %s704, 32
        %s706 = smul.addr %s705, 8
        %s707 = scalar_lea.vmem %s9, %s706
        %p708 = pneg %p298
        %p709 = pneg %p295
        %p710 = pneg %p324
        %p711 = pneg %p321
        %p712 = scmp.lt.s32.totalorder %s43, 2
        %s713 = scalar_select %p712, %s43, 2
        %s714 = smul.addr %s713, 4
        %s715 = scalar_lea.vmem %s10, %s714
        %p716 = pneg %p350
        %p717 = pneg %p347
        %p718 = scmp.lt.s32.totalorder %s43, 2
        %s719 = scalar_select %p718, %s43, 2
        %s720 = smul.addr %s719, 2
        %s721 = smul.addr %s720, 4
        %s722 = scalar_lea.vmem %s11, %s721
        %p723 = pneg %p376
        %p724 = pneg %p373
        %p725 = scmp.lt.s32.totalorder %s43, 2
        %s726 = scalar_select %p725, %s43, 2
        %s727 = smul.addr %s726, 4
        %s728 = scalar_lea.vmem %s12, %s727
        %p729 = pneg %p402
        %p730 = pneg %p399
        %s731 = sand.u32 %s389, 1
        %s732 = scalar_lea.sflag [#allocation4], %s731
        %s733 = sand.u32 %s389, 1
        %s734 = smul.addr %s733, 2400
        %s735 = scalar_lea.vmem [#allocation8], %s734
        %p736 = pneg %p428
        %p737 = pneg %p425
        %s738 = sand.u32 %s43, 1
        %s739 = scalar_lea.sflag [#allocation10], %s738
        %s740 = sand.u32 %s415, 1
        %s741 = smul.addr %s740, 2
        %s742 = scalar_lea.vmem [#allocation9], %s741
        %p743 = pneg %p454
        %p744 = pneg %p451
        %s745 = sand.u32 %s43, 1
        %s746 = scalar_lea.sflag [#allocation10], %s745
        %s747 = sand.u32 %s441, 1
        %s748 = smul.addr %s747, 256
        %s749 = scalar_lea.vmem [#allocation11], %s748
        %p750 = pneg %p480
        %p751 = pneg %p477
        %s752 = sand.u32 %s467, 1
        %s753 = scalar_lea.sflag [#allocation13], %s752
        %s754 = sand.u32 %s467, 1
        %s755 = scalar_lea.vmem [#allocation12], %s754
        %p756 = scmp.lt.s32.totalorder %s43, 2
        %s757 = scalar_select %p756, %s43, 2
        %s758 = smul.addr %s757, 10
        %s759 = smul.addr %s758, 8
        %s760 = scalar_lea.vmem %s0, %s759
        %p761 = scmp.lt.s32.totalorder %s43, 2
        %s762 = scalar_select %p761, %s43, 2
        %s763 = smul.addr %s762, 300
        %s764 = smul.addr %s763, 8
        %s765 = scalar_lea.vmem %s1, %s764
        %p766 = scmp.lt.s32.totalorder %s43, 2
        %s767 = scalar_select %p766, %s43, 2
        %s768 = smul.addr %s767, 2
        %s769 = scalar_lea.vmem %s2, %s768
        %p770 = scmp.lt.s32.totalorder %s43, 2
        %s771 = scalar_select %p770, %s43, 2
        %s772 = scalar_lea.vmem %s4, %s771
        %p773 = scmp.lt.s32.totalorder %s43, 2
        %s774 = scalar_select %p773, %s43, 2
        %s775 = smul.addr %s774, 2
        %s776 = scalar_lea.vmem %s6, %s775
        %p777 = scmp.lt.s32.totalorder %s43, 2
        %s778 = scalar_select %p777, %s43, 2
        %s779 = scalar_lea.vmem %s8, %s778
        %p780 = scmp.lt.s32.totalorder %s43, 2
        %s781 = scalar_select %p780, %s43, 2
        %s782 = smul.addr %s781, 32
        %s783 = smul.addr %s782, 8
        %s784 = scalar_lea.vmem %s9, %s783
        %p785 = scmp.lt.s32.totalorder %s43, 2
        %s786 = scalar_select %p785, %s43, 2
        %s787 = smul.addr %s786, 4
        %s788 = scalar_lea.vmem %s10, %s787
        %p789 = scmp.lt.s32.totalorder %s43, 2
        %s790 = scalar_select %p789, %s43, 2
        %s791 = smul.addr %s790, 2
        %s792 = smul.addr %s791, 4
        %s793 = scalar_lea.vmem %s11, %s792
        %p794 = scmp.lt.s32.totalorder %s43, 2
        %s795 = scalar_select %p794, %s43, 2
        %s796 = smul.addr %s795, 4
        %s797 = scalar_lea.vmem %s12, %s796
        %v799 = vld [vmem:[%s632] sm:$0xff]
        %v800 = vld [vmem:[%s632 + $0x8] sm:$0xff]
        %v801 = vld [vmem:[%s632 + $0x10] sm:$0xff]
        %v802 = vld [vmem:[%s632 + $0x18] sm:$0xff]
        %v803 = vld [vmem:[%s632 + $0x20] sm:$0xff]
        %v804 = vld [vmem:[%s632 + $0x28] sm:$0xff]
        %v805 = vld [vmem:[%s632 + $0x30] sm:$0xff]
        %v806 = vld [vmem:[%s632 + $0x38] sm:$0xff]
        %v807 = vld [vmem:[%s632 + $0x40] sm:$0xff]
        %v808 = vld [vmem:[%s632 + $0x48] sm:$0xff]
        %v809 = vld [vmem:[%s632 + $0x50] sm:$0xff]
        %v810 = vld [vmem:[%s632 + $0x58] sm:$0xff]
        %v811 = vld [vmem:[%s632 + $0x60] sm:$0xff]
        %v812 = vld [vmem:[%s632 + $0x68] sm:$0xff]
        %v813 = vld [vmem:[%s632 + $0x70] sm:$0xff]
        %v814 = vld [vmem:[%s632 + $0x78] sm:$0xff]
        %v815 = vld [vmem:[%s632 + $0x80] sm:$0xff]
        %v816 = vld [vmem:[%s632 + $0x88] sm:$0xff]
        %v817 = vld [vmem:[%s632 + $0x90] sm:$0xff]
        %v818 = vld [vmem:[%s632 + $0x98] sm:$0xff]
        %v819 = vld [vmem:[%s632 + $0xa0] sm:$0xff]
        %v820 = vld [vmem:[%s632 + $0xa8] sm:$0xff]
        %v821 = vld [vmem:[%s632 + $0xb0] sm:$0xff]
        %v822 = vld [vmem:[%s632 + $0xb8] sm:$0xff]
        %v823 = vld [vmem:[%s632 + $0xc0] sm:$0xff]
        %v824 = vld [vmem:[%s632 + $0xc8] sm:$0xff]
        %v825 = vld [vmem:[%s632 + $0xd0] sm:$0xff]
        %v826 = vld [vmem:[%s632 + $0xd8] sm:$0xff]
        %v827 = vld [vmem:[%s632 + $0xe0] sm:$0xff]
        %v828 = vld [vmem:[%s632 + $0xe8] sm:$0xff]
        %v829 = vld [vmem:[%s632 + $0xf0] sm:$0xff]
        %v830 = vld [vmem:[%s632 + $0xf8] sm:$0xff]
        %v831 = vld [vmem:[%s632 + $0x100] sm:$0xff]
        %v832 = vld [vmem:[%s632 + $0x108] sm:$0xff]
        %v833 = vld [vmem:[%s632 + $0x110] sm:$0xff]
        %v834 = vld [vmem:[%s632 + $0x118] sm:$0xff]
        %v835 = vld [vmem:[%s632 + $0x120] sm:$0xff]
        %v836 = vld [vmem:[%s632 + $0x128] sm:$0xff]
        %v837 = vld [vmem:[%s632 + $0x130] sm:$0xff]
        %v838 = vld [vmem:[%s632 + $0x138] sm:$0xff]
        %v839 = vld [vmem:[%s632 + $0x140] sm:$0xff]
        %v840 = vld [vmem:[%s632 + $0x148] sm:$0xff]
        %v841 = vld [vmem:[%s632 + $0x150] sm:$0xff]
        %v842 = vld [vmem:[%s632 + $0x158] sm:$0xff]
        %v843 = vld [vmem:[%s632 + $0x160] sm:$0xff]
        %v844 = vld [vmem:[%s632 + $0x168] sm:$0xff]
        %v845 = vld [vmem:[%s632 + $0x170] sm:$0xff]
        %v846 = vld [vmem:[%s632 + $0x178] sm:$0xff]
        %v847 = vld [vmem:[%s632 + $0x180] sm:$0xff]
        %v848 = vld [vmem:[%s632 + $0x188] sm:$0xff]
        %v849 = vld [vmem:[%s632 + $0x190] sm:$0xff]
        %v850 = vld [vmem:[%s632 + $0x198] sm:$0xff]
        %v851 = vld [vmem:[%s632 + $0x1a0] sm:$0xff]
        %v852 = vld [vmem:[%s632 + $0x1a8] sm:$0xff]
        %v853 = vld [vmem:[%s632 + $0x1b0] sm:$0xff]
        %v854 = vld [vmem:[%s632 + $0x1b8] sm:$0xff]
        %v855 = vld [vmem:[%s632 + $0x1c0] sm:$0xff]
        %v856 = vld [vmem:[%s632 + $0x1c8] sm:$0xff]
        %v857 = vld [vmem:[%s632 + $0x1d0] sm:$0xff]
        %v858 = vld [vmem:[%s632 + $0x1d8] sm:$0xff]
        %v859 = vld [vmem:[%s632 + $0x1e0] sm:$0xff]
        %v860 = vld [vmem:[%s632 + $0x1e8] sm:$0xff]
        %v861 = vld [vmem:[%s632 + $0x1f0] sm:$0xff]
        %v862 = vld [vmem:[%s632 + $0x1f8] sm:$0xff]
        %v863 = vld [vmem:[%s632 + $0x200] sm:$0xff]
        %v864 = vld [vmem:[%s632 + $0x208] sm:$0xff]
        %v865 = vld [vmem:[%s632 + $0x210] sm:$0xff]
        %v866 = vld [vmem:[%s632 + $0x218] sm:$0xff]
        %v867 = vld [vmem:[%s632 + $0x220] sm:$0xff]
        %v868 = vld [vmem:[%s632 + $0x228] sm:$0xff]
        %v869 = vld [vmem:[%s632 + $0x230] sm:$0xff]
        %v870 = vld [vmem:[%s632 + $0x238] sm:$0xff]
        %v871 = vld [vmem:[%s632 + $0x240] sm:$0xff]
        %v872 = vld [vmem:[%s632 + $0x248] sm:$0xff]
        %v873 = vld [vmem:[%s632 + $0x250] sm:$0xff]
        %v874 = vld [vmem:[%s632 + $0x258] sm:$0xff]
        %v875 = vld [vmem:[%s632 + $0x260] sm:$0xff]
        %v876 = vld [vmem:[%s632 + $0x268] sm:$0xff]
        %v877 = vld [vmem:[%s632 + $0x270] sm:$0xff]
        %v878 = vld [vmem:[%s632 + $0x278] sm:$0xff]
        %v879 = vld [vmem:[%s632 + $0x280] sm:$0xff]
        %v880 = vld [vmem:[%s632 + $0x288] sm:$0xff]
        %v881 = vld [vmem:[%s632 + $0x290] sm:$0xff]
        %v882 = vld [vmem:[%s632 + $0x298] sm:$0xff]
        %v883 = vld [vmem:[%s632 + $0x2a0] sm:$0xff]
        %v884 = vld [vmem:[%s632 + $0x2a8] sm:$0xff]
        %v885 = vld [vmem:[%s632 + $0x2b0] sm:$0xff]
        %v886 = vld [vmem:[%s632 + $0x2b8] sm:$0xff]
        %v887 = vld [vmem:[%s632 + $0x2c0] sm:$0xff]
        %v888 = vld [vmem:[%s632 + $0x2c8] sm:$0xff]
        %v889 = vld [vmem:[%s632 + $0x2d0] sm:$0xff]
        %v890 = vld [vmem:[%s632 + $0x2d8] sm:$0xff]
        %v891 = vld [vmem:[%s632 + $0x2e0] sm:$0xff]
        %v892 = vld [vmem:[%s632 + $0x2e8] sm:$0xff]
        %v893 = vld [vmem:[%s632 + $0x2f0] sm:$0xff]
        %v894 = vld [vmem:[%s632 + $0x2f8] sm:$0xff]
        %v895 = vld [vmem:[%s632 + $0x300] sm:$0xff]
        %v896 = vld [vmem:[%s632 + $0x308] sm:$0xff]
        %v897 = vld [vmem:[%s632 + $0x310] sm:$0xff]
        %v898 = vld [vmem:[%s632 + $0x318] sm:$0xff]
        %v899 = vld [vmem:[%s632 + $0x320] sm:$0xff]
        %v900 = vld [vmem:[%s632 + $0x328] sm:$0xff]
        %v901 = vld [vmem:[%s632 + $0x330] sm:$0xff]
        %v902 = vld [vmem:[%s632 + $0x338] sm:$0xff]
        %v903 = vld [vmem:[%s632 + $0x340] sm:$0xff]
        %v904 = vld [vmem:[%s632 + $0x348] sm:$0xff]
        %v905 = vld [vmem:[%s632 + $0x350] sm:$0xff]
        %v906 = vld [vmem:[%s632 + $0x358] sm:$0xff]
        %v907 = vld [vmem:[%s632 + $0x360] sm:$0xff]
        %v908 = vld [vmem:[%s632 + $0x368] sm:$0xff]
        %v909 = vld [vmem:[%s632 + $0x370] sm:$0xff]
        %v910 = vld [vmem:[%s632 + $0x378] sm:$0xff]
        %v911 = vld [vmem:[%s632 + $0x380] sm:$0xff]
        %v912 = vld [vmem:[%s632 + $0x388] sm:$0xff]
        %v913 = vld [vmem:[%s632 + $0x390] sm:$0xff]
        %v914 = vld [vmem:[%s632 + $0x398] sm:$0xff]
        %v915 = vld [vmem:[%s632 + $0x3a0] sm:$0xff]
        %v916 = vld [vmem:[%s632 + $0x3a8] sm:$0xff]
        %v917 = vld [vmem:[%s632 + $0x3b0] sm:$0xff]
        %v918 = vld [vmem:[%s632 + $0x3b8] sm:$0xff]
        %v919 = vld [vmem:[%s632 + $0x3c0] sm:$0xff]
        %v920 = vld [vmem:[%s632 + $0x3c8] sm:$0xff]
        %v921 = vld [vmem:[%s632 + $0x3d0] sm:$0xff]
        %v922 = vld [vmem:[%s632 + $0x3d8] sm:$0xff]
        %v923 = vld [vmem:[%s632 + $0x3e0] sm:$0xff]
        %v924 = vld [vmem:[%s632 + $0x3e8] sm:$0xff]
        %v925 = vld [vmem:[%s632 + $0x3f0] sm:$0xff]
        %v926 = vld [vmem:[%s632 + $0x3f8] sm:$0xff]
        %v927 = vld [vmem:[%s632 + $0x400] sm:$0xff]
        %v928 = vld [vmem:[%s632 + $0x408] sm:$0xff]
        %v929 = vld [vmem:[%s632 + $0x410] sm:$0xff]
        %v930 = vld [vmem:[%s632 + $0x418] sm:$0xff]
        %v931 = vld [vmem:[%s632 + $0x420] sm:$0xff]
        %v932 = vld [vmem:[%s632 + $0x428] sm:$0xff]
        %v933 = vld [vmem:[%s632 + $0x430] sm:$0xff]
        %v934 = vld [vmem:[%s632 + $0x438] sm:$0xff]
        %v935 = vld [vmem:[%s632 + $0x440] sm:$0xff]
        %v936 = vld [vmem:[%s632 + $0x448] sm:$0xff]
        %v937 = vld [vmem:[%s632 + $0x450] sm:$0xff]
        %v938 = vld [vmem:[%s632 + $0x458] sm:$0xff]
        %v939 = vld [vmem:[%s632 + $0x460] sm:$0xff]
        %v940 = vld [vmem:[%s632 + $0x468] sm:$0xff]
        %v941 = vld [vmem:[%s632 + $0x470] sm:$0xff]
        %v942 = vld [vmem:[%s632 + $0x478] sm:$0xff]
        %v943 = vld [vmem:[%s632 + $0x480] sm:$0xff]
        %v944 = vld [vmem:[%s632 + $0x488] sm:$0xff]
        %v945 = vld [vmem:[%s632 + $0x490] sm:$0xff]
        %v946 = vld [vmem:[%s632 + $0x498] sm:$0xff]
        %v947 = vld [vmem:[%s632 + $0x4a0] sm:$0xff]
        %v948 = vld [vmem:[%s632 + $0x4a8] sm:$0xff]
        %v949 = vld [vmem:[%s632 + $0x4b0] sm:$0xff]
        %v950 = vld [vmem:[%s632 + $0x4b8] sm:$0xff]
        %v951 = vld [vmem:[%s632 + $0x4c0] sm:$0xff]
        %v952 = vld [vmem:[%s632 + $0x4c8] sm:$0xff]
        %v953 = vld [vmem:[%s632 + $0x4d0] sm:$0xff]
        %v954 = vld [vmem:[%s632 + $0x4d8] sm:$0xff]
        %v955 = vld [vmem:[%s632 + $0x4e0] sm:$0xff]
        %v956 = vld [vmem:[%s632 + $0x4e8] sm:$0xff]
        %v957 = vld [vmem:[%s632 + $0x4f0] sm:$0xff]
        %v958 = vld [vmem:[%s632 + $0x4f8] sm:$0xff]
        %v959 = vld [vmem:[%s632 + $0x500] sm:$0xff]
        %v960 = vld [vmem:[%s632 + $0x508] sm:$0xff]
        %v961 = vld [vmem:[%s632 + $0x510] sm:$0xff]
        %v962 = vld [vmem:[%s632 + $0x518] sm:$0xff]
        %v963 = vld [vmem:[%s632 + $0x520] sm:$0xff]
        %v964 = vld [vmem:[%s632 + $0x528] sm:$0xff]
        %v965 = vld [vmem:[%s632 + $0x530] sm:$0xff]
        %v966 = vld [vmem:[%s632 + $0x538] sm:$0xff]
        %v967 = vld [vmem:[%s632 + $0x540] sm:$0xff]
        %v968 = vld [vmem:[%s632 + $0x548] sm:$0xff]
        %v969 = vld [vmem:[%s632 + $0x550] sm:$0xff]
        %v970 = vld [vmem:[%s632 + $0x558] sm:$0xff]
        %v971 = vld [vmem:[%s632 + $0x560] sm:$0xff]
        %v972 = vld [vmem:[%s632 + $0x568] sm:$0xff]
        %v973 = vld [vmem:[%s632 + $0x570] sm:$0xff]
        %v974 = vld [vmem:[%s632 + $0x578] sm:$0xff]
        %v975 = vld [vmem:[%s632 + $0x580] sm:$0xff]
        %v976 = vld [vmem:[%s632 + $0x588] sm:$0xff]
        %v977 = vld [vmem:[%s632 + $0x590] sm:$0xff]
        %v978 = vld [vmem:[%s632 + $0x598] sm:$0xff]
        %v979 = vld [vmem:[%s632 + $0x5a0] sm:$0xff]
        %v980 = vld [vmem:[%s632 + $0x5a8] sm:$0xff]
        %v981 = vld [vmem:[%s632 + $0x5b0] sm:$0xff]
        %v982 = vld [vmem:[%s632 + $0x5b8] sm:$0xff]
        %v983 = vld [vmem:[%s632 + $0x5c0] sm:$0xff]
        %v984 = vld [vmem:[%s632 + $0x5c8] sm:$0xff]
        %v985 = vld [vmem:[%s632 + $0x5d0] sm:$0xff]
        %v986 = vld [vmem:[%s632 + $0x5d8] sm:$0xff]
        %v987 = vld [vmem:[%s632 + $0x5e0] sm:$0xff]
        %v988 = vld [vmem:[%s632 + $0x5e8] sm:$0xff]
        %v989 = vld [vmem:[%s632 + $0x5f0] sm:$0xff]
        %v990 = vld [vmem:[%s632 + $0x5f8] sm:$0xff]
        %v991 = vld [vmem:[%s632 + $0x600] sm:$0xff]
        %v992 = vld [vmem:[%s632 + $0x608] sm:$0xff]
        %v993 = vld [vmem:[%s632 + $0x610] sm:$0xff]
        %v994 = vld [vmem:[%s632 + $0x618] sm:$0xff]
        %v995 = vld [vmem:[%s632 + $0x620] sm:$0xff]
        %v996 = vld [vmem:[%s632 + $0x628] sm:$0xff]
        %v997 = vld [vmem:[%s632 + $0x630] sm:$0xff]
        %v998 = vld [vmem:[%s632 + $0x638] sm:$0xff]
        %v999 = vld [vmem:[%s632 + $0x640] sm:$0xff]
        %v1000 = vld [vmem:[%s632 + $0x648] sm:$0xff]
        %v1001 = vld [vmem:[%s632 + $0x650] sm:$0xff]
        %v1002 = vld [vmem:[%s632 + $0x658] sm:$0xff]
        %v1003 = vld [vmem:[%s632 + $0x660] sm:$0xff]
        %v1004 = vld [vmem:[%s632 + $0x668] sm:$0xff]
        %v1005 = vld [vmem:[%s632 + $0x670] sm:$0xff]
        %v1006 = vld [vmem:[%s632 + $0x678] sm:$0xff]
        %v1007 = vld [vmem:[%s632 + $0x680] sm:$0xff]
        %v1008 = vld [vmem:[%s632 + $0x688] sm:$0xff]
        %v1009 = vld [vmem:[%s632 + $0x690] sm:$0xff]
        %v1010 = vld [vmem:[%s632 + $0x698] sm:$0xff]
        %v1011 = vld [vmem:[%s632 + $0x6a0] sm:$0xff]
        %v1012 = vld [vmem:[%s632 + $0x6a8] sm:$0xff]
        %v1013 = vld [vmem:[%s632 + $0x6b0] sm:$0xff]
        %v1014 = vld [vmem:[%s632 + $0x6b8] sm:$0xff]
        %v1015 = vld [vmem:[%s632 + $0x6c0] sm:$0xff]
        %v1016 = vld [vmem:[%s632 + $0x6c8] sm:$0xff]
        %v1017 = vld [vmem:[%s632 + $0x6d0] sm:$0xff]
        %v1018 = vld [vmem:[%s632 + $0x6d8] sm:$0xff]
        %v1019 = vld [vmem:[%s632 + $0x6e0] sm:$0xff]
        %v1020 = vld [vmem:[%s632 + $0x6e8] sm:$0xff]
        %v1021 = vld [vmem:[%s632 + $0x6f0] sm:$0xff]
        %v1022 = vld [vmem:[%s632 + $0x6f8] sm:$0xff]
        %v1023 = vld [vmem:[%s632 + $0x700] sm:$0xff]
        %v1024 = vld [vmem:[%s632 + $0x708] sm:$0xff]
        %v1025 = vld [vmem:[%s632 + $0x710] sm:$0xff]
        %v1026 = vld [vmem:[%s632 + $0x718] sm:$0xff]
        %v1027 = vld [vmem:[%s632 + $0x720] sm:$0xff]
        %v1028 = vld [vmem:[%s632 + $0x728] sm:$0xff]
        %v1029 = vld [vmem:[%s632 + $0x730] sm:$0xff]
        %v1030 = vld [vmem:[%s632 + $0x738] sm:$0xff]
        %v1031 = vld [vmem:[%s632 + $0x740] sm:$0xff]
        %v1032 = vld [vmem:[%s632 + $0x748] sm:$0xff]
        %v1033 = vld [vmem:[%s632 + $0x750] sm:$0xff]
        %v1034 = vld [vmem:[%s632 + $0x758] sm:$0xff]
        %v1035 = vld [vmem:[%s632 + $0x760] sm:$0xff]
        %v1036 = vld [vmem:[%s632 + $0x768] sm:$0xff]
        %v1037 = vld [vmem:[%s632 + $0x770] sm:$0xff]
        %v1038 = vld [vmem:[%s632 + $0x778] sm:$0xff]
        %v1039 = vld [vmem:[%s632 + $0x780] sm:$0xff]
        %v1040 = vld [vmem:[%s632 + $0x788] sm:$0xff]
        %v1041 = vld [vmem:[%s632 + $0x790] sm:$0xff]
        %v1042 = vld [vmem:[%s632 + $0x798] sm:$0xff]
        %v1043 = vld [vmem:[%s632 + $0x7a0] sm:$0xff]
        %v1044 = vld [vmem:[%s632 + $0x7a8] sm:$0xff]
        %v1045 = vld [vmem:[%s632 + $0x7b0] sm:$0xff]
        %v1046 = vld [vmem:[%s632 + $0x7b8] sm:$0xff]
        %v1047 = vld [vmem:[%s632 + $0x7c0] sm:$0xff]
        %v1048 = vld [vmem:[%s632 + $0x7c8] sm:$0xff]
        %v1049 = vld [vmem:[%s632 + $0x7d0] sm:$0xff]
        %v1050 = vld [vmem:[%s632 + $0x7d8] sm:$0xff]
        %v1051 = vld [vmem:[%s632 + $0x7e0] sm:$0xff]
        %v1052 = vld [vmem:[%s632 + $0x7e8] sm:$0xff]
        %v1053 = vld [vmem:[%s632 + $0x7f0] sm:$0xff]
        %v1054 = vld [vmem:[%s632 + $0x7f8] sm:$0xff]
        %v1055 = vld [vmem:[%s632 + $0x800] sm:$0xff]
        %v1056 = vld [vmem:[%s632 + $0x808] sm:$0xff]
        %v1057 = vld [vmem:[%s632 + $0x810] sm:$0xff]
        %v1058 = vld [vmem:[%s632 + $0x818] sm:$0xff]
        %v1059 = vld [vmem:[%s632 + $0x820] sm:$0xff]
        %v1060 = vld [vmem:[%s632 + $0x828] sm:$0xff]
        %v1061 = vld [vmem:[%s632 + $0x830] sm:$0xff]
        %v1062 = vld [vmem:[%s632 + $0x838] sm:$0xff]
        %v1063 = vld [vmem:[%s632 + $0x840] sm:$0xff]
        %v1064 = vld [vmem:[%s632 + $0x848] sm:$0xff]
        %v1065 = vld [vmem:[%s632 + $0x850] sm:$0xff]
        %v1066 = vld [vmem:[%s632 + $0x858] sm:$0xff]
        %v1067 = vld [vmem:[%s632 + $0x860] sm:$0xff]
        %v1068 = vld [vmem:[%s632 + $0x868] sm:$0xff]
        %v1069 = vld [vmem:[%s632 + $0x870] sm:$0xff]
        %v1070 = vld [vmem:[%s632 + $0x878] sm:$0xff]
        %v1071 = vld [vmem:[%s632 + $0x880] sm:$0xff]
        %v1072 = vld [vmem:[%s632 + $0x888] sm:$0xff]
        %v1073 = vld [vmem:[%s632 + $0x890] sm:$0xff]
        %v1074 = vld [vmem:[%s632 + $0x898] sm:$0xff]
        %v1075 = vld [vmem:[%s632 + $0x8a0] sm:$0xff]
        %v1076 = vld [vmem:[%s632 + $0x8a8] sm:$0xff]
        %v1077 = vld [vmem:[%s632 + $0x8b0] sm:$0xff]
        %v1078 = vld [vmem:[%s632 + $0x8b8] sm:$0xff]
        %v1079 = vld [vmem:[%s632 + $0x8c0] sm:$0xff]
        %v1080 = vld [vmem:[%s632 + $0x8c8] sm:$0xff]
        %v1081 = vld [vmem:[%s632 + $0x8d0] sm:$0xff]
        %v1082 = vld [vmem:[%s632 + $0x8d8] sm:$0xff]
        %v1083 = vld [vmem:[%s632 + $0x8e0] sm:$0xff]
        %v1084 = vld [vmem:[%s632 + $0x8e8] sm:$0xff]
        %v1085 = vld [vmem:[%s632 + $0x8f0] sm:$0xff]
        %v1086 = vld [vmem:[%s632 + $0x8f8] sm:$0xff]
        %v1087 = vld [vmem:[%s632 + $0x900] sm:$0xff]
        %v1088 = vld [vmem:[%s632 + $0x908] sm:$0xff]
        %v1089 = vld [vmem:[%s632 + $0x910] sm:$0xff]
        %v1090 = vld [vmem:[%s632 + $0x918] sm:$0xff]
        %v1091 = vld [vmem:[%s632 + $0x920] sm:$0xff]
        %v1092 = vld [vmem:[%s632 + $0x928] sm:$0xff]
        %v1093 = vld [vmem:[%s632 + $0x930] sm:$0xff]
        %v1094 = vld [vmem:[%s632 + $0x938] sm:$0xff]
        %v1095 = vld [vmem:[%s632 + $0x940] sm:$0xff]
        %v1096 = vld [vmem:[%s632 + $0x948] sm:$0xff]
        %v1097 = vld [vmem:[%s632 + $0x950] sm:$0xff]
        %v1098 = vld [vmem:[%s632 + $0x958] sm:$0xff]
        %v1099 = vmul.f32 %v799, 0.999
        %v1100 = vmul.f32 %v800, 0.999
        %v1101 = vmul.f32 %v801, 0.999
        %v1102 = vmul.f32 %v802, 0.999
        %v1103 = vmul.f32 %v803, 0.999
        %v1104 = vmul.f32 %v804, 0.999
        %v1105 = vmul.f32 %v805, 0.999
        %v1106 = vmul.f32 %v806, 0.999
        %v1107 = vmul.f32 %v807, 0.999
        %v1108 = vmul.f32 %v808, 0.999
        %v1109 = vmul.f32 %v809, 0.999
        %v1110 = vmul.f32 %v810, 0.999
        %v1111 = vmul.f32 %v811, 0.999
        %v1112 = vmul.f32 %v812, 0.999
        %v1113 = vmul.f32 %v813, 0.999
        %v1114 = vmul.f32 %v814, 0.999
        %v1115 = vmul.f32 %v815, 0.999
        %v1116 = vmul.f32 %v816, 0.999
        %v1117 = vmul.f32 %v817, 0.999
        %v1118 = vmul.f32 %v818, 0.999
        %v1119 = vmul.f32 %v819, 0.999
        %v1120 = vmul.f32 %v820, 0.999
        %v1121 = vmul.f32 %v821, 0.999
        %v1122 = vmul.f32 %v822, 0.999
        %v1123 = vmul.f32 %v823, 0.999
        %v1124 = vmul.f32 %v824, 0.999
        %v1125 = vmul.f32 %v825, 0.999
        %v1126 = vmul.f32 %v826, 0.999
        %v1127 = vmul.f32 %v827, 0.999
        %v1128 = vmul.f32 %v828, 0.999
        %v1129 = vmul.f32 %v829, 0.999
        %v1130 = vmul.f32 %v830, 0.999
        %v1131 = vmul.f32 %v831, 0.999
        %v1132 = vmul.f32 %v832, 0.999
        %v1133 = vmul.f32 %v833, 0.999
        %v1134 = vmul.f32 %v834, 0.999
        %v1135 = vmul.f32 %v835, 0.999
        %v1136 = vmul.f32 %v836, 0.999
        %v1137 = vmul.f32 %v837, 0.999
        %v1138 = vmul.f32 %v838, 0.999
        %v1139 = vmul.f32 %v839, 0.999
        %v1140 = vmul.f32 %v840, 0.999
        %v1141 = vmul.f32 %v841, 0.999
        %v1142 = vmul.f32 %v842, 0.999
        %v1143 = vmul.f32 %v843, 0.999
        %v1144 = vmul.f32 %v844, 0.999
        %v1145 = vmul.f32 %v845, 0.999
        %v1146 = vmul.f32 %v846, 0.999
        %v1147 = vmul.f32 %v847, 0.999
        %v1148 = vmul.f32 %v848, 0.999
        %v1149 = vmul.f32 %v849, 0.999
        %v1150 = vmul.f32 %v850, 0.999
        %v1151 = vmul.f32 %v851, 0.999
        %v1152 = vmul.f32 %v852, 0.999
        %v1153 = vmul.f32 %v853, 0.999
        %v1154 = vmul.f32 %v854, 0.999
        %v1155 = vmul.f32 %v855, 0.999
        %v1156 = vmul.f32 %v856, 0.999
        %v1157 = vmul.f32 %v857, 0.999
        %v1158 = vmul.f32 %v858, 0.999
        %v1159 = vmul.f32 %v859, 0.999
        %v1160 = vmul.f32 %v860, 0.999
        %v1161 = vmul.f32 %v861, 0.999
        %v1162 = vmul.f32 %v862, 0.999
        %v1163 = vmul.f32 %v863, 0.999
        %v1164 = vmul.f32 %v864, 0.999
        %v1165 = vmul.f32 %v865, 0.999
        %v1166 = vmul.f32 %v866, 0.999
        %v1167 = vmul.f32 %v867, 0.999
        %v1168 = vmul.f32 %v868, 0.999
        %v1169 = vmul.f32 %v869, 0.999
        %v1170 = vmul.f32 %v870, 0.999
        %v1171 = vmul.f32 %v871, 0.999
        %v1172 = vmul.f32 %v872, 0.999
        %v1173 = vmul.f32 %v873, 0.999
        %v1174 = vmul.f32 %v874, 0.999
        %v1175 = vmul.f32 %v875, 0.999
        %v1176 = vmul.f32 %v876, 0.999
        %v1177 = vmul.f32 %v877, 0.999
        %v1178 = vmul.f32 %v878, 0.999
        %v1179 = vmul.f32 %v879, 0.999
        %v1180 = vmul.f32 %v880, 0.999
        %v1181 = vmul.f32 %v881, 0.999
        %v1182 = vmul.f32 %v882, 0.999
        %v1183 = vmul.f32 %v883, 0.999
        %v1184 = vmul.f32 %v884, 0.999
        %v1185 = vmul.f32 %v885, 0.999
        %v1186 = vmul.f32 %v886, 0.999
        %v1187 = vmul.f32 %v887, 0.999
        %v1188 = vmul.f32 %v888, 0.999
        %v1189 = vmul.f32 %v889, 0.999
        %v1190 = vmul.f32 %v890, 0.999
        %v1191 = vmul.f32 %v891, 0.999
        %v1192 = vmul.f32 %v892, 0.999
        %v1193 = vmul.f32 %v893, 0.999
        %v1194 = vmul.f32 %v894, 0.999
        %v1195 = vmul.f32 %v895, 0.999
        %v1196 = vmul.f32 %v896, 0.999
        %v1197 = vmul.f32 %v897, 0.999
        %v1198 = vmul.f32 %v898, 0.999
        %v1199 = vmul.f32 %v899, 0.999
        %v1200 = vmul.f32 %v900, 0.999
        %v1201 = vmul.f32 %v901, 0.999
        %v1202 = vmul.f32 %v902, 0.999
        %v1203 = vmul.f32 %v903, 0.999
        %v1204 = vmul.f32 %v904, 0.999
        %v1205 = vmul.f32 %v905, 0.999
        %v1206 = vmul.f32 %v906, 0.999
        %v1207 = vmul.f32 %v907, 0.999
        %v1208 = vmul.f32 %v908, 0.999
        %v1209 = vmul.f32 %v909, 0.999
        %v1210 = vmul.f32 %v910, 0.999
        %v1211 = vmul.f32 %v911, 0.999
        %v1212 = vmul.f32 %v912, 0.999
        %v1213 = vmul.f32 %v913, 0.999
        %v1214 = vmul.f32 %v914, 0.999
        %v1215 = vmul.f32 %v915, 0.999
        %v1216 = vmul.f32 %v916, 0.999
        %v1217 = vmul.f32 %v917, 0.999
        %v1218 = vmul.f32 %v918, 0.999
        %v1219 = vmul.f32 %v919, 0.999
        %v1220 = vmul.f32 %v920, 0.999
        %v1221 = vmul.f32 %v921, 0.999
        %v1222 = vmul.f32 %v922, 0.999
        %v1223 = vmul.f32 %v923, 0.999
        %v1224 = vmul.f32 %v924, 0.999
        %v1225 = vmul.f32 %v925, 0.999
        %v1226 = vmul.f32 %v926, 0.999
        %v1227 = vmul.f32 %v927, 0.999
        %v1228 = vmul.f32 %v928, 0.999
        %v1229 = vmul.f32 %v929, 0.999
        %v1230 = vmul.f32 %v930, 0.999
        %v1231 = vmul.f32 %v931, 0.999
        %v1232 = vmul.f32 %v932, 0.999
        %v1233 = vmul.f32 %v933, 0.999
        %v1234 = vmul.f32 %v934, 0.999
        %v1235 = vmul.f32 %v935, 0.999
        %v1236 = vmul.f32 %v936, 0.999
        %v1237 = vmul.f32 %v937, 0.999
        %v1238 = vmul.f32 %v938, 0.999
        %v1239 = vmul.f32 %v939, 0.999
        %v1240 = vmul.f32 %v940, 0.999
        %v1241 = vmul.f32 %v941, 0.999
        %v1242 = vmul.f32 %v942, 0.999
        %v1243 = vmul.f32 %v943, 0.999
        %v1244 = vmul.f32 %v944, 0.999
        %v1245 = vmul.f32 %v945, 0.999
        %v1246 = vmul.f32 %v946, 0.999
        %v1247 = vmul.f32 %v947, 0.999
        %v1248 = vmul.f32 %v948, 0.999
        %v1249 = vmul.f32 %v949, 0.999
        %v1250 = vmul.f32 %v950, 0.999
        %v1251 = vmul.f32 %v951, 0.999
        %v1252 = vmul.f32 %v952, 0.999
        %v1253 = vmul.f32 %v953, 0.999
        %v1254 = vmul.f32 %v954, 0.999
        %v1255 = vmul.f32 %v955, 0.999
        %v1256 = vmul.f32 %v956, 0.999
        %v1257 = vmul.f32 %v957, 0.999
        %v1258 = vmul.f32 %v958, 0.999
        %v1259 = vmul.f32 %v959, 0.999
        %v1260 = vmul.f32 %v960, 0.999
        %v1261 = vmul.f32 %v961, 0.999
        %v1262 = vmul.f32 %v962, 0.999
        %v1263 = vmul.f32 %v963, 0.999
        %v1264 = vmul.f32 %v964, 0.999
        %v1265 = vmul.f32 %v965, 0.999
        %v1266 = vmul.f32 %v966, 0.999
        %v1267 = vmul.f32 %v967, 0.999
        %v1268 = vmul.f32 %v968, 0.999
        %v1269 = vmul.f32 %v969, 0.999
        %v1270 = vmul.f32 %v970, 0.999
        %v1271 = vmul.f32 %v971, 0.999
        %v1272 = vmul.f32 %v972, 0.999
        %v1273 = vmul.f32 %v973, 0.999
        %v1274 = vmul.f32 %v974, 0.999
        %v1275 = vmul.f32 %v975, 0.999
        %v1276 = vmul.f32 %v976, 0.999
        %v1277 = vmul.f32 %v977, 0.999
        %v1278 = vmul.f32 %v978, 0.999
        %v1279 = vmul.f32 %v979, 0.999
        %v1280 = vmul.f32 %v980, 0.999
        %v1281 = vmul.f32 %v981, 0.999
        %v1282 = vmul.f32 %v982, 0.999
        %v1283 = vmul.f32 %v983, 0.999
        %v1284 = vmul.f32 %v984, 0.999
        %v1285 = vmul.f32 %v985, 0.999
        %v1286 = vmul.f32 %v986, 0.999
        %v1287 = vmul.f32 %v987, 0.999
        %v1288 = vmul.f32 %v988, 0.999
        %v1289 = vmul.f32 %v989, 0.999
        %v1290 = vmul.f32 %v990, 0.999
        %v1291 = vmul.f32 %v991, 0.999
        %v1292 = vmul.f32 %v992, 0.999
        %v1293 = vmul.f32 %v993, 0.999
        %v1294 = vmul.f32 %v994, 0.999
        %v1295 = vmul.f32 %v995, 0.999
        %v1296 = vmul.f32 %v996, 0.999
        %v1297 = vmul.f32 %v997, 0.999
        %v1298 = vmul.f32 %v998, 0.999
        %v1299 = vmul.f32 %v999, 0.999
        %v1300 = vmul.f32 %v1000, 0.999
        %v1301 = vmul.f32 %v1001, 0.999
        %v1302 = vmul.f32 %v1002, 0.999
        %v1303 = vmul.f32 %v1003, 0.999
        %v1304 = vmul.f32 %v1004, 0.999
        %v1305 = vmul.f32 %v1005, 0.999
        %v1306 = vmul.f32 %v1006, 0.999
        %v1307 = vmul.f32 %v1007, 0.999
        %v1308 = vmul.f32 %v1008, 0.999
        %v1309 = vmul.f32 %v1009, 0.999
        %v1310 = vmul.f32 %v1010, 0.999
        %v1311 = vmul.f32 %v1011, 0.999
        %v1312 = vmul.f32 %v1012, 0.999
        %v1313 = vmul.f32 %v1013, 0.999
        %v1314 = vmul.f32 %v1014, 0.999
        %v1315 = vmul.f32 %v1015, 0.999
        %v1316 = vmul.f32 %v1016, 0.999
        %v1317 = vmul.f32 %v1017, 0.999
        %v1318 = vmul.f32 %v1018, 0.999
        %v1319 = vmul.f32 %v1019, 0.999
        %v1320 = vmul.f32 %v1020, 0.999
        %v1321 = vmul.f32 %v1021, 0.999
        %v1322 = vmul.f32 %v1022, 0.999
        %v1323 = vmul.f32 %v1023, 0.999
        %v1324 = vmul.f32 %v1024, 0.999
        %v1325 = vmul.f32 %v1025, 0.999
        %v1326 = vmul.f32 %v1026, 0.999
        %v1327 = vmul.f32 %v1027, 0.999
        %v1328 = vmul.f32 %v1028, 0.999
        %v1329 = vmul.f32 %v1029, 0.999
        %v1330 = vmul.f32 %v1030, 0.999
        %v1331 = vmul.f32 %v1031, 0.999
        %v1332 = vmul.f32 %v1032, 0.999
        %v1333 = vmul.f32 %v1033, 0.999
        %v1334 = vmul.f32 %v1034, 0.999
        %v1335 = vmul.f32 %v1035, 0.999
        %v1336 = vmul.f32 %v1036, 0.999
        %v1337 = vmul.f32 %v1037, 0.999
        %v1338 = vmul.f32 %v1038, 0.999
        %v1339 = vmul.f32 %v1039, 0.999
        %v1340 = vmul.f32 %v1040, 0.999
        %v1341 = vmul.f32 %v1041, 0.999
        %v1342 = vmul.f32 %v1042, 0.999
        %v1343 = vmul.f32 %v1043, 0.999
        %v1344 = vmul.f32 %v1044, 0.999
        %v1345 = vmul.f32 %v1045, 0.999
        %v1346 = vmul.f32 %v1046, 0.999
        %v1347 = vmul.f32 %v1047, 0.999
        %v1348 = vmul.f32 %v1048, 0.999
        %v1349 = vmul.f32 %v1049, 0.999
        %v1350 = vmul.f32 %v1050, 0.999
        %v1351 = vmul.f32 %v1051, 0.999
        %v1352 = vmul.f32 %v1052, 0.999
        %v1353 = vmul.f32 %v1053, 0.999
        %v1354 = vmul.f32 %v1054, 0.999
        %v1355 = vmul.f32 %v1055, 0.999
        %v1356 = vmul.f32 %v1056, 0.999
        %v1357 = vmul.f32 %v1057, 0.999
        %v1358 = vmul.f32 %v1058, 0.999
        %v1359 = vmul.f32 %v1059, 0.999
        %v1360 = vmul.f32 %v1060, 0.999
        %v1361 = vmul.f32 %v1061, 0.999
        %v1362 = vmul.f32 %v1062, 0.999
        %v1363 = vmul.f32 %v1063, 0.999
        %v1364 = vmul.f32 %v1064, 0.999
        %v1365 = vmul.f32 %v1065, 0.999
        %v1366 = vmul.f32 %v1066, 0.999
        %v1367 = vmul.f32 %v1067, 0.999
        %v1368 = vmul.f32 %v1068, 0.999
        %v1369 = vmul.f32 %v1069, 0.999
        %v1370 = vmul.f32 %v1070, 0.999
        %v1371 = vmul.f32 %v1071, 0.999
        %v1372 = vmul.f32 %v1072, 0.999
        %v1373 = vmul.f32 %v1073, 0.999
        %v1374 = vmul.f32 %v1074, 0.999
        %v1375 = vmul.f32 %v1075, 0.999
        %v1376 = vmul.f32 %v1076, 0.999
        %v1377 = vmul.f32 %v1077, 0.999
        %v1378 = vmul.f32 %v1078, 0.999
        %v1379 = vmul.f32 %v1079, 0.999
        %v1380 = vmul.f32 %v1080, 0.999
        %v1381 = vmul.f32 %v1081, 0.999
        %v1382 = vmul.f32 %v1082, 0.999
        %v1383 = vmul.f32 %v1083, 0.999
        %v1384 = vmul.f32 %v1084, 0.999
        %v1385 = vmul.f32 %v1085, 0.999
        %v1386 = vmul.f32 %v1086, 0.999
        %v1387 = vmul.f32 %v1087, 0.999
        %v1388 = vmul.f32 %v1088, 0.999
        %v1389 = vmul.f32 %v1089, 0.999
        %v1390 = vmul.f32 %v1090, 0.999
        %v1391 = vmul.f32 %v1091, 0.999
        %v1392 = vmul.f32 %v1092, 0.999
        %v1393 = vmul.f32 %v1093, 0.999
        %v1394 = vmul.f32 %v1094, 0.999
        %v1395 = vmul.f32 %v1095, 0.999
        %v1396 = vmul.f32 %v1096, 0.999
        %v1397 = vmul.f32 %v1097, 0.999
        %v1398 = vmul.f32 %v1098, 0.999
        %v1399 = vld [vmem:[%s765] sm:$0xff]
        %v1400 = vld [vmem:[%s765 + $0x8] sm:$0xff]
        %v1401 = vld [vmem:[%s765 + $0x10] sm:$0xff]
        %v1402 = vld [vmem:[%s765 + $0x18] sm:$0xff]
        %v1403 = vld [vmem:[%s765 + $0x20] sm:$0xff]
        %v1404 = vld [vmem:[%s765 + $0x28] sm:$0xff]
        %v1405 = vld [vmem:[%s765 + $0x30] sm:$0xff]
        %v1406 = vld [vmem:[%s765 + $0x38] sm:$0xff]
        %v1407 = vld [vmem:[%s765 + $0x40] sm:$0xff]
        %v1408 = vld [vmem:[%s765 + $0x48] sm:$0xff]
        %v1409 = vld [vmem:[%s765 + $0x50] sm:$0xff]
        %v1410 = vld [vmem:[%s765 + $0x58] sm:$0xff]
        %v1411 = vld [vmem:[%s765 + $0x60] sm:$0xff]
        %v1412 = vld [vmem:[%s765 + $0x68] sm:$0xff]
        %v1413 = vld [vmem:[%s765 + $0x70] sm:$0xff]
        %v1414 = vld [vmem:[%s765 + $0x78] sm:$0xff]
        %v1415 = vld [vmem:[%s765 + $0x80] sm:$0xff]
        %v1416 = vld [vmem:[%s765 + $0x88] sm:$0xff]
        %v1417 = vld [vmem:[%s765 + $0x90] sm:$0xff]
        %v1418 = vld [vmem:[%s765 + $0x98] sm:$0xff]
        %v1419 = vld [vmem:[%s765 + $0xa0] sm:$0xff]
        %v1420 = vld [vmem:[%s765 + $0xa8] sm:$0xff]
        %v1421 = vld [vmem:[%s765 + $0xb0] sm:$0xff]
        %v1422 = vld [vmem:[%s765 + $0xb8] sm:$0xff]
        %v1423 = vld [vmem:[%s765 + $0xc0] sm:$0xff]
        %v1424 = vld [vmem:[%s765 + $0xc8] sm:$0xff]
        %v1425 = vld [vmem:[%s765 + $0xd0] sm:$0xff]
        %v1426 = vld [vmem:[%s765 + $0xd8] sm:$0xff]
        %v1427 = vld [vmem:[%s765 + $0xe0] sm:$0xff]
        %v1428 = vld [vmem:[%s765 + $0xe8] sm:$0xff]
        %v1429 = vld [vmem:[%s765 + $0xf0] sm:$0xff]
        %v1430 = vld [vmem:[%s765 + $0xf8] sm:$0xff]
        %v1431 = vld [vmem:[%s765 + $0x100] sm:$0xff]
        %v1432 = vld [vmem:[%s765 + $0x108] sm:$0xff]
        %v1433 = vld [vmem:[%s765 + $0x110] sm:$0xff]
        %v1434 = vld [vmem:[%s765 + $0x118] sm:$0xff]
        %v1435 = vld [vmem:[%s765 + $0x120] sm:$0xff]
        %v1436 = vld [vmem:[%s765 + $0x128] sm:$0xff]
        %v1437 = vld [vmem:[%s765 + $0x130] sm:$0xff]
        %v1438 = vld [vmem:[%s765 + $0x138] sm:$0xff]
        %v1439 = vld [vmem:[%s765 + $0x140] sm:$0xff]
        %v1440 = vld [vmem:[%s765 + $0x148] sm:$0xff]
        %v1441 = vld [vmem:[%s765 + $0x150] sm:$0xff]
        %v1442 = vld [vmem:[%s765 + $0x158] sm:$0xff]
        %v1443 = vld [vmem:[%s765 + $0x160] sm:$0xff]
        %v1444 = vld [vmem:[%s765 + $0x168] sm:$0xff]
        %v1445 = vld [vmem:[%s765 + $0x170] sm:$0xff]
        %v1446 = vld [vmem:[%s765 + $0x178] sm:$0xff]
        %v1447 = vld [vmem:[%s765 + $0x180] sm:$0xff]
        %v1448 = vld [vmem:[%s765 + $0x188] sm:$0xff]
        %v1449 = vld [vmem:[%s765 + $0x190] sm:$0xff]
        %v1450 = vld [vmem:[%s765 + $0x198] sm:$0xff]
        %v1451 = vld [vmem:[%s765 + $0x1a0] sm:$0xff]
        %v1452 = vld [vmem:[%s765 + $0x1a8] sm:$0xff]
        %v1453 = vld [vmem:[%s765 + $0x1b0] sm:$0xff]
        %v1454 = vld [vmem:[%s765 + $0x1b8] sm:$0xff]
        %v1455 = vld [vmem:[%s765 + $0x1c0] sm:$0xff]
        %v1456 = vld [vmem:[%s765 + $0x1c8] sm:$0xff]
        %v1457 = vld [vmem:[%s765 + $0x1d0] sm:$0xff]
        %v1458 = vld [vmem:[%s765 + $0x1d8] sm:$0xff]
        %v1459 = vld [vmem:[%s765 + $0x1e0] sm:$0xff]
        %v1460 = vld [vmem:[%s765 + $0x1e8] sm:$0xff]
        %v1461 = vld [vmem:[%s765 + $0x1f0] sm:$0xff]
        %v1462 = vld [vmem:[%s765 + $0x1f8] sm:$0xff]
        %v1463 = vld [vmem:[%s765 + $0x200] sm:$0xff]
        %v1464 = vld [vmem:[%s765 + $0x208] sm:$0xff]
        %v1465 = vld [vmem:[%s765 + $0x210] sm:$0xff]
        %v1466 = vld [vmem:[%s765 + $0x218] sm:$0xff]
        %v1467 = vld [vmem:[%s765 + $0x220] sm:$0xff]
        %v1468 = vld [vmem:[%s765 + $0x228] sm:$0xff]
        %v1469 = vld [vmem:[%s765 + $0x230] sm:$0xff]
        %v1470 = vld [vmem:[%s765 + $0x238] sm:$0xff]
        %v1471 = vld [vmem:[%s765 + $0x240] sm:$0xff]
        %v1472 = vld [vmem:[%s765 + $0x248] sm:$0xff]
        %v1473 = vld [vmem:[%s765 + $0x250] sm:$0xff]
        %v1474 = vld [vmem:[%s765 + $0x258] sm:$0xff]
        %v1475 = vld [vmem:[%s765 + $0x260] sm:$0xff]
        %v1476 = vld [vmem:[%s765 + $0x268] sm:$0xff]
        %v1477 = vld [vmem:[%s765 + $0x270] sm:$0xff]
        %v1478 = vld [vmem:[%s765 + $0x278] sm:$0xff]
        %v1479 = vld [vmem:[%s765 + $0x280] sm:$0xff]
        %v1480 = vld [vmem:[%s765 + $0x288] sm:$0xff]
        %v1481 = vld [vmem:[%s765 + $0x290] sm:$0xff]
        %v1482 = vld [vmem:[%s765 + $0x298] sm:$0xff]
        %v1483 = vld [vmem:[%s765 + $0x2a0] sm:$0xff]
        %v1484 = vld [vmem:[%s765 + $0x2a8] sm:$0xff]
        %v1485 = vld [vmem:[%s765 + $0x2b0] sm:$0xff]
        %v1486 = vld [vmem:[%s765 + $0x2b8] sm:$0xff]
        %v1487 = vld [vmem:[%s765 + $0x2c0] sm:$0xff]
        %v1488 = vld [vmem:[%s765 + $0x2c8] sm:$0xff]
        %v1489 = vld [vmem:[%s765 + $0x2d0] sm:$0xff]
        %v1490 = vld [vmem:[%s765 + $0x2d8] sm:$0xff]
        %v1491 = vld [vmem:[%s765 + $0x2e0] sm:$0xff]
        %v1492 = vld [vmem:[%s765 + $0x2e8] sm:$0xff]
        %v1493 = vld [vmem:[%s765 + $0x2f0] sm:$0xff]
        %v1494 = vld [vmem:[%s765 + $0x2f8] sm:$0xff]
        %v1495 = vld [vmem:[%s765 + $0x300] sm:$0xff]
        %v1496 = vld [vmem:[%s765 + $0x308] sm:$0xff]
        %v1497 = vld [vmem:[%s765 + $0x310] sm:$0xff]
        %v1498 = vld [vmem:[%s765 + $0x318] sm:$0xff]
        %v1499 = vld [vmem:[%s765 + $0x320] sm:$0xff]
        %v1500 = vld [vmem:[%s765 + $0x328] sm:$0xff]
        %v1501 = vld [vmem:[%s765 + $0x330] sm:$0xff]
        %v1502 = vld [vmem:[%s765 + $0x338] sm:$0xff]
        %v1503 = vld [vmem:[%s765 + $0x340] sm:$0xff]
        %v1504 = vld [vmem:[%s765 + $0x348] sm:$0xff]
        %v1505 = vld [vmem:[%s765 + $0x350] sm:$0xff]
        %v1506 = vld [vmem:[%s765 + $0x358] sm:$0xff]
        %v1507 = vld [vmem:[%s765 + $0x360] sm:$0xff]
        %v1508 = vld [vmem:[%s765 + $0x368] sm:$0xff]
        %v1509 = vld [vmem:[%s765 + $0x370] sm:$0xff]
        %v1510 = vld [vmem:[%s765 + $0x378] sm:$0xff]
        %v1511 = vld [vmem:[%s765 + $0x380] sm:$0xff]
        %v1512 = vld [vmem:[%s765 + $0x388] sm:$0xff]
        %v1513 = vld [vmem:[%s765 + $0x390] sm:$0xff]
        %v1514 = vld [vmem:[%s765 + $0x398] sm:$0xff]
        %v1515 = vld [vmem:[%s765 + $0x3a0] sm:$0xff]
        %v1516 = vld [vmem:[%s765 + $0x3a8] sm:$0xff]
        %v1517 = vld [vmem:[%s765 + $0x3b0] sm:$0xff]
        %v1518 = vld [vmem:[%s765 + $0x3b8] sm:$0xff]
        %v1519 = vld [vmem:[%s765 + $0x3c0] sm:$0xff]
        %v1520 = vld [vmem:[%s765 + $0x3c8] sm:$0xff]
        %v1521 = vld [vmem:[%s765 + $0x3d0] sm:$0xff]
        %v1522 = vld [vmem:[%s765 + $0x3d8] sm:$0xff]
        %v1523 = vld [vmem:[%s765 + $0x3e0] sm:$0xff]
        %v1524 = vld [vmem:[%s765 + $0x3e8] sm:$0xff]
        %v1525 = vld [vmem:[%s765 + $0x3f0] sm:$0xff]
        %v1526 = vld [vmem:[%s765 + $0x3f8] sm:$0xff]
        %v1527 = vld [vmem:[%s765 + $0x400] sm:$0xff]
        %v1528 = vld [vmem:[%s765 + $0x408] sm:$0xff]
        %v1529 = vld [vmem:[%s765 + $0x410] sm:$0xff]
        %v1530 = vld [vmem:[%s765 + $0x418] sm:$0xff]
        %v1531 = vld [vmem:[%s765 + $0x420] sm:$0xff]
        %v1532 = vld [vmem:[%s765 + $0x428] sm:$0xff]
        %v1533 = vld [vmem:[%s765 + $0x430] sm:$0xff]
        %v1534 = vld [vmem:[%s765 + $0x438] sm:$0xff]
        %v1535 = vld [vmem:[%s765 + $0x440] sm:$0xff]
        %v1536 = vld [vmem:[%s765 + $0x448] sm:$0xff]
        %v1537 = vld [vmem:[%s765 + $0x450] sm:$0xff]
        %v1538 = vld [vmem:[%s765 + $0x458] sm:$0xff]
        %v1539 = vld [vmem:[%s765 + $0x460] sm:$0xff]
        %v1540 = vld [vmem:[%s765 + $0x468] sm:$0xff]
        %v1541 = vld [vmem:[%s765 + $0x470] sm:$0xff]
        %v1542 = vld [vmem:[%s765 + $0x478] sm:$0xff]
        %v1543 = vld [vmem:[%s765 + $0x480] sm:$0xff]
        %v1544 = vld [vmem:[%s765 + $0x488] sm:$0xff]
        %v1545 = vld [vmem:[%s765 + $0x490] sm:$0xff]
        %v1546 = vld [vmem:[%s765 + $0x498] sm:$0xff]
        %v1547 = vld [vmem:[%s765 + $0x4a0] sm:$0xff]
        %v1548 = vld [vmem:[%s765 + $0x4a8] sm:$0xff]
        %v1549 = vld [vmem:[%s765 + $0x4b0] sm:$0xff]
        %v1550 = vld [vmem:[%s765 + $0x4b8] sm:$0xff]
        %v1551 = vld [vmem:[%s765 + $0x4c0] sm:$0xff]
        %v1552 = vld [vmem:[%s765 + $0x4c8] sm:$0xff]
        %v1553 = vld [vmem:[%s765 + $0x4d0] sm:$0xff]
        %v1554 = vld [vmem:[%s765 + $0x4d8] sm:$0xff]
        %v1555 = vld [vmem:[%s765 + $0x4e0] sm:$0xff]
        %v1556 = vld [vmem:[%s765 + $0x4e8] sm:$0xff]
        %v1557 = vld [vmem:[%s765 + $0x4f0] sm:$0xff]
        %v1558 = vld [vmem:[%s765 + $0x4f8] sm:$0xff]
        %v1559 = vld [vmem:[%s765 + $0x500] sm:$0xff]
        %v1560 = vld [vmem:[%s765 + $0x508] sm:$0xff]
        %v1561 = vld [vmem:[%s765 + $0x510] sm:$0xff]
        %v1562 = vld [vmem:[%s765 + $0x518] sm:$0xff]
        %v1563 = vld [vmem:[%s765 + $0x520] sm:$0xff]
        %v1564 = vld [vmem:[%s765 + $0x528] sm:$0xff]
        %v1565 = vld [vmem:[%s765 + $0x530] sm:$0xff]
        %v1566 = vld [vmem:[%s765 + $0x538] sm:$0xff]
        %v1567 = vld [vmem:[%s765 + $0x540] sm:$0xff]
        %v1568 = vld [vmem:[%s765 + $0x548] sm:$0xff]
        %v1569 = vld [vmem:[%s765 + $0x550] sm:$0xff]
        %v1570 = vld [vmem:[%s765 + $0x558] sm:$0xff]
        %v1571 = vld [vmem:[%s765 + $0x560] sm:$0xff]
        %v1572 = vld [vmem:[%s765 + $0x568] sm:$0xff]
        %v1573 = vld [vmem:[%s765 + $0x570] sm:$0xff]
        %v1574 = vld [vmem:[%s765 + $0x578] sm:$0xff]
        %v1575 = vld [vmem:[%s765 + $0x580] sm:$0xff]
        %v1576 = vld [vmem:[%s765 + $0x588] sm:$0xff]
        %v1577 = vld [vmem:[%s765 + $0x590] sm:$0xff]
        %v1578 = vld [vmem:[%s765 + $0x598] sm:$0xff]
        %v1579 = vld [vmem:[%s765 + $0x5a0] sm:$0xff]
        %v1580 = vld [vmem:[%s765 + $0x5a8] sm:$0xff]
        %v1581 = vld [vmem:[%s765 + $0x5b0] sm:$0xff]
        %v1582 = vld [vmem:[%s765 + $0x5b8] sm:$0xff]
        %v1583 = vld [vmem:[%s765 + $0x5c0] sm:$0xff]
        %v1584 = vld [vmem:[%s765 + $0x5c8] sm:$0xff]
        %v1585 = vld [vmem:[%s765 + $0x5d0] sm:$0xff]
        %v1586 = vld [vmem:[%s765 + $0x5d8] sm:$0xff]
        %v1587 = vld [vmem:[%s765 + $0x5e0] sm:$0xff]
        %v1588 = vld [vmem:[%s765 + $0x5e8] sm:$0xff]
        %v1589 = vld [vmem:[%s765 + $0x5f0] sm:$0xff]
        %v1590 = vld [vmem:[%s765 + $0x5f8] sm:$0xff]
        %v1591 = vld [vmem:[%s765 + $0x600] sm:$0xff]
        %v1592 = vld [vmem:[%s765 + $0x608] sm:$0xff]
        %v1593 = vld [vmem:[%s765 + $0x610] sm:$0xff]
        %v1594 = vld [vmem:[%s765 + $0x618] sm:$0xff]
        %v1595 = vld [vmem:[%s765 + $0x620] sm:$0xff]
        %v1596 = vld [vmem:[%s765 + $0x628] sm:$0xff]
        %v1597 = vld [vmem:[%s765 + $0x630] sm:$0xff]
        %v1598 = vld [vmem:[%s765 + $0x638] sm:$0xff]
        %v1599 = vld [vmem:[%s765 + $0x640] sm:$0xff]
        %v1600 = vld [vmem:[%s765 + $0x648] sm:$0xff]
        %v1601 = vld [vmem:[%s765 + $0x650] sm:$0xff]
        %v1602 = vld [vmem:[%s765 + $0x658] sm:$0xff]
        %v1603 = vld [vmem:[%s765 + $0x660] sm:$0xff]
        %v1604 = vld [vmem:[%s765 + $0x668] sm:$0xff]
        %v1605 = vld [vmem:[%s765 + $0x670] sm:$0xff]
        %v1606 = vld [vmem:[%s765 + $0x678] sm:$0xff]
        %v1607 = vld [vmem:[%s765 + $0x680] sm:$0xff]
        %v1608 = vld [vmem:[%s765 + $0x688] sm:$0xff]
        %v1609 = vld [vmem:[%s765 + $0x690] sm:$0xff]
        %v1610 = vld [vmem:[%s765 + $0x698] sm:$0xff]
        %v1611 = vld [vmem:[%s765 + $0x6a0] sm:$0xff]
        %v1612 = vld [vmem:[%s765 + $0x6a8] sm:$0xff]
        %v1613 = vld [vmem:[%s765 + $0x6b0] sm:$0xff]
        %v1614 = vld [vmem:[%s765 + $0x6b8] sm:$0xff]
        %v1615 = vld [vmem:[%s765 + $0x6c0] sm:$0xff]
        %v1616 = vld [vmem:[%s765 + $0x6c8] sm:$0xff]
        %v1617 = vld [vmem:[%s765 + $0x6d0] sm:$0xff]
        %v1618 = vld [vmem:[%s765 + $0x6d8] sm:$0xff]
        %v1619 = vld [vmem:[%s765 + $0x6e0] sm:$0xff]
        %v1620 = vld [vmem:[%s765 + $0x6e8] sm:$0xff]
        %v1621 = vld [vmem:[%s765 + $0x6f0] sm:$0xff]
        %v1622 = vld [vmem:[%s765 + $0x6f8] sm:$0xff]
        %v1623 = vld [vmem:[%s765 + $0x700] sm:$0xff]
        %v1624 = vld [vmem:[%s765 + $0x708] sm:$0xff]
        %v1625 = vld [vmem:[%s765 + $0x710] sm:$0xff]
        %v1626 = vld [vmem:[%s765 + $0x718] sm:$0xff]
        %v1627 = vld [vmem:[%s765 + $0x720] sm:$0xff]
        %v1628 = vld [vmem:[%s765 + $0x728] sm:$0xff]
        %v1629 = vld [vmem:[%s765 + $0x730] sm:$0xff]
        %v1630 = vld [vmem:[%s765 + $0x738] sm:$0xff]
        %v1631 = vld [vmem:[%s765 + $0x740] sm:$0xff]
        %v1632 = vld [vmem:[%s765 + $0x748] sm:$0xff]
        %v1633 = vld [vmem:[%s765 + $0x750] sm:$0xff]
        %v1634 = vld [vmem:[%s765 + $0x758] sm:$0xff]
        %v1635 = vld [vmem:[%s765 + $0x760] sm:$0xff]
        %v1636 = vld [vmem:[%s765 + $0x768] sm:$0xff]
        %v1637 = vld [vmem:[%s765 + $0x770] sm:$0xff]
        %v1638 = vld [vmem:[%s765 + $0x778] sm:$0xff]
        %v1639 = vld [vmem:[%s765 + $0x780] sm:$0xff]
        %v1640 = vld [vmem:[%s765 + $0x788] sm:$0xff]
        %v1641 = vld [vmem:[%s765 + $0x790] sm:$0xff]
        %v1642 = vld [vmem:[%s765 + $0x798] sm:$0xff]
        %v1643 = vld [vmem:[%s765 + $0x7a0] sm:$0xff]
        %v1644 = vld [vmem:[%s765 + $0x7a8] sm:$0xff]
        %v1645 = vld [vmem:[%s765 + $0x7b0] sm:$0xff]
        %v1646 = vld [vmem:[%s765 + $0x7b8] sm:$0xff]
        %v1647 = vld [vmem:[%s765 + $0x7c0] sm:$0xff]
        %v1648 = vld [vmem:[%s765 + $0x7c8] sm:$0xff]
        %v1649 = vld [vmem:[%s765 + $0x7d0] sm:$0xff]
        %v1650 = vld [vmem:[%s765 + $0x7d8] sm:$0xff]
        %v1651 = vld [vmem:[%s765 + $0x7e0] sm:$0xff]
        %v1652 = vld [vmem:[%s765 + $0x7e8] sm:$0xff]
        %v1653 = vld [vmem:[%s765 + $0x7f0] sm:$0xff]
        %v1654 = vld [vmem:[%s765 + $0x7f8] sm:$0xff]
        %v1655 = vld [vmem:[%s765 + $0x800] sm:$0xff]
        %v1656 = vld [vmem:[%s765 + $0x808] sm:$0xff]
        %v1657 = vld [vmem:[%s765 + $0x810] sm:$0xff]
        %v1658 = vld [vmem:[%s765 + $0x818] sm:$0xff]
        %v1659 = vld [vmem:[%s765 + $0x820] sm:$0xff]
        %v1660 = vld [vmem:[%s765 + $0x828] sm:$0xff]
        %v1661 = vld [vmem:[%s765 + $0x830] sm:$0xff]
        %v1662 = vld [vmem:[%s765 + $0x838] sm:$0xff]
        %v1663 = vld [vmem:[%s765 + $0x840] sm:$0xff]
        %v1664 = vld [vmem:[%s765 + $0x848] sm:$0xff]
        %v1665 = vld [vmem:[%s765 + $0x850] sm:$0xff]
        %v1666 = vld [vmem:[%s765 + $0x858] sm:$0xff]
        %v1667 = vld [vmem:[%s765 + $0x860] sm:$0xff]
        %v1668 = vld [vmem:[%s765 + $0x868] sm:$0xff]
        %v1669 = vld [vmem:[%s765 + $0x870] sm:$0xff]
        %v1670 = vld [vmem:[%s765 + $0x878] sm:$0xff]
        %v1671 = vld [vmem:[%s765 + $0x880] sm:$0xff]
        %v1672 = vld [vmem:[%s765 + $0x888] sm:$0xff]
        %v1673 = vld [vmem:[%s765 + $0x890] sm:$0xff]
        %v1674 = vld [vmem:[%s765 + $0x898] sm:$0xff]
        %v1675 = vld [vmem:[%s765 + $0x8a0] sm:$0xff]
        %v1676 = vld [vmem:[%s765 + $0x8a8] sm:$0xff]
        %v1677 = vld [vmem:[%s765 + $0x8b0] sm:$0xff]
        %v1678 = vld [vmem:[%s765 + $0x8b8] sm:$0xff]
        %v1679 = vld [vmem:[%s765 + $0x8c0] sm:$0xff]
        %v1680 = vld [vmem:[%s765 + $0x8c8] sm:$0xff]
        %v1681 = vld [vmem:[%s765 + $0x8d0] sm:$0xff]
        %v1682 = vld [vmem:[%s765 + $0x8d8] sm:$0xff]
        %v1683 = vld [vmem:[%s765 + $0x8e0] sm:$0xff]
        %v1684 = vld [vmem:[%s765 + $0x8e8] sm:$0xff]
        %v1685 = vld [vmem:[%s765 + $0x8f0] sm:$0xff]
        %v1686 = vld [vmem:[%s765 + $0x8f8] sm:$0xff]
        %v1687 = vld [vmem:[%s765 + $0x900] sm:$0xff]
        %v1688 = vld [vmem:[%s765 + $0x908] sm:$0xff]
        %v1689 = vld [vmem:[%s765 + $0x910] sm:$0xff]
        %v1690 = vld [vmem:[%s765 + $0x918] sm:$0xff]
        %v1691 = vld [vmem:[%s765 + $0x920] sm:$0xff]
        %v1692 = vld [vmem:[%s765 + $0x928] sm:$0xff]
        %v1693 = vld [vmem:[%s765 + $0x930] sm:$0xff]
        %v1694 = vld [vmem:[%s765 + $0x938] sm:$0xff]
        %v1695 = vld [vmem:[%s765 + $0x940] sm:$0xff]
        %v1696 = vld [vmem:[%s765 + $0x948] sm:$0xff]
        %v1697 = vld [vmem:[%s765 + $0x950] sm:$0xff]
        %v1698 = vld [vmem:[%s765 + $0x958] sm:$0xff]
        %v1699 = vmul.f32 %v1399, 0.001
        %v1700 = vmul.f32 %v1400, 0.001
        %v1701 = vmul.f32 %v1401, 0.001
        %v1702 = vmul.f32 %v1402, 0.001
        %v1703 = vmul.f32 %v1403, 0.001
        %v1704 = vmul.f32 %v1404, 0.001
        %v1705 = vmul.f32 %v1405, 0.001
        %v1706 = vmul.f32 %v1406, 0.001
        %v1707 = vmul.f32 %v1407, 0.001
        %v1708 = vmul.f32 %v1408, 0.001
        %v1709 = vmul.f32 %v1409, 0.001
        %v1710 = vmul.f32 %v1410, 0.001
        %v1711 = vmul.f32 %v1411, 0.001
        %v1712 = vmul.f32 %v1412, 0.001
        %v1713 = vmul.f32 %v1413, 0.001
        %v1714 = vmul.f32 %v1414, 0.001
        %v1715 = vmul.f32 %v1415, 0.001
        %v1716 = vmul.f32 %v1416, 0.001
        %v1717 = vmul.f32 %v1417, 0.001
        %v1718 = vmul.f32 %v1418, 0.001
        %v1719 = vmul.f32 %v1419, 0.001
        %v1720 = vmul.f32 %v1420, 0.001
        %v1721 = vmul.f32 %v1421, 0.001
        %v1722 = vmul.f32 %v1422, 0.001
        %v1723 = vmul.f32 %v1423, 0.001
        %v1724 = vmul.f32 %v1424, 0.001
        %v1725 = vmul.f32 %v1425, 0.001
        %v1726 = vmul.f32 %v1426, 0.001
        %v1727 = vmul.f32 %v1427, 0.001
        %v1728 = vmul.f32 %v1428, 0.001
        %v1729 = vmul.f32 %v1429, 0.001
        %v1730 = vmul.f32 %v1430, 0.001
        %v1731 = vmul.f32 %v1431, 0.001
        %v1732 = vmul.f32 %v1432, 0.001
        %v1733 = vmul.f32 %v1433, 0.001
        %v1734 = vmul.f32 %v1434, 0.001
        %v1735 = vmul.f32 %v1435, 0.001
        %v1736 = vmul.f32 %v1436, 0.001
        %v1737 = vmul.f32 %v1437, 0.001
        %v1738 = vmul.f32 %v1438, 0.001
        %v1739 = vmul.f32 %v1439, 0.001
        %v1740 = vmul.f32 %v1440, 0.001
        %v1741 = vmul.f32 %v1441, 0.001
        %v1742 = vmul.f32 %v1442, 0.001
        %v1743 = vmul.f32 %v1443, 0.001
        %v1744 = vmul.f32 %v1444, 0.001
        %v1745 = vmul.f32 %v1445, 0.001
        %v1746 = vmul.f32 %v1446, 0.001
        %v1747 = vmul.f32 %v1447, 0.001
        %v1748 = vmul.f32 %v1448, 0.001
        %v1749 = vmul.f32 %v1449, 0.001
        %v1750 = vmul.f32 %v1450, 0.001
        %v1751 = vmul.f32 %v1451, 0.001
        %v1752 = vmul.f32 %v1452, 0.001
        %v1753 = vmul.f32 %v1453, 0.001
        %v1754 = vmul.f32 %v1454, 0.001
        %v1755 = vmul.f32 %v1455, 0.001
        %v1756 = vmul.f32 %v1456, 0.001
        %v1757 = vmul.f32 %v1457, 0.001
        %v1758 = vmul.f32 %v1458, 0.001
        %v1759 = vmul.f32 %v1459, 0.001
        %v1760 = vmul.f32 %v1460, 0.001
        %v1761 = vmul.f32 %v1461, 0.001
        %v1762 = vmul.f32 %v1462, 0.001
        %v1763 = vmul.f32 %v1463, 0.001
        %v1764 = vmul.f32 %v1464, 0.001
        %v1765 = vmul.f32 %v1465, 0.001
        %v1766 = vmul.f32 %v1466, 0.001
        %v1767 = vmul.f32 %v1467, 0.001
        %v1768 = vmul.f32 %v1468, 0.001
        %v1769 = vmul.f32 %v1469, 0.001
        %v1770 = vmul.f32 %v1470, 0.001
        %v1771 = vmul.f32 %v1471, 0.001
        %v1772 = vmul.f32 %v1472, 0.001
        %v1773 = vmul.f32 %v1473, 0.001
        %v1774 = vmul.f32 %v1474, 0.001
        %v1775 = vmul.f32 %v1475, 0.001
        %v1776 = vmul.f32 %v1476, 0.001
        %v1777 = vmul.f32 %v1477, 0.001
        %v1778 = vmul.f32 %v1478, 0.001
        %v1779 = vmul.f32 %v1479, 0.001
        %v1780 = vmul.f32 %v1480, 0.001
        %v1781 = vmul.f32 %v1481, 0.001
        %v1782 = vmul.f32 %v1482, 0.001
        %v1783 = vmul.f32 %v1483, 0.001
        %v1784 = vmul.f32 %v1484, 0.001
        %v1785 = vmul.f32 %v1485, 0.001
        %v1786 = vmul.f32 %v1486, 0.001
        %v1787 = vmul.f32 %v1487, 0.001
        %v1788 = vmul.f32 %v1488, 0.001
        %v1789 = vmul.f32 %v1489, 0.001
        %v1790 = vmul.f32 %v1490, 0.001
        %v1791 = vmul.f32 %v1491, 0.001
        %v1792 = vmul.f32 %v1492, 0.001
        %v1793 = vmul.f32 %v1493, 0.001
        %v1794 = vmul.f32 %v1494, 0.001
        %v1795 = vmul.f32 %v1495, 0.001
        %v1796 = vmul.f32 %v1496, 0.001
        %v1797 = vmul.f32 %v1497, 0.001
        %v1798 = vmul.f32 %v1498, 0.001
        %v1799 = vmul.f32 %v1499, 0.001
        %v1800 = vmul.f32 %v1500, 0.001
        %v1801 = vmul.f32 %v1501, 0.001
        %v1802 = vmul.f32 %v1502, 0.001
        %v1803 = vmul.f32 %v1503, 0.001
        %v1804 = vmul.f32 %v1504, 0.001
        %v1805 = vmul.f32 %v1505, 0.001
        %v1806 = vmul.f32 %v1506, 0.001
        %v1807 = vmul.f32 %v1507, 0.001
        %v1808 = vmul.f32 %v1508, 0.001
        %v1809 = vmul.f32 %v1509, 0.001
        %v1810 = vmul.f32 %v1510, 0.001
        %v1811 = vmul.f32 %v1511, 0.001
        %v1812 = vmul.f32 %v1512, 0.001
        %v1813 = vmul.f32 %v1513, 0.001
        %v1814 = vmul.f32 %v1514, 0.001
        %v1815 = vmul.f32 %v1515, 0.001
        %v1816 = vmul.f32 %v1516, 0.001
        %v1817 = vmul.f32 %v1517, 0.001
        %v1818 = vmul.f32 %v1518, 0.001
        %v1819 = vmul.f32 %v1519, 0.001
        %v1820 = vmul.f32 %v1520, 0.001
        %v1821 = vmul.f32 %v1521, 0.001
        %v1822 = vmul.f32 %v1522, 0.001
        %v1823 = vmul.f32 %v1523, 0.001
        %v1824 = vmul.f32 %v1524, 0.001
        %v1825 = vmul.f32 %v1525, 0.001
        %v1826 = vmul.f32 %v1526, 0.001
        %v1827 = vmul.f32 %v1527, 0.001
        %v1828 = vmul.f32 %v1528, 0.001
        %v1829 = vmul.f32 %v1529, 0.001
        %v1830 = vmul.f32 %v1530, 0.001
        %v1831 = vmul.f32 %v1531, 0.001
        %v1832 = vmul.f32 %v1532, 0.001
        %v1833 = vmul.f32 %v1533, 0.001
        %v1834 = vmul.f32 %v1534, 0.001
        %v1835 = vmul.f32 %v1535, 0.001
        %v1836 = vmul.f32 %v1536, 0.001
        %v1837 = vmul.f32 %v1537, 0.001
        %v1838 = vmul.f32 %v1538, 0.001
        %v1839 = vmul.f32 %v1539, 0.001
        %v1840 = vmul.f32 %v1540, 0.001
        %v1841 = vmul.f32 %v1541, 0.001
        %v1842 = vmul.f32 %v1542, 0.001
        %v1843 = vmul.f32 %v1543, 0.001
        %v1844 = vmul.f32 %v1544, 0.001
        %v1845 = vmul.f32 %v1545, 0.001
        %v1846 = vmul.f32 %v1546, 0.001
        %v1847 = vmul.f32 %v1547, 0.001
        %v1848 = vmul.f32 %v1548, 0.001
        %v1849 = vmul.f32 %v1549, 0.001
        %v1850 = vmul.f32 %v1550, 0.001
        %v1851 = vmul.f32 %v1551, 0.001
        %v1852 = vmul.f32 %v1552, 0.001
        %v1853 = vmul.f32 %v1553, 0.001
        %v1854 = vmul.f32 %v1554, 0.001
        %v1855 = vmul.f32 %v1555, 0.001
        %v1856 = vmul.f32 %v1556, 0.001
        %v1857 = vmul.f32 %v1557, 0.001
        %v1858 = vmul.f32 %v1558, 0.001
        %v1859 = vmul.f32 %v1559, 0.001
        %v1860 = vmul.f32 %v1560, 0.001
        %v1861 = vmul.f32 %v1561, 0.001
        %v1862 = vmul.f32 %v1562, 0.001
        %v1863 = vmul.f32 %v1563, 0.001
        %v1864 = vmul.f32 %v1564, 0.001
        %v1865 = vmul.f32 %v1565, 0.001
        %v1866 = vmul.f32 %v1566, 0.001
        %v1867 = vmul.f32 %v1567, 0.001
        %v1868 = vmul.f32 %v1568, 0.001
        %v1869 = vmul.f32 %v1569, 0.001
        %v1870 = vmul.f32 %v1570, 0.001
        %v1871 = vmul.f32 %v1571, 0.001
        %v1872 = vmul.f32 %v1572, 0.001
        %v1873 = vmul.f32 %v1573, 0.001
        %v1874 = vmul.f32 %v1574, 0.001
        %v1875 = vmul.f32 %v1575, 0.001
        %v1876 = vmul.f32 %v1576, 0.001
        %v1877 = vmul.f32 %v1577, 0.001
        %v1878 = vmul.f32 %v1578, 0.001
        %v1879 = vmul.f32 %v1579, 0.001
        %v1880 = vmul.f32 %v1580, 0.001
        %v1881 = vmul.f32 %v1581, 0.001
        %v1882 = vmul.f32 %v1582, 0.001
        %v1883 = vmul.f32 %v1583, 0.001
        %v1884 = vmul.f32 %v1584, 0.001
        %v1885 = vmul.f32 %v1585, 0.001
        %v1886 = vmul.f32 %v1586, 0.001
        %v1887 = vmul.f32 %v1587, 0.001
        %v1888 = vmul.f32 %v1588, 0.001
        %v1889 = vmul.f32 %v1589, 0.001
        %v1890 = vmul.f32 %v1590, 0.001
        %v1891 = vmul.f32 %v1591, 0.001
        %v1892 = vmul.f32 %v1592, 0.001
        %v1893 = vmul.f32 %v1593, 0.001
        %v1894 = vmul.f32 %v1594, 0.001
        %v1895 = vmul.f32 %v1595, 0.001
        %v1896 = vmul.f32 %v1596, 0.001
        %v1897 = vmul.f32 %v1597, 0.001
        %v1898 = vmul.f32 %v1598, 0.001
        %v1899 = vmul.f32 %v1599, 0.001
        %v1900 = vmul.f32 %v1600, 0.001
        %v1901 = vmul.f32 %v1601, 0.001
        %v1902 = vmul.f32 %v1602, 0.001
        %v1903 = vmul.f32 %v1603, 0.001
        %v1904 = vmul.f32 %v1604, 0.001
        %v1905 = vmul.f32 %v1605, 0.001
        %v1906 = vmul.f32 %v1606, 0.001
        %v1907 = vmul.f32 %v1607, 0.001
        %v1908 = vmul.f32 %v1608, 0.001
        %v1909 = vmul.f32 %v1609, 0.001
        %v1910 = vmul.f32 %v1610, 0.001
        %v1911 = vmul.f32 %v1611, 0.001
        %v1912 = vmul.f32 %v1612, 0.001
        %v1913 = vmul.f32 %v1613, 0.001
        %v1914 = vmul.f32 %v1614, 0.001
        %v1915 = vmul.f32 %v1615, 0.001
        %v1916 = vmul.f32 %v1616, 0.001
        %v1917 = vmul.f32 %v1617, 0.001
        %v1918 = vmul.f32 %v1618, 0.001
        %v1919 = vmul.f32 %v1619, 0.001
        %v1920 = vmul.f32 %v1620, 0.001
        %v1921 = vmul.f32 %v1621, 0.001
        %v1922 = vmul.f32 %v1622, 0.001
        %v1923 = vmul.f32 %v1623, 0.001
        %v1924 = vmul.f32 %v1624, 0.001
        %v1925 = vmul.f32 %v1625, 0.001
        %v1926 = vmul.f32 %v1626, 0.001
        %v1927 = vmul.f32 %v1627, 0.001
        %v1928 = vmul.f32 %v1628, 0.001
        %v1929 = vmul.f32 %v1629, 0.001
        %v1930 = vmul.f32 %v1630, 0.001
        %v1931 = vmul.f32 %v1631, 0.001
        %v1932 = vmul.f32 %v1632, 0.001
        %v1933 = vmul.f32 %v1633, 0.001
        %v1934 = vmul.f32 %v1634, 0.001
        %v1935 = vmul.f32 %v1635, 0.001
        %v1936 = vmul.f32 %v1636, 0.001
        %v1937 = vmul.f32 %v1637, 0.001
        %v1938 = vmul.f32 %v1638, 0.001
        %v1939 = vmul.f32 %v1639, 0.001
        %v1940 = vmul.f32 %v1640, 0.001
        %v1941 = vmul.f32 %v1641, 0.001
        %v1942 = vmul.f32 %v1642, 0.001
        %v1943 = vmul.f32 %v1643, 0.001
        %v1944 = vmul.f32 %v1644, 0.001
        %v1945 = vmul.f32 %v1645, 0.001
        %v1946 = vmul.f32 %v1646, 0.001
        %v1947 = vmul.f32 %v1647, 0.001
        %v1948 = vmul.f32 %v1648, 0.001
        %v1949 = vmul.f32 %v1649, 0.001
        %v1950 = vmul.f32 %v1650, 0.001
        %v1951 = vmul.f32 %v1651, 0.001
        %v1952 = vmul.f32 %v1652, 0.001
        %v1953 = vmul.f32 %v1653, 0.001
        %v1954 = vmul.f32 %v1654, 0.001
        %v1955 = vmul.f32 %v1655, 0.001
        %v1956 = vmul.f32 %v1656, 0.001
        %v1957 = vmul.f32 %v1657, 0.001
        %v1958 = vmul.f32 %v1658, 0.001
        %v1959 = vmul.f32 %v1659, 0.001
        %v1960 = vmul.f32 %v1660, 0.001
        %v1961 = vmul.f32 %v1661, 0.001
        %v1962 = vmul.f32 %v1662, 0.001
        %v1963 = vmul.f32 %v1663, 0.001
        %v1964 = vmul.f32 %v1664, 0.001
        %v1965 = vmul.f32 %v1665, 0.001
        %v1966 = vmul.f32 %v1666, 0.001
        %v1967 = vmul.f32 %v1667, 0.001
        %v1968 = vmul.f32 %v1668, 0.001
        %v1969 = vmul.f32 %v1669, 0.001
        %v1970 = vmul.f32 %v1670, 0.001
        %v1971 = vmul.f32 %v1671, 0.001
        %v1972 = vmul.f32 %v1672, 0.001
        %v1973 = vmul.f32 %v1673, 0.001
        %v1974 = vmul.f32 %v1674, 0.001
        %v1975 = vmul.f32 %v1675, 0.001
        %v1976 = vmul.f32 %v1676, 0.001
        %v1977 = vmul.f32 %v1677, 0.001
        %v1978 = vmul.f32 %v1678, 0.001
        %v1979 = vmul.f32 %v1679, 0.001
        %v1980 = vmul.f32 %v1680, 0.001
        %v1981 = vmul.f32 %v1681, 0.001
        %v1982 = vmul.f32 %v1682, 0.001
        %v1983 = vmul.f32 %v1683, 0.001
        %v1984 = vmul.f32 %v1684, 0.001
        %v1985 = vmul.f32 %v1685, 0.001
        %v1986 = vmul.f32 %v1686, 0.001
        %v1987 = vmul.f32 %v1687, 0.001
        %v1988 = vmul.f32 %v1688, 0.001
        %v1989 = vmul.f32 %v1689, 0.001
        %v1990 = vmul.f32 %v1690, 0.001
        %v1991 = vmul.f32 %v1691, 0.001
        %v1992 = vmul.f32 %v1692, 0.001
        %v1993 = vmul.f32 %v1693, 0.001
        %v1994 = vmul.f32 %v1694, 0.001
        %v1995 = vmul.f32 %v1695, 0.001
        %v1996 = vmul.f32 %v1696, 0.001
        %v1997 = vmul.f32 %v1697, 0.001
        %v1998 = vmul.f32 %v1698, 0.001
        %v1999 = vadd.f32 %v1099, %v1699
        %v2000 = vadd.f32 %v1100, %v1700
        %v2001 = vadd.f32 %v1101, %v1701
        %v2002 = vadd.f32 %v1102, %v1702
        %v2003 = vadd.f32 %v1103, %v1703
        %v2004 = vadd.f32 %v1104, %v1704
        %v2005 = vadd.f32 %v1105, %v1705
        %v2006 = vadd.f32 %v1106, %v1706
        %v2007 = vadd.f32 %v1107, %v1707
        %v2008 = vadd.f32 %v1108, %v1708
        %v2009 = vadd.f32 %v1109, %v1709
        %v2010 = vadd.f32 %v1110, %v1710
        %v2011 = vadd.f32 %v1111, %v1711
        %v2012 = vadd.f32 %v1112, %v1712
        %v2013 = vadd.f32 %v1113, %v1713
        %v2014 = vadd.f32 %v1114, %v1714
        %v2015 = vadd.f32 %v1115, %v1715
        %v2016 = vadd.f32 %v1116, %v1716
        %v2017 = vadd.f32 %v1117, %v1717
        %v2018 = vadd.f32 %v1118, %v1718
        %v2019 = vadd.f32 %v1119, %v1719
        %v2020 = vadd.f32 %v1120, %v1720
        %v2021 = vadd.f32 %v1121, %v1721
        %v2022 = vadd.f32 %v1122, %v1722
        %v2023 = vadd.f32 %v1123, %v1723
        %v2024 = vadd.f32 %v1124, %v1724
        %v2025 = vadd.f32 %v1125, %v1725
        %v2026 = vadd.f32 %v1126, %v1726
        %v2027 = vadd.f32 %v1127, %v1727
        %v2028 = vadd.f32 %v1128, %v1728
        %v2029 = vadd.f32 %v1129, %v1729
        %v2030 = vadd.f32 %v1130, %v1730
        %v2031 = vadd.f32 %v1131, %v1731
        %v2032 = vadd.f32 %v1132, %v1732
        %v2033 = vadd.f32 %v1133, %v1733
        %v2034 = vadd.f32 %v1134, %v1734
        %v2035 = vadd.f32 %v1135, %v1735
        %v2036 = vadd.f32 %v1136, %v1736
        %v2037 = vadd.f32 %v1137, %v1737
        %v2038 = vadd.f32 %v1138, %v1738
        %v2039 = vadd.f32 %v1139, %v1739
        %v2040 = vadd.f32 %v1140, %v1740
        %v2041 = vadd.f32 %v1141, %v1741
        %v2042 = vadd.f32 %v1142, %v1742
        %v2043 = vadd.f32 %v1143, %v1743
        %v2044 = vadd.f32 %v1144, %v1744
        %v2045 = vadd.f32 %v1145, %v1745
        %v2046 = vadd.f32 %v1146, %v1746
        %v2047 = vadd.f32 %v1147, %v1747
        %v2048 = vadd.f32 %v1148, %v1748
        %v2049 = vadd.f32 %v1149, %v1749
        %v2050 = vadd.f32 %v1150, %v1750
        %v2051 = vadd.f32 %v1151, %v1751
        %v2052 = vadd.f32 %v1152, %v1752
        %v2053 = vadd.f32 %v1153, %v1753
        %v2054 = vadd.f32 %v1154, %v1754
        %v2055 = vadd.f32 %v1155, %v1755
        %v2056 = vadd.f32 %v1156, %v1756
        %v2057 = vadd.f32 %v1157, %v1757
        %v2058 = vadd.f32 %v1158, %v1758
        %v2059 = vadd.f32 %v1159, %v1759
        %v2060 = vadd.f32 %v1160, %v1760
        %v2061 = vadd.f32 %v1161, %v1761
        %v2062 = vadd.f32 %v1162, %v1762
        %v2063 = vadd.f32 %v1163, %v1763
        %v2064 = vadd.f32 %v1164, %v1764
        %v2065 = vadd.f32 %v1165, %v1765
        %v2066 = vadd.f32 %v1166, %v1766
        %v2067 = vadd.f32 %v1167, %v1767
        %v2068 = vadd.f32 %v1168, %v1768
        %v2069 = vadd.f32 %v1169, %v1769
        %v2070 = vadd.f32 %v1170, %v1770
        %v2071 = vadd.f32 %v1171, %v1771
        %v2072 = vadd.f32 %v1172, %v1772
        %v2073 = vadd.f32 %v1173, %v1773
        %v2074 = vadd.f32 %v1174, %v1774
        %v2075 = vadd.f32 %v1175, %v1775
        %v2076 = vadd.f32 %v1176, %v1776
        %v2077 = vadd.f32 %v1177, %v1777
        %v2078 = vadd.f32 %v1178, %v1778
        %v2079 = vadd.f32 %v1179, %v1779
        %v2080 = vadd.f32 %v1180, %v1780
        %v2081 = vadd.f32 %v1181, %v1781
        %v2082 = vadd.f32 %v1182, %v1782
        %v2083 = vadd.f32 %v1183, %v1783
        %v2084 = vadd.f32 %v1184, %v1784
        %v2085 = vadd.f32 %v1185, %v1785
        %v2086 = vadd.f32 %v1186, %v1786
        %v2087 = vadd.f32 %v1187, %v1787
        %v2088 = vadd.f32 %v1188, %v1788
        %v2089 = vadd.f32 %v1189, %v1789
        %v2090 = vadd.f32 %v1190, %v1790
        %v2091 = vadd.f32 %v1191, %v1791
        %v2092 = vadd.f32 %v1192, %v1792
        %v2093 = vadd.f32 %v1193, %v1793
        %v2094 = vadd.f32 %v1194, %v1794
        %v2095 = vadd.f32 %v1195, %v1795
        %v2096 = vadd.f32 %v1196, %v1796
        %v2097 = vadd.f32 %v1197, %v1797
        %v2098 = vadd.f32 %v1198, %v1798
        %v2099 = vadd.f32 %v1199, %v1799
        %v2100 = vadd.f32 %v1200, %v1800
        %v2101 = vadd.f32 %v1201, %v1801
        %v2102 = vadd.f32 %v1202, %v1802
        %v2103 = vadd.f32 %v1203, %v1803
        %v2104 = vadd.f32 %v1204, %v1804
        %v2105 = vadd.f32 %v1205, %v1805
        %v2106 = vadd.f32 %v1206, %v1806
        %v2107 = vadd.f32 %v1207, %v1807
        %v2108 = vadd.f32 %v1208, %v1808
        %v2109 = vadd.f32 %v1209, %v1809
        %v2110 = vadd.f32 %v1210, %v1810
        %v2111 = vadd.f32 %v1211, %v1811
        %v2112 = vadd.f32 %v1212, %v1812
        %v2113 = vadd.f32 %v1213, %v1813
        %v2114 = vadd.f32 %v1214, %v1814
        %v2115 = vadd.f32 %v1215, %v1815
        %v2116 = vadd.f32 %v1216, %v1816
        %v2117 = vadd.f32 %v1217, %v1817
        %v2118 = vadd.f32 %v1218, %v1818
        %v2119 = vadd.f32 %v1219, %v1819
        %v2120 = vadd.f32 %v1220, %v1820
        %v2121 = vadd.f32 %v1221, %v1821
        %v2122 = vadd.f32 %v1222, %v1822
        %v2123 = vadd.f32 %v1223, %v1823
        %v2124 = vadd.f32 %v1224, %v1824
        %v2125 = vadd.f32 %v1225, %v1825
        %v2126 = vadd.f32 %v1226, %v1826
        %v2127 = vadd.f32 %v1227, %v1827
        %v2128 = vadd.f32 %v1228, %v1828
        %v2129 = vadd.f32 %v1229, %v1829
        %v2130 = vadd.f32 %v1230, %v1830
        %v2131 = vadd.f32 %v1231, %v1831
        %v2132 = vadd.f32 %v1232, %v1832
        %v2133 = vadd.f32 %v1233, %v1833
        %v2134 = vadd.f32 %v1234, %v1834
        %v2135 = vadd.f32 %v1235, %v1835
        %v2136 = vadd.f32 %v1236, %v1836
        %v2137 = vadd.f32 %v1237, %v1837
        %v2138 = vadd.f32 %v1238, %v1838
        %v2139 = vadd.f32 %v1239, %v1839
        %v2140 = vadd.f32 %v1240, %v1840
        %v2141 = vadd.f32 %v1241, %v1841
        %v2142 = vadd.f32 %v1242, %v1842
        %v2143 = vadd.f32 %v1243, %v1843
        %v2144 = vadd.f32 %v1244, %v1844
        %v2145 = vadd.f32 %v1245, %v1845
        %v2146 = vadd.f32 %v1246, %v1846
        %v2147 = vadd.f32 %v1247, %v1847
        %v2148 = vadd.f32 %v1248, %v1848
        %v2149 = vadd.f32 %v1249, %v1849
        %v2150 = vadd.f32 %v1250, %v1850
        %v2151 = vadd.f32 %v1251, %v1851
        %v2152 = vadd.f32 %v1252, %v1852
        %v2153 = vadd.f32 %v1253, %v1853
        %v2154 = vadd.f32 %v1254, %v1854
        %v2155 = vadd.f32 %v1255, %v1855
        %v2156 = vadd.f32 %v1256, %v1856
        %v2157 = vadd.f32 %v1257, %v1857
        %v2158 = vadd.f32 %v1258, %v1858
        %v2159 = vadd.f32 %v1259, %v1859
        %v2160 = vadd.f32 %v1260, %v1860
        %v2161 = vadd.f32 %v1261, %v1861
        %v2162 = vadd.f32 %v1262, %v1862
        %v2163 = vadd.f32 %v1263, %v1863
        %v2164 = vadd.f32 %v1264, %v1864
        %v2165 = vadd.f32 %v1265, %v1865
        %v2166 = vadd.f32 %v1266, %v1866
        %v2167 = vadd.f32 %v1267, %v1867
        %v2168 = vadd.f32 %v1268, %v1868
        %v2169 = vadd.f32 %v1269, %v1869
        %v2170 = vadd.f32 %v1270, %v1870
        %v2171 = vadd.f32 %v1271, %v1871
        %v2172 = vadd.f32 %v1272, %v1872
        %v2173 = vadd.f32 %v1273, %v1873
        %v2174 = vadd.f32 %v1274, %v1874
        %v2175 = vadd.f32 %v1275, %v1875
        %v2176 = vadd.f32 %v1276, %v1876
        %v2177 = vadd.f32 %v1277, %v1877
        %v2178 = vadd.f32 %v1278, %v1878
        %v2179 = vadd.f32 %v1279, %v1879
        %v2180 = vadd.f32 %v1280, %v1880
        %v2181 = vadd.f32 %v1281, %v1881
        %v2182 = vadd.f32 %v1282, %v1882
        %v2183 = vadd.f32 %v1283, %v1883
        %v2184 = vadd.f32 %v1284, %v1884
        %v2185 = vadd.f32 %v1285, %v1885
        %v2186 = vadd.f32 %v1286, %v1886
        %v2187 = vadd.f32 %v1287, %v1887
        %v2188 = vadd.f32 %v1288, %v1888
        %v2189 = vadd.f32 %v1289, %v1889
        %v2190 = vadd.f32 %v1290, %v1890
        %v2191 = vadd.f32 %v1291, %v1891
        %v2192 = vadd.f32 %v1292, %v1892
        %v2193 = vadd.f32 %v1293, %v1893
        %v2194 = vadd.f32 %v1294, %v1894
        %v2195 = vadd.f32 %v1295, %v1895
        %v2196 = vadd.f32 %v1296, %v1896
        %v2197 = vadd.f32 %v1297, %v1897
        %v2198 = vadd.f32 %v1298, %v1898
        %v2199 = vadd.f32 %v1299, %v1899
        %v2200 = vadd.f32 %v1300, %v1900
        %v2201 = vadd.f32 %v1301, %v1901
        %v2202 = vadd.f32 %v1302, %v1902
        %v2203 = vadd.f32 %v1303, %v1903
        %v2204 = vadd.f32 %v1304, %v1904
        %v2205 = vadd.f32 %v1305, %v1905
        %v2206 = vadd.f32 %v1306, %v1906
        %v2207 = vadd.f32 %v1307, %v1907
        %v2208 = vadd.f32 %v1308, %v1908
        %v2209 = vadd.f32 %v1309, %v1909
        %v2210 = vadd.f32 %v1310, %v1910
        %v2211 = vadd.f32 %v1311, %v1911
        %v2212 = vadd.f32 %v1312, %v1912
        %v2213 = vadd.f32 %v1313, %v1913
        %v2214 = vadd.f32 %v1314, %v1914
        %v2215 = vadd.f32 %v1315, %v1915
        %v2216 = vadd.f32 %v1316, %v1916
        %v2217 = vadd.f32 %v1317, %v1917
        %v2218 = vadd.f32 %v1318, %v1918
        %v2219 = vadd.f32 %v1319, %v1919
        %v2220 = vadd.f32 %v1320, %v1920
        %v2221 = vadd.f32 %v1321, %v1921
        %v2222 = vadd.f32 %v1322, %v1922
        %v2223 = vadd.f32 %v1323, %v1923
        %v2224 = vadd.f32 %v1324, %v1924
        %v2225 = vadd.f32 %v1325, %v1925
        %v2226 = vadd.f32 %v1326, %v1926
        %v2227 = vadd.f32 %v1327, %v1927
        %v2228 = vadd.f32 %v1328, %v1928
        %v2229 = vadd.f32 %v1329, %v1929
        %v2230 = vadd.f32 %v1330, %v1930
        %v2231 = vadd.f32 %v1331, %v1931
        %v2232 = vadd.f32 %v1332, %v1932
        %v2233 = vadd.f32 %v1333, %v1933
        %v2234 = vadd.f32 %v1334, %v1934
        %v2235 = vadd.f32 %v1335, %v1935
        %v2236 = vadd.f32 %v1336, %v1936
        %v2237 = vadd.f32 %v1337, %v1937
        %v2238 = vadd.f32 %v1338, %v1938
        %v2239 = vadd.f32 %v1339, %v1939
        %v2240 = vadd.f32 %v1340, %v1940
        %v2241 = vadd.f32 %v1341, %v1941
        %v2242 = vadd.f32 %v1342, %v1942
        %v2243 = vadd.f32 %v1343, %v1943
        %v2244 = vadd.f32 %v1344, %v1944
        %v2245 = vadd.f32 %v1345, %v1945
        %v2246 = vadd.f32 %v1346, %v1946
        %v2247 = vadd.f32 %v1347, %v1947
        %v2248 = vadd.f32 %v1348, %v1948
        %v2249 = vadd.f32 %v1349, %v1949
        %v2250 = vadd.f32 %v1350, %v1950
        %v2251 = vadd.f32 %v1351, %v1951
        %v2252 = vadd.f32 %v1352, %v1952
        %v2253 = vadd.f32 %v1353, %v1953
        %v2254 = vadd.f32 %v1354, %v1954
        %v2255 = vadd.f32 %v1355, %v1955
        %v2256 = vadd.f32 %v1356, %v1956
        %v2257 = vadd.f32 %v1357, %v1957
        %v2258 = vadd.f32 %v1358, %v1958
        %v2259 = vadd.f32 %v1359, %v1959
        %v2260 = vadd.f32 %v1360, %v1960
        %v2261 = vadd.f32 %v1361, %v1961
        %v2262 = vadd.f32 %v1362, %v1962
        %v2263 = vadd.f32 %v1363, %v1963
        %v2264 = vadd.f32 %v1364, %v1964
        %v2265 = vadd.f32 %v1365, %v1965
        %v2266 = vadd.f32 %v1366, %v1966
        %v2267 = vadd.f32 %v1367, %v1967
        %v2268 = vadd.f32 %v1368, %v1968
        %v2269 = vadd.f32 %v1369, %v1969
        %v2270 = vadd.f32 %v1370, %v1970
        %v2271 = vadd.f32 %v1371, %v1971
        %v2272 = vadd.f32 %v1372, %v1972
        %v2273 = vadd.f32 %v1373, %v1973
        %v2274 = vadd.f32 %v1374, %v1974
        %v2275 = vadd.f32 %v1375, %v1975
        %v2276 = vadd.f32 %v1376, %v1976
        %v2277 = vadd.f32 %v1377, %v1977
        %v2278 = vadd.f32 %v1378, %v1978
        %v2279 = vadd.f32 %v1379, %v1979
        %v2280 = vadd.f32 %v1380, %v1980
        %v2281 = vadd.f32 %v1381, %v1981
        %v2282 = vadd.f32 %v1382, %v1982
        %v2283 = vadd.f32 %v1383, %v1983
        %v2284 = vadd.f32 %v1384, %v1984
        %v2285 = vadd.f32 %v1385, %v1985
        %v2286 = vadd.f32 %v1386, %v1986
        %v2287 = vadd.f32 %v1387, %v1987
        %v2288 = vadd.f32 %v1388, %v1988
        %v2289 = vadd.f32 %v1389, %v1989
        %v2290 = vadd.f32 %v1390, %v1990
        %v2291 = vadd.f32 %v1391, %v1991
        %v2292 = vadd.f32 %v1392, %v1992
        %v2293 = vadd.f32 %v1393, %v1993
        %v2294 = vadd.f32 %v1394, %v1994
        %v2295 = vadd.f32 %v1395, %v1995
        %v2296 = vadd.f32 %v1396, %v1996
        %v2297 = vadd.f32 %v1397, %v1997
        %v2298 = vadd.f32 %v1398, %v1998
        %v2299 = vld [vmem:[%s776] sm:$0x3]
        %v2300 = vmul.f32 %v2299, 0.999
        %v2301 = vld [vmem:[%s769] sm:$0x3]
        %v2302 = vmul.f32 %v2301, 0.001
        %v2303 = vadd.f32 %v2300, %v2302
        %v2304 = vld [vmem:[%s641] sm:$0xff]
        %v2305 = vld [vmem:[%s641 + $0x8] sm:$0xff]
        %v2306 = vld [vmem:[%s641 + $0x10] sm:$0xff]
        %v2307 = vld [vmem:[%s641 + $0x18] sm:$0xff]
        %v2308 = vld [vmem:[%s641 + $0x20] sm:$0xff]
        %v2309 = vld [vmem:[%s641 + $0x28] sm:$0xff]
        %v2310 = vld [vmem:[%s641 + $0x30] sm:$0xff]
        %v2311 = vld [vmem:[%s641 + $0x38] sm:$0xff]
        %v2312 = vld [vmem:[%s641 + $0x40] sm:$0xff]
        %v2313 = vld [vmem:[%s641 + $0x48] sm:$0xff]
        %v2314 = vld [vmem:[%s641 + $0x50] sm:$0xff]
        %v2315 = vld [vmem:[%s641 + $0x58] sm:$0xff]
        %v2316 = vld [vmem:[%s641 + $0x60] sm:$0xff]
        %v2317 = vld [vmem:[%s641 + $0x68] sm:$0xff]
        %v2318 = vld [vmem:[%s641 + $0x70] sm:$0xff]
        %v2319 = vld [vmem:[%s641 + $0x78] sm:$0xff]
        %v2320 = vld [vmem:[%s641 + $0x80] sm:$0xff]
        %v2321 = vld [vmem:[%s641 + $0x88] sm:$0xff]
        %v2322 = vld [vmem:[%s641 + $0x90] sm:$0xff]
        %v2323 = vld [vmem:[%s641 + $0x98] sm:$0xff]
        %v2324 = vld [vmem:[%s641 + $0xa0] sm:$0xff]
        %v2325 = vld [vmem:[%s641 + $0xa8] sm:$0xff]
        %v2326 = vld [vmem:[%s641 + $0xb0] sm:$0xff]
        %v2327 = vld [vmem:[%s641 + $0xb8] sm:$0xff]
        %v2328 = vld [vmem:[%s641 + $0xc0] sm:$0xff]
        %v2329 = vld [vmem:[%s641 + $0xc8] sm:$0xff]
        %v2330 = vld [vmem:[%s641 + $0xd0] sm:$0xff]
        %v2331 = vld [vmem:[%s641 + $0xd8] sm:$0xff]
        %v2332 = vld [vmem:[%s641 + $0xe0] sm:$0xff]
        %v2333 = vld [vmem:[%s641 + $0xe8] sm:$0xff]
        %v2334 = vld [vmem:[%s641 + $0xf0] sm:$0xff]
        %v2335 = vld [vmem:[%s641 + $0xf8] sm:$0xff]
        %v2336 = vmul.f32 %v2304, 0.999
        %v2337 = vmul.f32 %v2305, 0.999
        %v2338 = vmul.f32 %v2306, 0.999
        %v2339 = vmul.f32 %v2307, 0.999
        %v2340 = vmul.f32 %v2308, 0.999
        %v2341 = vmul.f32 %v2309, 0.999
        %v2342 = vmul.f32 %v2310, 0.999
        %v2343 = vmul.f32 %v2311, 0.999
        %v2344 = vmul.f32 %v2312, 0.999
        %v2345 = vmul.f32 %v2313, 0.999
        %v2346 = vmul.f32 %v2314, 0.999
        %v2347 = vmul.f32 %v2315, 0.999
        %v2348 = vmul.f32 %v2316, 0.999
        %v2349 = vmul.f32 %v2317, 0.999
        %v2350 = vmul.f32 %v2318, 0.999
        %v2351 = vmul.f32 %v2319, 0.999
        %v2352 = vmul.f32 %v2320, 0.999
        %v2353 = vmul.f32 %v2321, 0.999
        %v2354 = vmul.f32 %v2322, 0.999
        %v2355 = vmul.f32 %v2323, 0.999
        %v2356 = vmul.f32 %v2324, 0.999
        %v2357 = vmul.f32 %v2325, 0.999
        %v2358 = vmul.f32 %v2326, 0.999
        %v2359 = vmul.f32 %v2327, 0.999
        %v2360 = vmul.f32 %v2328, 0.999
        %v2361 = vmul.f32 %v2329, 0.999
        %v2362 = vmul.f32 %v2330, 0.999
        %v2363 = vmul.f32 %v2331, 0.999
        %v2364 = vmul.f32 %v2332, 0.999
        %v2365 = vmul.f32 %v2333, 0.999
        %v2366 = vmul.f32 %v2334, 0.999
        %v2367 = vmul.f32 %v2335, 0.999
        %v2368 = vld [vmem:[%s623] sm:$0xff]
        %v2369 = vld [vmem:[%s623 + $0x8] sm:$0xff]
        %v2370 = vld [vmem:[%s623 + $0x10] sm:$0xff]
        %v2371 = vld [vmem:[%s623 + $0x18] sm:$0xff]
        %v2372 = vld [vmem:[%s623 + $0x20] sm:$0xff]
        %v2373 = vld [vmem:[%s623 + $0x28] sm:$0xff]
        %v2374 = vld [vmem:[%s623 + $0x30] sm:$0xff]
        %v2375 = vld [vmem:[%s623 + $0x38] sm:$0xff]
        %v2376 = vld [vmem:[%s623 + $0x40] sm:$0xff]
        %v2377 = vld [vmem:[%s623 + $0x48] sm:$0xff]
        %v2378 = vld [vmem:[%s623 + $0x50] sm:$0xff]
        %v2379 = vld [vmem:[%s623 + $0x58] sm:$0xff]
        %v2380 = vld [vmem:[%s623 + $0x60] sm:$0xff]
        %v2381 = vld [vmem:[%s623 + $0x68] sm:$0xff]
        %v2382 = vld [vmem:[%s623 + $0x70] sm:$0xff]
        %v2383 = vld [vmem:[%s623 + $0x78] sm:$0xff]
        %v2384 = vld [vmem:[%s623 + $0x80] sm:$0xff]
        %v2385 = vld [vmem:[%s623 + $0x88] sm:$0xff]
        %v2386 = vld [vmem:[%s623 + $0x90] sm:$0xff]
        %v2387 = vld [vmem:[%s623 + $0x98] sm:$0xff]
        %v2388 = vld [vmem:[%s623 + $0xa0] sm:$0xff]
        %v2389 = vld [vmem:[%s623 + $0xa8] sm:$0xff]
        %v2390 = vld [vmem:[%s623 + $0xb0] sm:$0xff]
        %v2391 = vld [vmem:[%s623 + $0xb8] sm:$0xff]
        %v2392 = vld [vmem:[%s623 + $0xc0] sm:$0xff]
        %v2393 = vld [vmem:[%s623 + $0xc8] sm:$0xff]
        %v2394 = vld [vmem:[%s623 + $0xd0] sm:$0xff]
        %v2395 = vld [vmem:[%s623 + $0xd8] sm:$0xff]
        %v2396 = vld [vmem:[%s623 + $0xe0] sm:$0xff]
        %v2397 = vld [vmem:[%s623 + $0xe8] sm:$0xff]
        %v2398 = vld [vmem:[%s623 + $0xf0] sm:$0xff]
        %v2399 = vld [vmem:[%s623 + $0xf8] sm:$0xff]
        %v2400 = vmul.f32 %v2368, 0.001
        %v2401 = vmul.f32 %v2369, 0.001
        %v2402 = vmul.f32 %v2370, 0.001
        %v2403 = vmul.f32 %v2371, 0.001
        %v2404 = vmul.f32 %v2372, 0.001
        %v2405 = vmul.f32 %v2373, 0.001
        %v2406 = vmul.f32 %v2374, 0.001
        %v2407 = vmul.f32 %v2375, 0.001
        %v2408 = vmul.f32 %v2376, 0.001
        %v2409 = vmul.f32 %v2377, 0.001
        %v2410 = vmul.f32 %v2378, 0.001
        %v2411 = vmul.f32 %v2379, 0.001
        %v2412 = vmul.f32 %v2380, 0.001
        %v2413 = vmul.f32 %v2381, 0.001
        %v2414 = vmul.f32 %v2382, 0.001
        %v2415 = vmul.f32 %v2383, 0.001
        %v2416 = vmul.f32 %v2384, 0.001
        %v2417 = vmul.f32 %v2385, 0.001
        %v2418 = vmul.f32 %v2386, 0.001
        %v2419 = vmul.f32 %v2387, 0.001
        %v2420 = vmul.f32 %v2388, 0.001
        %v2421 = vmul.f32 %v2389, 0.001
        %v2422 = vmul.f32 %v2390, 0.001
        %v2423 = vmul.f32 %v2391, 0.001
        %v2424 = vmul.f32 %v2392, 0.001
        %v2425 = vmul.f32 %v2393, 0.001
        %v2426 = vmul.f32 %v2394, 0.001
        %v2427 = vmul.f32 %v2395, 0.001
        %v2428 = vmul.f32 %v2396, 0.001
        %v2429 = vmul.f32 %v2397, 0.001
        %v2430 = vmul.f32 %v2398, 0.001
        %v2431 = vmul.f32 %v2399, 0.001
        %v2432 = vadd.f32 %v2336, %v2400
        %v2433 = vadd.f32 %v2337, %v2401
        %v2434 = vadd.f32 %v2338, %v2402
        %v2435 = vadd.f32 %v2339, %v2403
        %v2436 = vadd.f32 %v2340, %v2404
        %v2437 = vadd.f32 %v2341, %v2405
        %v2438 = vadd.f32 %v2342, %v2406
        %v2439 = vadd.f32 %v2343, %v2407
        %v2440 = vadd.f32 %v2344, %v2408
        %v2441 = vadd.f32 %v2345, %v2409
        %v2442 = vadd.f32 %v2346, %v2410
        %v2443 = vadd.f32 %v2347, %v2411
        %v2444 = vadd.f32 %v2348, %v2412
        %v2445 = vadd.f32 %v2349, %v2413
        %v2446 = vadd.f32 %v2350, %v2414
        %v2447 = vadd.f32 %v2351, %v2415
        %v2448 = vadd.f32 %v2352, %v2416
        %v2449 = vadd.f32 %v2353, %v2417
        %v2450 = vadd.f32 %v2354, %v2418
        %v2451 = vadd.f32 %v2355, %v2419
        %v2452 = vadd.f32 %v2356, %v2420
        %v2453 = vadd.f32 %v2357, %v2421
        %v2454 = vadd.f32 %v2358, %v2422
        %v2455 = vadd.f32 %v2359, %v2423
        %v2456 = vadd.f32 %v2360, %v2424
        %v2457 = vadd.f32 %v2361, %v2425
        %v2458 = vadd.f32 %v2362, %v2426
        %v2459 = vadd.f32 %v2363, %v2427
        %v2460 = vadd.f32 %v2364, %v2428
        %v2461 = vadd.f32 %v2365, %v2429
        %v2462 = vadd.f32 %v2366, %v2430
        %v2463 = vadd.f32 %v2367, %v2431
        %v2464 = vld [vmem:[%s779] sm:$0x1]
        %v2465 = vmul.f32 %v2464, 0.999
        %v2466 = vld [vmem:[%s772] sm:$0x1]
        %v2467 = vmul.f32 %v2466, 0.001
        %v2468 = vadd.f32 %v2465, %v2467
        %2469 = vst [vmem:[%s735] sm:$0xff] %v1999
        %2470 = vst [vmem:[%s735 + $0x8] sm:$0xff] %v2000
        %2471 = vst [vmem:[%s735 + $0x10] sm:$0xff] %v2001
        %2472 = vst [vmem:[%s735 + $0x18] sm:$0xff] %v2002
        %2473 = vst [vmem:[%s735 + $0x20] sm:$0xff] %v2003
        %2474 = vst [vmem:[%s735 + $0x28] sm:$0xff] %v2004
        %2475 = vst [vmem:[%s735 + $0x30] sm:$0xff] %v2005
        %2476 = vst [vmem:[%s735 + $0x38] sm:$0xff] %v2006
        %2477 = vst [vmem:[%s735 + $0x40] sm:$0xff] %v2007
        %2478 = vst [vmem:[%s735 + $0x48] sm:$0xff] %v2008
        %2479 = vst [vmem:[%s735 + $0x50] sm:$0xff] %v2009
        %2480 = vst [vmem:[%s735 + $0x58] sm:$0xff] %v2010
        %2481 = vst [vmem:[%s735 + $0x60] sm:$0xff] %v2011
        %2482 = vst [vmem:[%s735 + $0x68] sm:$0xff] %v2012
        %2483 = vst [vmem:[%s735 + $0x70] sm:$0xff] %v2013
        %2484 = vst [vmem:[%s735 + $0x78] sm:$0xff] %v2014
        %2485 = vst [vmem:[%s735 + $0x80] sm:$0xff] %v2015
        %2486 = vst [vmem:[%s735 + $0x88] sm:$0xff] %v2016
        %2487 = vst [vmem:[%s735 + $0x90] sm:$0xff] %v2017
        %2488 = vst [vmem:[%s735 + $0x98] sm:$0xff] %v2018
        %2489 = vst [vmem:[%s735 + $0xa0] sm:$0xff] %v2019
        %2490 = vst [vmem:[%s735 + $0xa8] sm:$0xff] %v2020
        %2491 = vst [vmem:[%s735 + $0xb0] sm:$0xff] %v2021
        %2492 = vst [vmem:[%s735 + $0xb8] sm:$0xff] %v2022
        %2493 = vst [vmem:[%s735 + $0xc0] sm:$0xff] %v2023
        %2494 = vst [vmem:[%s735 + $0xc8] sm:$0xff] %v2024
        %2495 = vst [vmem:[%s735 + $0xd0] sm:$0xff] %v2025
        %2496 = vst [vmem:[%s735 + $0xd8] sm:$0xff] %v2026
        %2497 = vst [vmem:[%s735 + $0xe0] sm:$0xff] %v2027
        %2498 = vst [vmem:[%s735 + $0xe8] sm:$0xff] %v2028
        %2499 = vst [vmem:[%s735 + $0xf0] sm:$0xff] %v2029
        %2500 = vst [vmem:[%s735 + $0xf8] sm:$0xff] %v2030
        %2501 = vst [vmem:[%s735 + $0x100] sm:$0xff] %v2031
        %2502 = vst [vmem:[%s735 + $0x108] sm:$0xff] %v2032
        %2503 = vst [vmem:[%s735 + $0x110] sm:$0xff] %v2033
        %2504 = vst [vmem:[%s735 + $0x118] sm:$0xff] %v2034
        %2505 = vst [vmem:[%s735 + $0x120] sm:$0xff] %v2035
        %2506 = vst [vmem:[%s735 + $0x128] sm:$0xff] %v2036
        %2507 = vst [vmem:[%s735 + $0x130] sm:$0xff] %v2037
        %2508 = vst [vmem:[%s735 + $0x138] sm:$0xff] %v2038
        %2509 = vst [vmem:[%s735 + $0x140] sm:$0xff] %v2039
        %2510 = vst [vmem:[%s735 + $0x148] sm:$0xff] %v2040
        %2511 = vst [vmem:[%s735 + $0x150] sm:$0xff] %v2041
        %2512 = vst [vmem:[%s735 + $0x158] sm:$0xff] %v2042
        %2513 = vst [vmem:[%s735 + $0x160] sm:$0xff] %v2043
        %2514 = vst [vmem:[%s735 + $0x168] sm:$0xff] %v2044
        %2515 = vst [vmem:[%s735 + $0x170] sm:$0xff] %v2045
        %2516 = vst [vmem:[%s735 + $0x178] sm:$0xff] %v2046
        %2517 = vst [vmem:[%s735 + $0x180] sm:$0xff] %v2047
        %2518 = vst [vmem:[%s735 + $0x188] sm:$0xff] %v2048
        %2519 = vst [vmem:[%s735 + $0x190] sm:$0xff] %v2049
        %2520 = vst [vmem:[%s735 + $0x198] sm:$0xff] %v2050
        %2521 = vst [vmem:[%s735 + $0x1a0] sm:$0xff] %v2051
        %2522 = vst [vmem:[%s735 + $0x1a8] sm:$0xff] %v2052
        %2523 = vst [vmem:[%s735 + $0x1b0] sm:$0xff] %v2053
        %2524 = vst [vmem:[%s735 + $0x1b8] sm:$0xff] %v2054
        %2525 = vst [vmem:[%s735 + $0x1c0] sm:$0xff] %v2055
        %2526 = vst [vmem:[%s735 + $0x1c8] sm:$0xff] %v2056
        %2527 = vst [vmem:[%s735 + $0x1d0] sm:$0xff] %v2057
        %2528 = vst [vmem:[%s735 + $0x1d8] sm:$0xff] %v2058
        %2529 = vst [vmem:[%s735 + $0x1e0] sm:$0xff] %v2059
        %2530 = vst [vmem:[%s735 + $0x1e8] sm:$0xff] %v2060
        %2531 = vst [vmem:[%s735 + $0x1f0] sm:$0xff] %v2061
        %2532 = vst [vmem:[%s735 + $0x1f8] sm:$0xff] %v2062
        %2533 = vst [vmem:[%s735 + $0x200] sm:$0xff] %v2063
        %2534 = vst [vmem:[%s735 + $0x208] sm:$0xff] %v2064
        %2535 = vst [vmem:[%s735 + $0x210] sm:$0xff] %v2065
        %2536 = vst [vmem:[%s735 + $0x218] sm:$0xff] %v2066
        %2537 = vst [vmem:[%s735 + $0x220] sm:$0xff] %v2067
        %2538 = vst [vmem:[%s735 + $0x228] sm:$0xff] %v2068
        %2539 = vst [vmem:[%s735 + $0x230] sm:$0xff] %v2069
        %2540 = vst [vmem:[%s735 + $0x238] sm:$0xff] %v2070
        %2541 = vst [vmem:[%s735 + $0x240] sm:$0xff] %v2071
        %2542 = vst [vmem:[%s735 + $0x248] sm:$0xff] %v2072
        %2543 = vst [vmem:[%s735 + $0x250] sm:$0xff] %v2073
        %2544 = vst [vmem:[%s735 + $0x258] sm:$0xff] %v2074
        %2545 = vst [vmem:[%s735 + $0x260] sm:$0xff] %v2075
        %2546 = vst [vmem:[%s735 + $0x268] sm:$0xff] %v2076
        %2547 = vst [vmem:[%s735 + $0x270] sm:$0xff] %v2077
        %2548 = vst [vmem:[%s735 + $0x278] sm:$0xff] %v2078
        %2549 = vst [vmem:[%s735 + $0x280] sm:$0xff] %v2079
        %2550 = vst [vmem:[%s735 + $0x288] sm:$0xff] %v2080
        %2551 = vst [vmem:[%s735 + $0x290] sm:$0xff] %v2081
        %2552 = vst [vmem:[%s735 + $0x298] sm:$0xff] %v2082
        %2553 = vst [vmem:[%s735 + $0x2a0] sm:$0xff] %v2083
        %2554 = vst [vmem:[%s735 + $0x2a8] sm:$0xff] %v2084
        %2555 = vst [vmem:[%s735 + $0x2b0] sm:$0xff] %v2085
        %2556 = vst [vmem:[%s735 + $0x2b8] sm:$0xff] %v2086
        %2557 = vst [vmem:[%s735 + $0x2c0] sm:$0xff] %v2087
        %2558 = vst [vmem:[%s735 + $0x2c8] sm:$0xff] %v2088
        %2559 = vst [vmem:[%s735 + $0x2d0] sm:$0xff] %v2089
        %2560 = vst [vmem:[%s735 + $0x2d8] sm:$0xff] %v2090
        %2561 = vst [vmem:[%s735 + $0x2e0] sm:$0xff] %v2091
        %2562 = vst [vmem:[%s735 + $0x2e8] sm:$0xff] %v2092
        %2563 = vst [vmem:[%s735 + $0x2f0] sm:$0xff] %v2093
        %2564 = vst [vmem:[%s735 + $0x2f8] sm:$0xff] %v2094
        %2565 = vst [vmem:[%s735 + $0x300] sm:$0xff] %v2095
        %2566 = vst [vmem:[%s735 + $0x308] sm:$0xff] %v2096
        %2567 = vst [vmem:[%s735 + $0x310] sm:$0xff] %v2097
        %2568 = vst [vmem:[%s735 + $0x318] sm:$0xff] %v2098
        %2569 = vst [vmem:[%s735 + $0x320] sm:$0xff] %v2099
        %2570 = vst [vmem:[%s735 + $0x328] sm:$0xff] %v2100
        %2571 = vst [vmem:[%s735 + $0x330] sm:$0xff] %v2101
        %2572 = vst [vmem:[%s735 + $0x338] sm:$0xff] %v2102
        %2573 = vst [vmem:[%s735 + $0x340] sm:$0xff] %v2103
        %2574 = vst [vmem:[%s735 + $0x348] sm:$0xff] %v2104
        %2575 = vst [vmem:[%s735 + $0x350] sm:$0xff] %v2105
        %2576 = vst [vmem:[%s735 + $0x358] sm:$0xff] %v2106
        %2577 = vst [vmem:[%s735 + $0x360] sm:$0xff] %v2107
        %2578 = vst [vmem:[%s735 + $0x368] sm:$0xff] %v2108
        %2579 = vst [vmem:[%s735 + $0x370] sm:$0xff] %v2109
        %2580 = vst [vmem:[%s735 + $0x378] sm:$0xff] %v2110
        %2581 = vst [vmem:[%s735 + $0x380] sm:$0xff] %v2111
        %2582 = vst [vmem:[%s735 + $0x388] sm:$0xff] %v2112
        %2583 = vst [vmem:[%s735 + $0x390] sm:$0xff] %v2113
        %2584 = vst [vmem:[%s735 + $0x398] sm:$0xff] %v2114
        %2585 = vst [vmem:[%s735 + $0x3a0] sm:$0xff] %v2115
        %2586 = vst [vmem:[%s735 + $0x3a8] sm:$0xff] %v2116
        %2587 = vst [vmem:[%s735 + $0x3b0] sm:$0xff] %v2117
        %2588 = vst [vmem:[%s735 + $0x3b8] sm:$0xff] %v2118
        %2589 = vst [vmem:[%s735 + $0x3c0] sm:$0xff] %v2119
        %2590 = vst [vmem:[%s735 + $0x3c8] sm:$0xff] %v2120
        %2591 = vst [vmem:[%s735 + $0x3d0] sm:$0xff] %v2121
        %2592 = vst [vmem:[%s735 + $0x3d8] sm:$0xff] %v2122
        %2593 = vst [vmem:[%s735 + $0x3e0] sm:$0xff] %v2123
        %2594 = vst [vmem:[%s735 + $0x3e8] sm:$0xff] %v2124
        %2595 = vst [vmem:[%s735 + $0x3f0] sm:$0xff] %v2125
        %2596 = vst [vmem:[%s735 + $0x3f8] sm:$0xff] %v2126
        %2597 = vst [vmem:[%s735 + $0x400] sm:$0xff] %v2127
        %2598 = vst [vmem:[%s735 + $0x408] sm:$0xff] %v2128
        %2599 = vst [vmem:[%s735 + $0x410] sm:$0xff] %v2129
        %2600 = vst [vmem:[%s735 + $0x418] sm:$0xff] %v2130
        %2601 = vst [vmem:[%s735 + $0x420] sm:$0xff] %v2131
        %2602 = vst [vmem:[%s735 + $0x428] sm:$0xff] %v2132
        %2603 = vst [vmem:[%s735 + $0x430] sm:$0xff] %v2133
        %2604 = vst [vmem:[%s735 + $0x438] sm:$0xff] %v2134
        %2605 = vst [vmem:[%s735 + $0x440] sm:$0xff] %v2135
        %2606 = vst [vmem:[%s735 + $0x448] sm:$0xff] %v2136
        %2607 = vst [vmem:[%s735 + $0x450] sm:$0xff] %v2137
        %2608 = vst [vmem:[%s735 + $0x458] sm:$0xff] %v2138
        %2609 = vst [vmem:[%s735 + $0x460] sm:$0xff] %v2139
        %2610 = vst [vmem:[%s735 + $0x468] sm:$0xff] %v2140
        %2611 = vst [vmem:[%s735 + $0x470] sm:$0xff] %v2141
        %2612 = vst [vmem:[%s735 + $0x478] sm:$0xff] %v2142
        %2613 = vst [vmem:[%s735 + $0x480] sm:$0xff] %v2143
        %2614 = vst [vmem:[%s735 + $0x488] sm:$0xff] %v2144
        %2615 = vst [vmem:[%s735 + $0x490] sm:$0xff] %v2145
        %2616 = vst [vmem:[%s735 + $0x498] sm:$0xff] %v2146
        %2617 = vst [vmem:[%s735 + $0x4a0] sm:$0xff] %v2147
        %2618 = vst [vmem:[%s735 + $0x4a8] sm:$0xff] %v2148
        %2619 = vst [vmem:[%s735 + $0x4b0] sm:$0xff] %v2149
        %2620 = vst [vmem:[%s735 + $0x4b8] sm:$0xff] %v2150
        %2621 = vst [vmem:[%s735 + $0x4c0] sm:$0xff] %v2151
        %2622 = vst [vmem:[%s735 + $0x4c8] sm:$0xff] %v2152
        %2623 = vst [vmem:[%s735 + $0x4d0] sm:$0xff] %v2153
        %2624 = vst [vmem:[%s735 + $0x4d8] sm:$0xff] %v2154
        %2625 = vst [vmem:[%s735 + $0x4e0] sm:$0xff] %v2155
        %2626 = vst [vmem:[%s735 + $0x4e8] sm:$0xff] %v2156
        %2627 = vst [vmem:[%s735 + $0x4f0] sm:$0xff] %v2157
        %2628 = vst [vmem:[%s735 + $0x4f8] sm:$0xff] %v2158
        %2629 = vst [vmem:[%s735 + $0x500] sm:$0xff] %v2159
        %2630 = vst [vmem:[%s735 + $0x508] sm:$0xff] %v2160
        %2631 = vst [vmem:[%s735 + $0x510] sm:$0xff] %v2161
        %2632 = vst [vmem:[%s735 + $0x518] sm:$0xff] %v2162
        %2633 = vst [vmem:[%s735 + $0x520] sm:$0xff] %v2163
        %2634 = vst [vmem:[%s735 + $0x528] sm:$0xff] %v2164
        %2635 = vst [vmem:[%s735 + $0x530] sm:$0xff] %v2165
        %2636 = vst [vmem:[%s735 + $0x538] sm:$0xff] %v2166
        %2637 = vst [vmem:[%s735 + $0x540] sm:$0xff] %v2167
        %2638 = vst [vmem:[%s735 + $0x548] sm:$0xff] %v2168
        %2639 = vst [vmem:[%s735 + $0x550] sm:$0xff] %v2169
        %2640 = vst [vmem:[%s735 + $0x558] sm:$0xff] %v2170
        %2641 = vst [vmem:[%s735 + $0x560] sm:$0xff] %v2171
        %2642 = vst [vmem:[%s735 + $0x568] sm:$0xff] %v2172
        %2643 = vst [vmem:[%s735 + $0x570] sm:$0xff] %v2173
        %2644 = vst [vmem:[%s735 + $0x578] sm:$0xff] %v2174
        %2645 = vst [vmem:[%s735 + $0x580] sm:$0xff] %v2175
        %2646 = vst [vmem:[%s735 + $0x588] sm:$0xff] %v2176
        %2647 = vst [vmem:[%s735 + $0x590] sm:$0xff] %v2177
        %2648 = vst [vmem:[%s735 + $0x598] sm:$0xff] %v2178
        %2649 = vst [vmem:[%s735 + $0x5a0] sm:$0xff] %v2179
        %2650 = vst [vmem:[%s735 + $0x5a8] sm:$0xff] %v2180
        %2651 = vst [vmem:[%s735 + $0x5b0] sm:$0xff] %v2181
        %2652 = vst [vmem:[%s735 + $0x5b8] sm:$0xff] %v2182
        %2653 = vst [vmem:[%s735 + $0x5c0] sm:$0xff] %v2183
        %2654 = vst [vmem:[%s735 + $0x5c8] sm:$0xff] %v2184
        %2655 = vst [vmem:[%s735 + $0x5d0] sm:$0xff] %v2185
        %2656 = vst [vmem:[%s735 + $0x5d8] sm:$0xff] %v2186
        %2657 = vst [vmem:[%s735 + $0x5e0] sm:$0xff] %v2187
        %2658 = vst [vmem:[%s735 + $0x5e8] sm:$0xff] %v2188
        %2659 = vst [vmem:[%s735 + $0x5f0] sm:$0xff] %v2189
        %2660 = vst [vmem:[%s735 + $0x5f8] sm:$0xff] %v2190
        %2661 = vst [vmem:[%s735 + $0x600] sm:$0xff] %v2191
        %2662 = vst [vmem:[%s735 + $0x608] sm:$0xff] %v2192
        %2663 = vst [vmem:[%s735 + $0x610] sm:$0xff] %v2193
        %2664 = vst [vmem:[%s735 + $0x618] sm:$0xff] %v2194
        %2665 = vst [vmem:[%s735 + $0x620] sm:$0xff] %v2195
        %2666 = vst [vmem:[%s735 + $0x628] sm:$0xff] %v2196
        %2667 = vst [vmem:[%s735 + $0x630] sm:$0xff] %v2197
        %2668 = vst [vmem:[%s735 + $0x638] sm:$0xff] %v2198
        %2669 = vst [vmem:[%s735 + $0x640] sm:$0xff] %v2199
        %2670 = vst [vmem:[%s735 + $0x648] sm:$0xff] %v2200
        %2671 = vst [vmem:[%s735 + $0x650] sm:$0xff] %v2201
        %2672 = vst [vmem:[%s735 + $0x658] sm:$0xff] %v2202
        %2673 = vst [vmem:[%s735 + $0x660] sm:$0xff] %v2203
        %2674 = vst [vmem:[%s735 + $0x668] sm:$0xff] %v2204
        %2675 = vst [vmem:[%s735 + $0x670] sm:$0xff] %v2205
        %2676 = vst [vmem:[%s735 + $0x678] sm:$0xff] %v2206
        %2677 = vst [vmem:[%s735 + $0x680] sm:$0xff] %v2207
        %2678 = vst [vmem:[%s735 + $0x688] sm:$0xff] %v2208
        %2679 = vst [vmem:[%s735 + $0x690] sm:$0xff] %v2209
        %2680 = vst [vmem:[%s735 + $0x698] sm:$0xff] %v2210
        %2681 = vst [vmem:[%s735 + $0x6a0] sm:$0xff] %v2211
        %2682 = vst [vmem:[%s735 + $0x6a8] sm:$0xff] %v2212
        %2683 = vst [vmem:[%s735 + $0x6b0] sm:$0xff] %v2213
        %2684 = vst [vmem:[%s735 + $0x6b8] sm:$0xff] %v2214
        %2685 = vst [vmem:[%s735 + $0x6c0] sm:$0xff] %v2215
        %2686 = vst [vmem:[%s735 + $0x6c8] sm:$0xff] %v2216
        %2687 = vst [vmem:[%s735 + $0x6d0] sm:$0xff] %v2217
        %2688 = vst [vmem:[%s735 + $0x6d8] sm:$0xff] %v2218
        %2689 = vst [vmem:[%s735 + $0x6e0] sm:$0xff] %v2219
        %2690 = vst [vmem:[%s735 + $0x6e8] sm:$0xff] %v2220
        %2691 = vst [vmem:[%s735 + $0x6f0] sm:$0xff] %v2221
        %2692 = vst [vmem:[%s735 + $0x6f8] sm:$0xff] %v2222
        %2693 = vst [vmem:[%s735 + $0x700] sm:$0xff] %v2223
        %2694 = vst [vmem:[%s735 + $0x708] sm:$0xff] %v2224
        %2695 = vst [vmem:[%s735 + $0x710] sm:$0xff] %v2225
        %2696 = vst [vmem:[%s735 + $0x718] sm:$0xff] %v2226
        %2697 = vst [vmem:[%s735 + $0x720] sm:$0xff] %v2227
        %2698 = vst [vmem:[%s735 + $0x728] sm:$0xff] %v2228
        %2699 = vst [vmem:[%s735 + $0x730] sm:$0xff] %v2229
        %2700 = vst [vmem:[%s735 + $0x738] sm:$0xff] %v2230
        %2701 = vst [vmem:[%s735 + $0x740] sm:$0xff] %v2231
        %2702 = vst [vmem:[%s735 + $0x748] sm:$0xff] %v2232
        %2703 = vst [vmem:[%s735 + $0x750] sm:$0xff] %v2233
        %2704 = vst [vmem:[%s735 + $0x758] sm:$0xff] %v2234
        %2705 = vst [vmem:[%s735 + $0x760] sm:$0xff] %v2235
        %2706 = vst [vmem:[%s735 + $0x768] sm:$0xff] %v2236
        %2707 = vst [vmem:[%s735 + $0x770] sm:$0xff] %v2237
        %2708 = vst [vmem:[%s735 + $0x778] sm:$0xff] %v2238
        %2709 = vst [vmem:[%s735 + $0x780] sm:$0xff] %v2239
        %2710 = vst [vmem:[%s735 + $0x788] sm:$0xff] %v2240
        %2711 = vst [vmem:[%s735 + $0x790] sm:$0xff] %v2241
        %2712 = vst [vmem:[%s735 + $0x798] sm:$0xff] %v2242
        %2713 = vst [vmem:[%s735 + $0x7a0] sm:$0xff] %v2243
        %2714 = vst [vmem:[%s735 + $0x7a8] sm:$0xff] %v2244
        %2715 = vst [vmem:[%s735 + $0x7b0] sm:$0xff] %v2245
        %2716 = vst [vmem:[%s735 + $0x7b8] sm:$0xff] %v2246
        %2717 = vst [vmem:[%s735 + $0x7c0] sm:$0xff] %v2247
        %2718 = vst [vmem:[%s735 + $0x7c8] sm:$0xff] %v2248
        %2719 = vst [vmem:[%s735 + $0x7d0] sm:$0xff] %v2249
        %2720 = vst [vmem:[%s735 + $0x7d8] sm:$0xff] %v2250
        %2721 = vst [vmem:[%s735 + $0x7e0] sm:$0xff] %v2251
        %2722 = vst [vmem:[%s735 + $0x7e8] sm:$0xff] %v2252
        %2723 = vst [vmem:[%s735 + $0x7f0] sm:$0xff] %v2253
        %2724 = vst [vmem:[%s735 + $0x7f8] sm:$0xff] %v2254
        %2725 = vst [vmem:[%s735 + $0x800] sm:$0xff] %v2255
        %2726 = vst [vmem:[%s735 + $0x808] sm:$0xff] %v2256
        %2727 = vst [vmem:[%s735 + $0x810] sm:$0xff] %v2257
        %2728 = vst [vmem:[%s735 + $0x818] sm:$0xff] %v2258
        %2729 = vst [vmem:[%s735 + $0x820] sm:$0xff] %v2259
        %2730 = vst [vmem:[%s735 + $0x828] sm:$0xff] %v2260
        %2731 = vst [vmem:[%s735 + $0x830] sm:$0xff] %v2261
        %2732 = vst [vmem:[%s735 + $0x838] sm:$0xff] %v2262
        %2733 = vst [vmem:[%s735 + $0x840] sm:$0xff] %v2263
        %2734 = vst [vmem:[%s735 + $0x848] sm:$0xff] %v2264
        %2735 = vst [vmem:[%s735 + $0x850] sm:$0xff] %v2265
        %2736 = vst [vmem:[%s735 + $0x858] sm:$0xff] %v2266
        %2737 = vst [vmem:[%s735 + $0x860] sm:$0xff] %v2267
        %2738 = vst [vmem:[%s735 + $0x868] sm:$0xff] %v2268
        %2739 = vst [vmem:[%s735 + $0x870] sm:$0xff] %v2269
        %2740 = vst [vmem:[%s735 + $0x878] sm:$0xff] %v2270
        %2741 = vst [vmem:[%s735 + $0x880] sm:$0xff] %v2271
        %2742 = vst [vmem:[%s735 + $0x888] sm:$0xff] %v2272
        %2743 = vst [vmem:[%s735 + $0x890] sm:$0xff] %v2273
        %2744 = vst [vmem:[%s735 + $0x898] sm:$0xff] %v2274
        %2745 = vst [vmem:[%s735 + $0x8a0] sm:$0xff] %v2275
        %2746 = vst [vmem:[%s735 + $0x8a8] sm:$0xff] %v2276
        %2747 = vst [vmem:[%s735 + $0x8b0] sm:$0xff] %v2277
        %2748 = vst [vmem:[%s735 + $0x8b8] sm:$0xff] %v2278
        %2749 = vst [vmem:[%s735 + $0x8c0] sm:$0xff] %v2279
        %2750 = vst [vmem:[%s735 + $0x8c8] sm:$0xff] %v2280
        %2751 = vst [vmem:[%s735 + $0x8d0] sm:$0xff] %v2281
        %2752 = vst [vmem:[%s735 + $0x8d8] sm:$0xff] %v2282
        %2753 = vst [vmem:[%s735 + $0x8e0] sm:$0xff] %v2283
        %2754 = vst [vmem:[%s735 + $0x8e8] sm:$0xff] %v2284
        %2755 = vst [vmem:[%s735 + $0x8f0] sm:$0xff] %v2285
        %2756 = vst [vmem:[%s735 + $0x8f8] sm:$0xff] %v2286
        %2757 = vst [vmem:[%s735 + $0x900] sm:$0xff] %v2287
        %2758 = vst [vmem:[%s735 + $0x908] sm:$0xff] %v2288
        %2759 = vst [vmem:[%s735 + $0x910] sm:$0xff] %v2289
        %2760 = vst [vmem:[%s735 + $0x918] sm:$0xff] %v2290
        %2761 = vst [vmem:[%s735 + $0x920] sm:$0xff] %v2291
        %2762 = vst [vmem:[%s735 + $0x928] sm:$0xff] %v2292
        %2763 = vst [vmem:[%s735 + $0x930] sm:$0xff] %v2293
        %2764 = vst [vmem:[%s735 + $0x938] sm:$0xff] %v2294
        %2765 = vst [vmem:[%s735 + $0x940] sm:$0xff] %v2295
        %2766 = vst [vmem:[%s735 + $0x948] sm:$0xff] %v2296
        %2767 = vst [vmem:[%s735 + $0x950] sm:$0xff] %v2297
        %2768 = vst [vmem:[%s735 + $0x958] sm:$0xff] %v2298
        %v2769 = vlaneseq
        %vm2770 = vcmp.ge.s32.totalorder %v2769, 0
        %vm2771 = vcmp.lt.s32.totalorder %v2769, 256
        %vm2772 = vmand %vm2770, %vm2771
        %2773 = vst.msk [vmem:[%s742] sm:$0x3] %vm2772, %v2303
        %2774 = vst [vmem:[%s749] sm:$0xff] %v2432
        %2775 = vst [vmem:[%s749 + $0x8] sm:$0xff] %v2433
        %2776 = vst [vmem:[%s749 + $0x10] sm:$0xff] %v2434
        %2777 = vst [vmem:[%s749 + $0x18] sm:$0xff] %v2435
        %2778 = vst [vmem:[%s749 + $0x20] sm:$0xff] %v2436
        %2779 = vst [vmem:[%s749 + $0x28] sm:$0xff] %v2437
        %2780 = vst [vmem:[%s749 + $0x30] sm:$0xff] %v2438
        %2781 = vst [vmem:[%s749 + $0x38] sm:$0xff] %v2439
        %2782 = vst [vmem:[%s749 + $0x40] sm:$0xff] %v2440
        %2783 = vst [vmem:[%s749 + $0x48] sm:$0xff] %v2441
        %2784 = vst [vmem:[%s749 + $0x50] sm:$0xff] %v2442
        %2785 = vst [vmem:[%s749 + $0x58] sm:$0xff] %v2443
        %2786 = vst [vmem:[%s749 + $0x60] sm:$0xff] %v2444
        %2787 = vst [vmem:[%s749 + $0x68] sm:$0xff] %v2445
        %2788 = vst [vmem:[%s749 + $0x70] sm:$0xff] %v2446
        %2789 = vst [vmem:[%s749 + $0x78] sm:$0xff] %v2447
        %2790 = vst [vmem:[%s749 + $0x80] sm:$0xff] %v2448
        %2791 = vst [vmem:[%s749 + $0x88] sm:$0xff] %v2449
        %2792 = vst [vmem:[%s749 + $0x90] sm:$0xff] %v2450
        %2793 = vst [vmem:[%s749 + $0x98] sm:$0xff] %v2451
        %2794 = vst [vmem:[%s749 + $0xa0] sm:$0xff] %v2452
        %2795 = vst [vmem:[%s749 + $0xa8] sm:$0xff] %v2453
        %2796 = vst [vmem:[%s749 + $0xb0] sm:$0xff] %v2454
        %2797 = vst [vmem:[%s749 + $0xb8] sm:$0xff] %v2455
        %2798 = vst [vmem:[%s749 + $0xc0] sm:$0xff] %v2456
        %2799 = vst [vmem:[%s749 + $0xc8] sm:$0xff] %v2457
        %2800 = vst [vmem:[%s749 + $0xd0] sm:$0xff] %v2458
        %2801 = vst [vmem:[%s749 + $0xd8] sm:$0xff] %v2459
        %2802 = vst [vmem:[%s749 + $0xe0] sm:$0xff] %v2460
        %2803 = vst [vmem:[%s749 + $0xe8] sm:$0xff] %v2461
        %2804 = vst [vmem:[%s749 + $0xf0] sm:$0xff] %v2462
        %2805 = vst [vmem:[%s749 + $0xf8] sm:$0xff] %v2463
        %2806 = vst [vmem:[%s755] sm:$0x1] %v2468
        %v2807 = vld [vmem:[%s760] sm:$0xff]
        %v2808 = vld [vmem:[%s760 + $0x8] sm:$0xff]
        %v2809 = vld [vmem:[%s760 + $0x10] sm:$0xff]
        %v2810 = vld [vmem:[%s760 + $0x18] sm:$0xff]
        %v2811 = vld [vmem:[%s760 + $0x20] sm:$0xff]
        %v2812 = vld [vmem:[%s760 + $0x28] sm:$0xff]
        %v2813 = vld [vmem:[%s760 + $0x30] sm:$0xff]
        %v2814 = vld [vmem:[%s760 + $0x38] sm:$0xff]
        %v2815 = vld [vmem:[%s760 + $0x40] sm:$0xff]
        %v2816 = vld [vmem:[%s760 + $0x48] sm:$0xff]
        %v2817 = vld [vmem:[%s765] sm:$0xff]
        %v2818 = vld [vmem:[%s765 + $0x8] sm:$0xff]
        %v2819 = vld [vmem:[%s765 + $0x10] sm:$0xff]
        %v2820 = vld [vmem:[%s765 + $0x18] sm:$0xff]
        %v2821 = vld [vmem:[%s765 + $0x20] sm:$0xff]
        %v2822 = vld [vmem:[%s765 + $0x28] sm:$0xff]
        %v2823 = vld [vmem:[%s765 + $0x30] sm:$0xff]
        %v2824 = vld [vmem:[%s765 + $0x38] sm:$0xff]
        %v2825 = vld [vmem:[%s765 + $0x40] sm:$0xff]
        %v2826 = vld [vmem:[%s765 + $0x48] sm:$0xff]
        %v2827 = vld [vmem:[%s765 + $0x50] sm:$0xff]
        %v2828 = vld [vmem:[%s765 + $0x58] sm:$0xff]
        %v2829 = vld [vmem:[%s765 + $0x60] sm:$0xff]
        %v2830 = vld [vmem:[%s765 + $0x68] sm:$0xff]
        %v2831 = vld [vmem:[%s765 + $0x70] sm:$0xff]
        %v2832 = vld [vmem:[%s765 + $0x78] sm:$0xff]
        %v2833 = vld [vmem:[%s765 + $0x80] sm:$0xff]
        %v2834 = vld [vmem:[%s765 + $0x88] sm:$0xff]
        %v2835 = vld [vmem:[%s765 + $0x90] sm:$0xff]
        %v2836 = vld [vmem:[%s765 + $0x98] sm:$0xff]
        %v2837 = vld [vmem:[%s765 + $0xa0] sm:$0xff]
        %v2838 = vld [vmem:[%s765 + $0xa8] sm:$0xff]
        %v2839 = vld [vmem:[%s765 + $0xb0] sm:$0xff]
        %v2840 = vld [vmem:[%s765 + $0xb8] sm:$0xff]
        %v2841 = vld [vmem:[%s765 + $0xc0] sm:$0xff]
        %v2842 = vld [vmem:[%s765 + $0xc8] sm:$0xff]
        %v2843 = vld [vmem:[%s765 + $0xd0] sm:$0xff]
        %v2844 = vld [vmem:[%s765 + $0xd8] sm:$0xff]
        %v2845 = vld [vmem:[%s765 + $0xe0] sm:$0xff]
        %v2846 = vld [vmem:[%s765 + $0xe8] sm:$0xff]
        %v2847 = vld [vmem:[%s765 + $0xf0] sm:$0xff]
        %v2848 = vld [vmem:[%s765 + $0xf8] sm:$0xff]
        %v2849 = vld [vmem:[%s765 + $0x100] sm:$0xff]
        %v2850 = vld [vmem:[%s765 + $0x108] sm:$0xff]
        %v2851 = vld [vmem:[%s765 + $0x110] sm:$0xff]
        %v2852 = vld [vmem:[%s765 + $0x118] sm:$0xff]
        %v2853 = vld [vmem:[%s765 + $0x120] sm:$0xff]
        %v2854 = vld [vmem:[%s765 + $0x128] sm:$0xff]
        %v2855 = vld [vmem:[%s765 + $0x130] sm:$0xff]
        %v2856 = vld [vmem:[%s765 + $0x138] sm:$0xff]
        %v2857 = vld [vmem:[%s765 + $0x140] sm:$0xff]
        %v2858 = vld [vmem:[%s765 + $0x148] sm:$0xff]
        %v2859 = vld [vmem:[%s765 + $0x150] sm:$0xff]
        %v2860 = vld [vmem:[%s765 + $0x158] sm:$0xff]
        %v2861 = vld [vmem:[%s765 + $0x160] sm:$0xff]
        %v2862 = vld [vmem:[%s765 + $0x168] sm:$0xff]
        %v2863 = vld [vmem:[%s765 + $0x170] sm:$0xff]
        %v2864 = vld [vmem:[%s765 + $0x178] sm:$0xff]
        %v2865 = vld [vmem:[%s765 + $0x180] sm:$0xff]
        %v2866 = vld [vmem:[%s765 + $0x188] sm:$0xff]
        %v2867 = vld [vmem:[%s765 + $0x190] sm:$0xff]
        %v2868 = vld [vmem:[%s765 + $0x198] sm:$0xff]
        %v2869 = vld [vmem:[%s765 + $0x1a0] sm:$0xff]
        %v2870 = vld [vmem:[%s765 + $0x1a8] sm:$0xff]
        %v2871 = vld [vmem:[%s765 + $0x1b0] sm:$0xff]
        %v2872 = vld [vmem:[%s765 + $0x1b8] sm:$0xff]
        %v2873 = vld [vmem:[%s765 + $0x1c0] sm:$0xff]
        %v2874 = vld [vmem:[%s765 + $0x1c8] sm:$0xff]
        %v2875 = vld [vmem:[%s765 + $0x1d0] sm:$0xff]
        %v2876 = vld [vmem:[%s765 + $0x1d8] sm:$0xff]
        %v2877 = vld [vmem:[%s765 + $0x1e0] sm:$0xff]
        %v2878 = vld [vmem:[%s765 + $0x1e8] sm:$0xff]
        %v2879 = vld [vmem:[%s765 + $0x1f0] sm:$0xff]
        %v2880 = vld [vmem:[%s765 + $0x1f8] sm:$0xff]
        %v2881 = vld [vmem:[%s765 + $0x200] sm:$0xff]
        %v2882 = vld [vmem:[%s765 + $0x208] sm:$0xff]
        %v2883 = vld [vmem:[%s765 + $0x210] sm:$0xff]
        %v2884 = vld [vmem:[%s765 + $0x218] sm:$0xff]
        %v2885 = vld [vmem:[%s765 + $0x220] sm:$0xff]
        %v2886 = vld [vmem:[%s765 + $0x228] sm:$0xff]
        %v2887 = vld [vmem:[%s765 + $0x230] sm:$0xff]
        %v2888 = vld [vmem:[%s765 + $0x238] sm:$0xff]
        %v2889 = vld [vmem:[%s765 + $0x240] sm:$0xff]
        %v2890 = vld [vmem:[%s765 + $0x248] sm:$0xff]
        %v2891 = vld [vmem:[%s765 + $0x250] sm:$0xff]
        %v2892 = vld [vmem:[%s765 + $0x258] sm:$0xff]
        %v2893 = vld [vmem:[%s765 + $0x260] sm:$0xff]
        %v2894 = vld [vmem:[%s765 + $0x268] sm:$0xff]
        %v2895 = vld [vmem:[%s765 + $0x270] sm:$0xff]
        %v2896 = vld [vmem:[%s765 + $0x278] sm:$0xff]
        %v2897 = vld [vmem:[%s765 + $0x280] sm:$0xff]
        %v2898 = vld [vmem:[%s765 + $0x288] sm:$0xff]
        %v2899 = vld [vmem:[%s765 + $0x290] sm:$0xff]
        %v2900 = vld [vmem:[%s765 + $0x298] sm:$0xff]
        %v2901 = vld [vmem:[%s765 + $0x2a0] sm:$0xff]
        %v2902 = vld [vmem:[%s765 + $0x2a8] sm:$0xff]
        %v2903 = vld [vmem:[%s765 + $0x2b0] sm:$0xff]
        %v2904 = vld [vmem:[%s765 + $0x2b8] sm:$0xff]
        %v2905 = vld [vmem:[%s765 + $0x2c0] sm:$0xff]
        %v2906 = vld [vmem:[%s765 + $0x2c8] sm:$0xff]
        %v2907 = vld [vmem:[%s765 + $0x2d0] sm:$0xff]
        %v2908 = vld [vmem:[%s765 + $0x2d8] sm:$0xff]
        %v2909 = vld [vmem:[%s765 + $0x2e0] sm:$0xff]
        %v2910 = vld [vmem:[%s765 + $0x2e8] sm:$0xff]
        %v2911 = vld [vmem:[%s765 + $0x2f0] sm:$0xff]
        %v2912 = vld [vmem:[%s765 + $0x2f8] sm:$0xff]
        %v2913 = vld [vmem:[%s765 + $0x300] sm:$0xff]
        %v2914 = vld [vmem:[%s765 + $0x308] sm:$0xff]
        %v2915 = vld [vmem:[%s765 + $0x310] sm:$0xff]
        %v2916 = vld [vmem:[%s765 + $0x318] sm:$0xff]
        %v2917 = vld [vmem:[%s765 + $0x320] sm:$0xff]
        %v2918 = vld [vmem:[%s765 + $0x328] sm:$0xff]
        %v2919 = vld [vmem:[%s765 + $0x330] sm:$0xff]
        %v2920 = vld [vmem:[%s765 + $0x338] sm:$0xff]
        %v2921 = vld [vmem:[%s765 + $0x340] sm:$0xff]
        %v2922 = vld [vmem:[%s765 + $0x348] sm:$0xff]
        %v2923 = vld [vmem:[%s765 + $0x350] sm:$0xff]
        %v2924 = vld [vmem:[%s765 + $0x358] sm:$0xff]
        %v2925 = vld [vmem:[%s765 + $0x360] sm:$0xff]
        %v2926 = vld [vmem:[%s765 + $0x368] sm:$0xff]
        %v2927 = vld [vmem:[%s765 + $0x370] sm:$0xff]
        %v2928 = vld [vmem:[%s765 + $0x378] sm:$0xff]
        %v2929 = vld [vmem:[%s765 + $0x380] sm:$0xff]
        %v2930 = vld [vmem:[%s765 + $0x388] sm:$0xff]
        %v2931 = vld [vmem:[%s765 + $0x390] sm:$0xff]
        %v2932 = vld [vmem:[%s765 + $0x398] sm:$0xff]
        %v2933 = vld [vmem:[%s765 + $0x3a0] sm:$0xff]
        %v2934 = vld [vmem:[%s765 + $0x3a8] sm:$0xff]
        %v2935 = vld [vmem:[%s765 + $0x3b0] sm:$0xff]
        %v2936 = vld [vmem:[%s765 + $0x3b8] sm:$0xff]
        %v2937 = vld [vmem:[%s765 + $0x3c0] sm:$0xff]
        %v2938 = vld [vmem:[%s765 + $0x3c8] sm:$0xff]
        %v2939 = vld [vmem:[%s765 + $0x3d0] sm:$0xff]
        %v2940 = vld [vmem:[%s765 + $0x3d8] sm:$0xff]
        %v2941 = vld [vmem:[%s765 + $0x3e0] sm:$0xff]
        %v2942 = vld [vmem:[%s765 + $0x3e8] sm:$0xff]
        %v2943 = vld [vmem:[%s765 + $0x3f0] sm:$0xff]
        %v2944 = vld [vmem:[%s765 + $0x3f8] sm:$0xff]
        %v2945 = vld [vmem:[%s765 + $0x400] sm:$0xff]
        %v2946 = vld [vmem:[%s765 + $0x408] sm:$0xff]
        %v2947 = vld [vmem:[%s765 + $0x410] sm:$0xff]
        %v2948 = vld [vmem:[%s765 + $0x418] sm:$0xff]
        %v2949 = vld [vmem:[%s765 + $0x420] sm:$0xff]
        %v2950 = vld [vmem:[%s765 + $0x428] sm:$0xff]
        %v2951 = vld [vmem:[%s765 + $0x430] sm:$0xff]
        %v2952 = vld [vmem:[%s765 + $0x438] sm:$0xff]
        %v2953 = vld [vmem:[%s765 + $0x440] sm:$0xff]
        %v2954 = vld [vmem:[%s765 + $0x448] sm:$0xff]
        %v2955 = vld [vmem:[%s765 + $0x450] sm:$0xff]
        %v2956 = vld [vmem:[%s765 + $0x458] sm:$0xff]
        %v2957 = vld [vmem:[%s765 + $0x460] sm:$0xff]
        %v2958 = vld [vmem:[%s765 + $0x468] sm:$0xff]
        %v2959 = vld [vmem:[%s765 + $0x470] sm:$0xff]
        %v2960 = vld [vmem:[%s765 + $0x478] sm:$0xff]
        %v2961 = vld [vmem:[%s765 + $0x480] sm:$0xff]
        %v2962 = vld [vmem:[%s765 + $0x488] sm:$0xff]
        %v2963 = vld [vmem:[%s765 + $0x490] sm:$0xff]
        %v2964 = vld [vmem:[%s765 + $0x498] sm:$0xff]
        %v2965 = vld [vmem:[%s765 + $0x4a0] sm:$0xff]
        %v2966 = vld [vmem:[%s765 + $0x4a8] sm:$0xff]
        %v2967 = vld [vmem:[%s765 + $0x4b0] sm:$0xff]
        %v2968 = vld [vmem:[%s765 + $0x4b8] sm:$0xff]
        %v2969 = vld [vmem:[%s765 + $0x4c0] sm:$0xff]
        %v2970 = vld [vmem:[%s765 + $0x4c8] sm:$0xff]
        %v2971 = vld [vmem:[%s765 + $0x4d0] sm:$0xff]
        %v2972 = vld [vmem:[%s765 + $0x4d8] sm:$0xff]
        %v2973 = vld [vmem:[%s765 + $0x4e0] sm:$0xff]
        %v2974 = vld [vmem:[%s765 + $0x4e8] sm:$0xff]
        %v2975 = vld [vmem:[%s765 + $0x4f0] sm:$0xff]
        %v2976 = vld [vmem:[%s765 + $0x4f8] sm:$0xff]
        %v2977 = vld [vmem:[%s765 + $0x500] sm:$0xff]
        %v2978 = vld [vmem:[%s765 + $0x508] sm:$0xff]
        %v2979 = vld [vmem:[%s765 + $0x510] sm:$0xff]
        %v2980 = vld [vmem:[%s765 + $0x518] sm:$0xff]
        %v2981 = vld [vmem:[%s765 + $0x520] sm:$0xff]
        %v2982 = vld [vmem:[%s765 + $0x528] sm:$0xff]
        %v2983 = vld [vmem:[%s765 + $0x530] sm:$0xff]
        %v2984 = vld [vmem:[%s765 + $0x538] sm:$0xff]
        %v2985 = vld [vmem:[%s765 + $0x540] sm:$0xff]
        %v2986 = vld [vmem:[%s765 + $0x548] sm:$0xff]
        %v2987 = vld [vmem:[%s765 + $0x550] sm:$0xff]
        %v2988 = vld [vmem:[%s765 + $0x558] sm:$0xff]
        %v2989 = vld [vmem:[%s765 + $0x560] sm:$0xff]
        %v2990 = vld [vmem:[%s765 + $0x568] sm:$0xff]
        %v2991 = vld [vmem:[%s765 + $0x570] sm:$0xff]
        %v2992 = vld [vmem:[%s765 + $0x578] sm:$0xff]
        %v2993 = vld [vmem:[%s765 + $0x580] sm:$0xff]
        %v2994 = vld [vmem:[%s765 + $0x588] sm:$0xff]
        %v2995 = vld [vmem:[%s765 + $0x590] sm:$0xff]
        %v2996 = vld [vmem:[%s765 + $0x598] sm:$0xff]
        %v2997 = vld [vmem:[%s765 + $0x5a0] sm:$0xff]
        %v2998 = vld [vmem:[%s765 + $0x5a8] sm:$0xff]
        %v2999 = vld [vmem:[%s765 + $0x5b0] sm:$0xff]
        %v3000 = vld [vmem:[%s765 + $0x5b8] sm:$0xff]
        %v3001 = vld [vmem:[%s765 + $0x5c0] sm:$0xff]
        %v3002 = vld [vmem:[%s765 + $0x5c8] sm:$0xff]
        %v3003 = vld [vmem:[%s765 + $0x5d0] sm:$0xff]
        %v3004 = vld [vmem:[%s765 + $0x5d8] sm:$0xff]
        %v3005 = vld [vmem:[%s765 + $0x5e0] sm:$0xff]
        %v3006 = vld [vmem:[%s765 + $0x5e8] sm:$0xff]
        %v3007 = vld [vmem:[%s765 + $0x5f0] sm:$0xff]
        %v3008 = vld [vmem:[%s765 + $0x5f8] sm:$0xff]
        %v3009 = vld [vmem:[%s765 + $0x600] sm:$0xff]
        %v3010 = vld [vmem:[%s765 + $0x608] sm:$0xff]
        %v3011 = vld [vmem:[%s765 + $0x610] sm:$0xff]
        %v3012 = vld [vmem:[%s765 + $0x618] sm:$0xff]
        %v3013 = vld [vmem:[%s765 + $0x620] sm:$0xff]
        %v3014 = vld [vmem:[%s765 + $0x628] sm:$0xff]
        %v3015 = vld [vmem:[%s765 + $0x630] sm:$0xff]
        %v3016 = vld [vmem:[%s765 + $0x638] sm:$0xff]
        %v3017 = vld [vmem:[%s765 + $0x640] sm:$0xff]
        %v3018 = vld [vmem:[%s765 + $0x648] sm:$0xff]
        %v3019 = vld [vmem:[%s765 + $0x650] sm:$0xff]
        %v3020 = vld [vmem:[%s765 + $0x658] sm:$0xff]
        %v3021 = vld [vmem:[%s765 + $0x660] sm:$0xff]
        %v3022 = vld [vmem:[%s765 + $0x668] sm:$0xff]
        %v3023 = vld [vmem:[%s765 + $0x670] sm:$0xff]
        %v3024 = vld [vmem:[%s765 + $0x678] sm:$0xff]
        %v3025 = vld [vmem:[%s765 + $0x680] sm:$0xff]
        %v3026 = vld [vmem:[%s765 + $0x688] sm:$0xff]
        %v3027 = vld [vmem:[%s765 + $0x690] sm:$0xff]
        %v3028 = vld [vmem:[%s765 + $0x698] sm:$0xff]
        %v3029 = vld [vmem:[%s765 + $0x6a0] sm:$0xff]
        %v3030 = vld [vmem:[%s765 + $0x6a8] sm:$0xff]
        %v3031 = vld [vmem:[%s765 + $0x6b0] sm:$0xff]
        %v3032 = vld [vmem:[%s765 + $0x6b8] sm:$0xff]
        %v3033 = vld [vmem:[%s765 + $0x6c0] sm:$0xff]
        %v3034 = vld [vmem:[%s765 + $0x6c8] sm:$0xff]
        %v3035 = vld [vmem:[%s765 + $0x6d0] sm:$0xff]
        %v3036 = vld [vmem:[%s765 + $0x6d8] sm:$0xff]
        %v3037 = vld [vmem:[%s765 + $0x6e0] sm:$0xff]
        %v3038 = vld [vmem:[%s765 + $0x6e8] sm:$0xff]
        %v3039 = vld [vmem:[%s765 + $0x6f0] sm:$0xff]
        %v3040 = vld [vmem:[%s765 + $0x6f8] sm:$0xff]
        %v3041 = vld [vmem:[%s765 + $0x700] sm:$0xff]
        %v3042 = vld [vmem:[%s765 + $0x708] sm:$0xff]
        %v3043 = vld [vmem:[%s765 + $0x710] sm:$0xff]
        %v3044 = vld [vmem:[%s765 + $0x718] sm:$0xff]
        %v3045 = vld [vmem:[%s765 + $0x720] sm:$0xff]
        %v3046 = vld [vmem:[%s765 + $0x728] sm:$0xff]
        %v3047 = vld [vmem:[%s765 + $0x730] sm:$0xff]
        %v3048 = vld [vmem:[%s765 + $0x738] sm:$0xff]
        %v3049 = vld [vmem:[%s765 + $0x740] sm:$0xff]
        %v3050 = vld [vmem:[%s765 + $0x748] sm:$0xff]
        %v3051 = vld [vmem:[%s765 + $0x750] sm:$0xff]
        %v3052 = vld [vmem:[%s765 + $0x758] sm:$0xff]
        %v3053 = vld [vmem:[%s765 + $0x760] sm:$0xff]
        %v3054 = vld [vmem:[%s765 + $0x768] sm:$0xff]
        %v3055 = vld [vmem:[%s765 + $0x770] sm:$0xff]
        %v3056 = vld [vmem:[%s765 + $0x778] sm:$0xff]
        %v3057 = vld [vmem:[%s765 + $0x780] sm:$0xff]
        %v3058 = vld [vmem:[%s765 + $0x788] sm:$0xff]
        %v3059 = vld [vmem:[%s765 + $0x790] sm:$0xff]
        %v3060 = vld [vmem:[%s765 + $0x798] sm:$0xff]
        %v3061 = vld [vmem:[%s765 + $0x7a0] sm:$0xff]
        %v3062 = vld [vmem:[%s765 + $0x7a8] sm:$0xff]
        %v3063 = vld [vmem:[%s765 + $0x7b0] sm:$0xff]
        %v3064 = vld [vmem:[%s765 + $0x7b8] sm:$0xff]
        %v3065 = vld [vmem:[%s765 + $0x7c0] sm:$0xff]
        %v3066 = vld [vmem:[%s765 + $0x7c8] sm:$0xff]
        %v3067 = vld [vmem:[%s765 + $0x7d0] sm:$0xff]
        %v3068 = vld [vmem:[%s765 + $0x7d8] sm:$0xff]
        %v3069 = vld [vmem:[%s765 + $0x7e0] sm:$0xff]
        %v3070 = vld [vmem:[%s765 + $0x7e8] sm:$0xff]
        %v3071 = vld [vmem:[%s765 + $0x7f0] sm:$0xff]
        %v3072 = vld [vmem:[%s765 + $0x7f8] sm:$0xff]
        %v3073 = vld [vmem:[%s765 + $0x800] sm:$0xff]
        %v3074 = vld [vmem:[%s765 + $0x808] sm:$0xff]
        %v3075 = vld [vmem:[%s765 + $0x810] sm:$0xff]
        %v3076 = vld [vmem:[%s765 + $0x818] sm:$0xff]
        %v3077 = vld [vmem:[%s765 + $0x820] sm:$0xff]
        %v3078 = vld [vmem:[%s765 + $0x828] sm:$0xff]
        %v3079 = vld [vmem:[%s765 + $0x830] sm:$0xff]
        %v3080 = vld [vmem:[%s765 + $0x838] sm:$0xff]
        %v3081 = vld [vmem:[%s765 + $0x840] sm:$0xff]
        %v3082 = vld [vmem:[%s765 + $0x848] sm:$0xff]
        %v3083 = vld [vmem:[%s765 + $0x850] sm:$0xff]
        %v3084 = vld [vmem:[%s765 + $0x858] sm:$0xff]
        %v3085 = vld [vmem:[%s765 + $0x860] sm:$0xff]
        %v3086 = vld [vmem:[%s765 + $0x868] sm:$0xff]
        %v3087 = vld [vmem:[%s765 + $0x870] sm:$0xff]
        %v3088 = vld [vmem:[%s765 + $0x878] sm:$0xff]
        %v3089 = vld [vmem:[%s765 + $0x880] sm:$0xff]
        %v3090 = vld [vmem:[%s765 + $0x888] sm:$0xff]
        %v3091 = vld [vmem:[%s765 + $0x890] sm:$0xff]
        %v3092 = vld [vmem:[%s765 + $0x898] sm:$0xff]
        %v3093 = vld [vmem:[%s765 + $0x8a0] sm:$0xff]
        %v3094 = vld [vmem:[%s765 + $0x8a8] sm:$0xff]
        %v3095 = vld [vmem:[%s765 + $0x8b0] sm:$0xff]
        %v3096 = vld [vmem:[%s765 + $0x8b8] sm:$0xff]
        %v3097 = vld [vmem:[%s765 + $0x8c0] sm:$0xff]
        %v3098 = vld [vmem:[%s765 + $0x8c8] sm:$0xff]
        %v3099 = vld [vmem:[%s765 + $0x8d0] sm:$0xff]
        %v3100 = vld [vmem:[%s765 + $0x8d8] sm:$0xff]
        %v3101 = vld [vmem:[%s765 + $0x8e0] sm:$0xff]
        %v3102 = vld [vmem:[%s765 + $0x8e8] sm:$0xff]
        %v3103 = vld [vmem:[%s765 + $0x8f0] sm:$0xff]
        %v3104 = vld [vmem:[%s765 + $0x8f8] sm:$0xff]
        %v3105 = vld [vmem:[%s765 + $0x900] sm:$0xff]
        %v3106 = vld [vmem:[%s765 + $0x908] sm:$0xff]
        %v3107 = vld [vmem:[%s765 + $0x910] sm:$0xff]
        %v3108 = vld [vmem:[%s765 + $0x918] sm:$0xff]
        %v3109 = vld [vmem:[%s765 + $0x920] sm:$0xff]
        %v3110 = vld [vmem:[%s765 + $0x928] sm:$0xff]
        %v3111 = vld [vmem:[%s765 + $0x930] sm:$0xff]
        %v3112 = vld [vmem:[%s765 + $0x938] sm:$0xff]
        %v3113 = vld [vmem:[%s765 + $0x940] sm:$0xff]
        %v3114 = vld [vmem:[%s765 + $0x948] sm:$0xff]
        %v3115 = vld [vmem:[%s765 + $0x950] sm:$0xff]
        %v3116 = vld [vmem:[%s765 + $0x958] sm:$0xff]
        %v3117 = vld [vmem:[%s769] sm:$0x3]
        %v3118 = vld [vmem:[%s623] sm:$0xff]
        %v3119 = vld [vmem:[%s623 + $0x8] sm:$0xff]
        %v3120 = vld [vmem:[%s623 + $0x10] sm:$0xff]
        %v3121 = vld [vmem:[%s623 + $0x18] sm:$0xff]
        %v3122 = vld [vmem:[%s623 + $0x20] sm:$0xff]
        %v3123 = vld [vmem:[%s623 + $0x28] sm:$0xff]
        %v3124 = vld [vmem:[%s623 + $0x30] sm:$0xff]
        %v3125 = vld [vmem:[%s623 + $0x38] sm:$0xff]
        %v3126 = vld [vmem:[%s623 + $0x40] sm:$0xff]
        %v3127 = vld [vmem:[%s623 + $0x48] sm:$0xff]
        %v3128 = vld [vmem:[%s623 + $0x50] sm:$0xff]
        %v3129 = vld [vmem:[%s623 + $0x58] sm:$0xff]
        %v3130 = vld [vmem:[%s623 + $0x60] sm:$0xff]
        %v3131 = vld [vmem:[%s623 + $0x68] sm:$0xff]
        %v3132 = vld [vmem:[%s623 + $0x70] sm:$0xff]
        %v3133 = vld [vmem:[%s623 + $0x78] sm:$0xff]
        %v3134 = vld [vmem:[%s623 + $0x80] sm:$0xff]
        %v3135 = vld [vmem:[%s623 + $0x88] sm:$0xff]
        %v3136 = vld [vmem:[%s623 + $0x90] sm:$0xff]
        %v3137 = vld [vmem:[%s623 + $0x98] sm:$0xff]
        %v3138 = vld [vmem:[%s623 + $0xa0] sm:$0xff]
        %v3139 = vld [vmem:[%s623 + $0xa8] sm:$0xff]
        %v3140 = vld [vmem:[%s623 + $0xb0] sm:$0xff]
        %v3141 = vld [vmem:[%s623 + $0xb8] sm:$0xff]
        %v3142 = vld [vmem:[%s623 + $0xc0] sm:$0xff]
        %v3143 = vld [vmem:[%s623 + $0xc8] sm:$0xff]
        %v3144 = vld [vmem:[%s623 + $0xd0] sm:$0xff]
        %v3145 = vld [vmem:[%s623 + $0xd8] sm:$0xff]
        %v3146 = vld [vmem:[%s623 + $0xe0] sm:$0xff]
        %v3147 = vld [vmem:[%s623 + $0xe8] sm:$0xff]
        %v3148 = vld [vmem:[%s623 + $0xf0] sm:$0xff]
        %v3149 = vld [vmem:[%s623 + $0xf8] sm:$0xff]
        %v3150 = vld [vmem:[%s772] sm:$0x1]
        %v3151 = vpack.c.bf16 %v2807, %v2807
        %v3152 = vpack.c.bf16 %v2808, %v2808
        %v3153 = vpack.c.bf16 %v2809, %v2809
        %v3154 = vpack.c.bf16 %v2810, %v2810
        %v3155 = vpack.c.bf16 %v2811, %v2811
        %v3156 = vpack.c.bf16 %v2812, %v2812
        %v3157 = vpack.c.bf16 %v2813, %v2813
        %v3158 = vpack.c.bf16 %v2814, %v2814
        %v3159 = vpack.c.bf16 %v2815, %v2815
        %v3160 = vpack.c.bf16 %v2816, %v2816
        %v3161 = vpack.c.bf16 %v2819, %v2817
        %v3162 = vpack.c.bf16 %v2820, %v2818
        %v3163 = vpack.c.bf16 %v2823, %v2821
        %v3164 = vpack.c.bf16 %v2824, %v2822
        %v3165 = vpack.c.bf16 %v2827, %v2825
        %v3166 = vpack.c.bf16 %v2828, %v2826
        %v3167 = vpack.c.bf16 %v2831, %v2829
        %v3168 = vpack.c.bf16 %v2832, %v2830
        %v3169 = vpack.c.bf16 %v2835, %v2833
        %v3170 = vpack.c.bf16 %v2836, %v2834
        %v3171 = vpack.c.bf16 %v2839, %v2837
        %v3172 = vpack.c.bf16 %v2840, %v2838
        %v3173 = vpack.c.bf16 %v2843, %v2841
        %v3174 = vpack.c.bf16 %v2844, %v2842
        %v3175 = vpack.c.bf16 %v2847, %v2845
        %v3176 = vpack.c.bf16 %v2848, %v2846
        %v3177 = vpack.c.bf16 %v2851, %v2849
        %v3178 = vpack.c.bf16 %v2852, %v2850
        %v3179 = vpack.c.bf16 %v2855, %v2853
        %v3180 = vpack.c.bf16 %v2856, %v2854
        %v3181 = vpack.c.bf16 %v2859, %v2857
        %v3182 = vpack.c.bf16 %v2860, %v2858
        %v3183 = vpack.c.bf16 %v2863, %v2861
        %v3184 = vpack.c.bf16 %v2864, %v2862
        %v3185 = vpack.c.bf16 %v2867, %v2865
        %v3186 = vpack.c.bf16 %v2868, %v2866
        %v3187 = vpack.c.bf16 %v2871, %v2869
        %v3188 = vpack.c.bf16 %v2872, %v2870
        %v3189 = vpack.c.bf16 %v2875, %v2873
        %v3190 = vpack.c.bf16 %v2876, %v2874
        %v3191 = vpack.c.bf16 %v2879, %v2877
        %v3192 = vpack.c.bf16 %v2880, %v2878
        %v3193 = vpack.c.bf16 %v2883, %v2881
        %v3194 = vpack.c.bf16 %v2884, %v2882
        %v3195 = vpack.c.bf16 %v2887, %v2885
        %v3196 = vpack.c.bf16 %v2888, %v2886
        %v3197 = vpack.c.bf16 %v2891, %v2889
        %v3198 = vpack.c.bf16 %v2892, %v2890
        %v3199 = vpack.c.bf16 %v2895, %v2893
        %v3200 = vpack.c.bf16 %v2896, %v2894
        %v3201 = vpack.c.bf16 %v2899, %v2897
        %v3202 = vpack.c.bf16 %v2900, %v2898
        %v3203 = vpack.c.bf16 %v2903, %v2901
        %v3204 = vpack.c.bf16 %v2904, %v2902
        %v3205 = vpack.c.bf16 %v2907, %v2905
        %v3206 = vpack.c.bf16 %v2908, %v2906
        %v3207 = vpack.c.bf16 %v2911, %v2909
        %v3208 = vpack.c.bf16 %v2912, %v2910
        %v3209 = vpack.c.bf16 %v2915, %v2913
        %v3210 = vpack.c.bf16 %v2916, %v2914
        %v3211 = vpack.c.bf16 %v2919, %v2917
        %v3212 = vpack.c.bf16 %v2920, %v2918
        %v3213 = vpack.c.bf16 %v2923, %v2921
        %v3214 = vpack.c.bf16 %v2924, %v2922
        %v3215 = vpack.c.bf16 %v2927, %v2925
        %v3216 = vpack.c.bf16 %v2928, %v2926
        %v3217 = vpack.c.bf16 %v2931, %v2929
        %v3218 = vpack.c.bf16 %v2932, %v2930
        %v3219 = vpack.c.bf16 %v2935, %v2933
        %v3220 = vpack.c.bf16 %v2936, %v2934
        %v3221 = vpack.c.bf16 %v2939, %v2937
        %v3222 = vpack.c.bf16 %v2940, %v2938
        %v3223 = vpack.c.bf16 %v2943, %v2941
        %v3224 = vpack.c.bf16 %v2944, %v2942
        %v3225 = vpack.c.bf16 %v2947, %v2945
        %v3226 = vpack.c.bf16 %v2948, %v2946
        %v3227 = vpack.c.bf16 %v2951, %v2949
        %v3228 = vpack.c.bf16 %v2952, %v2950
        %v3229 = vpack.c.bf16 %v2955, %v2953
        %v3230 = vpack.c.bf16 %v2956, %v2954
        %v3231 = vpack.c.bf16 %v2959, %v2957
        %v3232 = vpack.c.bf16 %v2960, %v2958
        %v3233 = vpack.c.bf16 %v2963, %v2961
        %v3234 = vpack.c.bf16 %v2964, %v2962
        %v3235 = vpack.c.bf16 %v2967, %v2965
        %v3236 = vpack.c.bf16 %v2968, %v2966
        %v3237 = vpack.c.bf16 %v2971, %v2969
        %v3238 = vpack.c.bf16 %v2972, %v2970
        %v3239 = vpack.c.bf16 %v2975, %v2973
        %v3240 = vpack.c.bf16 %v2976, %v2974
        %v3241 = vpack.c.bf16 %v2979, %v2977
        %v3242 = vpack.c.bf16 %v2980, %v2978
        %v3243 = vpack.c.bf16 %v2983, %v2981
        %v3244 = vpack.c.bf16 %v2984, %v2982
        %v3245 = vpack.c.bf16 %v2987, %v2985
        %v3246 = vpack.c.bf16 %v2988, %v2986
        %v3247 = vpack.c.bf16 %v2991, %v2989
        %v3248 = vpack.c.bf16 %v2992, %v2990
        %v3249 = vpack.c.bf16 %v2995, %v2993
        %v3250 = vpack.c.bf16 %v2996, %v2994
        %v3251 = vpack.c.bf16 %v2999, %v2997
        %v3252 = vpack.c.bf16 %v3000, %v2998
        %v3253 = vpack.c.bf16 %v3003, %v3001
        %v3254 = vpack.c.bf16 %v3004, %v3002
        %v3255 = vpack.c.bf16 %v3007, %v3005
        %v3256 = vpack.c.bf16 %v3008, %v3006
        %v3257 = vpack.c.bf16 %v3011, %v3009
        %v3258 = vpack.c.bf16 %v3012, %v3010
        %v3259 = vpack.c.bf16 %v3015, %v3013
        %v3260 = vpack.c.bf16 %v3016, %v3014
        %v3261 = vpack.c.bf16 %v3019, %v3017
        %v3262 = vpack.c.bf16 %v3020, %v3018
        %v3263 = vpack.c.bf16 %v3023, %v3021
        %v3264 = vpack.c.bf16 %v3024, %v3022
        %v3265 = vpack.c.bf16 %v3027, %v3025
        %v3266 = vpack.c.bf16 %v3028, %v3026
        %v3267 = vpack.c.bf16 %v3031, %v3029
        %v3268 = vpack.c.bf16 %v3032, %v3030
        %v3269 = vpack.c.bf16 %v3035, %v3033
        %v3270 = vpack.c.bf16 %v3036, %v3034
        %v3271 = vpack.c.bf16 %v3039, %v3037
        %v3272 = vpack.c.bf16 %v3040, %v3038
        %v3273 = vpack.c.bf16 %v3043, %v3041
        %v3274 = vpack.c.bf16 %v3044, %v3042
        %v3275 = vpack.c.bf16 %v3047, %v3045
        %v3276 = vpack.c.bf16 %v3048, %v3046
        %v3277 = vpack.c.bf16 %v3051, %v3049
        %v3278 = vpack.c.bf16 %v3052, %v3050
        %v3279 = vpack.c.bf16 %v3055, %v3053
        %v3280 = vpack.c.bf16 %v3056, %v3054
        %v3281 = vpack.c.bf16 %v3059, %v3057
        %v3282 = vpack.c.bf16 %v3060, %v3058
        %v3283 = vpack.c.bf16 %v3063, %v3061
        %v3284 = vpack.c.bf16 %v3064, %v3062
        %v3285 = vpack.c.bf16 %v3067, %v3065
        %v3286 = vpack.c.bf16 %v3068, %v3066
        %v3287 = vpack.c.bf16 %v3071, %v3069
        %v3288 = vpack.c.bf16 %v3072, %v3070
        %v3289 = vpack.c.bf16 %v3075, %v3073
        %v3290 = vpack.c.bf16 %v3076, %v3074
        %v3291 = vpack.c.bf16 %v3079, %v3077
        %v3292 = vpack.c.bf16 %v3080, %v3078
        %v3293 = vpack.c.bf16 %v3083, %v3081
        %v3294 = vpack.c.bf16 %v3084, %v3082
        %v3295 = vpack.c.bf16 %v3087, %v3085
        %v3296 = vpack.c.bf16 %v3088, %v3086
        %v3297 = vpack.c.bf16 %v3091, %v3089
        %v3298 = vpack.c.bf16 %v3092, %v3090
        %v3299 = vpack.c.bf16 %v3095, %v3093
        %v3300 = vpack.c.bf16 %v3096, %v3094
        %v3301 = vpack.c.bf16 %v3099, %v3097
        %v3302 = vpack.c.bf16 %v3100, %v3098
        %v3303 = vpack.c.bf16 %v3103, %v3101
        %v3304 = vpack.c.bf16 %v3104, %v3102
        %v3305 = vpack.c.bf16 %v3107, %v3105
        %v3306 = vpack.c.bf16 %v3108, %v3106
        %v3307 = vpack.c.bf16 %v3111, %v3109
        %v3308 = vpack.c.bf16 %v3112, %v3110
        %v3309 = vpack.c.bf16 %v3115, %v3113
        %v3310 = vpack.c.bf16 %v3116, %v3114
        %v3312 = vlaneseq
        %v3313 = vshrl.u32 %v3312, 7
        %v3314 = vsub.s32 0, %v3313
        %v3315 = vrot.slane %v3117, %v3314
        %v3316 = vlaneseq
        %v3317 = vshrl.u32 %v3316, 7
        %v3318 = vsub.s32 1, %v3317
        %v3319 = vrot.slane %v3117, %v3318
        %vm3322 = vcmask 392192
        %v3324 = vsel %vm3322, %v3160, 0
        %3326 = vmatprep.subr.bf16.mxu0 %v3162
        %3327 = vmatpush1.bf16.msra.mxu0 %v3161
        %3328 = vmatprep.subr.bf16.mxu0 %v3164
        %3329 = vmatpush1.bf16.msra.mxu0 %v3163
        %3330 = vmatprep.subr.bf16.mxu0 %v3166
        %3331 = vmatpush1.bf16.msra.mxu0 %v3165
        %3332 = vmatprep.subr.bf16.mxu0 %v3168
        %3333 = vmatpush1.bf16.msra.mxu0 %v3167
        %3334 = vmatprep.subr.bf16.mxu0 %v3170
        %3335 = vmatpush1.bf16.msra.mxu0 %v3169
        %3336 = vmatprep.subr.bf16.mxu0 %v3172
        %3337 = vmatpush1.bf16.msra.mxu0 %v3171
        %3338 = vmatprep.subr.bf16.mxu0 %v3174
        %3339 = vmatpush1.bf16.msra.mxu0 %v3173
        %3340 = vmatprep.subr.bf16.mxu0 %v3176
        %3341 = vmatpush1.bf16.msra.mxu0 %v3175
        %3342 = vmatprep.subr.bf16.mxu0 %v3178
        %3343 = vmatpush1.bf16.msra.mxu0 %v3177
        %3344 = vmatprep.subr.bf16.mxu0 %v3180
        %3345 = vmatpush1.bf16.msra.mxu0 %v3179
        %3346 = vmatprep.subr.bf16.mxu0 %v3182
        %3347 = vmatpush1.bf16.msra.mxu0 %v3181
        %3348 = vmatprep.subr.bf16.mxu0 %v3184
        %3349 = vmatpush1.bf16.msra.mxu0 %v3183
        %3350 = vmatprep.subr.bf16.mxu0 %v3186
        %3351 = vmatpush1.bf16.msra.mxu0 %v3185
        %3352 = vmatprep.subr.bf16.mxu0 %v3188
        %3353 = vmatpush1.bf16.msra.mxu0 %v3187
        %3354 = vmatprep.subr.bf16.mxu0 %v3190
        %3355 = vmatpush1.bf16.msra.mxu0 %v3189
        %3356 = vmatprep.subr.bf16.mxu0 %v3192
        %3357 = vmatpush1.bf16.msra.mxu0 %v3191
        %3358 = vmatprep.mubr.bf16.mxu0 %v3152
        %3359 = vmatmul.mubr.bf16.gmra.mrb[0].mxu0 %v3151
        %v3360 = vpop.f32.mrb[0].mxu0
        %v3361 = vadd.f32 %v3315, %v3360
        %v3362 = vpop.f32.mrb[0].mxu0
        %v3363 = vadd.f32 %v3319, %v3362
        %v3364 = vpop.f32.mrb[0].mxu0
        %v3365 = vpop.f32.mrb[0].mxu0
        %3366 = vdwg.mxu0
        %3367 = vmatprep.subr.bf16.mxu0 %v3194
        %3368 = vmatpush1.bf16.msra.mxu0 %v3193
        %3369 = vmatprep.subr.bf16.mxu0 %v3196
        %3370 = vmatpush1.bf16.msra.mxu0 %v3195
        %3371 = vmatprep.subr.bf16.mxu0 %v3198
        %3372 = vmatpush1.bf16.msra.mxu0 %v3197
        %3373 = vmatprep.subr.bf16.mxu0 %v3200
        %3374 = vmatpush1.bf16.msra.mxu0 %v3199
        %3375 = vmatprep.subr.bf16.mxu0 %v3202
        %3376 = vmatpush1.bf16.msra.mxu0 %v3201
        %3377 = vmatprep.subr.bf16.mxu0 %v3204
        %3378 = vmatpush1.bf16.msra.mxu0 %v3203
        %3379 = vmatprep.subr.bf16.mxu0 %v3206
        %3380 = vmatpush1.bf16.msra.mxu0 %v3205
        %3381 = vmatprep.subr.bf16.mxu0 %v3208
        %3382 = vmatpush1.bf16.msra.mxu0 %v3207
        %3383 = vmatprep.subr.bf16.mxu0 %v3210
        %3384 = vmatpush1.bf16.msra.mxu0 %v3209
        %3385 = vmatprep.subr.bf16.mxu0 %v3212
        %3386 = vmatpush1.bf16.msra.mxu0 %v3211
        %3387 = vmatprep.subr.bf16.mxu0 %v3214
        %3388 = vmatpush1.bf16.msra.mxu0 %v3213
        %3389 = vmatprep.subr.bf16.mxu0 %v3216
        %3390 = vmatpush1.bf16.msra.mxu0 %v3215
        %3391 = vmatprep.subr.bf16.mxu0 %v3218
        %3392 = vmatpush1.bf16.msra.mxu0 %v3217
        %3393 = vmatprep.subr.bf16.mxu0 %v3220
        %3394 = vmatpush1.bf16.msra.mxu0 %v3219
        %3395 = vmatprep.subr.bf16.mxu0 %v3222
        %3396 = vmatpush1.bf16.msra.mxu0 %v3221
        %3397 = vmatprep.subr.bf16.mxu0 %v3224
        %3398 = vmatpush1.bf16.msra.mxu0 %v3223
        %3399 = vmatprep.mubr.bf16.mxu0 %v3154
        %3400 = vmatmul.mubr.bf16.gmra.mrb[0].mxu0 %v3153
        %v3401 = vpop.f32.mrb[0].mxu0
        %v3402 = vadd.f32 %v3361, %v3401
        %v3403 = vpop.f32.mrb[0].mxu0
        %v3404 = vadd.f32 %v3363, %v3403
        %v3405 = vpop.f32.mrb[0].mxu0
        %v3406 = vpop.f32.mrb[0].mxu0
        %3407 = vdwg.mxu0
        %3408 = vmatprep.subr.bf16.mxu0 %v3226
        %3409 = vmatpush1.bf16.msra.mxu0 %v3225
        %3410 = vmatprep.subr.bf16.mxu0 %v3228
        %3411 = vmatpush1.bf16.msra.mxu0 %v3227
        %3412 = vmatprep.subr.bf16.mxu0 %v3230
        %3413 = vmatpush1.bf16.msra.mxu0 %v3229
        %3414 = vmatprep.subr.bf16.mxu0 %v3232
        %3415 = vmatpush1.bf16.msra.mxu0 %v3231
        %3416 = vmatprep.subr.bf16.mxu0 %v3234
        %3417 = vmatpush1.bf16.msra.mxu0 %v3233
        %3418 = vmatprep.subr.bf16.mxu0 %v3236
        %3419 = vmatpush1.bf16.msra.mxu0 %v3235
        %3420 = vmatprep.subr.bf16.mxu0 %v3238
        %3421 = vmatpush1.bf16.msra.mxu0 %v3237
        %3422 = vmatprep.subr.bf16.mxu0 %v3240
        %3423 = vmatpush1.bf16.msra.mxu0 %v3239
        %3424 = vmatprep.subr.bf16.mxu0 %v3242
        %3425 = vmatpush1.bf16.msra.mxu0 %v3241
        %3426 = vmatprep.subr.bf16.mxu0 %v3244
        %3427 = vmatpush1.bf16.msra.mxu0 %v3243
        %3428 = vmatprep.subr.bf16.mxu0 %v3246
        %3429 = vmatpush1.bf16.msra.mxu0 %v3245
        %3430 = vmatprep.subr.bf16.mxu0 %v3248
        %3431 = vmatpush1.bf16.msra.mxu0 %v3247
        %3432 = vmatprep.subr.bf16.mxu0 %v3250
        %3433 = vmatpush1.bf16.msra.mxu0 %v3249
        %3434 = vmatprep.subr.bf16.mxu0 %v3252
        %3435 = vmatpush1.bf16.msra.mxu0 %v3251
        %3436 = vmatprep.subr.bf16.mxu0 %v3254
        %3437 = vmatpush1.bf16.msra.mxu0 %v3253
        %3438 = vmatprep.subr.bf16.mxu0 %v3256
        %3439 = vmatpush1.bf16.msra.mxu0 %v3255
        %3440 = vmatprep.mubr.bf16.mxu0 %v3156
        %3441 = vmatmul.mubr.bf16.gmra.mrb[0].mxu0 %v3155
        %v3442 = vpop.f32.mrb[0].mxu0
        %v3443 = vadd.f32 %v3402, %v3442
        %v3444 = vpop.f32.mrb[0].mxu0
        %v3445 = vadd.f32 %v3404, %v3444
        %v3446 = vpop.f32.mrb[0].mxu0
        %v3447 = vpop.f32.mrb[0].mxu0
        %3448 = vdwg.mxu0
        %3449 = vmatprep.subr.bf16.mxu0 %v3258
        %3450 = vmatpush1.bf16.msra.mxu0 %v3257
        %3451 = vmatprep.subr.bf16.mxu0 %v3260
        %3452 = vmatpush1.bf16.msra.mxu0 %v3259
        %3453 = vmatprep.subr.bf16.mxu0 %v3262
        %3454 = vmatpush1.bf16.msra.mxu0 %v3261
        %3455 = vmatprep.subr.bf16.mxu0 %v3264
        %3456 = vmatpush1.bf16.msra.mxu0 %v3263
        %3457 = vmatprep.subr.bf16.mxu0 %v3266
        %3458 = vmatpush1.bf16.msra.mxu0 %v3265
        %3459 = vmatprep.subr.bf16.mxu0 %v3268
        %3460 = vmatpush1.bf16.msra.mxu0 %v3267
        %3461 = vmatprep.subr.bf16.mxu0 %v3270
        %3462 = vmatpush1.bf16.msra.mxu0 %v3269
        %3463 = vmatprep.subr.bf16.mxu0 %v3272
        %3464 = vmatpush1.bf16.msra.mxu0 %v3271
        %3465 = vmatprep.subr.bf16.mxu0 %v3274
        %3466 = vmatpush1.bf16.msra.mxu0 %v3273
        %3467 = vmatprep.subr.bf16.mxu0 %v3276
        %3468 = vmatpush1.bf16.msra.mxu0 %v3275
        %3469 = vmatprep.subr.bf16.mxu0 %v3278
        %3470 = vmatpush1.bf16.msra.mxu0 %v3277
        %3471 = vmatprep.subr.bf16.mxu0 %v3280
        %3472 = vmatpush1.bf16.msra.mxu0 %v3279
        %3473 = vmatprep.subr.bf16.mxu0 %v3282
        %3474 = vmatpush1.bf16.msra.mxu0 %v3281
        %3475 = vmatprep.subr.bf16.mxu0 %v3284
        %3476 = vmatpush1.bf16.msra.mxu0 %v3283
        %3477 = vmatprep.subr.bf16.mxu0 %v3286
        %3478 = vmatpush1.bf16.msra.mxu0 %v3285
        %3479 = vmatprep.subr.bf16.mxu0 %v3288
        %3480 = vmatpush1.bf16.msra.mxu0 %v3287
        %3481 = vmatprep.mubr.bf16.mxu0 %v3158
        %3482 = vmatmul.mubr.bf16.gmra.mrb[0].mxu0 %v3157
        %v3483 = vpop.f32.mrb[0].mxu0
        %v3484 = vadd.f32 %v3443, %v3483
        %v3485 = vpop.f32.mrb[0].mxu0
        %v3486 = vadd.f32 %v3445, %v3485
        %v3487 = vpop.f32.mrb[0].mxu0
        %v3488 = vpop.f32.mrb[0].mxu0
        %3489 = vdwg.mxu0
        %3490 = vmatprep.subr.bf16.mxu0 %v3290
        %3491 = vmatpush1.bf16.msra.mxu0 %v3289
        %3492 = vmatprep.subr.bf16.mxu0 %v3292
        %3493 = vmatpush1.bf16.msra.mxu0 %v3291
        %3494 = vmatprep.subr.bf16.mxu0 %v3294
        %3495 = vmatpush1.bf16.msra.mxu0 %v3293
        %3496 = vmatprep.subr.bf16.mxu0 %v3296
        %3497 = vmatpush1.bf16.msra.mxu0 %v3295
        %3498 = vmatprep.subr.bf16.mxu0 %v3298
        %3499 = vmatpush1.bf16.msra.mxu0 %v3297
        %3500 = vmatprep.subr.bf16.mxu0 %v3300
        %3501 = vmatpush1.bf16.msra.mxu0 %v3299
        %3502 = vmatprep.subr.bf16.mxu0 %v3302
        %3503 = vmatpush1.bf16.msra.mxu0 %v3301
        %3504 = vmatprep.subr.bf16.mxu0 %v3304
        %3505 = vmatpush1.bf16.msra.mxu0 %v3303
        %3506 = vmatprep.subr.bf16.mxu0 %v3306
        %3507 = vmatpush1.bf16.msra.mxu0 %v3305
        %3508 = vmatprep.subr.bf16.mxu0 %v3308
        %3509 = vmatpush1.bf16.msra.mxu0 %v3307
        %3510 = vmatprep.subr.bf16.mxu0 %v3310
        %3511 = vmatpush1.bf16.msra.mxu0 %v3309
        %3512 = vmatprep.subr.bf16.mxu0 0
        %3513 = vmatpush1.bf16.msra.mxu0 0
        %3514 = vmatprep.subr.bf16.mxu0 0
        %3515 = vmatpush1.bf16.msra.mxu0 0
        %3516 = vmatprep.subr.bf16.mxu0 0
        %3517 = vmatpush1.bf16.msra.mxu0 0
        %3518 = vmatprep.subr.bf16.mxu0 0
        %3519 = vmatpush1.bf16.msra.mxu0 0
        %3520 = vmatprep.subr.bf16.mxu0 0
        %3521 = vmatpush1.bf16.msra.mxu0 0
        %3522 = vmatprep.mubr.bf16.mxu0 %v3324
        %3523 = vmatmul.mubr.bf16.gmra.mrb[0].mxu0 %v3159
        %v3524 = vpop.f32.mrb[0].mxu0
        %v3525 = vadd.f32 %v3484, %v3524
        %v3526 = vpop.f32.mrb[0].mxu0
        %v3527 = vadd.f32 %v3486, %v3526
        %v3528 = vpop.f32.mrb[0].mxu0
        %v3529 = vpop.f32.mrb[0].mxu0
        %3530 = vdwg.mxu0
        %v3531 = vmax.f32 %v3525, 0.0
        %v3532 = vmax.f32 %v3527, 0.0
        %v3533 = vpack.c.bf16 %v3531, %v3531
        %v3534 = vpack.c.bf16 %v3532, %v3532
        %v3535 = vpack.c.bf16 %v3119, %v3118
        %v3536 = vpack.c.bf16 %v3121, %v3120
        %v3537 = vpack.c.bf16 %v3123, %v3122
        %v3538 = vpack.c.bf16 %v3125, %v3124
        %v3539 = vpack.c.bf16 %v3127, %v3126
        %v3540 = vpack.c.bf16 %v3129, %v3128
        %v3541 = vpack.c.bf16 %v3131, %v3130
        %v3542 = vpack.c.bf16 %v3133, %v3132
        %v3543 = vpack.c.bf16 %v3135, %v3134
        %v3544 = vpack.c.bf16 %v3137, %v3136
        %v3545 = vpack.c.bf16 %v3139, %v3138
        %v3546 = vpack.c.bf16 %v3141, %v3140
        %v3547 = vpack.c.bf16 %v3143, %v3142
        %v3548 = vpack.c.bf16 %v3145, %v3144
        %v3549 = vpack.c.bf16 %v3147, %v3146
        %v3550 = vpack.c.bf16 %v3149, %v3148
        %v3552 = vlaneseq
        %v3553 = vshrl.u32 %v3552, 7
        %v3554 = vsub.s32 0, %v3553
        %v3555 = vrot.slane %v3150, %v3554
        %3557 = vmatprep.subr.bf16.mxu0 0
        %3558 = vmatpush1.bf16.msra.mxu0 %v3535
        %3559 = vmatprep.subr.bf16.mxu0 0
        %3560 = vmatpush1.bf16.msra.mxu0 %v3536
        %3561 = vmatprep.subr.bf16.mxu0 0
        %3562 = vmatpush1.bf16.msra.mxu0 %v3537
        %3563 = vmatprep.subr.bf16.mxu0 0
        %3564 = vmatpush1.bf16.msra.mxu0 %v3538
        %3565 = vmatprep.subr.bf16.mxu0 0
        %3566 = vmatpush1.bf16.msra.mxu0 %v3539
        %3567 = vmatprep.subr.bf16.mxu0 0
        %3568 = vmatpush1.bf16.msra.mxu0 %v3540
        %3569 = vmatprep.subr.bf16.mxu0 0
        %3570 = vmatpush1.bf16.msra.mxu0 %v3541
        %3571 = vmatprep.subr.bf16.mxu0 0
        %3572 = vmatpush1.bf16.msra.mxu0 %v3542
        %3573 = vmatprep.subr.bf16.mxu0 0
        %3574 = vmatpush1.bf16.msra.mxu0 %v3543
        %3575 = vmatprep.subr.bf16.mxu0 0
        %3576 = vmatpush1.bf16.msra.mxu0 %v3544
        %3577 = vmatprep.subr.bf16.mxu0 0
        %3578 = vmatpush1.bf16.msra.mxu0 %v3545
        %3579 = vmatprep.subr.bf16.mxu0 0
        %3580 = vmatpush1.bf16.msra.mxu0 %v3546
        %3581 = vmatprep.subr.bf16.mxu0 0
        %3582 = vmatpush1.bf16.msra.mxu0 %v3547
        %3583 = vmatprep.subr.bf16.mxu0 0
        %3584 = vmatpush1.bf16.msra.mxu0 %v3548
        %3585 = vmatprep.subr.bf16.mxu0 0
        %3586 = vmatpush1.bf16.msra.mxu0 %v3549
        %3587 = vmatprep.subr.bf16.mxu0 0
        %3588 = vmatpush1.bf16.msra.mxu0 %v3550
        %3589 = vmatprep.mubr.bf16.mxu0 %v3534
        %3590 = vmatmul.mubr.bf16.gmra.mrb[0].mxu0 %v3533
        %v3591 = vpop.f32.mrb[0].mxu0
        %v3592 = vadd.f32 %v3555, %v3591
        %v3593 = vpop.f32.mrb[0].mxu0
        %v3594 = vpop.f32.mrb[0].mxu0
        %v3595 = vpop.f32.mrb[0].mxu0
        %3596 = vdwg.mxu0
        %v3597 = vmul.f32 %v3592, %v3592
        %vm3598 = vcmask 1043456
        %v3599 = vsel %vm3598, %v3597, 0.0
        %3600 = vadd.xlane.f32.xlu0 %v3599
        %v3601 = vpop.xlane.xlu0 %3600
        %v3602 = vmax.f32 %v3601, 1e-24
        %v3603 = vrsqrt.pop %v3602
        %v3604 = vmul.f32 %v3592, %v3603
        %v3605 = vpack.c.bf16 %v2001, %v1999
        %v3606 = vpack.c.bf16 %v2002, %v2000
        %v3607 = vpack.c.bf16 %v2005, %v2003
        %v3608 = vpack.c.bf16 %v2006, %v2004
        %v3609 = vpack.c.bf16 %v2009, %v2007
        %v3610 = vpack.c.bf16 %v2010, %v2008
        %v3611 = vpack.c.bf16 %v2013, %v2011
        %v3612 = vpack.c.bf16 %v2014, %v2012
        %v3613 = vpack.c.bf16 %v2017, %v2015
        %v3614 = vpack.c.bf16 %v2018, %v2016
        %v3615 = vpack.c.bf16 %v2021, %v2019
        %v3616 = vpack.c.bf16 %v2022, %v2020
        %v3617 = vpack.c.bf16 %v2025, %v2023
        %v3618 = vpack.c.bf16 %v2026, %v2024
        %v3619 = vpack.c.bf16 %v2029, %v2027
        %v3620 = vpack.c.bf16 %v2030, %v2028
        %v3621 = vpack.c.bf16 %v2033, %v2031
        %v3622 = vpack.c.bf16 %v2034, %v2032
        %v3623 = vpack.c.bf16 %v2037, %v2035
        %v3624 = vpack.c.bf16 %v2038, %v2036
        %v3625 = vpack.c.bf16 %v2041, %v2039
        %v3626 = vpack.c.bf16 %v2042, %v2040
        %v3627 = vpack.c.bf16 %v2045, %v2043
        %v3628 = vpack.c.bf16 %v2046, %v2044
        %v3629 = vpack.c.bf16 %v2049, %v2047
        %v3630 = vpack.c.bf16 %v2050, %v2048
        %v3631 = vpack.c.bf16 %v2053, %v2051
        %v3632 = vpack.c.bf16 %v2054, %v2052
        %v3633 = vpack.c.bf16 %v2057, %v2055
        %v3634 = vpack.c.bf16 %v2058, %v2056
        %v3635 = vpack.c.bf16 %v2061, %v2059
        %v3636 = vpack.c.bf16 %v2062, %v2060
        %v3637 = vpack.c.bf16 %v2065, %v2063
        %v3638 = vpack.c.bf16 %v2066, %v2064
        %v3639 = vpack.c.bf16 %v2069, %v2067
        %v3640 = vpack.c.bf16 %v2070, %v2068
        %v3641 = vpack.c.bf16 %v2073, %v2071
        %v3642 = vpack.c.bf16 %v2074, %v2072
        %v3643 = vpack.c.bf16 %v2077, %v2075
        %v3644 = vpack.c.bf16 %v2078, %v2076
        %v3645 = vpack.c.bf16 %v2081, %v2079
        %v3646 = vpack.c.bf16 %v2082, %v2080
        %v3647 = vpack.c.bf16 %v2085, %v2083
        %v3648 = vpack.c.bf16 %v2086, %v2084
        %v3649 = vpack.c.bf16 %v2089, %v2087
        %v3650 = vpack.c.bf16 %v2090, %v2088
        %v3651 = vpack.c.bf16 %v2093, %v2091
        %v3652 = vpack.c.bf16 %v2094, %v2092
        %v3653 = vpack.c.bf16 %v2097, %v2095
        %v3654 = vpack.c.bf16 %v2098, %v2096
        %v3655 = vpack.c.bf16 %v2101, %v2099
        %v3656 = vpack.c.bf16 %v2102, %v2100
        %v3657 = vpack.c.bf16 %v2105, %v2103
        %v3658 = vpack.c.bf16 %v2106, %v2104
        %v3659 = vpack.c.bf16 %v2109, %v2107
        %v3660 = vpack.c.bf16 %v2110, %v2108
        %v3661 = vpack.c.bf16 %v2113, %v2111
        %v3662 = vpack.c.bf16 %v2114, %v2112
        %v3663 = vpack.c.bf16 %v2117, %v2115
        %v3664 = vpack.c.bf16 %v2118, %v2116
        %v3665 = vpack.c.bf16 %v2121, %v2119
        %v3666 = vpack.c.bf16 %v2122, %v2120
        %v3667 = vpack.c.bf16 %v2125, %v2123
        %v3668 = vpack.c.bf16 %v2126, %v2124
        %v3669 = vpack.c.bf16 %v2129, %v2127
        %v3670 = vpack.c.bf16 %v2130, %v2128
        %v3671 = vpack.c.bf16 %v2133, %v2131
        %v3672 = vpack.c.bf16 %v2134, %v2132
        %v3673 = vpack.c.bf16 %v2137, %v2135
        %v3674 = vpack.c.bf16 %v2138, %v2136
        %v3675 = vpack.c.bf16 %v2141, %v2139
        %v3676 = vpack.c.bf16 %v2142, %v2140
        %v3677 = vpack.c.bf16 %v2145, %v2143
        %v3678 = vpack.c.bf16 %v2146, %v2144
        %v3679 = vpack.c.bf16 %v2149, %v2147
        %v3680 = vpack.c.bf16 %v2150, %v2148
        %v3681 = vpack.c.bf16 %v2153, %v2151
        %v3682 = vpack.c.bf16 %v2154, %v2152
        %v3683 = vpack.c.bf16 %v2157, %v2155
        %v3684 = vpack.c.bf16 %v2158, %v2156
        %v3685 = vpack.c.bf16 %v2161, %v2159
        %v3686 = vpack.c.bf16 %v2162, %v2160
        %v3687 = vpack.c.bf16 %v2165, %v2163
        %v3688 = vpack.c.bf16 %v2166, %v2164
        %v3689 = vpack.c.bf16 %v2169, %v2167
        %v3690 = vpack.c.bf16 %v2170, %v2168
        %v3691 = vpack.c.bf16 %v2173, %v2171
        %v3692 = vpack.c.bf16 %v2174, %v2172
        %v3693 = vpack.c.bf16 %v2177, %v2175
        %v3694 = vpack.c.bf16 %v2178, %v2176
        %v3695 = vpack.c.bf16 %v2181, %v2179
        %v3696 = vpack.c.bf16 %v2182, %v2180
        %v3697 = vpack.c.bf16 %v2185, %v2183
        %v3698 = vpack.c.bf16 %v2186, %v2184
        %v3699 = vpack.c.bf16 %v2189, %v2187
        %v3700 = vpack.c.bf16 %v2190, %v2188
        %v3701 = vpack.c.bf16 %v2193, %v2191
        %v3702 = vpack.c.bf16 %v2194, %v2192
        %v3703 = vpack.c.bf16 %v2197, %v2195
        %v3704 = vpack.c.bf16 %v2198, %v2196
        %v3705 = vpack.c.bf16 %v2201, %v2199
        %v3706 = vpack.c.bf16 %v2202, %v2200
        %v3707 = vpack.c.bf16 %v2205, %v2203
        %v3708 = vpack.c.bf16 %v2206, %v2204
        %v3709 = vpack.c.bf16 %v2209, %v2207
        %v3710 = vpack.c.bf16 %v2210, %v2208
        %v3711 = vpack.c.bf16 %v2213, %v2211
        %v3712 = vpack.c.bf16 %v2214, %v2212
        %v3713 = vpack.c.bf16 %v2217, %v2215
        %v3714 = vpack.c.bf16 %v2218, %v2216
        %v3715 = vpack.c.bf16 %v2221, %v2219
        %v3716 = vpack.c.bf16 %v2222, %v2220
        %v3717 = vpack.c.bf16 %v2225, %v2223
        %v3718 = vpack.c.bf16 %v2226, %v2224
        %v3719 = vpack.c.bf16 %v2229, %v2227
        %v3720 = vpack.c.bf16 %v2230, %v2228
        %v3721 = vpack.c.bf16 %v2233, %v2231
        %v3722 = vpack.c.bf16 %v2234, %v2232
        %v3723 = vpack.c.bf16 %v2237, %v2235
        %v3724 = vpack.c.bf16 %v2238, %v2236
        %v3725 = vpack.c.bf16 %v2241, %v2239
        %v3726 = vpack.c.bf16 %v2242, %v2240
        %v3727 = vpack.c.bf16 %v2245, %v2243
        %v3728 = vpack.c.bf16 %v2246, %v2244
        %v3729 = vpack.c.bf16 %v2249, %v2247
        %v3730 = vpack.c.bf16 %v2250, %v2248
        %v3731 = vpack.c.bf16 %v2253, %v2251
        %v3732 = vpack.c.bf16 %v2254, %v2252
        %v3733 = vpack.c.bf16 %v2257, %v2255
        %v3734 = vpack.c.bf16 %v2258, %v2256
        %v3735 = vpack.c.bf16 %v2261, %v2259
        %v3736 = vpack.c.bf16 %v2262, %v2260
        %v3737 = vpack.c.bf16 %v2265, %v2263
        %v3738 = vpack.c.bf16 %v2266, %v2264
        %v3739 = vpack.c.bf16 %v2269, %v2267
        %v3740 = vpack.c.bf16 %v2270, %v2268
        %v3741 = vpack.c.bf16 %v2273, %v2271
        %v3742 = vpack.c.bf16 %v2274, %v2272
        %v3743 = vpack.c.bf16 %v2277, %v2275
        %v3744 = vpack.c.bf16 %v2278, %v2276
        %v3745 = vpack.c.bf16 %v2281, %v2279
        %v3746 = vpack.c.bf16 %v2282, %v2280
        %v3747 = vpack.c.bf16 %v2285, %v2283
        %v3748 = vpack.c.bf16 %v2286, %v2284
        %v3749 = vpack.c.bf16 %v2289, %v2287
        %v3750 = vpack.c.bf16 %v2290, %v2288
        %v3751 = vpack.c.bf16 %v2293, %v2291
        %v3752 = vpack.c.bf16 %v2294, %v2292
        %v3753 = vpack.c.bf16 %v2297, %v2295
        %v3754 = vpack.c.bf16 %v2298, %v2296
        %v3756 = vlaneseq
        %v3757 = vshrl.u32 %v3756, 7
        %v3758 = vsub.s32 0, %v3757
        %v3759 = vrot.slane %v2303, %v3758
        %v3760 = vlaneseq
        %v3761 = vshrl.u32 %v3760, 7
        %v3762 = vsub.s32 1, %v3761
        %v3763 = vrot.slane %v2303, %v3762
        %v3776 = vrot.slane %v3151, 2
        %v3777 = vrot.slane %v3152, 2
        %v3778 = vrot.slane %v3153, 2
        %v3779 = vrot.slane %v3154, 2
        %v3780 = vrot.slane %v3155, 2
        %v3781 = vrot.slane %v3156, 2
        %v3782 = vrot.slane %v3157, 2
        %v3783 = vrot.slane %v3158, 2
        %v3784 = vrot.slane %v3159, 2
        %v3785 = vrot.slane %v3160, 2
        %v3796 = vsel %vm3322, %v3785, 0
        %3798 = vmatprep.subr.bf16.mxu0 %v3606
        %3799 = vmatpush1.bf16.msra.mxu0 %v3605
        %3800 = vmatprep.subr.bf16.mxu0 %v3608
        %3801 = vmatpush1.bf16.msra.mxu0 %v3607
        %3802 = vmatprep.subr.bf16.mxu0 %v3610
        %3803 = vmatpush1.bf16.msra.mxu0 %v3609
        %3804 = vmatprep.subr.bf16.mxu0 %v3612
        %3805 = vmatpush1.bf16.msra.mxu0 %v3611
        %3806 = vmatprep.subr.bf16.mxu0 %v3614
        %3807 = vmatpush1.bf16.msra.mxu0 %v3613
        %3808 = vmatprep.subr.bf16.mxu0 %v3616
        %3809 = vmatpush1.bf16.msra.mxu0 %v3615
        %3810 = vmatprep.subr.bf16.mxu0 %v3618
        %3811 = vmatpush1.bf16.msra.mxu0 %v3617
        %3812 = vmatprep.subr.bf16.mxu0 %v3620
        %3813 = vmatpush1.bf16.msra.mxu0 %v3619
        %3814 = vmatprep.subr.bf16.mxu0 %v3622
        %3815 = vmatpush1.bf16.msra.mxu0 %v3621
        %3816 = vmatprep.subr.bf16.mxu0 %v3624
        %3817 = vmatpush1.bf16.msra.mxu0 %v3623
        %3818 = vmatprep.subr.bf16.mxu0 %v3626
        %3819 = vmatpush1.bf16.msra.mxu0 %v3625
        %3820 = vmatprep.subr.bf16.mxu0 %v3628
        %3821 = vmatpush1.bf16.msra.mxu0 %v3627
        %3822 = vmatprep.subr.bf16.mxu0 %v3630
        %3823 = vmatpush1.bf16.msra.mxu0 %v3629
        %3824 = vmatprep.subr.bf16.mxu0 %v3632
        %3825 = vmatpush1.bf16.msra.mxu0 %v3631
        %3826 = vmatprep.subr.bf16.mxu0 %v3634
        %3827 = vmatpush1.bf16.msra.mxu0 %v3633
        %3828 = vmatprep.subr.bf16.mxu0 %v3636
        %3829 = vmatpush1.bf16.msra.mxu0 %v3635
        %3830 = vmatprep.mubr.bf16.mxu0 %v3777
        %3831 = vmatmul.mubr.bf16.gmra.mrb[0].mxu0 %v3776
        %v3832 = vpop.f32.mrb[0].mxu0
        %v3833 = vadd.f32 %v3759, %v3832
        %v3834 = vpop.f32.mrb[0].mxu0
        %v3835 = vadd.f32 %v3763, %v3834
        %v3836 = vpop.f32.mrb[0].mxu0
        %v3837 = vpop.f32.mrb[0].mxu0
        %3838 = vdwg.mxu0
        %3839 = vmatprep.subr.bf16.mxu0 %v3638
        %3840 = vmatpush1.bf16.msra.mxu0 %v3637
        %3841 = vmatprep.subr.bf16.mxu0 %v3640
        %3842 = vmatpush1.bf16.msra.mxu0 %v3639
        %3843 = vmatprep.subr.bf16.mxu0 %v3642
        %3844 = vmatpush1.bf16.msra.mxu0 %v3641
        %3845 = vmatprep.subr.bf16.mxu0 %v3644
        %3846 = vmatpush1.bf16.msra.mxu0 %v3643
        %3847 = vmatprep.subr.bf16.mxu0 %v3646
        %3848 = vmatpush1.bf16.msra.mxu0 %v3645
        %3849 = vmatprep.subr.bf16.mxu0 %v3648
        %3850 = vmatpush1.bf16.msra.mxu0 %v3647
        %3851 = vmatprep.subr.bf16.mxu0 %v3650
        %3852 = vmatpush1.bf16.msra.mxu0 %v3649
        %3853 = vmatprep.subr.bf16.mxu0 %v3652
        %3854 = vmatpush1.bf16.msra.mxu0 %v3651
        %3855 = vmatprep.subr.bf16.mxu0 %v3654
        %3856 = vmatpush1.bf16.msra.mxu0 %v3653
        %3857 = vmatprep.subr.bf16.mxu0 %v3656
        %3858 = vmatpush1.bf16.msra.mxu0 %v3655
        %3859 = vmatprep.subr.bf16.mxu0 %v3658
        %3860 = vmatpush1.bf16.msra.mxu0 %v3657
        %3861 = vmatprep.subr.bf16.mxu0 %v3660
        %3862 = vmatpush1.bf16.msra.mxu0 %v3659
        %3863 = vmatprep.subr.bf16.mxu0 %v3662
        %3864 = vmatpush1.bf16.msra.mxu0 %v3661
        %3865 = vmatprep.subr.bf16.mxu0 %v3664
        %3866 = vmatpush1.bf16.msra.mxu0 %v3663
        %3867 = vmatprep.subr.bf16.mxu0 %v3666
        %3868 = vmatpush1.bf16.msra.mxu0 %v3665
        %3869 = vmatprep.subr.bf16.mxu0 %v3668
        %3870 = vmatpush1.bf16.msra.mxu0 %v3667
        %3871 = vmatprep.mubr.bf16.mxu0 %v3779
        %3872 = vmatmul.mubr.bf16.gmra.mrb[0].mxu0 %v3778
        %v3873 = vpop.f32.mrb[0].mxu0
        %v3874 = vadd.f32 %v3833, %v3873
        %v3875 = vpop.f32.mrb[0].mxu0
        %v3876 = vadd.f32 %v3835, %v3875
        %v3877 = vpop.f32.mrb[0].mxu0
        %v3878 = vpop.f32.mrb[0].mxu0
        %3879 = vdwg.mxu0
        %3880 = vmatprep.subr.bf16.mxu0 %v3670
        %3881 = vmatpush1.bf16.msra.mxu0 %v3669
        %3882 = vmatprep.subr.bf16.mxu0 %v3672
        %3883 = vmatpush1.bf16.msra.mxu0 %v3671
        %3884 = vmatprep.subr.bf16.mxu0 %v3674
        %3885 = vmatpush1.bf16.msra.mxu0 %v3673
        %3886 = vmatprep.subr.bf16.mxu0 %v3676
        %3887 = vmatpush1.bf16.msra.mxu0 %v3675
        %3888 = vmatprep.subr.bf16.mxu0 %v3678
        %3889 = vmatpush1.bf16.msra.mxu0 %v3677
        %3890 = vmatprep.subr.bf16.mxu0 %v3680
        %3891 = vmatpush1.bf16.msra.mxu0 %v3679
        %3892 = vmatprep.subr.bf16.mxu0 %v3682
        %3893 = vmatpush1.bf16.msra.mxu0 %v3681
        %3894 = vmatprep.subr.bf16.mxu0 %v3684
        %3895 = vmatpush1.bf16.msra.mxu0 %v3683
        %3896 = vmatprep.subr.bf16.mxu0 %v3686
        %3897 = vmatpush1.bf16.msra.mxu0 %v3685
        %3898 = vmatprep.subr.bf16.mxu0 %v3688
        %3899 = vmatpush1.bf16.msra.mxu0 %v3687
        %3900 = vmatprep.subr.bf16.mxu0 %v3690
        %3901 = vmatpush1.bf16.msra.mxu0 %v3689
        %3902 = vmatprep.subr.bf16.mxu0 %v3692
        %3903 = vmatpush1.bf16.msra.mxu0 %v3691
        %3904 = vmatprep.subr.bf16.mxu0 %v3694
        %3905 = vmatpush1.bf16.msra.mxu0 %v3693
        %3906 = vmatprep.subr.bf16.mxu0 %v3696
        %3907 = vmatpush1.bf16.msra.mxu0 %v3695
        %3908 = vmatprep.subr.bf16.mxu0 %v3698
        %3909 = vmatpush1.bf16.msra.mxu0 %v3697
        %3910 = vmatprep.subr.bf16.mxu0 %v3700
        %3911 = vmatpush1.bf16.msra.mxu0 %v3699
        %3912 = vmatprep.mubr.bf16.mxu0 %v3781
        %3913 = vmatmul.mubr.bf16.gmra.mrb[0].mxu0 %v3780
        %v3914 = vpop.f32.mrb[0].mxu0
        %v3915 = vadd.f32 %v3874, %v3914
        %v3916 = vpop.f32.mrb[0].mxu0
        %v3917 = vadd.f32 %v3876, %v3916
        %v3918 = vpop.f32.mrb[0].mxu0
        %v3919 = vpop.f32.mrb[0].mxu0
        %3920 = vdwg.mxu0
        %3921 = vmatprep.subr.bf16.mxu0 %v3702
        %3922 = vmatpush1.bf16.msra.mxu0 %v3701
        %3923 = vmatprep.subr.bf16.mxu0 %v3704
        %3924 = vmatpush1.bf16.msra.mxu0 %v3703
        %3925 = vmatprep.subr.bf16.mxu0 %v3706
        %3926 = vmatpush1.bf16.msra.mxu0 %v3705
        %3927 = vmatprep.subr.bf16.mxu0 %v3708
        %3928 = vmatpush1.bf16.msra.mxu0 %v3707
        %3929 = vmatprep.subr.bf16.mxu0 %v3710
        %3930 = vmatpush1.bf16.msra.mxu0 %v3709
        %3931 = vmatprep.subr.bf16.mxu0 %v3712
        %3932 = vmatpush1.bf16.msra.mxu0 %v3711
        %3933 = vmatprep.subr.bf16.mxu0 %v3714
        %3934 = vmatpush1.bf16.msra.mxu0 %v3713
        %3935 = vmatprep.subr.bf16.mxu0 %v3716
        %3936 = vmatpush1.bf16.msra.mxu0 %v3715
        %3937 = vmatprep.subr.bf16.mxu0 %v3718
        %3938 = vmatpush1.bf16.msra.mxu0 %v3717
        %3939 = vmatprep.subr.bf16.mxu0 %v3720
        %3940 = vmatpush1.bf16.msra.mxu0 %v3719
        %3941 = vmatprep.subr.bf16.mxu0 %v3722
        %3942 = vmatpush1.bf16.msra.mxu0 %v3721
        %3943 = vmatprep.subr.bf16.mxu0 %v3724
        %3944 = vmatpush1.bf16.msra.mxu0 %v3723
        %3945 = vmatprep.subr.bf16.mxu0 %v3726
        %3946 = vmatpush1.bf16.msra.mxu0 %v3725
        %3947 = vmatprep.subr.bf16.mxu0 %v3728
        %3948 = vmatpush1.bf16.msra.mxu0 %v3727
        %3949 = vmatprep.subr.bf16.mxu0 %v3730
        %3950 = vmatpush1.bf16.msra.mxu0 %v3729
        %3951 = vmatprep.subr.bf16.mxu0 %v3732
        %3952 = vmatpush1.bf16.msra.mxu0 %v3731
        %3953 = vmatprep.mubr.bf16.mxu0 %v3783
        %3954 = vmatmul.mubr.bf16.gmra.mrb[0].mxu0 %v3782
        %v3955 = vpop.f32.mrb[0].mxu0
        %v3956 = vadd.f32 %v3915, %v3955
        %v3957 = vpop.f32.mrb[0].mxu0
        %v3958 = vadd.f32 %v3917, %v3957
        %v3959 = vpop.f32.mrb[0].mxu0
        %v3960 = vpop.f32.mrb[0].mxu0
        %3961 = vdwg.mxu0
        %3962 = vmatprep.subr.bf16.mxu0 %v3734
        %3963 = vmatpush1.bf16.msra.mxu0 %v3733
        %3964 = vmatprep.subr.bf16.mxu0 %v3736
        %3965 = vmatpush1.bf16.msra.mxu0 %v3735
        %3966 = vmatprep.subr.bf16.mxu0 %v3738
        %3967 = vmatpush1.bf16.msra.mxu0 %v3737
        %3968 = vmatprep.subr.bf16.mxu0 %v3740
        %3969 = vmatpush1.bf16.msra.mxu0 %v3739
        %3970 = vmatprep.subr.bf16.mxu0 %v3742
        %3971 = vmatpush1.bf16.msra.mxu0 %v3741
        %3972 = vmatprep.subr.bf16.mxu0 %v3744
        %3973 = vmatpush1.bf16.msra.mxu0 %v3743
        %3974 = vmatprep.subr.bf16.mxu0 %v3746
        %3975 = vmatpush1.bf16.msra.mxu0 %v3745
        %3976 = vmatprep.subr.bf16.mxu0 %v3748
        %3977 = vmatpush1.bf16.msra.mxu0 %v3747
        %3978 = vmatprep.subr.bf16.mxu0 %v3750
        %3979 = vmatpush1.bf16.msra.mxu0 %v3749
        %3980 = vmatprep.subr.bf16.mxu0 %v3752
        %3981 = vmatpush1.bf16.msra.mxu0 %v3751
        %3982 = vmatprep.subr.bf16.mxu0 %v3754
        %3983 = vmatpush1.bf16.msra.mxu0 %v3753
        %3984 = vmatprep.subr.bf16.mxu0 0
        %3985 = vmatpush1.bf16.msra.mxu0 0
        %3986 = vmatprep.subr.bf16.mxu0 0
        %3987 = vmatpush1.bf16.msra.mxu0 0
        %3988 = vmatprep.subr.bf16.mxu0 0
        %3989 = vmatpush1.bf16.msra.mxu0 0
        %3990 = vmatprep.subr.bf16.mxu0 0
        %3991 = vmatpush1.bf16.msra.mxu0 0
        %3992 = vmatprep.subr.bf16.mxu0 0
        %3993 = vmatpush1.bf16.msra.mxu0 0
        %3994 = vmatprep.mubr.bf16.mxu0 %v3796
        %3995 = vmatmul.mubr.bf16.gmra.mrb[0].mxu0 %v3784
        %v3996 = vpop.f32.mrb[0].mxu0
        %v3997 = vadd.f32 %v3956, %v3996
        %v3998 = vpop.f32.mrb[0].mxu0
        %v3999 = vadd.f32 %v3958, %v3998
        %v4000 = vpop.f32.mrb[0].mxu0
        %v4001 = vpop.f32.mrb[0].mxu0
        %4002 = vdwg.mxu0
        %v4003 = vmax.f32 %v3997, 0.0
        %v4004 = vmax.f32 %v3999, 0.0
        %v4005 = vpack.c.bf16 %v4003, %v4003
        %v4006 = vpack.c.bf16 %v4004, %v4004
        %v4007 = vpack.c.bf16 %v2433, %v2432
        %v4008 = vpack.c.bf16 %v2435, %v2434
        %v4009 = vpack.c.bf16 %v2437, %v2436
        %v4010 = vpack.c.bf16 %v2439, %v2438
        %v4011 = vpack.c.bf16 %v2441, %v2440
        %v4012 = vpack.c.bf16 %v2443, %v2442
        %v4013 = vpack.c.bf16 %v2445, %v2444
        %v4014 = vpack.c.bf16 %v2447, %v2446
        %v4015 = vpack.c.bf16 %v2449, %v2448
        %v4016 = vpack.c.bf16 %v2451, %v2450
        %v4017 = vpack.c.bf16 %v2453, %v2452
        %v4018 = vpack.c.bf16 %v2455, %v2454
        %v4019 = vpack.c.bf16 %v2457, %v2456
        %v4020 = vpack.c.bf16 %v2459, %v2458
        %v4021 = vpack.c.bf16 %v2461, %v2460
        %v4022 = vpack.c.bf16 %v2463, %v2462
        %v4024 = vlaneseq
        %v4025 = vshrl.u32 %v4024, 7
        %v4026 = vsub.s32 0, %v4025
        %v4027 = vrot.slane %v2468, %v4026
        %4029 = vmatprep.subr.bf16.mxu0 0
        %4030 = vmatpush1.bf16.msra.mxu0 %v4007
        %4031 = vmatprep.subr.bf16.mxu0 0
        %4032 = vmatpush1.bf16.msra.mxu0 %v4008
        %4033 = vmatprep.subr.bf16.mxu0 0
        %4034 = vmatpush1.bf16.msra.mxu0 %v4009
        %4035 = vmatprep.subr.bf16.mxu0 0
        %4036 = vmatpush1.bf16.msra.mxu0 %v4010
        %4037 = vmatprep.subr.bf16.mxu0 0
        %4038 = vmatpush1.bf16.msra.mxu0 %v4011
        %4039 = vmatprep.subr.bf16.mxu0 0
        %4040 = vmatpush1.bf16.msra.mxu0 %v4012
        %4041 = vmatprep.subr.bf16.mxu0 0
        %4042 = vmatpush1.bf16.msra.mxu0 %v4013
        %4043 = vmatprep.subr.bf16.mxu0 0
        %4044 = vmatpush1.bf16.msra.mxu0 %v4014
        %4045 = vmatprep.subr.bf16.mxu0 0
        %4046 = vmatpush1.bf16.msra.mxu0 %v4015
        %4047 = vmatprep.subr.bf16.mxu0 0
        %4048 = vmatpush1.bf16.msra.mxu0 %v4016
        %4049 = vmatprep.subr.bf16.mxu0 0
        %4050 = vmatpush1.bf16.msra.mxu0 %v4017
        %4051 = vmatprep.subr.bf16.mxu0 0
        %4052 = vmatpush1.bf16.msra.mxu0 %v4018
        %4053 = vmatprep.subr.bf16.mxu0 0
        %4054 = vmatpush1.bf16.msra.mxu0 %v4019
        %4055 = vmatprep.subr.bf16.mxu0 0
        %4056 = vmatpush1.bf16.msra.mxu0 %v4020
        %4057 = vmatprep.subr.bf16.mxu0 0
        %4058 = vmatpush1.bf16.msra.mxu0 %v4021
        %4059 = vmatprep.subr.bf16.mxu0 0
        %4060 = vmatpush1.bf16.msra.mxu0 %v4022
        %4061 = vmatprep.mubr.bf16.mxu0 %v4006
        %4062 = vmatmul.mubr.bf16.gmra.mrb[0].mxu0 %v4005
        %v4063 = vpop.f32.mrb[0].mxu0
        %v4064 = vadd.f32 %v4027, %v4063
        %v4065 = vpop.f32.mrb[0].mxu0
        %v4066 = vpop.f32.mrb[0].mxu0
        %v4067 = vpop.f32.mrb[0].mxu0
        %4068 = vdwg.mxu0
        %v4069 = vmul.f32 %v4064, %v4064
        %v4070 = vsel %vm3598, %v4069, 0.0
        %4071 = vadd.xlane.f32.xlu0 %v4070
        %v4072 = vpop.xlane.xlu0 %4071
        %v4073 = vmax.f32 %v4072, 1e-24
        %v4074 = vrsqrt.pop %v4073
        %v4075 = vmul.f32 %v4064, %v4074
        %v4076 = vmul.f32 %v3604, %v4075
        %v4077 = vsel %vm3598, %v4076, 0.0
        %4078 = vadd.xlane.f32.xlu0 %v4077
        %v4079 = vpop.xlane.xlu0 %4078
        %v4080 = vmul.f32 %v4079, 14.285714
        %vm4081 = vcmask 3072
        %4082 = vst.msk [vmem:[%s788] sm:$0xf] %vm4081, %v4080
        %v4083 = vld [vmem:[%s784] sm:$0xff]
        %v4084 = vld [vmem:[%s784 + $0x8] sm:$0xff]
        %v4085 = vld [vmem:[%s784 + $0x10] sm:$0xff]
        %v4086 = vld [vmem:[%s784 + $0x18] sm:$0xff]
        %v4087 = vld [vmem:[%s784 + $0x20] sm:$0xff]
        %v4088 = vld [vmem:[%s784 + $0x28] sm:$0xff]
        %v4089 = vld [vmem:[%s784 + $0x30] sm:$0xff]
        %v4090 = vld [vmem:[%s784 + $0x38] sm:$0xff]
        %v4091 = vld [vmem:[%s784 + $0x40] sm:$0xff]
        %v4092 = vld [vmem:[%s784 + $0x48] sm:$0xff]
        %v4093 = vld [vmem:[%s784 + $0x50] sm:$0xff]
        %v4094 = vld [vmem:[%s784 + $0x58] sm:$0xff]
        %v4095 = vld [vmem:[%s784 + $0x60] sm:$0xff]
        %v4096 = vld [vmem:[%s784 + $0x68] sm:$0xff]
        %v4097 = vld [vmem:[%s784 + $0x70] sm:$0xff]
        %v4098 = vld [vmem:[%s784 + $0x78] sm:$0xff]
        %v4099 = vld [vmem:[%s784 + $0x80] sm:$0xff]
        %v4100 = vld [vmem:[%s784 + $0x88] sm:$0xff]
        %v4101 = vld [vmem:[%s784 + $0x90] sm:$0xff]
        %v4102 = vld [vmem:[%s784 + $0x98] sm:$0xff]
        %v4103 = vld [vmem:[%s784 + $0xa0] sm:$0xff]
        %v4104 = vld [vmem:[%s784 + $0xa8] sm:$0xff]
        %v4105 = vld [vmem:[%s784 + $0xb0] sm:$0xff]
        %v4106 = vld [vmem:[%s784 + $0xb8] sm:$0xff]
        %v4107 = vld [vmem:[%s784 + $0xc0] sm:$0xff]
        %v4108 = vld [vmem:[%s784 + $0xc8] sm:$0xff]
        %v4109 = vld [vmem:[%s784 + $0xd0] sm:$0xff]
        %v4110 = vld [vmem:[%s784 + $0xd8] sm:$0xff]
        %v4111 = vld [vmem:[%s784 + $0xe0] sm:$0xff]
        %v4112 = vld [vmem:[%s784 + $0xe8] sm:$0xff]
        %v4113 = vld [vmem:[%s784 + $0xf0] sm:$0xff]
        %v4114 = vld [vmem:[%s784 + $0xf8] sm:$0xff]
        %4115 = vmatprep.subr.mxu0 %v4084
        %4116 = vmatpush1.msra.mxu0 %v4083
        %4117 = vmatprep.subr.mxu0 %v4086
        %4118 = vmatpush1.msra.mxu0 %v4085
        %4119 = vmatprep.subr.mxu0 %v4088
        %4120 = vmatpush1.msra.mxu0 %v4087
        %4121 = vmatprep.subr.mxu0 %v4090
        %4122 = vmatpush1.msra.mxu0 %v4089
        %4123 = vmatprep.subr.mxu0 %v4092
        %4124 = vmatpush1.msra.mxu0 %v4091
        %4125 = vmatprep.subr.mxu0 %v4094
        %4126 = vmatpush1.msra.mxu0 %v4093
        %4127 = vmatprep.subr.mxu0 %v4096
        %4128 = vmatpush1.msra.mxu0 %v4095
        %4129 = vmatprep.subr.mxu0 %v4098
        %4130 = vmatpush1.msra.mxu0 %v4097
        %4131 = vmatprep.subr.mxu0 %v4100
        %4132 = vmatpush1.msra.mxu0 %v4099
        %4133 = vmatprep.subr.mxu0 %v4102
        %4134 = vmatpush1.msra.mxu0 %v4101
        %4135 = vmatprep.subr.mxu0 %v4104
        %4136 = vmatpush1.msra.mxu0 %v4103
        %4137 = vmatprep.subr.mxu0 %v4106
        %4138 = vmatpush1.msra.mxu0 %v4105
        %4139 = vmatprep.subr.mxu0 %v4108
        %4140 = vmatpush1.msra.mxu0 %v4107
        %4141 = vmatprep.subr.mxu0 %v4110
        %4142 = vmatpush1.msra.mxu0 %v4109
        %4143 = vmatprep.subr.mxu0 %v4112
        %4144 = vmatpush1.msra.mxu0 %v4111
        %4145 = vmatprep.subr.mxu0 %v4114
        %4146 = vmatpush1.msra.mxu0 %v4113
        %4147 = vmatprep.subr.mxu0 0.0
        %4148 = vmatpush1.msra.mxu0 0.0
        %4149 = vmatprep.subr.mxu0 0.0
        %4150 = vmatpush1.msra.mxu0 0.0
        %4151 = vmatprep.subr.mxu0 0.0
        %4152 = vmatpush1.msra.mxu0 0.0
        %4153 = vmatprep.subr.mxu0 0.0
        %4154 = vmatpush1.msra.mxu0 0.0
        %4155 = vmatprep.subr.mxu0 0.0
        %4156 = vmatpush1.msra.mxu0 0.0
        %4157 = vmatprep.subr.mxu0 0.0
        %4158 = vmatpush1.msra.mxu0 0.0
        %4159 = vmatprep.subr.mxu0 0.0
        %4160 = vmatpush1.msra.mxu0 0.0
        %4161 = vmatprep.subr.mxu0 0.0
        %4162 = vmatpush1.msra.mxu0 0.0
        %4163 = vmatprep.subr.mxu0 0.0
        %4164 = vmatpush1.msra.mxu0 0.0
        %4165 = vmatprep.subr.mxu0 0.0
        %4166 = vmatpush1.msra.mxu0 0.0
        %4167 = vmatprep.subr.mxu0 0.0
        %4168 = vmatpush1.msra.mxu0 0.0
        %4169 = vmatprep.subr.mxu0 0.0
        %4170 = vmatpush1.msra.mxu0 0.0
        %4171 = vmatprep.subr.mxu0 0.0
        %4172 = vmatpush1.msra.mxu0 0.0
        %4173 = vmatprep.subr.mxu0 0.0
        %4174 = vmatpush1.msra.mxu0 0.0
        %4175 = vmatprep.subr.mxu0 0.0
        %4176 = vmatpush1.msra.mxu0 0.0
        %4177 = vmatprep.subr.mxu0 0.0
        %4178 = vmatpush1.msra.mxu0 0.0
        %4179 = vmatprep.mubr.f32.mxu0 0.0
        %4180 = vmatmul.mubr.f32.gmra.mrb[0].mxu0 %v3604
        %v4181 = vpop.f32.mrb[0].mxu0
        %v4182 = vadd.f32 0.0, %v4181
        %v4183 = vpop.f32.mrb[0].mxu0
        %v4184 = vadd.f32 0.0, %v4183
        %4185 = vdwg.mxu0
        %v4186 = vmul.f32 %v4182, 14.285714
        %v4187 = vmul.f32 %v4184, 14.285714
        %v4190 = vcombine.low %v4186, %v4187
        %4192 = vst [vmem:[%s793] sm:$0xff] %v4190
        %4193 = vst [vmem:[%s797] sm:$0xf] %v4075
        %p4194 = scmp.lt.s32.totalorder %s43, 2
        %s4195 = scalar_select %p4194, %s43, 2
        %s4196 = smul.addr %s4195, 4
        %s4197 = scalar_lea.vmem %s10, %s4196
        %p4198 = scmp.lt.s32.totalorder %s43, 2
        %s4199 = scalar_select %p4198, %s43, 2
        %s4200 = smul.addr %s4199, 2
        %s4201 = smul.addr %s4200, 4
        %s4202 = scalar_lea.vmem %s11, %s4201
        %p4203 = scmp.lt.s32.totalorder %s43, 2
        %s4204 = scalar_select %p4203, %s43, 2
        %s4205 = smul.addr %s4204, 4
        %s4206 = scalar_lea.vmem %s12, %s4205
        %s4207 = sand.u32 %s389, 1
        %s4208 = scalar_lea.sflag [#allocation4], %s4207
        %s4209 = sand.u32 %s389, 1
        %s4210 = smul.addr %s4209, 2400
        %s4211 = scalar_lea.vmem [#allocation8], %s4210
        %s4212 = sand.u32 %s43, 1
        %s4213 = scalar_lea.sflag [#allocation10], %s4212
        %s4214 = sand.u32 %s415, 1
        %s4215 = smul.addr %s4214, 2
        %s4216 = scalar_lea.vmem [#allocation9], %s4215
        %s4217 = sand.u32 %s43, 1
        %s4218 = scalar_lea.sflag [#allocation10], %s4217
        %s4219 = sand.u32 %s441, 1
        %s4220 = smul.addr %s4219, 256
        %s4221 = scalar_lea.vmem [#allocation11], %s4220
        %s4222 = sand.u32 %s467, 1
        %s4223 = scalar_lea.sflag [#allocation13], %s4222
        %s4224 = sand.u32 %s467, 1
        %s4225 = scalar_lea.vmem [#allocation12], %s4224
        // Predicated region
        $region73: #{crossclr_forward.3} parent=59 // pred_check
          %p4226 = pneg %p321
        $region74: #{crossclr_forward.3} parent=59 // pred_check_branch
          %4228 = sbr.rel (%p4226) target = $region76
        $region75: #{crossclr_forward.3} parent=59 // pred_region
          _
        $region76: #{crossclr_forward.3} parent=59 // pred_fallthru
          _
        // Predicated region
        $region77: #{crossclr_forward.3} parent=59 // pred_check
          %p4229 = pneg %p347
        $region78: #{crossclr_forward.3} parent=59 // pred_check_branch
          %4231 = sbr.rel (%p4229) target = $region80
        $region79: #{crossclr_forward.3} parent=59 // pred_region
          _
        $region80: #{crossclr_forward.3} parent=59 // pred_fallthru
          _
        // Predicated region
        $region81: #{crossclr_forward.3} parent=59 // pred_check
          %p4232 = pneg %p373
        $region82: #{crossclr_forward.3} parent=59 // pred_check_branch
          %4234 = sbr.rel (%p4232) target = $region84
        $region83: #{crossclr_forward.3} parent=59 // pred_region
          _
        $region84: #{crossclr_forward.3} parent=59 // pred_fallthru
          _
        // Predicated region
        $region85: #{crossclr_forward.3} parent=59 // pred_check
          %p4235 = pneg %p399
        $region86: #{crossclr_forward.3} parent=59 // pred_check_branch
          %4237 = sbr.rel (%p4235) target = $region88
        $region87: #{crossclr_forward.3} parent=59 // pred_region
          %s4239 = ssub.s32 38400, 38400
          %4240 = vsyncadd %s4208, %s4239
          %s4241 = smul.addr %s43, 300
          %s4242 = smul.addr %s4241, 128
          %s4243 = scalar_lea.hbm %s13, %s4242
          %s4244 = sshll.u32 %s4211, 4
          %s4245 = int_to_ptr.vmem [resolvable:$true] %s4244
          %4250 = dma.vmem_to_hbm [thread:$0]  %s4245, 38400, %s4243, %s4208, 256, 256, 16
        $region88: #{crossclr_forward.3} parent=59 // pred_fallthru
          _
        // Predicated region
        $region89: #{crossclr_forward.3} parent=59 // pred_check
          %p4251 = pneg %p425
        $region90: #{crossclr_forward.3} parent=59 // pred_check_branch
          %4253 = sbr.rel (%p4251) target = $region92
        $region91: #{crossclr_forward.3} parent=59 // pred_region
          %s4255 = ssub.s32 32, 32
          %4256 = vsyncadd %s4213, %s4255
          %s4257 = smul.addr %s43, 2
          %s4258 = smul.addr %s4257, 16
          %s4259 = scalar_lea.hbm %s14, %s4258
          %s4261 = sshll.u32 %s4216, 4
          %s4262 = int_to_ptr.vmem [resolvable:$true] %s4261
          %4264 = dma.vmem_to_hbm [thread:$0]  %s4262, 32, %s4259, %s4213
        $region92: #{crossclr_forward.3} parent=59 // pred_fallthru
          _
        // Predicated region
        $region93: #{crossclr_forward.3} parent=59 // pred_check
          %p4265 = pneg %p451
        $region94: #{crossclr_forward.3} parent=59 // pred_check_branch
          %4267 = sbr.rel (%p4265) target = $region96
        $region95: #{crossclr_forward.3} parent=59 // pred_region
          %s4269 = ssub.s32 4096, 4096
          %4270 = vsyncadd %s4218, %s4269
          %s4271 = smul.addr %s43, 32
          %s4272 = smul.addr %s4271, 128
          %s4273 = scalar_lea.hbm %s15, %s4272
          %s4274 = sshll.u32 %s4221, 4
          %s4275 = int_to_ptr.vmem [resolvable:$true] %s4274
          %4280 = dma.vmem_to_hbm [thread:$0]  %s4275, 4096, %s4273, %s4218, 128, 128, 8
        $region96: #{crossclr_forward.3} parent=59 // pred_fallthru
          _
        // Predicated region
        $region97: #{crossclr_forward.3} parent=59 // pred_check
          %p4281 = pneg %p477
        $region98: #{crossclr_forward.3} parent=59 // pred_check_branch
          %4283 = sbr.rel (%p4281) target = $region100
        $region99: #{crossclr_forward.3} parent=59 // pred_region
          %s4285 = ssub.s32 16, 16
          %4286 = vsyncadd %s4223, %s4285
          %s4287 = smul.addr %s43, 16
          %s4288 = scalar_lea.hbm %s16, %s4287
          %s4290 = sshll.u32 %s4225, 4
          %s4291 = int_to_ptr.vmem [resolvable:$true] %s4290
          %4293 = dma.vmem_to_hbm [thread:$0]  %s4291, 16, %s4288, %s4223
        $region100: #{crossclr_forward.3} parent=59 // pred_fallthru
          _
      $region60: #{crossclr_forward.3} parent=5 // pred_fallthru
        _
      %p4294 = scmp.le.s32.totalorder 2, %s38
      // Predicated region
      $region101: #{crossclr_forward.3} parent=5 // pred_check
        %p4295 = pneg %p4294
      $region102: #{crossclr_forward.3} parent=5 // pred_check_branch
        %4297 = sbr.rel (%p4295) target = $region104
      $region103: #{crossclr_forward.3} parent=5 // pred_region
        %s4298 = ssub.s32 %s38, 2
        // Predicated region
        $region105: #{crossclr_forward.3} parent=103 // pred_check
          %p4299 = pneg %p327
        $region106: #{crossclr_forward.3} parent=103 // pred_check_branch
          %4301 = sbr.rel (%p4299) target = $region108
        $region107: #{crossclr_forward.3} parent=103 // pred_region
          %p4302 = scmp.lt.s32.totalorder %s44, 2
          %s4303 = scalar_select %p4302, %s44, 2
          %s4304 = smul.addr %s4303, 4
          %s4305 = scalar_lea.vmem %s10, %s4304
        $region108: #{crossclr_forward.3} parent=103 // pred_fallthru
          _
        // Predicated region
        $region109: #{crossclr_forward.3} parent=103 // pred_check
          %p4306 = pneg %p353
        $region110: #{crossclr_forward.3} parent=103 // pred_check_branch
          %4308 = sbr.rel (%p4306) target = $region112
        $region111: #{crossclr_forward.3} parent=103 // pred_region
          %p4309 = scmp.lt.s32.totalorder %s44, 2
          %s4310 = scalar_select %p4309, %s44, 2
          %s4311 = smul.addr %s4310, 2
          %s4312 = smul.addr %s4311, 4
          %s4313 = scalar_lea.vmem %s11, %s4312
        $region112: #{crossclr_forward.3} parent=103 // pred_fallthru
          _
        // Predicated region
        $region113: #{crossclr_forward.3} parent=103 // pred_check
          %p4314 = pneg %p379
        $region114: #{crossclr_forward.3} parent=103 // pred_check_branch
          %4316 = sbr.rel (%p4314) target = $region116
        $region115: #{crossclr_forward.3} parent=103 // pred_region
          %p4317 = scmp.lt.s32.totalorder %s44, 2
          %s4318 = scalar_select %p4317, %s44, 2
          %s4319 = smul.addr %s4318, 4
          %s4320 = scalar_lea.vmem %s12, %s4319
        $region116: #{crossclr_forward.3} parent=103 // pred_fallthru
          _
        // Predicated region
        $region117: #{crossclr_forward.3} parent=103 // pred_check
          %p4321 = pneg %p405
        $region118: #{crossclr_forward.3} parent=103 // pred_check_branch
          %4323 = sbr.rel (%p4321) target = $region120
        $region119: #{crossclr_forward.3} parent=103 // pred_region
          %s4324 = sand.u32 %s390, 1
          %s4325 = scalar_lea.sflag [#allocation4], %s4324
          %s4326 = sand.u32 %s390, 1
          %s4327 = smul.addr %s4326, 2400
          %s4328 = scalar_lea.vmem [#allocation8], %s4327
          %4329 = dma.done %s4325, 38400
        $region120: #{crossclr_forward.3} parent=103 // pred_fallthru
          _
        // Predicated region
        $region121: #{crossclr_forward.3} parent=103 // pred_check
          %p4330 = pneg %p431
        $region122: #{crossclr_forward.3} parent=103 // pred_check_branch
          %4332 = sbr.rel (%p4330) target = $region124
        $region123: #{crossclr_forward.3} parent=103 // pred_region
          %s4333 = sand.u32 %s44, 1
          %s4334 = scalar_lea.sflag [#allocation10], %s4333
          %s4335 = sand.u32 %s416, 1
          %s4336 = smul.addr %s4335, 2
          %s4337 = scalar_lea.vmem [#allocation9], %s4336
          %4338 = dma.done %s4334, 32
        $region124: #{crossclr_forward.3} parent=103 // pred_fallthru
          _
        // Predicated region
        $region125: #{crossclr_forward.3} parent=103 // pred_check
          %p4339 = pneg %p457
        $region126: #{crossclr_forward.3} parent=103 // pred_check_branch
          %4341 = sbr.rel (%p4339) target = $region128
        $region127: #{crossclr_forward.3} parent=103 // pred_region
          %s4342 = sand.u32 %s44, 1
          %s4343 = scalar_lea.sflag [#allocation10], %s4342
          %s4344 = sand.u32 %s442, 1
          %s4345 = smul.addr %s4344, 256
          %s4346 = scalar_lea.vmem [#allocation11], %s4345
          %4347 = dma.done %s4343, 4096
        $region128: #{crossclr_forward.3} parent=103 // pred_fallthru
          _
        // Predicated region
        $region129: #{crossclr_forward.3} parent=103 // pred_check
          %p4348 = pneg %p483
        $region130: #{crossclr_forward.3} parent=103 // pred_check_branch
          %4350 = sbr.rel (%p4348) target = $region132
        $region131: #{crossclr_forward.3} parent=103 // pred_region
          %s4351 = sand.u32 %s468, 1
          %s4352 = scalar_lea.sflag [#allocation13], %s4351
          %s4353 = sand.u32 %s468, 1
          %s4354 = scalar_lea.vmem [#allocation12], %s4353
          %4355 = dma.done %s4352, 16
        $region132: #{crossclr_forward.3} parent=103 // pred_fallthru
          _
      $region104: #{crossclr_forward.3} parent=5 // pred_fallthru
        _
    $region6: #{crossclr_forward.3} parent=1 // loop_footer
      %s42 = sadd.s32 1, %s38
    $region7: #{crossclr_forward.3} parent=1 // loop_footer_branch
      %37 = sbr.rel target = $region3
    $region8: #{crossclr_forward.3} parent=1 // loop_exit
      _
    %4356 = vsyncpa [#allocation3], 1
    %s4357 = scalar_lea.sflag [#allocation3], 1
    %4358 = vsyncpa %s4357, 1
    %4359 = vsyncpa [#allocation6], 1
    %s4360 = scalar_lea.sflag [#allocation6], 1
    %4361 = vsyncpa %s4360, 1
    %4362 = vsyncpa [#allocation4], 1
    %s4363 = scalar_lea.sflag [#allocation4], 1
    %4364 = vsyncpa %s4363, 1
    %4365 = vsyncpa [#allocation10], 1
    %s4366 = scalar_lea.sflag [#allocation10], 1
    %4367 = vsyncpa %s4366, 1
    %4368 = vsyncpa [#allocation13], 1
    %s4369 = scalar_lea.sflag [#allocation13], 1
    %4370 = vsyncpa %s4369, 1

</llo_original>
